<compile_context>
chip_gen: v6e
topology: v6e:2x2x1
jax: 0.10.0
libtpu: 0.0.40
codegen_flags: <defaults>
</compile_context>

<pallas_src>
import jax
import jax.numpy as jnp
from jax.experimental import pallas as pl
from jax.experimental.pallas import tpu as pltpu

# ---------------------------------------------------------------------------
# Static model geometry (fixed by the PyTorch module: Linear(24*24*10, 100)).
H = W = 28
KH = KW = 3
C1, C2 = 20, 10          # conv1 / conv2 output channels
FC_H, FC_O = 100, 10     # FC hidden / output widths

M2E = (H - 4) * W        # 672: conv2 output cols (24 rows kept at full width 28)
M1E = M2E + 2 * W + 2    # 730: conv1 cols needed by conv2's shifted reads
L0 = M1E + 2 * W + 2     # 788: zero-padded flattened input length
KFC = C2 * M2E           # 6720: FC contraction incl. zero-weight padding cols


# ------------------------- Kernel A: fused conv stack ----------------------- #
def _conv_kernel(x_ref, w1_ref, b1_ref, w2_ref, b2_ref, o_ref, y1_scr):
    # conv1 (Cin=1) + tanh: 9 shifted VPU multiply-adds, channel-major output.
    acc1 = jnp.zeros((C1, M1E), jnp.float32)
    for dy in range(KH):
        for dx in range(KW):
            tap = dy * KW + dx
            xs = x_ref[0, :, pl.ds(dy * W + dx, M1E)]          # (1, M1E)
            acc1 = acc1 + w1_ref[tap] * xs                     # (C1,1)*(1,M1E)
    y1_scr[...] = jnp.tanh(acc1 + b1_ref[...])                 # (C1, M1E)

    # conv2 (Cin=20) + tanh: 9 shifted (C2 x C1) @ (C1 x M2E) MXU matmuls.
    acc2 = jnp.zeros((C2, M2E), jnp.float32)
    for dy in range(KH):
        for dx in range(KW):
            tap = dy * KW + dx
            y1s = y1_scr[:, pl.ds(dy * W + dx, M2E)]           # (C1, M2E)
            acc2 = acc2 + jnp.dot(w2_ref[tap], y1s,
                                  preferred_element_type=jnp.float32)
    o_ref[0] = jnp.tanh(acc2 + b2_ref[...])                    # (C2, M2E) lane-dense


def conv_pallas(x_flat, w1m, b1c, w2m, b2c):
    n = x_flat.shape[0]
    flops = n * (2 * 9 * C1 * M1E + 2 * 9 * C2 * C1 * M2E)
    trans = n * (C1 * M1E + C2 * M2E)
    byts = 4 * (n * (L0 + C2 * M2E) + w1m.size + b1c.size + w2m.size + b2c.size)
    return pl.pallas_call(
        _conv_kernel,
        out_shape=jax.ShapeDtypeStruct((n, C2, M2E), jnp.float32),
        grid=(n,),
        in_specs=[
            pl.BlockSpec((1, 1, L0), lambda b: (b, 0, 0)),
            pl.BlockSpec((KH * KW, C1, 1), lambda b: (0, 0, 0)),   # resident
            pl.BlockSpec((C1, 1), lambda b: (0, 0)),               # resident
            pl.BlockSpec((KH * KW, C2, C1), lambda b: (0, 0, 0)),  # resident
            pl.BlockSpec((C2, 1), lambda b: (0, 0)),               # resident
        ],
        out_specs=pl.BlockSpec((1, C2, M2E), lambda b: (b, 0, 0)),
        scratch_shapes=[pltpu.VMEM((C1, M1E), jnp.float32)],
        compiler_params=pltpu.CompilerParams(
            dimension_semantics=("parallel",),
            vmem_limit_bytes=32 * 1024 * 1024),
        cost_estimate=pl.CostEstimate(flops=flops, transcendentals=trans,
                                      bytes_accessed=byts),
    )(x_flat, w1m, b1c, w2m, b2c)


# --------------------------- Kernel B: fused FC tail ------------------------ #
def _fc_kernel(y_ref, w3_ref, b3_ref, w4_ref, b4_ref, o_ref):
    h = jnp.dot(y_ref[...], w3_ref[...], preferred_element_type=jnp.float32)
    h = jnp.tanh(h + b3_ref[...])
    o_ref[...] = (jnp.dot(h, w4_ref[...], preferred_element_type=jnp.float32)
                  + b4_ref[...]).astype(o_ref.dtype)


def fc_pallas(y, w3p, b3r, w4t, b4r):
    # TODO(synk): for much larger batch/hidden sizes, also tile the 6720-wide
    # contraction with an "arbitrary" grid axis + f32 VMEM accumulator.
    n, k = y.shape
    tm = n if n <= 128 else 128
    n_pad = tm * pl.cdiv(n, tm)
    if n_pad != n:
        y = jnp.pad(y, ((0, n_pad - n), (0, 0)))
    flops = 2 * n_pad * (k * FC_H + FC_H * FC_O)
    trans = n_pad * FC_H
    byts = 4 * (n_pad * k + k * FC_H + FC_H + FC_H * FC_O + FC_O + n_pad * FC_O)
    out = pl.pallas_call(
        _fc_kernel,
        out_shape=jax.ShapeDtypeStruct((n_pad, FC_O), jnp.float32),
        grid=(n_pad // tm,),
        in_specs=[
            pl.BlockSpec((tm, k), lambda i: (i, 0)),
            pl.BlockSpec((k, FC_H), lambda i: (0, 0)),   # w3 stays resident
            pl.BlockSpec((1, FC_H), lambda i: (0, 0)),
            pl.BlockSpec((FC_H, FC_O), lambda i: (0, 0)),
            pl.BlockSpec((1, FC_O), lambda i: (0, 0)),
        ],
        out_specs=pl.BlockSpec((tm, FC_O), lambda i: (i, 0)),
        compiler_params=pltpu.CompilerParams(
            dimension_semantics=("parallel",),
            vmem_limit_bytes=32 * 1024 * 1024),
        cost_estimate=pl.CostEstimate(flops=flops, transcendentals=trans,
                                      bytes_accessed=byts),
    )(y, w3p, b3r, w4t, b4r)
    return out[:n]


# --------------------- one-time parameter re-layout (host/eager) ------------ #
def prepare_params(params):
    w1, b1, w2, b2, w3, b3, w4, b4 = params
    # conv1 weights -> (tap, Cout, 1), tap = dy*3+dx
    w1m = jnp.transpose(w1, (2, 3, 0, 1)).reshape(KH * KW, C1, 1)
    b1c = b1.reshape(C1, 1)
    # conv2 weights -> (tap, Cout, Cin)
    w2m = jnp.transpose(w2, (2, 3, 0, 1)).reshape(KH * KW, C2, C1)
    b2c = b2.reshape(C2, 1)
    # fc1 weights: permute the 5760 contraction into kernel A's (10,24,28)
    # activation layout and zero-pad the 4 garbage columns per row.
    w3p = jnp.transpose(w3.reshape(FC_H, C2, H - 4, H - 4), (1, 2, 3, 0))
    w3p = jnp.pad(w3p, ((0, 0), (0, 0), (0, W - (H - 4)), (0, 0)))
    w3p = w3p.reshape(KFC, FC_H)
    b3r = b3.reshape(1, FC_H)
    w4t = w4.T                                   # (100, 10)
    b4r = b4.reshape(1, FC_O)
    f32 = jnp.float32
    return (w1m.astype(f32), b1c.astype(f32), w2m.astype(f32), b2c.astype(f32),
            w3p.astype(f32), b3r.astype(f32), w4t.astype(f32), b4r.astype(f32))


# ------------------------------- forward pass ------------------------------- #
@jax.jit
def model_forward(x_nchw, prep):
    w1m, b1c, w2m, b2c, w3p, b3r, w4t, b4r = prep
    n = x_nchw.shape[0]
    x_flat = x_nchw.astype(jnp.float32).reshape(n, 1, H * W)
    x_flat = jnp.pad(x_flat, ((0, 0), (0, 0), (0, L0 - H * W)))   # (N,1,788)
    y2 = conv_pallas(x_flat, w1m, b1c, w2m, b2c)                  # (N,10,672)
    return fc_pallas(y2.reshape(n, KFC), w3p, b3r, w4t, b4r)      # (N,10)


@jax.jit
def reference_forward(x_nchw, params):
    """Pure-JAX reference (mirrors the PyTorch module)."""
    w1, b1, w2, b2, w3, b3, w4, b4 = params
    dn = ("NCHW", "OIHW", "NCHW")
    y = jax.lax.conv_general_dilated(x_nchw, w1, (1, 1), "VALID", dimension_numbers=dn)
    y = jnp.tanh(y + b1[None, :, None, None])
    y = jax.lax.conv_general_dilated(y, w2, (1, 1), "VALID", dimension_numbers=dn)
    y = jnp.tanh(y + b2[None, :, None, None])
    y = y.reshape(y.shape[0], -1)
    y = jnp.tanh(y @ w3.T + b3)
    return y @ w4.T + b4


def init_params(key):
    ks = jax.random.split(key, 8)
    w1 = jax.random.normal(ks[0], (C1, 1, 3, 3), jnp.float32) * 0.2
    b1 = jax.random.normal(ks[1], (C1,), jnp.float32) * 0.05
    w2 = jax.random.normal(ks[2], (C2, C1, 3, 3), jnp.float32) * 0.05
    b2 = jax.random.normal(ks[3], (C2,), jnp.float32) * 0.05
    w3 = jax.random.normal(ks[4], (FC_H, (H - 4) * (H - 4) * C2), jnp.float32) * 0.01
    b3 = jax.random.normal(ks[5], (FC_H,), jnp.float32) * 0.05
    w4 = jax.random.normal(ks[6], (FC_O, FC_H), jnp.float32) * 0.1
    b4 = jax.random.normal(ks[7], (FC_O,), jnp.float32) * 0.05
    return (w1, b1, w2, b2, w3, b3, w4, b4)


if __name__ == "__main__":
    key = jax.random.PRNGKey(0)
    pkey, xkey = jax.random.split(key)
    params = init_params(pkey)
    prep = prepare_params(params)

    # Linear(24*24*10, ...) pins the spatial size: input must be (N, 1, 28, 28).
    x = jax.random.normal(xkey, (2, 1, 28, 28), jnp.float32)

    out = jax.block_until_ready(model_forward(x, prep))
    ref = jax.block_until_ready(reference_forward(x, params))

    assert out.shape == (2, FC_O), out.shape
    max_err = float(jnp.max(jnp.abs(out - ref)))
    assert jnp.allclose(out, ref, atol=2e-4, rtol=2e-4), max_err
    print("KERNEL_OK")
</pallas_src>

<mosaic_0001>
module attributes {stable_mosaic.version = 11 : i64} {
  func.func @_conv_kernel(%arg0: i32, %arg1: memref<1x1x788xf32, #tpu.memory_space<vmem>>, %arg2: memref<9x20x1xf32, #tpu.memory_space<vmem>>, %arg3: memref<20x1xf32, #tpu.memory_space<vmem>>, %arg4: memref<9x10x20xf32, #tpu.memory_space<vmem>>, %arg5: memref<10x1xf32, #tpu.memory_space<vmem>>, %arg6: memref<1x10x672xf32, #tpu.memory_space<vmem>>, %arg7: memref<20x730xf32, #tpu.memory_space<vmem>>) attributes {dimension_semantics = [#tpu.dimension_semantics<parallel>], iteration_bounds = array<i64: 2>, scalar_prefetch = 0 : i64, scratch_operands = 1 : i64, tpu.core_type = #tpu.core_type<tc>, window_params = [{transform_indices = @transform_0, window_bounds = array<i64: 1, 1, 788>}, {pipeline_mode = #tpu.pipeline_mode<synchronous>, transform_indices = @transform_1, window_bounds = array<i64: 9, 20, 1>}, {pipeline_mode = #tpu.pipeline_mode<synchronous>, transform_indices = @transform_2, window_bounds = array<i64: 20, 1>}, {pipeline_mode = #tpu.pipeline_mode<synchronous>, transform_indices = @transform_3, window_bounds = array<i64: 9, 10, 20>}, {pipeline_mode = #tpu.pipeline_mode<synchronous>, transform_indices = @transform_4, window_bounds = array<i64: 10, 1>}, {transform_indices = @transform_5, window_bounds = array<i64: 1, 10, 672>}]} {
    %cst = arith.constant 0.000000e+00 : f32
    %0 = vector.broadcast %cst : f32 to vector<20x730xf32>
    %c0 = arith.constant 0 : index
    %c0_0 = arith.constant 0 : index
    %c0_1 = arith.constant 0 : index
    %1 = vector.load %arg1[%c0, %c0_0, %c0_1] : memref<1x1x788xf32, #tpu.memory_space<vmem>>, vector<1x1x730xf32>
    %2 = vector.shape_cast %1 : vector<1x1x730xf32> to vector<1x730xf32>
    %c0_2 = arith.constant 0 : index
    %c0_3 = arith.constant 0 : index
    %c0_4 = arith.constant 0 : index
    %3 = vector.load %arg2[%c0_2, %c0_3, %c0_4] : memref<9x20x1xf32, #tpu.memory_space<vmem>>, vector<1x20x1xf32>
    %4 = vector.shape_cast %3 : vector<1x20x1xf32> to vector<20x1xf32>
    %5 = vector.broadcast %4 : vector<20x1xf32> to vector<20x730xf32>
    %6 = vector.broadcast %2 : vector<1x730xf32> to vector<20x730xf32>
    %7 = arith.mulf %5, %6 : vector<20x730xf32>
    %8 = arith.addf %0, %7 : vector<20x730xf32>
    %c0_5 = arith.constant 0 : index
    %c0_6 = arith.constant 0 : index
    %c1 = arith.constant 1 : index
    %9 = vector.load %arg1[%c0_5, %c0_6, %c1] : memref<1x1x788xf32, #tpu.memory_space<vmem>>, vector<1x1x730xf32>
    %10 = vector.shape_cast %9 : vector<1x1x730xf32> to vector<1x730xf32>
    %c1_7 = arith.constant 1 : index
    %c0_8 = arith.constant 0 : index
    %c0_9 = arith.constant 0 : index
    %11 = vector.load %arg2[%c1_7, %c0_8, %c0_9] : memref<9x20x1xf32, #tpu.memory_space<vmem>>, vector<1x20x1xf32>
    %12 = vector.shape_cast %11 : vector<1x20x1xf32> to vector<20x1xf32>
    %13 = vector.broadcast %12 : vector<20x1xf32> to vector<20x730xf32>
    %14 = vector.broadcast %10 : vector<1x730xf32> to vector<20x730xf32>
    %15 = arith.mulf %13, %14 : vector<20x730xf32>
    %16 = arith.addf %8, %15 : vector<20x730xf32>
    %c0_10 = arith.constant 0 : index
    %c0_11 = arith.constant 0 : index
    %c2 = arith.constant 2 : index
    %17 = vector.load %arg1[%c0_10, %c0_11, %c2] : memref<1x1x788xf32, #tpu.memory_space<vmem>>, vector<1x1x730xf32>
    %18 = vector.shape_cast %17 : vector<1x1x730xf32> to vector<1x730xf32>
    %c2_12 = arith.constant 2 : index
    %c0_13 = arith.constant 0 : index
    %c0_14 = arith.constant 0 : index
    %19 = vector.load %arg2[%c2_12, %c0_13, %c0_14] : memref<9x20x1xf32, #tpu.memory_space<vmem>>, vector<1x20x1xf32>
    %20 = vector.shape_cast %19 : vector<1x20x1xf32> to vector<20x1xf32>
    %21 = vector.broadcast %20 : vector<20x1xf32> to vector<20x730xf32>
    %22 = vector.broadcast %18 : vector<1x730xf32> to vector<20x730xf32>
    %23 = arith.mulf %21, %22 : vector<20x730xf32>
    %24 = arith.addf %16, %23 : vector<20x730xf32>
    %c0_15 = arith.constant 0 : index
    %c0_16 = arith.constant 0 : index
    %c28 = arith.constant 28 : index
    %25 = vector.load %arg1[%c0_15, %c0_16, %c28] : memref<1x1x788xf32, #tpu.memory_space<vmem>>, vector<1x1x730xf32>
    %26 = vector.shape_cast %25 : vector<1x1x730xf32> to vector<1x730xf32>
    %c3 = arith.constant 3 : index
    %c0_17 = arith.constant 0 : index
    %c0_18 = arith.constant 0 : index
    %27 = vector.load %arg2[%c3, %c0_17, %c0_18] : memref<9x20x1xf32, #tpu.memory_space<vmem>>, vector<1x20x1xf32>
    %28 = vector.shape_cast %27 : vector<1x20x1xf32> to vector<20x1xf32>
    %29 = vector.broadcast %28 : vector<20x1xf32> to vector<20x730xf32>
    %30 = vector.broadcast %26 : vector<1x730xf32> to vector<20x730xf32>
    %31 = arith.mulf %29, %30 : vector<20x730xf32>
    %32 = arith.addf %24, %31 : vector<20x730xf32>
    %c0_19 = arith.constant 0 : index
    %c0_20 = arith.constant 0 : index
    %c29 = arith.constant 29 : index
    %33 = vector.load %arg1[%c0_19, %c0_20, %c29] : memref<1x1x788xf32, #tpu.memory_space<vmem>>, vector<1x1x730xf32>
    %34 = vector.shape_cast %33 : vector<1x1x730xf32> to vector<1x730xf32>
    %c4 = arith.constant 4 : index
    %c0_21 = arith.constant 0 : index
    %c0_22 = arith.constant 0 : index
    %35 = vector.load %arg2[%c4, %c0_21, %c0_22] : memref<9x20x1xf32, #tpu.memory_space<vmem>>, vector<1x20x1xf32>
    %36 = vector.shape_cast %35 : vector<1x20x1xf32> to vector<20x1xf32>
    %37 = vector.broadcast %36 : vector<20x1xf32> to vector<20x730xf32>
    %38 = vector.broadcast %34 : vector<1x730xf32> to vector<20x730xf32>
    %39 = arith.mulf %37, %38 : vector<20x730xf32>
    %40 = arith.addf %32, %39 : vector<20x730xf32>
    %c0_23 = arith.constant 0 : index
    %c0_24 = arith.constant 0 : index
    %c30 = arith.constant 30 : index
    %41 = vector.load %arg1[%c0_23, %c0_24, %c30] : memref<1x1x788xf32, #tpu.memory_space<vmem>>, vector<1x1x730xf32>
    %42 = vector.shape_cast %41 : vector<1x1x730xf32> to vector<1x730xf32>
    %c5 = arith.constant 5 : index
    %c0_25 = arith.constant 0 : index
    %c0_26 = arith.constant 0 : index
    %43 = vector.load %arg2[%c5, %c0_25, %c0_26] : memref<9x20x1xf32, #tpu.memory_space<vmem>>, vector<1x20x1xf32>
    %44 = vector.shape_cast %43 : vector<1x20x1xf32> to vector<20x1xf32>
    %45 = vector.broadcast %44 : vector<20x1xf32> to vector<20x730xf32>
    %46 = vector.broadcast %42 : vector<1x730xf32> to vector<20x730xf32>
    %47 = arith.mulf %45, %46 : vector<20x730xf32>
    %48 = arith.addf %40, %47 : vector<20x730xf32>
    %c0_27 = arith.constant 0 : index
    %c0_28 = arith.constant 0 : index
    %c56 = arith.constant 56 : index
    %49 = vector.load %arg1[%c0_27, %c0_28, %c56] : memref<1x1x788xf32, #tpu.memory_space<vmem>>, vector<1x1x730xf32>
    %50 = vector.shape_cast %49 : vector<1x1x730xf32> to vector<1x730xf32>
    %c6 = arith.constant 6 : index
    %c0_29 = arith.constant 0 : index
    %c0_30 = arith.constant 0 : index
    %51 = vector.load %arg2[%c6, %c0_29, %c0_30] : memref<9x20x1xf32, #tpu.memory_space<vmem>>, vector<1x20x1xf32>
    %52 = vector.shape_cast %51 : vector<1x20x1xf32> to vector<20x1xf32>
    %53 = vector.broadcast %52 : vector<20x1xf32> to vector<20x730xf32>
    %54 = vector.broadcast %50 : vector<1x730xf32> to vector<20x730xf32>
    %55 = arith.mulf %53, %54 : vector<20x730xf32>
    %56 = arith.addf %48, %55 : vector<20x730xf32>
    %c0_31 = arith.constant 0 : index
    %c0_32 = arith.constant 0 : index
    %c57 = arith.constant 57 : index
    %57 = vector.load %arg1[%c0_31, %c0_32, %c57] : memref<1x1x788xf32, #tpu.memory_space<vmem>>, vector<1x1x730xf32>
    %58 = vector.shape_cast %57 : vector<1x1x730xf32> to vector<1x730xf32>
    %c7 = arith.constant 7 : index
    %c0_33 = arith.constant 0 : index
    %c0_34 = arith.constant 0 : index
    %59 = vector.load %arg2[%c7, %c0_33, %c0_34] : memref<9x20x1xf32, #tpu.memory_space<vmem>>, vector<1x20x1xf32>
    %60 = vector.shape_cast %59 : vector<1x20x1xf32> to vector<20x1xf32>
    %61 = vector.broadcast %60 : vector<20x1xf32> to vector<20x730xf32>
    %62 = vector.broadcast %58 : vector<1x730xf32> to vector<20x730xf32>
    %63 = arith.mulf %61, %62 : vector<20x730xf32>
    %64 = arith.addf %56, %63 : vector<20x730xf32>
    %c0_35 = arith.constant 0 : index
    %c0_36 = arith.constant 0 : index
    %c58 = arith.constant 58 : index
    %65 = vector.load %arg1[%c0_35, %c0_36, %c58] : memref<1x1x788xf32, #tpu.memory_space<vmem>>, vector<1x1x730xf32>
    %66 = vector.shape_cast %65 : vector<1x1x730xf32> to vector<1x730xf32>
    %c8 = arith.constant 8 : index
    %c0_37 = arith.constant 0 : index
    %c0_38 = arith.constant 0 : index
    %67 = vector.load %arg2[%c8, %c0_37, %c0_38] : memref<9x20x1xf32, #tpu.memory_space<vmem>>, vector<1x20x1xf32>
    %68 = vector.shape_cast %67 : vector<1x20x1xf32> to vector<20x1xf32>
    %69 = vector.broadcast %68 : vector<20x1xf32> to vector<20x730xf32>
    %70 = vector.broadcast %66 : vector<1x730xf32> to vector<20x730xf32>
    %71 = arith.mulf %69, %70 : vector<20x730xf32>
    %72 = arith.addf %64, %71 : vector<20x730xf32>
    %c0_39 = arith.constant 0 : index
    %c0_40 = arith.constant 0 : index
    %73 = vector.load %arg3[%c0_39, %c0_40] : memref<20x1xf32, #tpu.memory_space<vmem>>, vector<20x1xf32>
    %74 = vector.broadcast %73 : vector<20x1xf32> to vector<20x730xf32>
    %75 = arith.addf %72, %74 : vector<20x730xf32>
    %76 = math.tanh %75 : vector<20x730xf32>
    %c0_41 = arith.constant 0 : index
    %c0_42 = arith.constant 0 : index
    %77 = vector.load %arg7[%c0_41, %c0_42] : memref<20x730xf32, #tpu.memory_space<vmem>>, vector<20x730xf32>
    tpu.vector_store %arg7[%c0_41, %c0_42], %76 {strides = array<i32>} : memref<20x730xf32, #tpu.memory_space<vmem>>, vector<20x730xf32>,
    %cst_43 = arith.constant 0.000000e+00 : f32
    %78 = vector.broadcast %cst_43 : f32 to vector<10x672xf32>
    %c0_44 = arith.constant 0 : index
    %c0_45 = arith.constant 0 : index
    %79 = vector.load %arg7[%c0_44, %c0_45] : memref<20x730xf32, #tpu.memory_space<vmem>>, vector<20x672xf32>
    %c0_46 = arith.constant 0 : index
    %c0_47 = arith.constant 0 : index
    %c0_48 = arith.constant 0 : index
    %80 = vector.load %arg4[%c0_46, %c0_47, %c0_48] : memref<9x10x20xf32, #tpu.memory_space<vmem>>, vector<1x10x20xf32>
    %81 = vector.shape_cast %80 : vector<1x10x20xf32> to vector<10x20xf32>
    %cst_49 = arith.constant dense<0.000000e+00> : vector<10x672xf32>
    %82 = tpu.matmul %81, %79, %cst_49 {dimension_numbers = #tpu.dot_dimension_numbers<[1], [0], [0], [1], [0, 0, 1, 1], [], []>} : vector<10x20xf32>, vector<20x672xf32>, vector<10x672xf32> -> vector<10x672xf32>
    %83 = arith.addf %78, %82 : vector<10x672xf32>
    %c0_50 = arith.constant 0 : index
    %c1_51 = arith.constant 1 : index
    %84 = vector.load %arg7[%c0_50, %c1_51] : memref<20x730xf32, #tpu.memory_space<vmem>>, vector<20x672xf32>
    %c1_52 = arith.constant 1 : index
    %c0_53 = arith.constant 0 : index
    %c0_54 = arith.constant 0 : index
    %85 = vector.load %arg4[%c1_52, %c0_53, %c0_54] : memref<9x10x20xf32, #tpu.memory_space<vmem>>, vector<1x10x20xf32>
    %86 = vector.shape_cast %85 : vector<1x10x20xf32> to vector<10x20xf32>
    %cst_55 = arith.constant dense<0.000000e+00> : vector<10x672xf32>
    %87 = tpu.matmul %86, %84, %cst_55 {dimension_numbers = #tpu.dot_dimension_numbers<[1], [0], [0], [1], [0, 0, 1, 1], [], []>} : vector<10x20xf32>, vector<20x672xf32>, vector<10x672xf32> -> vector<10x672xf32>
    %88 = arith.addf %83, %87 : vector<10x672xf32>
    %c0_56 = arith.constant 0 : index
    %c2_57 = arith.constant 2 : index
    %89 = vector.load %arg7[%c0_56, %c2_57] : memref<20x730xf32, #tpu.memory_space<vmem>>, vector<20x672xf32>
    %c2_58 = arith.constant 2 : index
    %c0_59 = arith.constant 0 : index
    %c0_60 = arith.constant 0 : index
    %90 = vector.load %arg4[%c2_58, %c0_59, %c0_60] : memref<9x10x20xf32, #tpu.memory_space<vmem>>, vector<1x10x20xf32>
    %91 = vector.shape_cast %90 : vector<1x10x20xf32> to vector<10x20xf32>
    %cst_61 = arith.constant dense<0.000000e+00> : vector<10x672xf32>
    %92 = tpu.matmul %91, %89, %cst_61 {dimension_numbers = #tpu.dot_dimension_numbers<[1], [0], [0], [1], [0, 0, 1, 1], [], []>} : vector<10x20xf32>, vector<20x672xf32>, vector<10x672xf32> -> vector<10x672xf32>
    %93 = arith.addf %88, %92 : vector<10x672xf32>
    %c0_62 = arith.constant 0 : index
    %c28_63 = arith.constant 28 : index
    %94 = vector.load %arg7[%c0_62, %c28_63] : memref<20x730xf32, #tpu.memory_space<vmem>>, vector<20x672xf32>
    %c3_64 = arith.constant 3 : index
    %c0_65 = arith.constant 0 : index
    %c0_66 = arith.constant 0 : index
    %95 = vector.load %arg4[%c3_64, %c0_65, %c0_66] : memref<9x10x20xf32, #tpu.memory_space<vmem>>, vector<1x10x20xf32>
    %96 = vector.shape_cast %95 : vector<1x10x20xf32> to vector<10x20xf32>
    %cst_67 = arith.constant dense<0.000000e+00> : vector<10x672xf32>
    %97 = tpu.matmul %96, %94, %cst_67 {dimension_numbers = #tpu.dot_dimension_numbers<[1], [0], [0], [1], [0, 0, 1, 1], [], []>} : vector<10x20xf32>, vector<20x672xf32>, vector<10x672xf32> -> vector<10x672xf32>
    %98 = arith.addf %93, %97 : vector<10x672xf32>
    %c0_68 = arith.constant 0 : index
    %c29_69 = arith.constant 29 : index
    %99 = vector.load %arg7[%c0_68, %c29_69] : memref<20x730xf32, #tpu.memory_space<vmem>>, vector<20x672xf32>
    %c4_70 = arith.constant 4 : index
    %c0_71 = arith.constant 0 : index
    %c0_72 = arith.constant 0 : index
    %100 = vector.load %arg4[%c4_70, %c0_71, %c0_72] : memref<9x10x20xf32, #tpu.memory_space<vmem>>, vector<1x10x20xf32>
    %101 = vector.shape_cast %100 : vector<1x10x20xf32> to vector<10x20xf32>
    %cst_73 = arith.constant dense<0.000000e+00> : vector<10x672xf32>
    %102 = tpu.matmul %101, %99, %cst_73 {dimension_numbers = #tpu.dot_dimension_numbers<[1], [0], [0], [1], [0, 0, 1, 1], [], []>} : vector<10x20xf32>, vector<20x672xf32>, vector<10x672xf32> -> vector<10x672xf32>
    %103 = arith.addf %98, %102 : vector<10x672xf32>
    %c0_74 = arith.constant 0 : index
    %c30_75 = arith.constant 30 : index
    %104 = vector.load %arg7[%c0_74, %c30_75] : memref<20x730xf32, #tpu.memory_space<vmem>>, vector<20x672xf32>
    %c5_76 = arith.constant 5 : index
    %c0_77 = arith.constant 0 : index
    %c0_78 = arith.constant 0 : index
    %105 = vector.load %arg4[%c5_76, %c0_77, %c0_78] : memref<9x10x20xf32, #tpu.memory_space<vmem>>, vector<1x10x20xf32>
    %106 = vector.shape_cast %105 : vector<1x10x20xf32> to vector<10x20xf32>
    %cst_79 = arith.constant dense<0.000000e+00> : vector<10x672xf32>
    %107 = tpu.matmul %106, %104, %cst_79 {dimension_numbers = #tpu.dot_dimension_numbers<[1], [0], [0], [1], [0, 0, 1, 1], [], []>} : vector<10x20xf32>, vector<20x672xf32>, vector<10x672xf32> -> vector<10x672xf32>
    %108 = arith.addf %103, %107 : vector<10x672xf32>
    %c0_80 = arith.constant 0 : index
    %c56_81 = arith.constant 56 : index
    %109 = vector.load %arg7[%c0_80, %c56_81] : memref<20x730xf32, #tpu.memory_space<vmem>>, vector<20x672xf32>
    %c6_82 = arith.constant 6 : index
    %c0_83 = arith.constant 0 : index
    %c0_84 = arith.constant 0 : index
    %110 = vector.load %arg4[%c6_82, %c0_83, %c0_84] : memref<9x10x20xf32, #tpu.memory_space<vmem>>, vector<1x10x20xf32>
    %111 = vector.shape_cast %110 : vector<1x10x20xf32> to vector<10x20xf32>
    %cst_85 = arith.constant dense<0.000000e+00> : vector<10x672xf32>
    %112 = tpu.matmul %111, %109, %cst_85 {dimension_numbers = #tpu.dot_dimension_numbers<[1], [0], [0], [1], [0, 0, 1, 1], [], []>} : vector<10x20xf32>, vector<20x672xf32>, vector<10x672xf32> -> vector<10x672xf32>
    %113 = arith.addf %108, %112 : vector<10x672xf32>
    %c0_86 = arith.constant 0 : index
    %c57_87 = arith.constant 57 : index
    %114 = vector.load %arg7[%c0_86, %c57_87] : memref<20x730xf32, #tpu.memory_space<vmem>>, vector<20x672xf32>
    %c7_88 = arith.constant 7 : index
    %c0_89 = arith.constant 0 : index
    %c0_90 = arith.constant 0 : index
    %115 = vector.load %arg4[%c7_88, %c0_89, %c0_90] : memref<9x10x20xf32, #tpu.memory_space<vmem>>, vector<1x10x20xf32>
    %116 = vector.shape_cast %115 : vector<1x10x20xf32> to vector<10x20xf32>
    %cst_91 = arith.constant dense<0.000000e+00> : vector<10x672xf32>
    %117 = tpu.matmul %116, %114, %cst_91 {dimension_numbers = #tpu.dot_dimension_numbers<[1], [0], [0], [1], [0, 0, 1, 1], [], []>} : vector<10x20xf32>, vector<20x672xf32>, vector<10x672xf32> -> vector<10x672xf32>
    %118 = arith.addf %113, %117 : vector<10x672xf32>
    %c0_92 = arith.constant 0 : index
    %c58_93 = arith.constant 58 : index
    %119 = vector.load %arg7[%c0_92, %c58_93] : memref<20x730xf32, #tpu.memory_space<vmem>>, vector<20x672xf32>
    %c8_94 = arith.constant 8 : index
    %c0_95 = arith.constant 0 : index
    %c0_96 = arith.constant 0 : index
    %120 = vector.load %arg4[%c8_94, %c0_95, %c0_96] : memref<9x10x20xf32, #tpu.memory_space<vmem>>, vector<1x10x20xf32>
    %121 = vector.shape_cast %120 : vector<1x10x20xf32> to vector<10x20xf32>
    %cst_97 = arith.constant dense<0.000000e+00> : vector<10x672xf32>
    %122 = tpu.matmul %121, %119, %cst_97 {dimension_numbers = #tpu.dot_dimension_numbers<[1], [0], [0], [1], [0, 0, 1, 1], [], []>} : vector<10x20xf32>, vector<20x672xf32>, vector<10x672xf32> -> vector<10x672xf32>
    %123 = arith.addf %118, %122 : vector<10x672xf32>
    %c0_98 = arith.constant 0 : index
    %c0_99 = arith.constant 0 : index
    %124 = vector.load %arg5[%c0_98, %c0_99] : memref<10x1xf32, #tpu.memory_space<vmem>>, vector<10x1xf32>
    %125 = vector.broadcast %124 : vector<10x1xf32> to vector<10x672xf32>
    %126 = arith.addf %123, %125 : vector<10x672xf32>
    %127 = math.tanh %126 : vector<10x672xf32>
    %c0_100 = arith.constant 0 : index
    %c0_101 = arith.constant 0 : index
    %c0_102 = arith.constant 0 : index
    %128 = vector.load %arg6[%c0_100, %c0_101, %c0_102] : memref<1x10x672xf32, #tpu.memory_space<vmem>>, vector<1x10x672xf32>
    %129 = vector.shape_cast %128 : vector<1x10x672xf32> to vector<10x672xf32>
    %130 = vector.shape_cast %127 : vector<10x672xf32> to vector<1x10x672xf32>
    tpu.vector_store %arg6[%c0_100, %c0_101, %c0_102], %130 {strides = array<i32>} : memref<1x10x672xf32, #tpu.memory_space<vmem>>, vector<1x10x672xf32>,
    return
  }
  func.func @transform_0(%arg0: i32) -> (i32, i32, i32) {
    %c0_i32 = arith.constant 0 : i32
    %c0_i32_0 = arith.constant 0 : i32
    %c0_i32_1 = arith.constant 0 : i32
    return %arg0, %c0_i32, %c0_i32_0 : i32, i32, i32
  }
  func.func @transform_1(%arg0: i32) -> (i32, i32, i32) {
    %c0_i32 = arith.constant 0 : i32
    %c0_i32_0 = arith.constant 0 : i32
    %c0_i32_1 = arith.constant 0 : i32
    %c0_i32_2 = arith.constant 0 : i32
    return %c0_i32, %c0_i32_0, %c0_i32_1 : i32, i32, i32
  }
  func.func @transform_2(%arg0: i32) -> (i32, i32) {
    %c0_i32 = arith.constant 0 : i32
    %c0_i32_0 = arith.constant 0 : i32
    %c0_i32_1 = arith.constant 0 : i32
    return %c0_i32, %c0_i32_0 : i32, i32
  }
  func.func @transform_3(%arg0: i32) -> (i32, i32, i32) {
    %c0_i32 = arith.constant 0 : i32
    %c0_i32_0 = arith.constant 0 : i32
    %c0_i32_1 = arith.constant 0 : i32
    %c0_i32_2 = arith.constant 0 : i32
    return %c0_i32, %c0_i32_0, %c0_i32_1 : i32, i32, i32
  }
  func.func @transform_4(%arg0: i32) -> (i32, i32) {
    %c0_i32 = arith.constant 0 : i32
    %c0_i32_0 = arith.constant 0 : i32
    %c0_i32_1 = arith.constant 0 : i32
    return %c0_i32, %c0_i32_0 : i32, i32
  }
  func.func @transform_5(%arg0: i32) -> (i32, i32, i32) {
    %c0_i32 = arith.constant 0 : i32
    %c0_i32_0 = arith.constant 0 : i32
    %c0_i32_1 = arith.constant 0 : i32
    return %arg0, %c0_i32, %c0_i32_0 : i32, i32, i32
  }
}

module attributes {stable_mosaic.version = 11 : i64} {
  func.func @_fc_kernel(%arg0: i32, %arg1: memref<2x6720xf32, #tpu.memory_space<vmem>>, %arg2: memref<6720x100xf32, #tpu.memory_space<vmem>>, %arg3: memref<1x100xf32, #tpu.memory_space<vmem>>, %arg4: memref<100x10xf32, #tpu.memory_space<vmem>>, %arg5: memref<1x10xf32, #tpu.memory_space<vmem>>, %arg6: memref<2x10xf32, #tpu.memory_space<vmem>>) attributes {dimension_semantics = [#tpu.dimension_semantics<parallel>], iteration_bounds = array<i64: 1>, scalar_prefetch = 0 : i64, scratch_operands = 0 : i64, tpu.core_type = #tpu.core_type<tc>, window_params = [{transform_indices = @transform_0, window_bounds = array<i64: 2, 6720>}, {pipeline_mode = #tpu.pipeline_mode<synchronous>, transform_indices = @transform_1, window_bounds = array<i64: 6720, 100>}, {pipeline_mode = #tpu.pipeline_mode<synchronous>, transform_indices = @transform_2, window_bounds = array<i64: 1, 100>}, {pipeline_mode = #tpu.pipeline_mode<synchronous>, transform_indices = @transform_3, window_bounds = array<i64: 100, 10>}, {pipeline_mode = #tpu.pipeline_mode<synchronous>, transform_indices = @transform_4, window_bounds = array<i64: 1, 10>}, {transform_indices = @transform_5, window_bounds = array<i64: 2, 10>}]} {
    %c0 = arith.constant 0 : index
    %c0_0 = arith.constant 0 : index
    %0 = vector.load %arg1[%c0, %c0_0] : memref<2x6720xf32, #tpu.memory_space<vmem>>, vector<2x6720xf32>
    %c0_1 = arith.constant 0 : index
    %c0_2 = arith.constant 0 : index
    %1 = vector.load %arg2[%c0_1, %c0_2] : memref<6720x100xf32, #tpu.memory_space<vmem>>, vector<6720x100xf32>
    %cst = arith.constant dense<0.000000e+00> : vector<2x100xf32>
    %2 = tpu.matmul %0, %1, %cst {dimension_numbers = #tpu.dot_dimension_numbers<[1], [0], [0], [1], [0, 0, 1, 1], [], []>} : vector<2x6720xf32>, vector<6720x100xf32>, vector<2x100xf32> -> vector<2x100xf32>
    %c0_3 = arith.constant 0 : index
    %c0_4 = arith.constant 0 : index
    %3 = vector.load %arg3[%c0_3, %c0_4] : memref<1x100xf32, #tpu.memory_space<vmem>>, vector<1x100xf32>
    %4 = vector.broadcast %3 : vector<1x100xf32> to vector<2x100xf32>
    %5 = arith.addf %2, %4 : vector<2x100xf32>
    %6 = math.tanh %5 : vector<2x100xf32>
    %c0_5 = arith.constant 0 : index
    %c0_6 = arith.constant 0 : index
    %7 = vector.load %arg4[%c0_5, %c0_6] : memref<100x10xf32, #tpu.memory_space<vmem>>, vector<100x10xf32>
    %cst_7 = arith.constant dense<0.000000e+00> : vector<2x10xf32>
    %8 = tpu.matmul %6, %7, %cst_7 {dimension_numbers = #tpu.dot_dimension_numbers<[1], [0], [0], [1], [0, 0, 1, 1], [], []>} : vector<2x100xf32>, vector<100x10xf32>, vector<2x10xf32> -> vector<2x10xf32>
    %c0_8 = arith.constant 0 : index
    %c0_9 = arith.constant 0 : index
    %9 = vector.load %arg5[%c0_8, %c0_9] : memref<1x10xf32, #tpu.memory_space<vmem>>, vector<1x10xf32>
    %10 = vector.broadcast %9 : vector<1x10xf32> to vector<2x10xf32>
    %11 = arith.addf %8, %10 : vector<2x10xf32>
    %c0_10 = arith.constant 0 : index
    %c0_11 = arith.constant 0 : index
    %12 = vector.load %arg6[%c0_10, %c0_11] : memref<2x10xf32, #tpu.memory_space<vmem>>, vector<2x10xf32>
    tpu.vector_store %arg6[%c0_10, %c0_11], %11 {strides = array<i32>} : memref<2x10xf32, #tpu.memory_space<vmem>>, vector<2x10xf32>,
    return
  }
  func.func @transform_0(%arg0: i32) -> (i32, i32) {
    %c0_i32 = arith.constant 0 : i32
    %c0_i32_0 = arith.constant 0 : i32
    return %arg0, %c0_i32 : i32, i32
  }
  func.func @transform_1(%arg0: i32) -> (i32, i32) {
    %c0_i32 = arith.constant 0 : i32
    %c0_i32_0 = arith.constant 0 : i32
    %c0_i32_1 = arith.constant 0 : i32
    return %c0_i32, %c0_i32_0 : i32, i32
  }
  func.func @transform_2(%arg0: i32) -> (i32, i32) {
    %c0_i32 = arith.constant 0 : i32
    %c0_i32_0 = arith.constant 0 : i32
    %c0_i32_1 = arith.constant 0 : i32
    return %c0_i32, %c0_i32_0 : i32, i32
  }
  func.func @transform_3(%arg0: i32) -> (i32, i32) {
    %c0_i32 = arith.constant 0 : i32
    %c0_i32_0 = arith.constant 0 : i32
    %c0_i32_1 = arith.constant 0 : i32
    return %c0_i32, %c0_i32_0 : i32, i32
  }
  func.func @transform_4(%arg0: i32) -> (i32, i32) {
    %c0_i32 = arith.constant 0 : i32
    %c0_i32_0 = arith.constant 0 : i32
    %c0_i32_1 = arith.constant 0 : i32
    return %c0_i32, %c0_i32_0 : i32, i32
  }
  func.func @transform_5(%arg0: i32) -> (i32, i32) {
    %c0_i32 = arith.constant 0 : i32
    %c0_i32_0 = arith.constant 0 : i32
    return %arg0, %c0_i32 : i32, i32
  }
}

</mosaic_0001>

<llo_original>
// kernel: model_forward.2
$region0: #{model_forward.2}
  #allocation0 [shape = 'u32[]', space=smem, size = 0x4, offset = 0x4, fixed_abs, tag = 'smem constant byte address 0x4 - core index']
  #allocation1 [shape = 'u32[144,128]{1,0:T(1,128)}', space=vmem, size = 0x12000, scoped, tag = 'internal scratch']
  #allocation2 [shape = 'f32[20,730]{1,0:T(8,128)}', space=vmem, size = 0x12000, scoped, tag = 'scratch operand']
  %s0 = inlined_call_operand.vmem [shape: f32[2,1,788], index: 0, kind: input, shape index: {}]
  %s1 = inlined_call_operand.vmem [shape: f32[9,20,1], index: 1, kind: input, shape index: {}]
  %s2 = inlined_call_operand.vmem [shape: f32[20,1], index: 2, kind: input, shape index: {}]
  %s3 = inlined_call_operand.hbm [shape: f32[9,10,20], index: 3, kind: input, shape index: {}]
  %s4 = inlined_call_operand.vmem [shape: f32[10,1], index: 4, kind: input, shape index: {}]
  %s5 = inlined_call_operand.vmem [shape: f32[2,10,672], index: 5, kind: output, shape index: {}]
  %s6 = sld [smem:[#allocation0]]
  $region57: #{model_forward.2} parent=0
    _
  %s8 = ssub.s32 1, %s6
  %s9 = scalar_select 0, %s8, %s6
  $region1: #{model_forward.2} parent=0
    #allocation3 [shape = 'u8[73728]{0}', space=vmem, size = 0x12000, scoped, tag = 'input window, operand 3, single buffered']
    #allocation4 [shape = 's32[2]{0}', space=sflag, size = 0x8, scoped, tag = 'scoped memory for model_forward.2']
    %10 = vsyncpa [#allocation4], 0
    loop: start=0, step=1, limit=4
    $region2: #{model_forward.2} parent=1 // loop_pre_header
      _
    $region3: #{model_forward.2} parent=1 // loop_header
      %s12 = sphi 0, %s16
      %p13 = scmp.ge.s32.totalorder %s12, 4
      %s22 = sphi 0, %s24
      %s25 = sphi 0, %s22
      %s26 = sphi 0, %s25
      %s42 = sphi 0, %s26
      %s46 = sphi 0, %s46
      %s48 = sphi 0, %s46
      %s49 = sphi 0, %s48
      %s63 = sphi 0, %s49
      %s67 = sphi 0, %s67
      %s69 = sphi 0, %s67
      %s70 = sphi 0, %s69
      %s84 = sphi 0, %s70
      %s88 = sphi 0, %s88
      %s90 = sphi 0, %s88
      %s91 = sphi 0, %s90
      %s105 = sphi 0, %s91
      %s109 = sphi 0, %s109
      %s111 = sphi 0, %s109
      %s112 = sphi 0, %s111
      %s126 = sphi 0, %s112
      %s132 = sphi 0, %s134
      %s135 = sphi 0, %s132
      %s136 = sphi 0, %s135
      %s152 = sphi 0, %s136
    $region4: #{model_forward.2} parent=1 // loop_header_branch
      %15 = sbr.rel (%p13) target = $region8
    $region5: #{model_forward.2} parent=1 // loop_body
      %s17 = ssub.s32 %s12, 1
      %s18 = ssub.s32 %s12, 2
      %s19 = sadd.s32 %s12, 1
      %s20 = ssub.s32 %s12, %s19
      %p21 = scmp.eq.s32.totalorder %s20, 0
      %s23 = sadd.s32 %s22, 1
      %s24 = scalar_select %p21, %s22, %s23
      %p27 = pneg %p21
      %p28 = scmp.eq.s32.totalorder %s12, 1
      %p29 = por %p27, %p28
      %p30 = scmp.ne.s32.totalorder %s22, %s25
      %p31 = scmp.eq.s32.totalorder %s12, 0
      %p32 = por %p30, %p31
      %p33 = scmp.ne.s32.totalorder %s22, %s25
      %p34 = scmp.eq.s32.totalorder %s17, 1
      %p35 = por %p33, %p34
      %p36 = scmp.ne.s32.totalorder %s25, %s26
      %p37 = scmp.eq.s32.totalorder %s17, 0
      %p38 = por %p36, %p37
      %p39 = scmp.ne.s32.totalorder %s25, %s26
      %p40 = scmp.eq.s32.totalorder %s18, 1
      %p41 = por %p39, %p40
      %p43 = scmp.ne.s32.totalorder %s26, %s42
      %p44 = scmp.eq.s32.totalorder %s18, 0
      %p45 = por %p43, %p44
      %s47 = sadd.s32 %s46, 1
      %p50 = scmp.eq.s32.totalorder %s12, 1
      %p51 = scmp.ne.s32.totalorder %s46, %s48
      %p52 = scmp.eq.s32.totalorder %s12, 0
      %p53 = por %p51, %p52
      %p54 = scmp.ne.s32.totalorder %s46, %s48
      %p55 = scmp.eq.s32.totalorder %s17, 1
      %p56 = por %p54, %p55
      %p57 = scmp.ne.s32.totalorder %s48, %s49
      %p58 = scmp.eq.s32.totalorder %s17, 0
      %p59 = por %p57, %p58
      %p60 = scmp.ne.s32.totalorder %s48, %s49
      %p61 = scmp.eq.s32.totalorder %s18, 1
      %p62 = por %p60, %p61
      %p64 = scmp.ne.s32.totalorder %s49, %s63
      %p65 = scmp.eq.s32.totalorder %s18, 0
      %p66 = por %p64, %p65
      %s68 = sadd.s32 %s67, 1
      %p71 = scmp.eq.s32.totalorder %s12, 1
      %p72 = scmp.ne.s32.totalorder %s67, %s69
      %p73 = scmp.eq.s32.totalorder %s12, 0
      %p74 = por %p72, %p73
      %p75 = scmp.ne.s32.totalorder %s67, %s69
      %p76 = scmp.eq.s32.totalorder %s17, 1
      %p77 = por %p75, %p76
      %p78 = scmp.ne.s32.totalorder %s69, %s70
      %p79 = scmp.eq.s32.totalorder %s17, 0
      %p80 = por %p78, %p79
      %p81 = scmp.ne.s32.totalorder %s69, %s70
      %p82 = scmp.eq.s32.totalorder %s18, 1
      %p83 = por %p81, %p82
      %p85 = scmp.ne.s32.totalorder %s70, %s84
      %p86 = scmp.eq.s32.totalorder %s18, 0
      %p87 = por %p85, %p86
      %s89 = sadd.s32 %s88, 1
      %p92 = scmp.eq.s32.totalorder %s12, 1
      %p93 = scmp.ne.s32.totalorder %s88, %s90
      %p94 = scmp.eq.s32.totalorder %s12, 0
      %p95 = por %p93, %p94
      %p96 = scmp.ne.s32.totalorder %s88, %s90
      %p97 = scmp.eq.s32.totalorder %s17, 1
      %p98 = por %p96, %p97
      %p99 = scmp.ne.s32.totalorder %s90, %s91
      %p100 = scmp.eq.s32.totalorder %s17, 0
      %p101 = por %p99, %p100
      %p102 = scmp.ne.s32.totalorder %s90, %s91
      %p103 = scmp.eq.s32.totalorder %s18, 1
      %p104 = por %p102, %p103
      %p106 = scmp.ne.s32.totalorder %s91, %s105
      %p107 = scmp.eq.s32.totalorder %s18, 0
      %p108 = por %p106, %p107
      %s110 = sadd.s32 %s109, 1
      %p113 = scmp.eq.s32.totalorder %s12, 1
      %p114 = scmp.ne.s32.totalorder %s109, %s111
      %p115 = scmp.eq.s32.totalorder %s12, 0
      %p116 = por %p114, %p115
      %p117 = scmp.ne.s32.totalorder %s109, %s111
      %p118 = scmp.eq.s32.totalorder %s17, 1
      %p119 = por %p117, %p118
      %p120 = scmp.ne.s32.totalorder %s111, %s112
      %p121 = scmp.eq.s32.totalorder %s17, 0
      %p122 = por %p120, %p121
      %p123 = scmp.ne.s32.totalorder %s111, %s112
      %p124 = scmp.eq.s32.totalorder %s18, 1
      %p125 = por %p123, %p124
      %p127 = scmp.ne.s32.totalorder %s112, %s126
      %p128 = scmp.eq.s32.totalorder %s18, 0
      %p129 = por %p127, %p128
      %s130 = ssub.s32 %s12, %s19
      %p131 = scmp.eq.s32.totalorder %s130, 0
      %s133 = sadd.s32 %s132, 1
      %s134 = scalar_select %p131, %s132, %s133
      %p137 = pneg %p131
      %p138 = scmp.eq.s32.totalorder %s12, 1
      %p139 = por %p137, %p138
      %p140 = scmp.ne.s32.totalorder %s132, %s135
      %p141 = scmp.eq.s32.totalorder %s12, 0
      %p142 = por %p140, %p141
      %p143 = scmp.ne.s32.totalorder %s132, %s135
      %p144 = scmp.eq.s32.totalorder %s17, 1
      %p145 = por %p143, %p144
      %p146 = scmp.ne.s32.totalorder %s135, %s136
      %p147 = scmp.eq.s32.totalorder %s17, 0
      %p148 = por %p146, %p147
      %p149 = scmp.ne.s32.totalorder %s135, %s136
      %p150 = scmp.eq.s32.totalorder %s18, 1
      %p151 = por %p149, %p150
      %p153 = scmp.ne.s32.totalorder %s136, %s152
      %p154 = scmp.eq.s32.totalorder %s18, 0
      %p155 = por %p153, %p154
      %p156 = scmp.le.s32.totalorder 1, %s12
      %p157 = scmp.lt.s32.totalorder %s12, 3
      %p158 = pnand %p156, %p157
      %p159 = pneg %p158
      // Predicated region
      $region9: #{model_forward.2} parent=5 // pred_check
        _
      $region10: #{model_forward.2} parent=5 // pred_check_branch
        %161 = sbr.rel (%p158) target = $region12
      $region11: #{model_forward.2} parent=5 // pred_region
        %s162 = ssub.s32 %s12, 1
        // Predicated region
        $region13: #{model_forward.2} parent=11 // pred_check
          %p163 = pneg %p59
        $region14: #{model_forward.2} parent=11 // pred_check_branch
          %165 = sbr.rel (%p163) target = $region16
        $region15: #{model_forward.2} parent=11 // pred_region
          _
        $region16: #{model_forward.2} parent=11 // pred_fallthru
          _
        // Predicated region
        $region17: #{model_forward.2} parent=11 // pred_check
          %p166 = pneg %p80
        $region18: #{model_forward.2} parent=11 // pred_check_branch
          %168 = sbr.rel (%p166) target = $region20
        $region19: #{model_forward.2} parent=11 // pred_region
          _
        $region20: #{model_forward.2} parent=11 // pred_fallthru
          _
        // Predicated region
        $region21: #{model_forward.2} parent=11 // pred_check
          %p169 = pneg %p101
        $region22: #{model_forward.2} parent=11 // pred_check_branch
          %171 = sbr.rel (%p169) target = $region24
        $region23: #{model_forward.2} parent=11 // pred_region
          %s173 = ssub.s32 2304, 2304
          %174 = vsyncadd [#allocation4], %s173
          %s175 = sshll.u32 [#allocation3], 4
          %s176 = int_to_ptr.vmem [resolvable:$true] %s175
          %181 = dma.hbm_to_vmem [thread:$0]  %s3, 2304, %s176, [#allocation4], 128, 128, 8
        $region24: #{model_forward.2} parent=11 // pred_fallthru
          _
        // Predicated region
        $region25: #{model_forward.2} parent=11 // pred_check
          %p182 = pneg %p122
        $region26: #{model_forward.2} parent=11 // pred_check_branch
          %184 = sbr.rel (%p182) target = $region28
        $region27: #{model_forward.2} parent=11 // pred_region
          _
        $region28: #{model_forward.2} parent=11 // pred_fallthru
          _
      $region12: #{model_forward.2} parent=5 // pred_fallthru
        _
      %p185 = scmp.lt.s32.totalorder %s12, 2
      // Predicated region
      $region29: #{model_forward.2} parent=5 // pred_check
        %p186 = pneg %p185
      $region30: #{model_forward.2} parent=5 // pred_check_branch
        %188 = sbr.rel (%p186) target = $region32
      $region31: #{model_forward.2} parent=5 // pred_region
        // Predicated region
        $region33: #{model_forward.2} parent=31 // pred_check
          %p189 = pneg %p32
        $region34: #{model_forward.2} parent=31 // pred_check_branch
          %191 = sbr.rel (%p189) target = $region36
        $region35: #{model_forward.2} parent=31 // pred_region
          %p192 = scmp.lt.s32.totalorder %s12, 1
          %s193 = scalar_select %p192, %s12, 1
          %s194 = smul.addr %s193, 7
          %s195 = scalar_lea.vmem %s0, %s194
        $region36: #{model_forward.2} parent=31 // pred_fallthru
          _
      $region32: #{model_forward.2} parent=5 // pred_fallthru
        _
      %p196 = scmp.le.s32.totalorder 1, %s12
      %p197 = scmp.lt.s32.totalorder %s12, 3
      %p198 = pnand %p196, %p197
      %p199 = pneg %p198
      // Predicated region
      $region37: #{model_forward.2} parent=5 // pred_check
        _
      $region38: #{model_forward.2} parent=5 // pred_check_branch
        %201 = sbr.rel (%p198) target = $region40
      $region39: #{model_forward.2} parent=5 // pred_region
        %s202 = ssub.s32 %s12, 1
        // Predicated region
        $region41: #{model_forward.2} parent=39 // pred_check
          %p203 = pneg %p101
        $region42: #{model_forward.2} parent=39 // pred_check_branch
          %205 = sbr.rel (%p203) target = $region44
        $region43: #{model_forward.2} parent=39 // pred_region
          %206 = dma.done [#allocation4], 2304
        $region44: #{model_forward.2} parent=39 // pred_fallthru
          _
        %p207 = scmp.lt.s32.totalorder %s17, 1
        %s208 = scalar_select %p207, %s17, 1
        %s209 = smul.addr %s208, 7
        %s210 = scalar_lea.vmem %s0, %s209
        %p211 = pneg %p38
        %p212 = pneg %p35
        %p213 = pneg %p59
        %p214 = pneg %p56
        %p215 = pneg %p80
        %p216 = pneg %p77
        %p217 = pneg %p101
        %p218 = pneg %p98
        %p219 = pneg %p122
        %p220 = pneg %p119
        %p221 = pneg %p148
        %p222 = pneg %p145
        %p223 = scmp.lt.s32.totalorder %s17, 1
        %s224 = scalar_select %p223, %s17, 1
        %s225 = smul.addr %s224, 12
        %s226 = smul.addr %s225, 8
        %s227 = scalar_lea.vmem %s5, %s226
        %p228 = scmp.lt.s32.totalorder %s17, 1
        %s229 = scalar_select %p228, %s17, 1
        %s230 = smul.addr %s229, 7
        %s231 = scalar_lea.vmem %s0, %s230
        %p232 = scmp.lt.s32.totalorder %s17, 1
        %s233 = scalar_select %p232, %s17, 1
        %s234 = smul.addr %s233, 12
        %s235 = smul.addr %s234, 8
        %s236 = scalar_lea.vmem %s5, %s235
        %v237 = vld [vmem:[%s231] sm:$0x3f]
        %v238 = vld [vmem:[%s1] sm:$0xff]
        %v239 = vld [vmem:[%s1 + $0x8] sm:$0xff]
        %v240 = vld [vmem:[%s1 + $0x10] sm:$0xf]
        %242 = vset.pattern.permute.xlu0 0
        %243 = vperm.xlu0 %242, %v238
        %v244 = vpop.permute.xlu0 %243
        %247 = vset.pattern.permute.xlu0 0
        %248 = vperm.xlu0 %247, %v239
        %v249 = vpop.permute.xlu0 %248
        %252 = vset.pattern.permute.xlu0 0
        %253 = vperm.xlu0 %252, %v240
        %v254 = vpop.permute.xlu0 %253
        %v257 = vlaneseq
        %v258 = vshrl.u32 %v257, 7
        %v259 = vsub.s32 0, %v258
        %v260 = vrot.slane %v237, %v259
        %v261 = vlaneseq
        %v262 = vshrl.u32 %v261, 7
        %v263 = vsub.s32 1, %v262
        %v264 = vrot.slane %v237, %v263
        %v265 = vlaneseq
        %v266 = vshrl.u32 %v265, 7
        %v267 = vsub.s32 2, %v266
        %v268 = vrot.slane %v237, %v267
        %v269 = vlaneseq
        %v270 = vshrl.u32 %v269, 7
        %v271 = vsub.s32 3, %v270
        %v272 = vrot.slane %v237, %v271
        %v273 = vlaneseq
        %v274 = vshrl.u32 %v273, 7
        %v275 = vsub.s32 4, %v274
        %v276 = vrot.slane %v237, %v275
        %v277 = vlaneseq
        %v278 = vshrl.u32 %v277, 7
        %v279 = vsub.s32 5, %v278
        %v280 = vrot.slane %v237, %v279
        %v287 = vmul.f32 %v244, %v260
        %v288 = vmul.f32 %v244, %v264
        %v289 = vmul.f32 %v244, %v268
        %v290 = vmul.f32 %v244, %v272
        %v291 = vmul.f32 %v244, %v276
        %v292 = vmul.f32 %v244, %v280
        %v293 = vmul.f32 %v249, %v260
        %v294 = vmul.f32 %v249, %v264
        %v295 = vmul.f32 %v249, %v268
        %v296 = vmul.f32 %v249, %v272
        %v297 = vmul.f32 %v249, %v276
        %v298 = vmul.f32 %v249, %v280
        %v299 = vmul.f32 %v254, %v260
        %v300 = vmul.f32 %v254, %v264
        %v301 = vmul.f32 %v254, %v268
        %v302 = vmul.f32 %v254, %v272
        %v303 = vmul.f32 %v254, %v276
        %v304 = vmul.f32 %v254, %v280
        %v305 = vadd.f32 %v287, 0.0
        %v306 = vadd.f32 %v288, 0.0
        %v307 = vadd.f32 %v289, 0.0
        %v308 = vadd.f32 %v290, 0.0
        %v309 = vadd.f32 %v291, 0.0
        %v310 = vadd.f32 %v292, 0.0
        %v311 = vadd.f32 %v293, 0.0
        %v312 = vadd.f32 %v294, 0.0
        %v313 = vadd.f32 %v295, 0.0
        %v314 = vadd.f32 %v296, 0.0
        %v315 = vadd.f32 %v297, 0.0
        %v316 = vadd.f32 %v298, 0.0
        %v317 = vadd.f32 %v299, 0.0
        %v318 = vadd.f32 %v300, 0.0
        %v319 = vadd.f32 %v301, 0.0
        %v320 = vadd.f32 %v302, 0.0
        %v321 = vadd.f32 %v303, 0.0
        %v322 = vadd.f32 %v304, 0.0
        %s323 = scalar_lea.vmem %s1, 24
        %v324 = vld [vmem:[%s323] sm:$0xff]
        %v325 = vld [vmem:[%s323 + $0x8] sm:$0xff]
        %v326 = vld [vmem:[%s323 + $0x10] sm:$0xf]
        %328 = vset.pattern.permute.xlu0 0
        %329 = vperm.xlu0 %328, %v324
        %v330 = vpop.permute.xlu0 %329
        %333 = vset.pattern.permute.xlu0 0
        %334 = vperm.xlu0 %333, %v325
        %v335 = vpop.permute.xlu0 %334
        %338 = vset.pattern.permute.xlu0 0
        %339 = vperm.xlu0 %338, %v326
        %v340 = vpop.permute.xlu0 %339
        %v342 = vmul.f32 %v330, %v260
        %v343 = vmul.f32 %v330, %v264
        %v344 = vmul.f32 %v330, %v268
        %v345 = vmul.f32 %v330, %v272
        %v346 = vmul.f32 %v330, %v276
        %v347 = vmul.f32 %v330, %v280
        %v348 = vmul.f32 %v335, %v260
        %v349 = vmul.f32 %v335, %v264
        %v350 = vmul.f32 %v335, %v268
        %v351 = vmul.f32 %v335, %v272
        %v352 = vmul.f32 %v335, %v276
        %v353 = vmul.f32 %v335, %v280
        %v354 = vmul.f32 %v340, %v260
        %v355 = vmul.f32 %v340, %v264
        %v356 = vmul.f32 %v340, %v268
        %v357 = vmul.f32 %v340, %v272
        %v358 = vmul.f32 %v340, %v276
        %v359 = vmul.f32 %v340, %v280
        %378 = vrot.lane.b32.xlu0 %v342, 127
        %v379 = vpop.permute.xlu0 %378
        %380 = vrot.lane.b32.xlu0 %v343, 127
        %v381 = vpop.permute.xlu0 %380
        %382 = vrot.lane.b32.xlu0 %v344, 127
        %v383 = vpop.permute.xlu0 %382
        %384 = vrot.lane.b32.xlu0 %v345, 127
        %v385 = vpop.permute.xlu0 %384
        %386 = vrot.lane.b32.xlu0 %v346, 127
        %v387 = vpop.permute.xlu0 %386
        %388 = vrot.lane.b32.xlu0 %v347, 127
        %v389 = vpop.permute.xlu0 %388
        %390 = vrot.lane.b32.xlu0 %v348, 127
        %v391 = vpop.permute.xlu0 %390
        %392 = vrot.lane.b32.xlu0 %v349, 127
        %v393 = vpop.permute.xlu0 %392
        %394 = vrot.lane.b32.xlu0 %v350, 127
        %v395 = vpop.permute.xlu0 %394
        %396 = vrot.lane.b32.xlu0 %v351, 127
        %v397 = vpop.permute.xlu0 %396
        %398 = vrot.lane.b32.xlu0 %v352, 127
        %v399 = vpop.permute.xlu0 %398
        %400 = vrot.lane.b32.xlu0 %v353, 127
        %v401 = vpop.permute.xlu0 %400
        %402 = vrot.lane.b32.xlu0 %v354, 127
        %v403 = vpop.permute.xlu0 %402
        %404 = vrot.lane.b32.xlu0 %v355, 127
        %v405 = vpop.permute.xlu0 %404
        %406 = vrot.lane.b32.xlu0 %v356, 127
        %v407 = vpop.permute.xlu0 %406
        %408 = vrot.lane.b32.xlu0 %v357, 127
        %v409 = vpop.permute.xlu0 %408
        %410 = vrot.lane.b32.xlu0 %v358, 127
        %v411 = vpop.permute.xlu0 %410
        %412 = vrot.lane.b32.xlu0 %v359, 127
        %v413 = vpop.permute.xlu0 %412
        %vm414 = vcmask 1039360
        %v415 = vsel %vm414, %v379, %v381
        %v416 = vsel %vm414, %v381, %v383
        %v417 = vsel %vm414, %v383, %v385
        %v418 = vsel %vm414, %v385, %v387
        %v419 = vsel %vm414, %v387, %v389
        %v420 = vsel %vm414, %v391, %v393
        %v421 = vsel %vm414, %v393, %v395
        %v422 = vsel %vm414, %v395, %v397
        %v423 = vsel %vm414, %v397, %v399
        %v424 = vsel %vm414, %v399, %v401
        %v425 = vsel %vm414, %v403, %v405
        %v426 = vsel %vm414, %v405, %v407
        %v427 = vsel %vm414, %v407, %v409
        %v428 = vsel %vm414, %v409, %v411
        %v429 = vsel %vm414, %v411, %v413
        %v448 = vadd.f32 %v305, %v415
        %v449 = vadd.f32 %v306, %v416
        %v450 = vadd.f32 %v307, %v417
        %v451 = vadd.f32 %v308, %v418
        %v452 = vadd.f32 %v309, %v419
        %v453 = vadd.f32 %v310, %v389
        %v454 = vadd.f32 %v311, %v420
        %v455 = vadd.f32 %v312, %v421
        %v456 = vadd.f32 %v313, %v422
        %v457 = vadd.f32 %v314, %v423
        %v458 = vadd.f32 %v315, %v424
        %v459 = vadd.f32 %v316, %v401
        %v460 = vadd.f32 %v317, %v425
        %v461 = vadd.f32 %v318, %v426
        %v462 = vadd.f32 %v319, %v427
        %v463 = vadd.f32 %v320, %v428
        %v464 = vadd.f32 %v321, %v429
        %v465 = vadd.f32 %v322, %v413
        %s466 = scalar_lea.vmem %s1, 48
        %v467 = vld [vmem:[%s466] sm:$0xff]
        %v468 = vld [vmem:[%s466 + $0x8] sm:$0xff]
        %v469 = vld [vmem:[%s466 + $0x10] sm:$0xf]
        %471 = vset.pattern.permute.xlu0 0
        %472 = vperm.xlu0 %471, %v467
        %v473 = vpop.permute.xlu0 %472
        %476 = vset.pattern.permute.xlu0 0
        %477 = vperm.xlu0 %476, %v468
        %v478 = vpop.permute.xlu0 %477
        %481 = vset.pattern.permute.xlu0 0
        %482 = vperm.xlu0 %481, %v469
        %v483 = vpop.permute.xlu0 %482
        %v485 = vmul.f32 %v473, %v260
        %v486 = vmul.f32 %v473, %v264
        %v487 = vmul.f32 %v473, %v268
        %v488 = vmul.f32 %v473, %v272
        %v489 = vmul.f32 %v473, %v276
        %v490 = vmul.f32 %v473, %v280
        %v491 = vmul.f32 %v478, %v260
        %v492 = vmul.f32 %v478, %v264
        %v493 = vmul.f32 %v478, %v268
        %v494 = vmul.f32 %v478, %v272
        %v495 = vmul.f32 %v478, %v276
        %v496 = vmul.f32 %v478, %v280
        %v497 = vmul.f32 %v483, %v260
        %v498 = vmul.f32 %v483, %v264
        %v499 = vmul.f32 %v483, %v268
        %v500 = vmul.f32 %v483, %v272
        %v501 = vmul.f32 %v483, %v276
        %v502 = vmul.f32 %v483, %v280
        %521 = vrot.lane.b32.xlu0 %v485, 126
        %v522 = vpop.permute.xlu0 %521
        %523 = vrot.lane.b32.xlu0 %v486, 126
        %v524 = vpop.permute.xlu0 %523
        %525 = vrot.lane.b32.xlu0 %v487, 126
        %v526 = vpop.permute.xlu0 %525
        %527 = vrot.lane.b32.xlu0 %v488, 126
        %v528 = vpop.permute.xlu0 %527
        %529 = vrot.lane.b32.xlu0 %v489, 126
        %v530 = vpop.permute.xlu0 %529
        %531 = vrot.lane.b32.xlu0 %v490, 126
        %v532 = vpop.permute.xlu0 %531
        %533 = vrot.lane.b32.xlu0 %v491, 126
        %v534 = vpop.permute.xlu0 %533
        %535 = vrot.lane.b32.xlu0 %v492, 126
        %v536 = vpop.permute.xlu0 %535
        %537 = vrot.lane.b32.xlu0 %v493, 126
        %v538 = vpop.permute.xlu0 %537
        %539 = vrot.lane.b32.xlu0 %v494, 126
        %v540 = vpop.permute.xlu0 %539
        %541 = vrot.lane.b32.xlu0 %v495, 126
        %v542 = vpop.permute.xlu0 %541
        %543 = vrot.lane.b32.xlu0 %v496, 126
        %v544 = vpop.permute.xlu0 %543
        %545 = vrot.lane.b32.xlu0 %v497, 126
        %v546 = vpop.permute.xlu0 %545
        %547 = vrot.lane.b32.xlu0 %v498, 126
        %v548 = vpop.permute.xlu0 %547
        %549 = vrot.lane.b32.xlu0 %v499, 126
        %v550 = vpop.permute.xlu0 %549
        %551 = vrot.lane.b32.xlu0 %v500, 126
        %v552 = vpop.permute.xlu0 %551
        %553 = vrot.lane.b32.xlu0 %v501, 126
        %v554 = vpop.permute.xlu0 %553
        %555 = vrot.lane.b32.xlu0 %v502, 126
        %v556 = vpop.permute.xlu0 %555
        %vm557 = vcmask 1031168
        %v558 = vsel %vm557, %v522, %v524
        %v559 = vsel %vm557, %v524, %v526
        %v560 = vsel %vm557, %v526, %v528
        %v561 = vsel %vm557, %v528, %v530
        %v562 = vsel %vm557, %v530, %v532
        %v563 = vsel %vm557, %v534, %v536
        %v564 = vsel %vm557, %v536, %v538
        %v565 = vsel %vm557, %v538, %v540
        %v566 = vsel %vm557, %v540, %v542
        %v567 = vsel %vm557, %v542, %v544
        %v568 = vsel %vm557, %v546, %v548
        %v569 = vsel %vm557, %v548, %v550
        %v570 = vsel %vm557, %v550, %v552
        %v571 = vsel %vm557, %v552, %v554
        %v572 = vsel %vm557, %v554, %v556
        %v591 = vadd.f32 %v448, %v558
        %v592 = vadd.f32 %v449, %v559
        %v593 = vadd.f32 %v450, %v560
        %v594 = vadd.f32 %v451, %v561
        %v595 = vadd.f32 %v452, %v562
        %v596 = vadd.f32 %v453, %v532
        %v597 = vadd.f32 %v454, %v563
        %v598 = vadd.f32 %v455, %v564
        %v599 = vadd.f32 %v456, %v565
        %v600 = vadd.f32 %v457, %v566
        %v601 = vadd.f32 %v458, %v567
        %v602 = vadd.f32 %v459, %v544
        %v603 = vadd.f32 %v460, %v568
        %v604 = vadd.f32 %v461, %v569
        %v605 = vadd.f32 %v462, %v570
        %v606 = vadd.f32 %v463, %v571
        %v607 = vadd.f32 %v464, %v572
        %v608 = vadd.f32 %v465, %v556
        %s609 = scalar_lea.vmem %s1, 72
        %v610 = vld [vmem:[%s609] sm:$0xff]
        %v611 = vld [vmem:[%s609 + $0x8] sm:$0xff]
        %v612 = vld [vmem:[%s609 + $0x10] sm:$0xf]
        %614 = vset.pattern.permute.xlu0 0
        %615 = vperm.xlu0 %614, %v610
        %v616 = vpop.permute.xlu0 %615
        %619 = vset.pattern.permute.xlu0 0
        %620 = vperm.xlu0 %619, %v611
        %v621 = vpop.permute.xlu0 %620
        %624 = vset.pattern.permute.xlu0 0
        %625 = vperm.xlu0 %624, %v612
        %v626 = vpop.permute.xlu0 %625
        %v628 = vmul.f32 %v616, %v260
        %v629 = vmul.f32 %v616, %v264
        %v630 = vmul.f32 %v616, %v268
        %v631 = vmul.f32 %v616, %v272
        %v632 = vmul.f32 %v616, %v276
        %v633 = vmul.f32 %v616, %v280
        %v634 = vmul.f32 %v621, %v260
        %v635 = vmul.f32 %v621, %v264
        %v636 = vmul.f32 %v621, %v268
        %v637 = vmul.f32 %v621, %v272
        %v638 = vmul.f32 %v621, %v276
        %v639 = vmul.f32 %v621, %v280
        %v640 = vmul.f32 %v626, %v260
        %v641 = vmul.f32 %v626, %v264
        %v642 = vmul.f32 %v626, %v268
        %v643 = vmul.f32 %v626, %v272
        %v644 = vmul.f32 %v626, %v276
        %v645 = vmul.f32 %v626, %v280
        %664 = vrot.lane.b32.xlu0 %v628, 100
        %v665 = vpop.permute.xlu0 %664
        %666 = vrot.lane.b32.xlu0 %v629, 100
        %v667 = vpop.permute.xlu0 %666
        %668 = vrot.lane.b32.xlu0 %v630, 100
        %v669 = vpop.permute.xlu0 %668
        %670 = vrot.lane.b32.xlu0 %v631, 100
        %v671 = vpop.permute.xlu0 %670
        %672 = vrot.lane.b32.xlu0 %v632, 100
        %v673 = vpop.permute.xlu0 %672
        %674 = vrot.lane.b32.xlu0 %v633, 100
        %v675 = vpop.permute.xlu0 %674
        %676 = vrot.lane.b32.xlu0 %v634, 100
        %v677 = vpop.permute.xlu0 %676
        %678 = vrot.lane.b32.xlu0 %v635, 100
        %v679 = vpop.permute.xlu0 %678
        %680 = vrot.lane.b32.xlu0 %v636, 100
        %v681 = vpop.permute.xlu0 %680
        %682 = vrot.lane.b32.xlu0 %v637, 100
        %v683 = vpop.permute.xlu0 %682
        %684 = vrot.lane.b32.xlu0 %v638, 100
        %v685 = vpop.permute.xlu0 %684
        %686 = vrot.lane.b32.xlu0 %v639, 100
        %v687 = vpop.permute.xlu0 %686
        %688 = vrot.lane.b32.xlu0 %v640, 100
        %v689 = vpop.permute.xlu0 %688
        %690 = vrot.lane.b32.xlu0 %v641, 100
        %v691 = vpop.permute.xlu0 %690
        %692 = vrot.lane.b32.xlu0 %v642, 100
        %v693 = vpop.permute.xlu0 %692
        %694 = vrot.lane.b32.xlu0 %v643, 100
        %v695 = vpop.permute.xlu0 %694
        %696 = vrot.lane.b32.xlu0 %v644, 100
        %v697 = vpop.permute.xlu0 %696
        %698 = vrot.lane.b32.xlu0 %v645, 100
        %v699 = vpop.permute.xlu0 %698
        %vm700 = vcmask 818176
        %v701 = vsel %vm700, %v665, %v667
        %v702 = vsel %vm700, %v667, %v669
        %v703 = vsel %vm700, %v669, %v671
        %v704 = vsel %vm700, %v671, %v673
        %v705 = vsel %vm700, %v673, %v675
        %v706 = vsel %vm700, %v677, %v679
        %v707 = vsel %vm700, %v679, %v681
        %v708 = vsel %vm700, %v681, %v683
        %v709 = vsel %vm700, %v683, %v685
        %v710 = vsel %vm700, %v685, %v687
        %v711 = vsel %vm700, %v689, %v691
        %v712 = vsel %vm700, %v691, %v693
        %v713 = vsel %vm700, %v693, %v695
        %v714 = vsel %vm700, %v695, %v697
        %v715 = vsel %vm700, %v697, %v699
        %v734 = vadd.f32 %v591, %v701
        %v735 = vadd.f32 %v592, %v702
        %v736 = vadd.f32 %v593, %v703
        %v737 = vadd.f32 %v594, %v704
        %v738 = vadd.f32 %v595, %v705
        %v739 = vadd.f32 %v596, %v675
        %v740 = vadd.f32 %v597, %v706
        %v741 = vadd.f32 %v598, %v707
        %v742 = vadd.f32 %v599, %v708
        %v743 = vadd.f32 %v600, %v709
        %v744 = vadd.f32 %v601, %v710
        %v745 = vadd.f32 %v602, %v687
        %v746 = vadd.f32 %v603, %v711
        %v747 = vadd.f32 %v604, %v712
        %v748 = vadd.f32 %v605, %v713
        %v749 = vadd.f32 %v606, %v714
        %v750 = vadd.f32 %v607, %v715
        %v751 = vadd.f32 %v608, %v699
        %s752 = scalar_lea.vmem %s1, 96
        %v753 = vld [vmem:[%s752] sm:$0xff]
        %v754 = vld [vmem:[%s752 + $0x8] sm:$0xff]
        %v755 = vld [vmem:[%s752 + $0x10] sm:$0xf]
        %757 = vset.pattern.permute.xlu0 0
        %758 = vperm.xlu0 %757, %v753
        %v759 = vpop.permute.xlu0 %758
        %762 = vset.pattern.permute.xlu0 0
        %763 = vperm.xlu0 %762, %v754
        %v764 = vpop.permute.xlu0 %763
        %767 = vset.pattern.permute.xlu0 0
        %768 = vperm.xlu0 %767, %v755
        %v769 = vpop.permute.xlu0 %768
        %v771 = vmul.f32 %v759, %v260
        %v772 = vmul.f32 %v759, %v264
        %v773 = vmul.f32 %v759, %v268
        %v774 = vmul.f32 %v759, %v272
        %v775 = vmul.f32 %v759, %v276
        %v776 = vmul.f32 %v759, %v280
        %v777 = vmul.f32 %v764, %v260
        %v778 = vmul.f32 %v764, %v264
        %v779 = vmul.f32 %v764, %v268
        %v780 = vmul.f32 %v764, %v272
        %v781 = vmul.f32 %v764, %v276
        %v782 = vmul.f32 %v764, %v280
        %v783 = vmul.f32 %v769, %v260
        %v784 = vmul.f32 %v769, %v264
        %v785 = vmul.f32 %v769, %v268
        %v786 = vmul.f32 %v769, %v272
        %v787 = vmul.f32 %v769, %v276
        %v788 = vmul.f32 %v769, %v280
        %807 = vrot.lane.b32.xlu0 %v771, 99
        %v808 = vpop.permute.xlu0 %807
        %809 = vrot.lane.b32.xlu0 %v772, 99
        %v810 = vpop.permute.xlu0 %809
        %811 = vrot.lane.b32.xlu0 %v773, 99
        %v812 = vpop.permute.xlu0 %811
        %813 = vrot.lane.b32.xlu0 %v774, 99
        %v814 = vpop.permute.xlu0 %813
        %815 = vrot.lane.b32.xlu0 %v775, 99
        %v816 = vpop.permute.xlu0 %815
        %817 = vrot.lane.b32.xlu0 %v776, 99
        %v818 = vpop.permute.xlu0 %817
        %819 = vrot.lane.b32.xlu0 %v777, 99
        %v820 = vpop.permute.xlu0 %819
        %821 = vrot.lane.b32.xlu0 %v778, 99
        %v822 = vpop.permute.xlu0 %821
        %823 = vrot.lane.b32.xlu0 %v779, 99
        %v824 = vpop.permute.xlu0 %823
        %825 = vrot.lane.b32.xlu0 %v780, 99
        %v826 = vpop.permute.xlu0 %825
        %827 = vrot.lane.b32.xlu0 %v781, 99
        %v828 = vpop.permute.xlu0 %827
        %829 = vrot.lane.b32.xlu0 %v782, 99
        %v830 = vpop.permute.xlu0 %829
        %831 = vrot.lane.b32.xlu0 %v783, 99
        %v832 = vpop.permute.xlu0 %831
        %833 = vrot.lane.b32.xlu0 %v784, 99
        %v834 = vpop.permute.xlu0 %833
        %835 = vrot.lane.b32.xlu0 %v785, 99
        %v836 = vpop.permute.xlu0 %835
        %837 = vrot.lane.b32.xlu0 %v786, 99
        %v838 = vpop.permute.xlu0 %837
        %839 = vrot.lane.b32.xlu0 %v787, 99
        %v840 = vpop.permute.xlu0 %839
        %841 = vrot.lane.b32.xlu0 %v788, 99
        %v842 = vpop.permute.xlu0 %841
        %vm843 = vcmask 809984
        %v844 = vsel %vm843, %v808, %v810
        %v845 = vsel %vm843, %v810, %v812
        %v846 = vsel %vm843, %v812, %v814
        %v847 = vsel %vm843, %v814, %v816
        %v848 = vsel %vm843, %v816, %v818
        %v849 = vsel %vm843, %v820, %v822
        %v850 = vsel %vm843, %v822, %v824
        %v851 = vsel %vm843, %v824, %v826
        %v852 = vsel %vm843, %v826, %v828
        %v853 = vsel %vm843, %v828, %v830
        %v854 = vsel %vm843, %v832, %v834
        %v855 = vsel %vm843, %v834, %v836
        %v856 = vsel %vm843, %v836, %v838
        %v857 = vsel %vm843, %v838, %v840
        %v858 = vsel %vm843, %v840, %v842
        %v877 = vadd.f32 %v734, %v844
        %v878 = vadd.f32 %v735, %v845
        %v879 = vadd.f32 %v736, %v846
        %v880 = vadd.f32 %v737, %v847
        %v881 = vadd.f32 %v738, %v848
        %v882 = vadd.f32 %v739, %v818
        %v883 = vadd.f32 %v740, %v849
        %v884 = vadd.f32 %v741, %v850
        %v885 = vadd.f32 %v742, %v851
        %v886 = vadd.f32 %v743, %v852
        %v887 = vadd.f32 %v744, %v853
        %v888 = vadd.f32 %v745, %v830
        %v889 = vadd.f32 %v746, %v854
        %v890 = vadd.f32 %v747, %v855
        %v891 = vadd.f32 %v748, %v856
        %v892 = vadd.f32 %v749, %v857
        %v893 = vadd.f32 %v750, %v858
        %v894 = vadd.f32 %v751, %v842
        %s895 = scalar_lea.vmem %s1, 120
        %v896 = vld [vmem:[%s895] sm:$0xff]
        %v897 = vld [vmem:[%s895 + $0x8] sm:$0xff]
        %v898 = vld [vmem:[%s895 + $0x10] sm:$0xf]
        %900 = vset.pattern.permute.xlu0 0
        %901 = vperm.xlu0 %900, %v896
        %v902 = vpop.permute.xlu0 %901
        %905 = vset.pattern.permute.xlu0 0
        %906 = vperm.xlu0 %905, %v897
        %v907 = vpop.permute.xlu0 %906
        %910 = vset.pattern.permute.xlu0 0
        %911 = vperm.xlu0 %910, %v898
        %v912 = vpop.permute.xlu0 %911
        %v914 = vmul.f32 %v902, %v260
        %v915 = vmul.f32 %v902, %v264
        %v916 = vmul.f32 %v902, %v268
        %v917 = vmul.f32 %v902, %v272
        %v918 = vmul.f32 %v902, %v276
        %v919 = vmul.f32 %v902, %v280
        %v920 = vmul.f32 %v907, %v260
        %v921 = vmul.f32 %v907, %v264
        %v922 = vmul.f32 %v907, %v268
        %v923 = vmul.f32 %v907, %v272
        %v924 = vmul.f32 %v907, %v276
        %v925 = vmul.f32 %v907, %v280
        %v926 = vmul.f32 %v912, %v260
        %v927 = vmul.f32 %v912, %v264
        %v928 = vmul.f32 %v912, %v268
        %v929 = vmul.f32 %v912, %v272
        %v930 = vmul.f32 %v912, %v276
        %v931 = vmul.f32 %v912, %v280
        %950 = vrot.lane.b32.xlu0 %v914, 98
        %v951 = vpop.permute.xlu0 %950
        %952 = vrot.lane.b32.xlu0 %v915, 98
        %v953 = vpop.permute.xlu0 %952
        %954 = vrot.lane.b32.xlu0 %v916, 98
        %v955 = vpop.permute.xlu0 %954
        %956 = vrot.lane.b32.xlu0 %v917, 98
        %v957 = vpop.permute.xlu0 %956
        %958 = vrot.lane.b32.xlu0 %v918, 98
        %v959 = vpop.permute.xlu0 %958
        %960 = vrot.lane.b32.xlu0 %v919, 98
        %v961 = vpop.permute.xlu0 %960
        %962 = vrot.lane.b32.xlu0 %v920, 98
        %v963 = vpop.permute.xlu0 %962
        %964 = vrot.lane.b32.xlu0 %v921, 98
        %v965 = vpop.permute.xlu0 %964
        %966 = vrot.lane.b32.xlu0 %v922, 98
        %v967 = vpop.permute.xlu0 %966
        %968 = vrot.lane.b32.xlu0 %v923, 98
        %v969 = vpop.permute.xlu0 %968
        %970 = vrot.lane.b32.xlu0 %v924, 98
        %v971 = vpop.permute.xlu0 %970
        %972 = vrot.lane.b32.xlu0 %v925, 98
        %v973 = vpop.permute.xlu0 %972
        %974 = vrot.lane.b32.xlu0 %v926, 98
        %v975 = vpop.permute.xlu0 %974
        %976 = vrot.lane.b32.xlu0 %v927, 98
        %v977 = vpop.permute.xlu0 %976
        %978 = vrot.lane.b32.xlu0 %v928, 98
        %v979 = vpop.permute.xlu0 %978
        %980 = vrot.lane.b32.xlu0 %v929, 98
        %v981 = vpop.permute.xlu0 %980
        %982 = vrot.lane.b32.xlu0 %v930, 98
        %v983 = vpop.permute.xlu0 %982
        %984 = vrot.lane.b32.xlu0 %v931, 98
        %v985 = vpop.permute.xlu0 %984
        %vm986 = vcmask 801792
        %v987 = vsel %vm986, %v951, %v953
        %v988 = vsel %vm986, %v953, %v955
        %v989 = vsel %vm986, %v955, %v957
        %v990 = vsel %vm986, %v957, %v959
        %v991 = vsel %vm986, %v959, %v961
        %v992 = vsel %vm986, %v963, %v965
        %v993 = vsel %vm986, %v965, %v967
        %v994 = vsel %vm986, %v967, %v969
        %v995 = vsel %vm986, %v969, %v971
        %v996 = vsel %vm986, %v971, %v973
        %v997 = vsel %vm986, %v975, %v977
        %v998 = vsel %vm986, %v977, %v979
        %v999 = vsel %vm986, %v979, %v981
        %v1000 = vsel %vm986, %v981, %v983
        %v1001 = vsel %vm986, %v983, %v985
        %v1020 = vadd.f32 %v877, %v987
        %v1021 = vadd.f32 %v878, %v988
        %v1022 = vadd.f32 %v879, %v989
        %v1023 = vadd.f32 %v880, %v990
        %v1024 = vadd.f32 %v881, %v991
        %v1025 = vadd.f32 %v882, %v961
        %v1026 = vadd.f32 %v883, %v992
        %v1027 = vadd.f32 %v884, %v993
        %v1028 = vadd.f32 %v885, %v994
        %v1029 = vadd.f32 %v886, %v995
        %v1030 = vadd.f32 %v887, %v996
        %v1031 = vadd.f32 %v888, %v973
        %v1032 = vadd.f32 %v889, %v997
        %v1033 = vadd.f32 %v890, %v998
        %v1034 = vadd.f32 %v891, %v999
        %v1035 = vadd.f32 %v892, %v1000
        %v1036 = vadd.f32 %v893, %v1001
        %v1037 = vadd.f32 %v894, %v985
        %v1038 = vld [vmem:[%s231] sm:$0x7f]
        %s1039 = scalar_lea.vmem %s1, 144
        %v1040 = vld [vmem:[%s1039] sm:$0xff]
        %v1041 = vld [vmem:[%s1039 + $0x8] sm:$0xff]
        %v1042 = vld [vmem:[%s1039 + $0x10] sm:$0xf]
        %1044 = vset.pattern.permute.xlu0 0
        %1045 = vperm.xlu0 %1044, %v1040
        %v1046 = vpop.permute.xlu0 %1045
        %1049 = vset.pattern.permute.xlu0 0
        %1050 = vperm.xlu0 %1049, %v1041
        %v1051 = vpop.permute.xlu0 %1050
        %1054 = vset.pattern.permute.xlu0 0
        %1055 = vperm.xlu0 %1054, %v1042
        %v1056 = vpop.permute.xlu0 %1055
        %v1059 = vlaneseq
        %v1060 = vshrl.u32 %v1059, 7
        %v1061 = vsub.s32 0, %v1060
        %v1062 = vrot.slane %v1038, %v1061
        %v1063 = vlaneseq
        %v1064 = vshrl.u32 %v1063, 7
        %v1065 = vsub.s32 1, %v1064
        %v1066 = vrot.slane %v1038, %v1065
        %v1067 = vlaneseq
        %v1068 = vshrl.u32 %v1067, 7
        %v1069 = vsub.s32 2, %v1068
        %v1070 = vrot.slane %v1038, %v1069
        %v1071 = vlaneseq
        %v1072 = vshrl.u32 %v1071, 7
        %v1073 = vsub.s32 3, %v1072
        %v1074 = vrot.slane %v1038, %v1073
        %v1075 = vlaneseq
        %v1076 = vshrl.u32 %v1075, 7
        %v1077 = vsub.s32 4, %v1076
        %v1078 = vrot.slane %v1038, %v1077
        %v1079 = vlaneseq
        %v1080 = vshrl.u32 %v1079, 7
        %v1081 = vsub.s32 5, %v1080
        %v1082 = vrot.slane %v1038, %v1081
        %v1083 = vlaneseq
        %v1084 = vshrl.u32 %v1083, 7
        %v1085 = vsub.s32 6, %v1084
        %v1086 = vrot.slane %v1038, %v1085
        %v1094 = vmul.f32 %v1046, %v1062
        %v1095 = vmul.f32 %v1046, %v1066
        %v1096 = vmul.f32 %v1046, %v1070
        %v1097 = vmul.f32 %v1046, %v1074
        %v1098 = vmul.f32 %v1046, %v1078
        %v1099 = vmul.f32 %v1046, %v1082
        %v1100 = vmul.f32 %v1046, %v1086
        %v1101 = vmul.f32 %v1051, %v1062
        %v1102 = vmul.f32 %v1051, %v1066
        %v1103 = vmul.f32 %v1051, %v1070
        %v1104 = vmul.f32 %v1051, %v1074
        %v1105 = vmul.f32 %v1051, %v1078
        %v1106 = vmul.f32 %v1051, %v1082
        %v1107 = vmul.f32 %v1051, %v1086
        %v1108 = vmul.f32 %v1056, %v1062
        %v1109 = vmul.f32 %v1056, %v1066
        %v1110 = vmul.f32 %v1056, %v1070
        %v1111 = vmul.f32 %v1056, %v1074
        %v1112 = vmul.f32 %v1056, %v1078
        %v1113 = vmul.f32 %v1056, %v1082
        %v1114 = vmul.f32 %v1056, %v1086
        %1136 = vrot.lane.b32.xlu0 %v1094, 72
        %v1137 = vpop.permute.xlu0 %1136
        %1138 = vrot.lane.b32.xlu0 %v1095, 72
        %v1139 = vpop.permute.xlu0 %1138
        %1140 = vrot.lane.b32.xlu0 %v1096, 72
        %v1141 = vpop.permute.xlu0 %1140
        %1142 = vrot.lane.b32.xlu0 %v1097, 72
        %v1143 = vpop.permute.xlu0 %1142
        %1144 = vrot.lane.b32.xlu0 %v1098, 72
        %v1145 = vpop.permute.xlu0 %1144
        %1146 = vrot.lane.b32.xlu0 %v1099, 72
        %v1147 = vpop.permute.xlu0 %1146
        %1148 = vrot.lane.b32.xlu0 %v1100, 72
        %v1149 = vpop.permute.xlu0 %1148
        %1150 = vrot.lane.b32.xlu0 %v1101, 72
        %v1151 = vpop.permute.xlu0 %1150
        %1152 = vrot.lane.b32.xlu0 %v1102, 72
        %v1153 = vpop.permute.xlu0 %1152
        %1154 = vrot.lane.b32.xlu0 %v1103, 72
        %v1155 = vpop.permute.xlu0 %1154
        %1156 = vrot.lane.b32.xlu0 %v1104, 72
        %v1157 = vpop.permute.xlu0 %1156
        %1158 = vrot.lane.b32.xlu0 %v1105, 72
        %v1159 = vpop.permute.xlu0 %1158
        %1160 = vrot.lane.b32.xlu0 %v1106, 72
        %v1161 = vpop.permute.xlu0 %1160
        %1162 = vrot.lane.b32.xlu0 %v1107, 72
        %v1163 = vpop.permute.xlu0 %1162
        %1164 = vrot.lane.b32.xlu0 %v1108, 72
        %v1165 = vpop.permute.xlu0 %1164
        %1166 = vrot.lane.b32.xlu0 %v1109, 72
        %v1167 = vpop.permute.xlu0 %1166
        %1168 = vrot.lane.b32.xlu0 %v1110, 72
        %v1169 = vpop.permute.xlu0 %1168
        %1170 = vrot.lane.b32.xlu0 %v1111, 72
        %v1171 = vpop.permute.xlu0 %1170
        %1172 = vrot.lane.b32.xlu0 %v1112, 72
        %v1173 = vpop.permute.xlu0 %1172
        %1174 = vrot.lane.b32.xlu0 %v1113, 72
        %v1175 = vpop.permute.xlu0 %1174
        %1176 = vrot.lane.b32.xlu0 %v1114, 72
        %v1177 = vpop.permute.xlu0 %1176
        %vm1178 = vcmask 588800
        %v1179 = vsel %vm1178, %v1137, %v1139
        %v1180 = vsel %vm1178, %v1139, %v1141
        %v1181 = vsel %vm1178, %v1141, %v1143
        %v1182 = vsel %vm1178, %v1143, %v1145
        %v1183 = vsel %vm1178, %v1145, %v1147
        %v1184 = vsel %vm1178, %v1147, %v1149
        %v1185 = vsel %vm1178, %v1151, %v1153
        %v1186 = vsel %vm1178, %v1153, %v1155
        %v1187 = vsel %vm1178, %v1155, %v1157
        %v1188 = vsel %vm1178, %v1157, %v1159
        %v1189 = vsel %vm1178, %v1159, %v1161
        %v1190 = vsel %vm1178, %v1161, %v1163
        %v1191 = vsel %vm1178, %v1165, %v1167
        %v1192 = vsel %vm1178, %v1167, %v1169
        %v1193 = vsel %vm1178, %v1169, %v1171
        %v1194 = vsel %vm1178, %v1171, %v1173
        %v1195 = vsel %vm1178, %v1173, %v1175
        %v1196 = vsel %vm1178, %v1175, %v1177
        %v1215 = vadd.f32 %v1020, %v1179
        %v1216 = vadd.f32 %v1021, %v1180
        %v1217 = vadd.f32 %v1022, %v1181
        %v1218 = vadd.f32 %v1023, %v1182
        %v1219 = vadd.f32 %v1024, %v1183
        %v1220 = vadd.f32 %v1025, %v1184
        %v1221 = vadd.f32 %v1026, %v1185
        %v1222 = vadd.f32 %v1027, %v1186
        %v1223 = vadd.f32 %v1028, %v1187
        %v1224 = vadd.f32 %v1029, %v1188
        %v1225 = vadd.f32 %v1030, %v1189
        %v1226 = vadd.f32 %v1031, %v1190
        %v1227 = vadd.f32 %v1032, %v1191
        %v1228 = vadd.f32 %v1033, %v1192
        %v1229 = vadd.f32 %v1034, %v1193
        %v1230 = vadd.f32 %v1035, %v1194
        %v1231 = vadd.f32 %v1036, %v1195
        %v1232 = vadd.f32 %v1037, %v1196
        %s1233 = scalar_lea.vmem %s1, 168
        %v1234 = vld [vmem:[%s1233] sm:$0xff]
        %v1235 = vld [vmem:[%s1233 + $0x8] sm:$0xff]
        %v1236 = vld [vmem:[%s1233 + $0x10] sm:$0xf]
        %1238 = vset.pattern.permute.xlu0 0
        %1239 = vperm.xlu0 %1238, %v1234
        %v1240 = vpop.permute.xlu0 %1239
        %1243 = vset.pattern.permute.xlu0 0
        %1244 = vperm.xlu0 %1243, %v1235
        %v1245 = vpop.permute.xlu0 %1244
        %1248 = vset.pattern.permute.xlu0 0
        %1249 = vperm.xlu0 %1248, %v1236
        %v1250 = vpop.permute.xlu0 %1249
        %v1252 = vmul.f32 %v1240, %v1062
        %v1253 = vmul.f32 %v1240, %v1066
        %v1254 = vmul.f32 %v1240, %v1070
        %v1255 = vmul.f32 %v1240, %v1074
        %v1256 = vmul.f32 %v1240, %v1078
        %v1257 = vmul.f32 %v1240, %v1082
        %v1258 = vmul.f32 %v1240, %v1086
        %v1259 = vmul.f32 %v1245, %v1062
        %v1260 = vmul.f32 %v1245, %v1066
        %v1261 = vmul.f32 %v1245, %v1070
        %v1262 = vmul.f32 %v1245, %v1074
        %v1263 = vmul.f32 %v1245, %v1078
        %v1264 = vmul.f32 %v1245, %v1082
        %v1265 = vmul.f32 %v1245, %v1086
        %v1266 = vmul.f32 %v1250, %v1062
        %v1267 = vmul.f32 %v1250, %v1066
        %v1268 = vmul.f32 %v1250, %v1070
        %v1269 = vmul.f32 %v1250, %v1074
        %v1270 = vmul.f32 %v1250, %v1078
        %v1271 = vmul.f32 %v1250, %v1082
        %v1272 = vmul.f32 %v1250, %v1086
        %1294 = vrot.lane.b32.xlu0 %v1252, 71
        %v1295 = vpop.permute.xlu0 %1294
        %1296 = vrot.lane.b32.xlu0 %v1253, 71
        %v1297 = vpop.permute.xlu0 %1296
        %1298 = vrot.lane.b32.xlu0 %v1254, 71
        %v1299 = vpop.permute.xlu0 %1298
        %1300 = vrot.lane.b32.xlu0 %v1255, 71
        %v1301 = vpop.permute.xlu0 %1300
        %1302 = vrot.lane.b32.xlu0 %v1256, 71
        %v1303 = vpop.permute.xlu0 %1302
        %1304 = vrot.lane.b32.xlu0 %v1257, 71
        %v1305 = vpop.permute.xlu0 %1304
        %1306 = vrot.lane.b32.xlu0 %v1258, 71
        %v1307 = vpop.permute.xlu0 %1306
        %1308 = vrot.lane.b32.xlu0 %v1259, 71
        %v1309 = vpop.permute.xlu0 %1308
        %1310 = vrot.lane.b32.xlu0 %v1260, 71
        %v1311 = vpop.permute.xlu0 %1310
        %1312 = vrot.lane.b32.xlu0 %v1261, 71
        %v1313 = vpop.permute.xlu0 %1312
        %1314 = vrot.lane.b32.xlu0 %v1262, 71
        %v1315 = vpop.permute.xlu0 %1314
        %1316 = vrot.lane.b32.xlu0 %v1263, 71
        %v1317 = vpop.permute.xlu0 %1316
        %1318 = vrot.lane.b32.xlu0 %v1264, 71
        %v1319 = vpop.permute.xlu0 %1318
        %1320 = vrot.lane.b32.xlu0 %v1265, 71
        %v1321 = vpop.permute.xlu0 %1320
        %1322 = vrot.lane.b32.xlu0 %v1266, 71
        %v1323 = vpop.permute.xlu0 %1322
        %1324 = vrot.lane.b32.xlu0 %v1267, 71
        %v1325 = vpop.permute.xlu0 %1324
        %1326 = vrot.lane.b32.xlu0 %v1268, 71
        %v1327 = vpop.permute.xlu0 %1326
        %1328 = vrot.lane.b32.xlu0 %v1269, 71
        %v1329 = vpop.permute.xlu0 %1328
        %1330 = vrot.lane.b32.xlu0 %v1270, 71
        %v1331 = vpop.permute.xlu0 %1330
        %1332 = vrot.lane.b32.xlu0 %v1271, 71
        %v1333 = vpop.permute.xlu0 %1332
        %1334 = vrot.lane.b32.xlu0 %v1272, 71
        %v1335 = vpop.permute.xlu0 %1334
        %vm1336 = vcmask 580608
        %v1337 = vsel %vm1336, %v1295, %v1297
        %v1338 = vsel %vm1336, %v1297, %v1299
        %v1339 = vsel %vm1336, %v1299, %v1301
        %v1340 = vsel %vm1336, %v1301, %v1303
        %v1341 = vsel %vm1336, %v1303, %v1305
        %v1342 = vsel %vm1336, %v1305, %v1307
        %v1343 = vsel %vm1336, %v1309, %v1311
        %v1344 = vsel %vm1336, %v1311, %v1313
        %v1345 = vsel %vm1336, %v1313, %v1315
        %v1346 = vsel %vm1336, %v1315, %v1317
        %v1347 = vsel %vm1336, %v1317, %v1319
        %v1348 = vsel %vm1336, %v1319, %v1321
        %v1349 = vsel %vm1336, %v1323, %v1325
        %v1350 = vsel %vm1336, %v1325, %v1327
        %v1351 = vsel %vm1336, %v1327, %v1329
        %v1352 = vsel %vm1336, %v1329, %v1331
        %v1353 = vsel %vm1336, %v1331, %v1333
        %v1354 = vsel %vm1336, %v1333, %v1335
        %v1373 = vadd.f32 %v1215, %v1337
        %v1374 = vadd.f32 %v1216, %v1338
        %v1375 = vadd.f32 %v1217, %v1339
        %v1376 = vadd.f32 %v1218, %v1340
        %v1377 = vadd.f32 %v1219, %v1341
        %v1378 = vadd.f32 %v1220, %v1342
        %v1379 = vadd.f32 %v1221, %v1343
        %v1380 = vadd.f32 %v1222, %v1344
        %v1381 = vadd.f32 %v1223, %v1345
        %v1382 = vadd.f32 %v1224, %v1346
        %v1383 = vadd.f32 %v1225, %v1347
        %v1384 = vadd.f32 %v1226, %v1348
        %v1385 = vadd.f32 %v1227, %v1349
        %v1386 = vadd.f32 %v1228, %v1350
        %v1387 = vadd.f32 %v1229, %v1351
        %v1388 = vadd.f32 %v1230, %v1352
        %v1389 = vadd.f32 %v1231, %v1353
        %v1390 = vadd.f32 %v1232, %v1354
        %s1391 = scalar_lea.vmem %s1, 192
        %v1392 = vld [vmem:[%s1391] sm:$0xff]
        %v1393 = vld [vmem:[%s1391 + $0x8] sm:$0xff]
        %v1394 = vld [vmem:[%s1391 + $0x10] sm:$0xf]
        %1396 = vset.pattern.permute.xlu0 0
        %1397 = vperm.xlu0 %1396, %v1392
        %v1398 = vpop.permute.xlu0 %1397
        %1401 = vset.pattern.permute.xlu0 0
        %1402 = vperm.xlu0 %1401, %v1393
        %v1403 = vpop.permute.xlu0 %1402
        %1406 = vset.pattern.permute.xlu0 0
        %1407 = vperm.xlu0 %1406, %v1394
        %v1408 = vpop.permute.xlu0 %1407
        %v1410 = vmul.f32 %v1398, %v1062
        %v1411 = vmul.f32 %v1398, %v1066
        %v1412 = vmul.f32 %v1398, %v1070
        %v1413 = vmul.f32 %v1398, %v1074
        %v1414 = vmul.f32 %v1398, %v1078
        %v1415 = vmul.f32 %v1398, %v1082
        %v1416 = vmul.f32 %v1398, %v1086
        %v1417 = vmul.f32 %v1403, %v1062
        %v1418 = vmul.f32 %v1403, %v1066
        %v1419 = vmul.f32 %v1403, %v1070
        %v1420 = vmul.f32 %v1403, %v1074
        %v1421 = vmul.f32 %v1403, %v1078
        %v1422 = vmul.f32 %v1403, %v1082
        %v1423 = vmul.f32 %v1403, %v1086
        %v1424 = vmul.f32 %v1408, %v1062
        %v1425 = vmul.f32 %v1408, %v1066
        %v1426 = vmul.f32 %v1408, %v1070
        %v1427 = vmul.f32 %v1408, %v1074
        %v1428 = vmul.f32 %v1408, %v1078
        %v1429 = vmul.f32 %v1408, %v1082
        %v1430 = vmul.f32 %v1408, %v1086
        %1452 = vrot.lane.b32.xlu0 %v1410, 70
        %v1453 = vpop.permute.xlu0 %1452
        %1454 = vrot.lane.b32.xlu0 %v1411, 70
        %v1455 = vpop.permute.xlu0 %1454
        %1456 = vrot.lane.b32.xlu0 %v1412, 70
        %v1457 = vpop.permute.xlu0 %1456
        %1458 = vrot.lane.b32.xlu0 %v1413, 70
        %v1459 = vpop.permute.xlu0 %1458
        %1460 = vrot.lane.b32.xlu0 %v1414, 70
        %v1461 = vpop.permute.xlu0 %1460
        %1462 = vrot.lane.b32.xlu0 %v1415, 70
        %v1463 = vpop.permute.xlu0 %1462
        %1464 = vrot.lane.b32.xlu0 %v1416, 70
        %v1465 = vpop.permute.xlu0 %1464
        %1466 = vrot.lane.b32.xlu0 %v1417, 70
        %v1467 = vpop.permute.xlu0 %1466
        %1468 = vrot.lane.b32.xlu0 %v1418, 70
        %v1469 = vpop.permute.xlu0 %1468
        %1470 = vrot.lane.b32.xlu0 %v1419, 70
        %v1471 = vpop.permute.xlu0 %1470
        %1472 = vrot.lane.b32.xlu0 %v1420, 70
        %v1473 = vpop.permute.xlu0 %1472
        %1474 = vrot.lane.b32.xlu0 %v1421, 70
        %v1475 = vpop.permute.xlu0 %1474
        %1476 = vrot.lane.b32.xlu0 %v1422, 70
        %v1477 = vpop.permute.xlu0 %1476
        %1478 = vrot.lane.b32.xlu0 %v1423, 70
        %v1479 = vpop.permute.xlu0 %1478
        %1480 = vrot.lane.b32.xlu0 %v1424, 70
        %v1481 = vpop.permute.xlu0 %1480
        %1482 = vrot.lane.b32.xlu0 %v1425, 70
        %v1483 = vpop.permute.xlu0 %1482
        %1484 = vrot.lane.b32.xlu0 %v1426, 70
        %v1485 = vpop.permute.xlu0 %1484
        %1486 = vrot.lane.b32.xlu0 %v1427, 70
        %v1487 = vpop.permute.xlu0 %1486
        %1488 = vrot.lane.b32.xlu0 %v1428, 70
        %v1489 = vpop.permute.xlu0 %1488
        %1490 = vrot.lane.b32.xlu0 %v1429, 70
        %v1491 = vpop.permute.xlu0 %1490
        %1492 = vrot.lane.b32.xlu0 %v1430, 70
        %v1493 = vpop.permute.xlu0 %1492
        %vm1494 = vcmask 572416
        %v1495 = vsel %vm1494, %v1453, %v1455
        %v1496 = vsel %vm1494, %v1455, %v1457
        %v1497 = vsel %vm1494, %v1457, %v1459
        %v1498 = vsel %vm1494, %v1459, %v1461
        %v1499 = vsel %vm1494, %v1461, %v1463
        %v1500 = vsel %vm1494, %v1463, %v1465
        %v1501 = vsel %vm1494, %v1467, %v1469
        %v1502 = vsel %vm1494, %v1469, %v1471
        %v1503 = vsel %vm1494, %v1471, %v1473
        %v1504 = vsel %vm1494, %v1473, %v1475
        %v1505 = vsel %vm1494, %v1475, %v1477
        %v1506 = vsel %vm1494, %v1477, %v1479
        %v1507 = vsel %vm1494, %v1481, %v1483
        %v1508 = vsel %vm1494, %v1483, %v1485
        %v1509 = vsel %vm1494, %v1485, %v1487
        %v1510 = vsel %vm1494, %v1487, %v1489
        %v1511 = vsel %vm1494, %v1489, %v1491
        %v1512 = vsel %vm1494, %v1491, %v1493
        %v1531 = vadd.f32 %v1373, %v1495
        %v1532 = vadd.f32 %v1374, %v1496
        %v1533 = vadd.f32 %v1375, %v1497
        %v1534 = vadd.f32 %v1376, %v1498
        %v1535 = vadd.f32 %v1377, %v1499
        %v1536 = vadd.f32 %v1378, %v1500
        %v1537 = vadd.f32 %v1379, %v1501
        %v1538 = vadd.f32 %v1380, %v1502
        %v1539 = vadd.f32 %v1381, %v1503
        %v1540 = vadd.f32 %v1382, %v1504
        %v1541 = vadd.f32 %v1383, %v1505
        %v1542 = vadd.f32 %v1384, %v1506
        %v1543 = vadd.f32 %v1385, %v1507
        %v1544 = vadd.f32 %v1386, %v1508
        %v1545 = vadd.f32 %v1387, %v1509
        %v1546 = vadd.f32 %v1388, %v1510
        %v1547 = vadd.f32 %v1389, %v1511
        %v1548 = vadd.f32 %v1390, %v1512
        %v1549 = vld [vmem:[%s2] sm:$0xff]
        %v1550 = vld [vmem:[%s2 + $0x8] sm:$0xff]
        %v1551 = vld [vmem:[%s2 + $0x10] sm:$0xf]
        %1553 = vset.pattern.permute.xlu0 0
        %1554 = vperm.xlu0 %1553, %v1549
        %v1555 = vpop.permute.xlu0 %1554
        %1558 = vset.pattern.permute.xlu0 0
        %1559 = vperm.xlu0 %1558, %v1550
        %v1560 = vpop.permute.xlu0 %1559
        %1563 = vset.pattern.permute.xlu0 0
        %1564 = vperm.xlu0 %1563, %v1551
        %v1565 = vpop.permute.xlu0 %1564
        %v1567 = vadd.f32 %v1531, %v1555
        %v1568 = vadd.f32 %v1532, %v1555
        %v1569 = vadd.f32 %v1533, %v1555
        %v1570 = vadd.f32 %v1534, %v1555
        %v1571 = vadd.f32 %v1535, %v1555
        %v1572 = vadd.f32 %v1536, %v1555
        %v1573 = vadd.f32 %v1537, %v1560
        %v1574 = vadd.f32 %v1538, %v1560
        %v1575 = vadd.f32 %v1539, %v1560
        %v1576 = vadd.f32 %v1540, %v1560
        %v1577 = vadd.f32 %v1541, %v1560
        %v1578 = vadd.f32 %v1542, %v1560
        %v1579 = vadd.f32 %v1543, %v1565
        %v1580 = vadd.f32 %v1544, %v1565
        %v1581 = vadd.f32 %v1545, %v1565
        %v1582 = vadd.f32 %v1546, %v1565
        %v1583 = vadd.f32 %v1547, %v1565
        %v1584 = vadd.f32 %v1548, %v1565
        %v1585 = vtanh.pop %v1567
        %v1586 = vtanh.pop %v1568
        %v1587 = vtanh.pop %v1569
        %v1588 = vtanh.pop %v1570
        %v1589 = vtanh.pop %v1571
        %v1590 = vtanh.pop %v1572
        %v1591 = vtanh.pop %v1573
        %v1592 = vtanh.pop %v1574
        %v1593 = vtanh.pop %v1575
        %v1594 = vtanh.pop %v1576
        %v1595 = vtanh.pop %v1577
        %v1596 = vtanh.pop %v1578
        %v1597 = vtanh.pop %v1579
        %v1598 = vtanh.pop %v1580
        %v1599 = vtanh.pop %v1581
        %v1600 = vtanh.pop %v1582
        %v1601 = vtanh.pop %v1583
        %v1602 = vtanh.pop %v1584
        %1603 = vst [vmem:[#allocation2] sm:$0xff] %v1585
        %1604 = vst [vmem:[#allocation2 + $0x8] sm:$0xff] %v1586
        %1605 = vst [vmem:[#allocation2 + $0x10] sm:$0xff] %v1587
        %1606 = vst [vmem:[#allocation2 + $0x18] sm:$0xff] %v1588
        %1607 = vst [vmem:[#allocation2 + $0x20] sm:$0xff] %v1589
        %vm1608 = vcmask 736256
        %1609 = vst.msk [vmem:[#allocation2 + $0x28] sm:$0xff] %vm1608, %v1590
        %1610 = vst [vmem:[#allocation2 + $0x30] sm:$0xff] %v1591
        %1611 = vst [vmem:[#allocation2 + $0x38] sm:$0xff] %v1592
        %1612 = vst [vmem:[#allocation2 + $0x40] sm:$0xff] %v1593
        %1613 = vst [vmem:[#allocation2 + $0x48] sm:$0xff] %v1594
        %1614 = vst [vmem:[#allocation2 + $0x50] sm:$0xff] %v1595
        %1615 = vst.msk [vmem:[#allocation2 + $0x58] sm:$0xff] %vm1608, %v1596
        %1616 = vst [vmem:[#allocation2 + $0x60] sm:$0xf] %v1597
        %1617 = vst [vmem:[#allocation2 + $0x68] sm:$0xf] %v1598
        %1618 = vst [vmem:[#allocation2 + $0x70] sm:$0xf] %v1599
        %1619 = vst [vmem:[#allocation2 + $0x78] sm:$0xf] %v1600
        %1620 = vst [vmem:[#allocation2 + $0x80] sm:$0xf] %v1601
        %vm1621 = vcmask 732160
        %1622 = vst.msk [vmem:[#allocation2 + $0x88] sm:$0xf] %vm1621, %v1602
        %v1623 = vld [vmem:[#allocation2] sm:$0xff]
        %v1624 = vld [vmem:[#allocation2 + $0x8] sm:$0xff]
        %v1625 = vld [vmem:[#allocation2 + $0x10] sm:$0xff]
        %v1626 = vld [vmem:[#allocation2 + $0x18] sm:$0xff]
        %v1627 = vld [vmem:[#allocation2 + $0x20] sm:$0xff]
        %v1628 = vld [vmem:[#allocation2 + $0x28] sm:$0xff]
        %v1629 = vld [vmem:[#allocation2 + $0x30] sm:$0xff]
        %v1630 = vld [vmem:[#allocation2 + $0x38] sm:$0xff]
        %v1631 = vld [vmem:[#allocation2 + $0x40] sm:$0xff]
        %v1632 = vld [vmem:[#allocation2 + $0x48] sm:$0xff]
        %v1633 = vld [vmem:[#allocation2 + $0x50] sm:$0xff]
        %v1634 = vld [vmem:[#allocation2 + $0x58] sm:$0xff]
        %v1635 = vld [vmem:[#allocation2 + $0x60] sm:$0xf]
        %v1636 = vld [vmem:[#allocation2 + $0x68] sm:$0xf]
        %v1637 = vld [vmem:[#allocation2 + $0x70] sm:$0xf]
        %v1638 = vld [vmem:[#allocation2 + $0x78] sm:$0xf]
        %v1639 = vld [vmem:[#allocation2 + $0x80] sm:$0xf]
        %v1640 = vld [vmem:[#allocation2 + $0x88] sm:$0xf]
        %v1641 = vld [vmem:[#allocation3] sm:$0xff]
        %v1642 = vld [vmem:[#allocation3 + $0x8] sm:$0x3]
        %s1643 = scalar_lea.vmem [#allocation3], 16
        %v1644 = vld [vmem:[%s1643] sm:$0xff]
        %v1645 = vld [vmem:[%s1643 + $0x8] sm:$0x3]
        %1664 = vrot.lane.b32.xlu0 %v1623, 127
        %v1665 = vpop.permute.xlu0 %1664
        %1666 = vrot.lane.b32.xlu0 %v1624, 127
        %v1667 = vpop.permute.xlu0 %1666
        %1668 = vrot.lane.b32.xlu0 %v1625, 127
        %v1669 = vpop.permute.xlu0 %1668
        %1670 = vrot.lane.b32.xlu0 %v1626, 127
        %v1671 = vpop.permute.xlu0 %1670
        %1672 = vrot.lane.b32.xlu0 %v1627, 127
        %v1673 = vpop.permute.xlu0 %1672
        %1674 = vrot.lane.b32.xlu0 %v1628, 127
        %v1675 = vpop.permute.xlu0 %1674
        %1676 = vrot.lane.b32.xlu0 %v1629, 127
        %v1677 = vpop.permute.xlu0 %1676
        %1678 = vrot.lane.b32.xlu0 %v1630, 127
        %v1679 = vpop.permute.xlu0 %1678
        %1680 = vrot.lane.b32.xlu0 %v1631, 127
        %v1681 = vpop.permute.xlu0 %1680
        %1682 = vrot.lane.b32.xlu0 %v1632, 127
        %v1683 = vpop.permute.xlu0 %1682
        %1684 = vrot.lane.b32.xlu0 %v1633, 127
        %v1685 = vpop.permute.xlu0 %1684
        %1686 = vrot.lane.b32.xlu0 %v1634, 127
        %v1687 = vpop.permute.xlu0 %1686
        %1688 = vrot.lane.b32.xlu0 %v1635, 127
        %v1689 = vpop.permute.xlu0 %1688
        %1690 = vrot.lane.b32.xlu0 %v1636, 127
        %v1691 = vpop.permute.xlu0 %1690
        %1692 = vrot.lane.b32.xlu0 %v1637, 127
        %v1693 = vpop.permute.xlu0 %1692
        %1694 = vrot.lane.b32.xlu0 %v1638, 127
        %v1695 = vpop.permute.xlu0 %1694
        %1696 = vrot.lane.b32.xlu0 %v1639, 127
        %v1697 = vpop.permute.xlu0 %1696
        %1698 = vrot.lane.b32.xlu0 %v1640, 127
        %v1699 = vpop.permute.xlu0 %1698
        %v1700 = vsel %vm414, %v1665, %v1667
        %v1701 = vsel %vm414, %v1667, %v1669
        %v1702 = vsel %vm414, %v1669, %v1671
        %v1703 = vsel %vm414, %v1671, %v1673
        %v1704 = vsel %vm414, %v1673, %v1675
        %v1705 = vsel %vm414, %v1677, %v1679
        %v1706 = vsel %vm414, %v1679, %v1681
        %v1707 = vsel %vm414, %v1681, %v1683
        %v1708 = vsel %vm414, %v1683, %v1685
        %v1709 = vsel %vm414, %v1685, %v1687
        %v1710 = vsel %vm414, %v1689, %v1691
        %v1711 = vsel %vm414, %v1691, %v1693
        %v1712 = vsel %vm414, %v1693, %v1695
        %v1713 = vsel %vm414, %v1695, %v1697
        %v1714 = vsel %vm414, %v1697, %v1699
        %vm1727 = vcmask 162816
        %v1729 = vsel %vm1727, %v1644, 0
        %v1732 = vsel %vm1727, %v1645, 0
        %vm1734 = vcmask 1043456
        %v1735 = vsel %vm1734, %v1710, 0
        %v1737 = vsel %vm1734, %v1711, 0
        %v1739 = vsel %vm1734, %v1712, 0
        %v1741 = vsel %vm1734, %v1713, 0
        %v1743 = vsel %vm1734, %v1714, 0
        %v1745 = vsel %vm1734, %v1699, 0
        %1747 = vmatprep.subr.mxu0 0.0
        %1748 = vmatpush1.msra.mxu0 0.0
        %1749 = vmatprep.subr.mxu0 0.0
        %1750 = vmatpush1.msra.mxu0 0.0
        %1751 = vmatprep.subr.mxu0 0.0
        %1752 = vmatpush1.msra.mxu0 0.0
        %1753 = vmatprep.subr.mxu0 0.0
        %1754 = vmatpush1.msra.mxu0 0.0
        %1755 = vmatprep.subr.mxu0 0.0
        %1756 = vmatpush1.msra.mxu0 0.0
        %1757 = vmatprep.subr.mxu0 0.0
        %1758 = vmatpush1.msra.mxu0 0.0
        %1759 = vmatprep.subr.mxu0 0.0
        %1760 = vmatpush1.msra.mxu0 0.0
        %1761 = vmatprep.subr.mxu0 0.0
        %1762 = vmatpush1.msra.mxu0 0.0
        %1763 = vmatprep.subr.mxu0 0.0
        %1764 = vmatpush1.msra.mxu0 0.0
        %1765 = vmatprep.subr.mxu0 0.0
        %1766 = vmatpush1.msra.mxu0 0.0
        %1767 = vmatprep.subr.mxu0 0.0
        %1768 = vmatpush1.msra.mxu0 0.0
        %1769 = vmatprep.subr.mxu0 0.0
        %1770 = vmatpush1.msra.mxu0 0.0
        %1771 = vmatprep.subr.mxu0 0.0
        %1772 = vmatpush1.msra.mxu0 0.0
        %1773 = vmatprep.subr.mxu0 %v1737
        %1774 = vmatpush1.msra.mxu0 %v1735
        %1775 = vmatprep.subr.mxu0 %v1706
        %1776 = vmatpush1.msra.mxu0 %v1705
        %1777 = vmatprep.subr.mxu0 %v1701
        %1778 = vmatpush1.msra.mxu0 %v1700
        %1779 = vmatprep.subr.mxu0 0.0
        %1780 = vmatpush2.msra.mxu0 0.0
        %1781 = vmatprep.subr.mxu0 0.0
        %1782 = vmatpush2.msra.mxu0 0.0
        %1783 = vmatprep.subr.mxu0 0.0
        %1784 = vmatpush2.msra.mxu0 0.0
        %1785 = vmatprep.subr.mxu0 0.0
        %1786 = vmatpush2.msra.mxu0 0.0
        %1787 = vmatprep.subr.mxu0 0.0
        %1788 = vmatpush2.msra.mxu0 0.0
        %1789 = vmatprep.subr.mxu0 0.0
        %1790 = vmatpush2.msra.mxu0 0.0
        %1791 = vmatprep.subr.mxu0 0.0
        %1792 = vmatpush2.msra.mxu0 0.0
        %1793 = vmatprep.subr.mxu0 0.0
        %1794 = vmatpush2.msra.mxu0 0.0
        %1795 = vmatprep.subr.mxu0 0.0
        %1796 = vmatpush2.msra.mxu0 0.0
        %1797 = vmatprep.subr.mxu0 0.0
        %1798 = vmatpush2.msra.mxu0 0.0
        %1799 = vmatprep.subr.mxu0 0.0
        %1800 = vmatpush2.msra.mxu0 0.0
        %1801 = vmatprep.subr.mxu0 0.0
        %1802 = vmatpush2.msra.mxu0 0.0
        %1803 = vmatprep.subr.mxu0 0.0
        %1804 = vmatpush2.msra.mxu0 0.0
        %1805 = vmatprep.subr.mxu0 0.0
        %1806 = vmatpush2.msra.mxu0 0.0
        %1807 = vmatprep.subr.mxu0 0.0
        %1808 = vmatpush2.msra.mxu0 0.0
        %1809 = vmatprep.subr.mxu0 0.0
        %1810 = vmatpush2.msra.mxu0 0.0
        %1811 = vmatprep.mubr.f32.mxu0 0.0
        %1812 = vmatmul.mubr.f32.gmra.mxu0 %v1729
        %v1813 = vpop.f32.mrf.mxu0
        %v1814 = vadd.f32 0.0, %v1813
        %v1815 = vpop.f32.mrf.mxu0
        %v1816 = vadd.f32 0.0, %v1815
        %1817 = vmatprep.mubr.f32.mxu0 0.0
        %1818 = vmatmul.mubr.f32.gmra.mxu0 %v1732
        %v1819 = vpop.f32.mrf.mxu0
        %v1820 = vadd.f32 0.0, %v1819
        %v1821 = vpop.f32.mrf.mxu0
        %v1822 = vadd.f32 0.0, %v1821
        %1823 = vdwg.mxu0
        %1824 = vmatprep.subr.mxu0 0.0
        %1825 = vmatpush1.msra.mxu0 0.0
        %1826 = vmatprep.subr.mxu0 0.0
        %1827 = vmatpush1.msra.mxu0 0.0
        %1828 = vmatprep.subr.mxu0 0.0
        %1829 = vmatpush1.msra.mxu0 0.0
        %1830 = vmatprep.subr.mxu0 0.0
        %1831 = vmatpush1.msra.mxu0 0.0
        %1832 = vmatprep.subr.mxu0 0.0
        %1833 = vmatpush1.msra.mxu0 0.0
        %1834 = vmatprep.subr.mxu0 0.0
        %1835 = vmatpush1.msra.mxu0 0.0
        %1836 = vmatprep.subr.mxu0 0.0
        %1837 = vmatpush1.msra.mxu0 0.0
        %1838 = vmatprep.subr.mxu0 0.0
        %1839 = vmatpush1.msra.mxu0 0.0
        %1840 = vmatprep.subr.mxu0 0.0
        %1841 = vmatpush1.msra.mxu0 0.0
        %1842 = vmatprep.subr.mxu0 0.0
        %1843 = vmatpush1.msra.mxu0 0.0
        %1844 = vmatprep.subr.mxu0 0.0
        %1845 = vmatpush1.msra.mxu0 0.0
        %1846 = vmatprep.subr.mxu0 0.0
        %1847 = vmatpush1.msra.mxu0 0.0
        %1848 = vmatprep.subr.mxu0 0.0
        %1849 = vmatpush1.msra.mxu0 0.0
        %1850 = vmatprep.subr.mxu0 %v1741
        %1851 = vmatpush1.msra.mxu0 %v1739
        %1852 = vmatprep.subr.mxu0 %v1708
        %1853 = vmatpush1.msra.mxu0 %v1707
        %1854 = vmatprep.subr.mxu0 %v1703
        %1855 = vmatpush1.msra.mxu0 %v1702
        %1856 = vmatprep.subr.mxu0 0.0
        %1857 = vmatpush2.msra.mxu0 0.0
        %1858 = vmatprep.subr.mxu0 0.0
        %1859 = vmatpush2.msra.mxu0 0.0
        %1860 = vmatprep.subr.mxu0 0.0
        %1861 = vmatpush2.msra.mxu0 0.0
        %1862 = vmatprep.subr.mxu0 0.0
        %1863 = vmatpush2.msra.mxu0 0.0
        %1864 = vmatprep.subr.mxu0 0.0
        %1865 = vmatpush2.msra.mxu0 0.0
        %1866 = vmatprep.subr.mxu0 0.0
        %1867 = vmatpush2.msra.mxu0 0.0
        %1868 = vmatprep.subr.mxu0 0.0
        %1869 = vmatpush2.msra.mxu0 0.0
        %1870 = vmatprep.subr.mxu0 0.0
        %1871 = vmatpush2.msra.mxu0 0.0
        %1872 = vmatprep.subr.mxu0 0.0
        %1873 = vmatpush2.msra.mxu0 0.0
        %1874 = vmatprep.subr.mxu0 0.0
        %1875 = vmatpush2.msra.mxu0 0.0
        %1876 = vmatprep.subr.mxu0 0.0
        %1877 = vmatpush2.msra.mxu0 0.0
        %1878 = vmatprep.subr.mxu0 0.0
        %1879 = vmatpush2.msra.mxu0 0.0
        %1880 = vmatprep.subr.mxu0 0.0
        %1881 = vmatpush2.msra.mxu0 0.0
        %1882 = vmatprep.subr.mxu0 0.0
        %1883 = vmatpush2.msra.mxu0 0.0
        %1884 = vmatprep.subr.mxu0 0.0
        %1885 = vmatpush2.msra.mxu0 0.0
        %1886 = vmatprep.subr.mxu0 0.0
        %1887 = vmatpush2.msra.mxu0 0.0
        %1888 = vmatprep.mubr.f32.mxu0 0.0
        %1889 = vmatmul.mubr.f32.gmra.mxu0 %v1729
        %v1890 = vpop.f32.mrf.mxu0
        %v1891 = vadd.f32 0.0, %v1890
        %v1892 = vpop.f32.mrf.mxu0
        %v1893 = vadd.f32 0.0, %v1892
        %1894 = vmatprep.mubr.f32.mxu0 0.0
        %1895 = vmatmul.mubr.f32.gmra.mxu0 %v1732
        %v1896 = vpop.f32.mrf.mxu0
        %v1897 = vadd.f32 0.0, %v1896
        %v1898 = vpop.f32.mrf.mxu0
        %v1899 = vadd.f32 0.0, %v1898
        %1900 = vdwg.mxu0
        %1901 = vmatprep.subr.mxu0 0.0
        %1902 = vmatpush1.msra.mxu0 0.0
        %1903 = vmatprep.subr.mxu0 0.0
        %1904 = vmatpush1.msra.mxu0 0.0
        %1905 = vmatprep.subr.mxu0 0.0
        %1906 = vmatpush1.msra.mxu0 0.0
        %1907 = vmatprep.subr.mxu0 0.0
        %1908 = vmatpush1.msra.mxu0 0.0
        %1909 = vmatprep.subr.mxu0 0.0
        %1910 = vmatpush1.msra.mxu0 0.0
        %1911 = vmatprep.subr.mxu0 0.0
        %1912 = vmatpush1.msra.mxu0 0.0
        %1913 = vmatprep.subr.mxu0 0.0
        %1914 = vmatpush1.msra.mxu0 0.0
        %1915 = vmatprep.subr.mxu0 0.0
        %1916 = vmatpush1.msra.mxu0 0.0
        %1917 = vmatprep.subr.mxu0 0.0
        %1918 = vmatpush1.msra.mxu0 0.0
        %1919 = vmatprep.subr.mxu0 0.0
        %1920 = vmatpush1.msra.mxu0 0.0
        %1921 = vmatprep.subr.mxu0 0.0
        %1922 = vmatpush1.msra.mxu0 0.0
        %1923 = vmatprep.subr.mxu0 0.0
        %1924 = vmatpush1.msra.mxu0 0.0
        %1925 = vmatprep.subr.mxu0 0.0
        %1926 = vmatpush1.msra.mxu0 0.0
        %1927 = vmatprep.subr.mxu0 %v1745
        %1928 = vmatpush1.msra.mxu0 %v1743
        %1929 = vmatprep.subr.mxu0 %v1687
        %1930 = vmatpush1.msra.mxu0 %v1709
        %1931 = vmatprep.subr.mxu0 %v1675
        %1932 = vmatpush1.msra.mxu0 %v1704
        %1933 = vmatprep.subr.mxu0 0.0
        %1934 = vmatpush2.msra.mxu0 0.0
        %1935 = vmatprep.subr.mxu0 0.0
        %1936 = vmatpush2.msra.mxu0 0.0
        %1937 = vmatprep.subr.mxu0 0.0
        %1938 = vmatpush2.msra.mxu0 0.0
        %1939 = vmatprep.subr.mxu0 0.0
        %1940 = vmatpush2.msra.mxu0 0.0
        %1941 = vmatprep.subr.mxu0 0.0
        %1942 = vmatpush2.msra.mxu0 0.0
        %1943 = vmatprep.subr.mxu0 0.0
        %1944 = vmatpush2.msra.mxu0 0.0
        %1945 = vmatprep.subr.mxu0 0.0
        %1946 = vmatpush2.msra.mxu0 0.0
        %1947 = vmatprep.subr.mxu0 0.0
        %1948 = vmatpush2.msra.mxu0 0.0
        %1949 = vmatprep.subr.mxu0 0.0
        %1950 = vmatpush2.msra.mxu0 0.0
        %1951 = vmatprep.subr.mxu0 0.0
        %1952 = vmatpush2.msra.mxu0 0.0
        %1953 = vmatprep.subr.mxu0 0.0
        %1954 = vmatpush2.msra.mxu0 0.0
        %1955 = vmatprep.subr.mxu0 0.0
        %1956 = vmatpush2.msra.mxu0 0.0
        %1957 = vmatprep.subr.mxu0 0.0
        %1958 = vmatpush2.msra.mxu0 0.0
        %1959 = vmatprep.subr.mxu0 0.0
        %1960 = vmatpush2.msra.mxu0 0.0
        %1961 = vmatprep.subr.mxu0 0.0
        %1962 = vmatpush2.msra.mxu0 0.0
        %1963 = vmatprep.subr.mxu0 0.0
        %1964 = vmatpush2.msra.mxu0 0.0
        %1965 = vmatprep.mubr.f32.mxu0 0.0
        %1966 = vmatmul.mubr.f32.gmra.mxu0 %v1729
        %v1967 = vpop.f32.mrf.mxu0
        %v1968 = vadd.f32 0.0, %v1967
        %v1969 = vpop.f32.mrf.mxu0
        %v1970 = vadd.f32 0.0, %v1969
        %1971 = vmatprep.mubr.f32.mxu0 0.0
        %1972 = vmatmul.mubr.f32.gmra.mxu0 %v1732
        %v1973 = vpop.f32.mrf.mxu0
        %v1974 = vadd.f32 0.0, %v1973
        %v1975 = vpop.f32.mrf.mxu0
        %v1976 = vadd.f32 0.0, %v1975
        %1977 = vdwg.mxu0
        %v1979 = vsel %vm1727, %v1641, 0
        %v1982 = vsel %vm1727, %v1642, 0
        %v1984 = vsel %vm1734, %v1635, 0
        %v1986 = vsel %vm1734, %v1636, 0
        %v1988 = vsel %vm1734, %v1637, 0
        %v1990 = vsel %vm1734, %v1638, 0
        %v1992 = vsel %vm1734, %v1639, 0
        %v1994 = vsel %vm1734, %v1640, 0
        %1996 = vmatprep.subr.mxu0 0.0
        %1997 = vmatpush1.msra.mxu0 0.0
        %1998 = vmatprep.subr.mxu0 0.0
        %1999 = vmatpush1.msra.mxu0 0.0
        %2000 = vmatprep.subr.mxu0 0.0
        %2001 = vmatpush1.msra.mxu0 0.0
        %2002 = vmatprep.subr.mxu0 0.0
        %2003 = vmatpush1.msra.mxu0 0.0
        %2004 = vmatprep.subr.mxu0 0.0
        %2005 = vmatpush1.msra.mxu0 0.0
        %2006 = vmatprep.subr.mxu0 0.0
        %2007 = vmatpush1.msra.mxu0 0.0
        %2008 = vmatprep.subr.mxu0 0.0
        %2009 = vmatpush1.msra.mxu0 0.0
        %2010 = vmatprep.subr.mxu0 0.0
        %2011 = vmatpush1.msra.mxu0 0.0
        %2012 = vmatprep.subr.mxu0 0.0
        %2013 = vmatpush1.msra.mxu0 0.0
        %2014 = vmatprep.subr.mxu0 0.0
        %2015 = vmatpush1.msra.mxu0 0.0
        %2016 = vmatprep.subr.mxu0 0.0
        %2017 = vmatpush1.msra.mxu0 0.0
        %2018 = vmatprep.subr.mxu0 0.0
        %2019 = vmatpush1.msra.mxu0 0.0
        %2020 = vmatprep.subr.mxu0 0.0
        %2021 = vmatpush1.msra.mxu0 0.0
        %2022 = vmatprep.subr.mxu0 %v1986
        %2023 = vmatpush1.msra.mxu0 %v1984
        %2024 = vmatprep.subr.mxu0 %v1630
        %2025 = vmatpush1.msra.mxu0 %v1629
        %2026 = vmatprep.subr.mxu0 %v1624
        %2027 = vmatpush1.msra.mxu0 %v1623
        %2028 = vmatprep.subr.mxu0 0.0
        %2029 = vmatpush2.msra.mxu0 0.0
        %2030 = vmatprep.subr.mxu0 0.0
        %2031 = vmatpush2.msra.mxu0 0.0
        %2032 = vmatprep.subr.mxu0 0.0
        %2033 = vmatpush2.msra.mxu0 0.0
        %2034 = vmatprep.subr.mxu0 0.0
        %2035 = vmatpush2.msra.mxu0 0.0
        %2036 = vmatprep.subr.mxu0 0.0
        %2037 = vmatpush2.msra.mxu0 0.0
        %2038 = vmatprep.subr.mxu0 0.0
        %2039 = vmatpush2.msra.mxu0 0.0
        %2040 = vmatprep.subr.mxu0 0.0
        %2041 = vmatpush2.msra.mxu0 0.0
        %2042 = vmatprep.subr.mxu0 0.0
        %2043 = vmatpush2.msra.mxu0 0.0
        %2044 = vmatprep.subr.mxu0 0.0
        %2045 = vmatpush2.msra.mxu0 0.0
        %2046 = vmatprep.subr.mxu0 0.0
        %2047 = vmatpush2.msra.mxu0 0.0
        %2048 = vmatprep.subr.mxu0 0.0
        %2049 = vmatpush2.msra.mxu0 0.0
        %2050 = vmatprep.subr.mxu0 0.0
        %2051 = vmatpush2.msra.mxu0 0.0
        %2052 = vmatprep.subr.mxu0 0.0
        %2053 = vmatpush2.msra.mxu0 0.0
        %2054 = vmatprep.subr.mxu0 0.0
        %2055 = vmatpush2.msra.mxu0 0.0
        %2056 = vmatprep.subr.mxu0 0.0
        %2057 = vmatpush2.msra.mxu0 0.0
        %2058 = vmatprep.subr.mxu0 0.0
        %2059 = vmatpush2.msra.mxu0 0.0
        %2060 = vmatprep.mubr.f32.mxu0 0.0
        %2061 = vmatmul.mubr.f32.gmra.mxu0 %v1979
        %v2062 = vpop.f32.mrf.mxu0
        %v2063 = vadd.f32 %v1814, %v2062
        %v2064 = vpop.f32.mrf.mxu0
        %v2065 = vadd.f32 %v1816, %v2064
        %2066 = vmatprep.mubr.f32.mxu0 0.0
        %2067 = vmatmul.mubr.f32.gmra.mxu0 %v1982
        %v2068 = vpop.f32.mrf.mxu0
        %v2069 = vadd.f32 %v1820, %v2068
        %v2070 = vpop.f32.mrf.mxu0
        %v2071 = vadd.f32 %v1822, %v2070
        %2072 = vdwg.mxu0
        %2073 = vmatprep.subr.mxu0 0.0
        %2074 = vmatpush1.msra.mxu0 0.0
        %2075 = vmatprep.subr.mxu0 0.0
        %2076 = vmatpush1.msra.mxu0 0.0
        %2077 = vmatprep.subr.mxu0 0.0
        %2078 = vmatpush1.msra.mxu0 0.0
        %2079 = vmatprep.subr.mxu0 0.0
        %2080 = vmatpush1.msra.mxu0 0.0
        %2081 = vmatprep.subr.mxu0 0.0
        %2082 = vmatpush1.msra.mxu0 0.0
        %2083 = vmatprep.subr.mxu0 0.0
        %2084 = vmatpush1.msra.mxu0 0.0
        %2085 = vmatprep.subr.mxu0 0.0
        %2086 = vmatpush1.msra.mxu0 0.0
        %2087 = vmatprep.subr.mxu0 0.0
        %2088 = vmatpush1.msra.mxu0 0.0
        %2089 = vmatprep.subr.mxu0 0.0
        %2090 = vmatpush1.msra.mxu0 0.0
        %2091 = vmatprep.subr.mxu0 0.0
        %2092 = vmatpush1.msra.mxu0 0.0
        %2093 = vmatprep.subr.mxu0 0.0
        %2094 = vmatpush1.msra.mxu0 0.0
        %2095 = vmatprep.subr.mxu0 0.0
        %2096 = vmatpush1.msra.mxu0 0.0
        %2097 = vmatprep.subr.mxu0 0.0
        %2098 = vmatpush1.msra.mxu0 0.0
        %2099 = vmatprep.subr.mxu0 %v1990
        %2100 = vmatpush1.msra.mxu0 %v1988
        %2101 = vmatprep.subr.mxu0 %v1632
        %2102 = vmatpush1.msra.mxu0 %v1631
        %2103 = vmatprep.subr.mxu0 %v1626
        %2104 = vmatpush1.msra.mxu0 %v1625
        %2105 = vmatprep.subr.mxu0 0.0
        %2106 = vmatpush2.msra.mxu0 0.0
        %2107 = vmatprep.subr.mxu0 0.0
        %2108 = vmatpush2.msra.mxu0 0.0
        %2109 = vmatprep.subr.mxu0 0.0
        %2110 = vmatpush2.msra.mxu0 0.0
        %2111 = vmatprep.subr.mxu0 0.0
        %2112 = vmatpush2.msra.mxu0 0.0
        %2113 = vmatprep.subr.mxu0 0.0
        %2114 = vmatpush2.msra.mxu0 0.0
        %2115 = vmatprep.subr.mxu0 0.0
        %2116 = vmatpush2.msra.mxu0 0.0
        %2117 = vmatprep.subr.mxu0 0.0
        %2118 = vmatpush2.msra.mxu0 0.0
        %2119 = vmatprep.subr.mxu0 0.0
        %2120 = vmatpush2.msra.mxu0 0.0
        %2121 = vmatprep.subr.mxu0 0.0
        %2122 = vmatpush2.msra.mxu0 0.0
        %2123 = vmatprep.subr.mxu0 0.0
        %2124 = vmatpush2.msra.mxu0 0.0
        %2125 = vmatprep.subr.mxu0 0.0
        %2126 = vmatpush2.msra.mxu0 0.0
        %2127 = vmatprep.subr.mxu0 0.0
        %2128 = vmatpush2.msra.mxu0 0.0
        %2129 = vmatprep.subr.mxu0 0.0
        %2130 = vmatpush2.msra.mxu0 0.0
        %2131 = vmatprep.subr.mxu0 0.0
        %2132 = vmatpush2.msra.mxu0 0.0
        %2133 = vmatprep.subr.mxu0 0.0
        %2134 = vmatpush2.msra.mxu0 0.0
        %2135 = vmatprep.subr.mxu0 0.0
        %2136 = vmatpush2.msra.mxu0 0.0
        %2137 = vmatprep.mubr.f32.mxu0 0.0
        %2138 = vmatmul.mubr.f32.gmra.mxu0 %v1979
        %v2139 = vpop.f32.mrf.mxu0
        %v2140 = vadd.f32 %v1891, %v2139
        %v2141 = vpop.f32.mrf.mxu0
        %v2142 = vadd.f32 %v1893, %v2141
        %2143 = vmatprep.mubr.f32.mxu0 0.0
        %2144 = vmatmul.mubr.f32.gmra.mxu0 %v1982
        %v2145 = vpop.f32.mrf.mxu0
        %v2146 = vadd.f32 %v1897, %v2145
        %v2147 = vpop.f32.mrf.mxu0
        %v2148 = vadd.f32 %v1899, %v2147
        %2149 = vdwg.mxu0
        %2150 = vmatprep.subr.mxu0 0.0
        %2151 = vmatpush1.msra.mxu0 0.0
        %2152 = vmatprep.subr.mxu0 0.0
        %2153 = vmatpush1.msra.mxu0 0.0
        %2154 = vmatprep.subr.mxu0 0.0
        %2155 = vmatpush1.msra.mxu0 0.0
        %2156 = vmatprep.subr.mxu0 0.0
        %2157 = vmatpush1.msra.mxu0 0.0
        %2158 = vmatprep.subr.mxu0 0.0
        %2159 = vmatpush1.msra.mxu0 0.0
        %2160 = vmatprep.subr.mxu0 0.0
        %2161 = vmatpush1.msra.mxu0 0.0
        %2162 = vmatprep.subr.mxu0 0.0
        %2163 = vmatpush1.msra.mxu0 0.0
        %2164 = vmatprep.subr.mxu0 0.0
        %2165 = vmatpush1.msra.mxu0 0.0
        %2166 = vmatprep.subr.mxu0 0.0
        %2167 = vmatpush1.msra.mxu0 0.0
        %2168 = vmatprep.subr.mxu0 0.0
        %2169 = vmatpush1.msra.mxu0 0.0
        %2170 = vmatprep.subr.mxu0 0.0
        %2171 = vmatpush1.msra.mxu0 0.0
        %2172 = vmatprep.subr.mxu0 0.0
        %2173 = vmatpush1.msra.mxu0 0.0
        %2174 = vmatprep.subr.mxu0 0.0
        %2175 = vmatpush1.msra.mxu0 0.0
        %2176 = vmatprep.subr.mxu0 %v1994
        %2177 = vmatpush1.msra.mxu0 %v1992
        %2178 = vmatprep.subr.mxu0 %v1634
        %2179 = vmatpush1.msra.mxu0 %v1633
        %2180 = vmatprep.subr.mxu0 %v1628
        %2181 = vmatpush1.msra.mxu0 %v1627
        %2182 = vmatprep.subr.mxu0 0.0
        %2183 = vmatpush2.msra.mxu0 0.0
        %2184 = vmatprep.subr.mxu0 0.0
        %2185 = vmatpush2.msra.mxu0 0.0
        %2186 = vmatprep.subr.mxu0 0.0
        %2187 = vmatpush2.msra.mxu0 0.0
        %2188 = vmatprep.subr.mxu0 0.0
        %2189 = vmatpush2.msra.mxu0 0.0
        %2190 = vmatprep.subr.mxu0 0.0
        %2191 = vmatpush2.msra.mxu0 0.0
        %2192 = vmatprep.subr.mxu0 0.0
        %2193 = vmatpush2.msra.mxu0 0.0
        %2194 = vmatprep.subr.mxu0 0.0
        %2195 = vmatpush2.msra.mxu0 0.0
        %2196 = vmatprep.subr.mxu0 0.0
        %2197 = vmatpush2.msra.mxu0 0.0
        %2198 = vmatprep.subr.mxu0 0.0
        %2199 = vmatpush2.msra.mxu0 0.0
        %2200 = vmatprep.subr.mxu0 0.0
        %2201 = vmatpush2.msra.mxu0 0.0
        %2202 = vmatprep.subr.mxu0 0.0
        %2203 = vmatpush2.msra.mxu0 0.0
        %2204 = vmatprep.subr.mxu0 0.0
        %2205 = vmatpush2.msra.mxu0 0.0
        %2206 = vmatprep.subr.mxu0 0.0
        %2207 = vmatpush2.msra.mxu0 0.0
        %2208 = vmatprep.subr.mxu0 0.0
        %2209 = vmatpush2.msra.mxu0 0.0
        %2210 = vmatprep.subr.mxu0 0.0
        %2211 = vmatpush2.msra.mxu0 0.0
        %2212 = vmatprep.subr.mxu0 0.0
        %2213 = vmatpush2.msra.mxu0 0.0
        %2214 = vmatprep.mubr.f32.mxu0 0.0
        %2215 = vmatmul.mubr.f32.gmra.mxu0 %v1979
        %v2216 = vpop.f32.mrf.mxu0
        %v2217 = vadd.f32 %v1968, %v2216
        %v2218 = vpop.f32.mrf.mxu0
        %v2219 = vadd.f32 %v1970, %v2218
        %2220 = vmatprep.mubr.f32.mxu0 0.0
        %2221 = vmatmul.mubr.f32.gmra.mxu0 %v1982
        %v2222 = vpop.f32.mrf.mxu0
        %v2223 = vadd.f32 %v1974, %v2222
        %v2224 = vpop.f32.mrf.mxu0
        %v2225 = vadd.f32 %v1976, %v2224
        %2226 = vdwg.mxu0
        %s2227 = scalar_lea.vmem [#allocation3], 32
        %v2228 = vld [vmem:[%s2227] sm:$0xff]
        %v2229 = vld [vmem:[%s2227 + $0x8] sm:$0x3]
        %2230 = vrot.lane.b32.xlu0 %v1623, 126
        %v2231 = vpop.permute.xlu0 %2230
        %2232 = vrot.lane.b32.xlu0 %v1624, 126
        %v2233 = vpop.permute.xlu0 %2232
        %2234 = vrot.lane.b32.xlu0 %v1625, 126
        %v2235 = vpop.permute.xlu0 %2234
        %2236 = vrot.lane.b32.xlu0 %v1626, 126
        %v2237 = vpop.permute.xlu0 %2236
        %2238 = vrot.lane.b32.xlu0 %v1627, 126
        %v2239 = vpop.permute.xlu0 %2238
        %2240 = vrot.lane.b32.xlu0 %v1628, 126
        %v2241 = vpop.permute.xlu0 %2240
        %2242 = vrot.lane.b32.xlu0 %v1629, 126
        %v2243 = vpop.permute.xlu0 %2242
        %2244 = vrot.lane.b32.xlu0 %v1630, 126
        %v2245 = vpop.permute.xlu0 %2244
        %2246 = vrot.lane.b32.xlu0 %v1631, 126
        %v2247 = vpop.permute.xlu0 %2246
        %2248 = vrot.lane.b32.xlu0 %v1632, 126
        %v2249 = vpop.permute.xlu0 %2248
        %2250 = vrot.lane.b32.xlu0 %v1633, 126
        %v2251 = vpop.permute.xlu0 %2250
        %2252 = vrot.lane.b32.xlu0 %v1634, 126
        %v2253 = vpop.permute.xlu0 %2252
        %2254 = vrot.lane.b32.xlu0 %v1635, 126
        %v2255 = vpop.permute.xlu0 %2254
        %2256 = vrot.lane.b32.xlu0 %v1636, 126
        %v2257 = vpop.permute.xlu0 %2256
        %2258 = vrot.lane.b32.xlu0 %v1637, 126
        %v2259 = vpop.permute.xlu0 %2258
        %2260 = vrot.lane.b32.xlu0 %v1638, 126
        %v2261 = vpop.permute.xlu0 %2260
        %2262 = vrot.lane.b32.xlu0 %v1639, 126
        %v2263 = vpop.permute.xlu0 %2262
        %2264 = vrot.lane.b32.xlu0 %v1640, 126
        %v2265 = vpop.permute.xlu0 %2264
        %v2266 = vsel %vm557, %v2231, %v2233
        %v2267 = vsel %vm557, %v2233, %v2235
        %v2268 = vsel %vm557, %v2235, %v2237
        %v2269 = vsel %vm557, %v2237, %v2239
        %v2270 = vsel %vm557, %v2239, %v2241
        %v2271 = vsel %vm557, %v2243, %v2245
        %v2272 = vsel %vm557, %v2245, %v2247
        %v2273 = vsel %vm557, %v2247, %v2249
        %v2274 = vsel %vm557, %v2249, %v2251
        %v2275 = vsel %vm557, %v2251, %v2253
        %v2276 = vsel %vm557, %v2255, %v2257
        %v2277 = vsel %vm557, %v2257, %v2259
        %v2278 = vsel %vm557, %v2259, %v2261
        %v2279 = vsel %vm557, %v2261, %v2263
        %v2280 = vsel %vm557, %v2263, %v2265
        %v2294 = vsel %vm1727, %v2228, 0
        %v2297 = vsel %vm1727, %v2229, 0
        %v2299 = vsel %vm1734, %v2276, 0
        %v2301 = vsel %vm1734, %v2277, 0
        %v2303 = vsel %vm1734, %v2278, 0
        %v2305 = vsel %vm1734, %v2279, 0
        %v2307 = vsel %vm1734, %v2280, 0
        %v2309 = vsel %vm1734, %v2265, 0
        %2311 = vmatprep.subr.mxu0 0.0
        %2312 = vmatpush1.msra.mxu0 0.0
        %2313 = vmatprep.subr.mxu0 0.0
        %2314 = vmatpush1.msra.mxu0 0.0
        %2315 = vmatprep.subr.mxu0 0.0
        %2316 = vmatpush1.msra.mxu0 0.0
        %2317 = vmatprep.subr.mxu0 0.0
        %2318 = vmatpush1.msra.mxu0 0.0
        %2319 = vmatprep.subr.mxu0 0.0
        %2320 = vmatpush1.msra.mxu0 0.0
        %2321 = vmatprep.subr.mxu0 0.0
        %2322 = vmatpush1.msra.mxu0 0.0
        %2323 = vmatprep.subr.mxu0 0.0
        %2324 = vmatpush1.msra.mxu0 0.0
        %2325 = vmatprep.subr.mxu0 0.0
        %2326 = vmatpush1.msra.mxu0 0.0
        %2327 = vmatprep.subr.mxu0 0.0
        %2328 = vmatpush1.msra.mxu0 0.0
        %2329 = vmatprep.subr.mxu0 0.0
        %2330 = vmatpush1.msra.mxu0 0.0
        %2331 = vmatprep.subr.mxu0 0.0
        %2332 = vmatpush1.msra.mxu0 0.0
        %2333 = vmatprep.subr.mxu0 0.0
        %2334 = vmatpush1.msra.mxu0 0.0
        %2335 = vmatprep.subr.mxu0 0.0
        %2336 = vmatpush1.msra.mxu0 0.0
        %2337 = vmatprep.subr.mxu0 %v2301
        %2338 = vmatpush1.msra.mxu0 %v2299
        %2339 = vmatprep.subr.mxu0 %v2272
        %2340 = vmatpush1.msra.mxu0 %v2271
        %2341 = vmatprep.subr.mxu0 %v2267
        %2342 = vmatpush1.msra.mxu0 %v2266
        %2343 = vmatprep.subr.mxu0 0.0
        %2344 = vmatpush2.msra.mxu0 0.0
        %2345 = vmatprep.subr.mxu0 0.0
        %2346 = vmatpush2.msra.mxu0 0.0
        %2347 = vmatprep.subr.mxu0 0.0
        %2348 = vmatpush2.msra.mxu0 0.0
        %2349 = vmatprep.subr.mxu0 0.0
        %2350 = vmatpush2.msra.mxu0 0.0
        %2351 = vmatprep.subr.mxu0 0.0
        %2352 = vmatpush2.msra.mxu0 0.0
        %2353 = vmatprep.subr.mxu0 0.0
        %2354 = vmatpush2.msra.mxu0 0.0
        %2355 = vmatprep.subr.mxu0 0.0
        %2356 = vmatpush2.msra.mxu0 0.0
        %2357 = vmatprep.subr.mxu0 0.0
        %2358 = vmatpush2.msra.mxu0 0.0
        %2359 = vmatprep.subr.mxu0 0.0
        %2360 = vmatpush2.msra.mxu0 0.0
        %2361 = vmatprep.subr.mxu0 0.0
        %2362 = vmatpush2.msra.mxu0 0.0
        %2363 = vmatprep.subr.mxu0 0.0
        %2364 = vmatpush2.msra.mxu0 0.0
        %2365 = vmatprep.subr.mxu0 0.0
        %2366 = vmatpush2.msra.mxu0 0.0
        %2367 = vmatprep.subr.mxu0 0.0
        %2368 = vmatpush2.msra.mxu0 0.0
        %2369 = vmatprep.subr.mxu0 0.0
        %2370 = vmatpush2.msra.mxu0 0.0
        %2371 = vmatprep.subr.mxu0 0.0
        %2372 = vmatpush2.msra.mxu0 0.0
        %2373 = vmatprep.subr.mxu0 0.0
        %2374 = vmatpush2.msra.mxu0 0.0
        %2375 = vmatprep.mubr.f32.mxu0 0.0
        %2376 = vmatmul.mubr.f32.gmra.mxu0 %v2294
        %v2377 = vpop.f32.mrf.mxu0
        %v2378 = vadd.f32 0.0, %v2377
        %v2379 = vpop.f32.mrf.mxu0
        %v2380 = vadd.f32 0.0, %v2379
        %2381 = vmatprep.mubr.f32.mxu0 0.0
        %2382 = vmatmul.mubr.f32.gmra.mxu0 %v2297
        %v2383 = vpop.f32.mrf.mxu0
        %v2384 = vadd.f32 0.0, %v2383
        %v2385 = vpop.f32.mrf.mxu0
        %v2386 = vadd.f32 0.0, %v2385
        %2387 = vdwg.mxu0
        %2388 = vmatprep.subr.mxu0 0.0
        %2389 = vmatpush1.msra.mxu0 0.0
        %2390 = vmatprep.subr.mxu0 0.0
        %2391 = vmatpush1.msra.mxu0 0.0
        %2392 = vmatprep.subr.mxu0 0.0
        %2393 = vmatpush1.msra.mxu0 0.0
        %2394 = vmatprep.subr.mxu0 0.0
        %2395 = vmatpush1.msra.mxu0 0.0
        %2396 = vmatprep.subr.mxu0 0.0
        %2397 = vmatpush1.msra.mxu0 0.0
        %2398 = vmatprep.subr.mxu0 0.0
        %2399 = vmatpush1.msra.mxu0 0.0
        %2400 = vmatprep.subr.mxu0 0.0
        %2401 = vmatpush1.msra.mxu0 0.0
        %2402 = vmatprep.subr.mxu0 0.0
        %2403 = vmatpush1.msra.mxu0 0.0
        %2404 = vmatprep.subr.mxu0 0.0
        %2405 = vmatpush1.msra.mxu0 0.0
        %2406 = vmatprep.subr.mxu0 0.0
        %2407 = vmatpush1.msra.mxu0 0.0
        %2408 = vmatprep.subr.mxu0 0.0
        %2409 = vmatpush1.msra.mxu0 0.0
        %2410 = vmatprep.subr.mxu0 0.0
        %2411 = vmatpush1.msra.mxu0 0.0
        %2412 = vmatprep.subr.mxu0 0.0
        %2413 = vmatpush1.msra.mxu0 0.0
        %2414 = vmatprep.subr.mxu0 %v2305
        %2415 = vmatpush1.msra.mxu0 %v2303
        %2416 = vmatprep.subr.mxu0 %v2274
        %2417 = vmatpush1.msra.mxu0 %v2273
        %2418 = vmatprep.subr.mxu0 %v2269
        %2419 = vmatpush1.msra.mxu0 %v2268
        %2420 = vmatprep.subr.mxu0 0.0
        %2421 = vmatpush2.msra.mxu0 0.0
        %2422 = vmatprep.subr.mxu0 0.0
        %2423 = vmatpush2.msra.mxu0 0.0
        %2424 = vmatprep.subr.mxu0 0.0
        %2425 = vmatpush2.msra.mxu0 0.0
        %2426 = vmatprep.subr.mxu0 0.0
        %2427 = vmatpush2.msra.mxu0 0.0
        %2428 = vmatprep.subr.mxu0 0.0
        %2429 = vmatpush2.msra.mxu0 0.0
        %2430 = vmatprep.subr.mxu0 0.0
        %2431 = vmatpush2.msra.mxu0 0.0
        %2432 = vmatprep.subr.mxu0 0.0
        %2433 = vmatpush2.msra.mxu0 0.0
        %2434 = vmatprep.subr.mxu0 0.0
        %2435 = vmatpush2.msra.mxu0 0.0
        %2436 = vmatprep.subr.mxu0 0.0
        %2437 = vmatpush2.msra.mxu0 0.0
        %2438 = vmatprep.subr.mxu0 0.0
        %2439 = vmatpush2.msra.mxu0 0.0
        %2440 = vmatprep.subr.mxu0 0.0
        %2441 = vmatpush2.msra.mxu0 0.0
        %2442 = vmatprep.subr.mxu0 0.0
        %2443 = vmatpush2.msra.mxu0 0.0
        %2444 = vmatprep.subr.mxu0 0.0
        %2445 = vmatpush2.msra.mxu0 0.0
        %2446 = vmatprep.subr.mxu0 0.0
        %2447 = vmatpush2.msra.mxu0 0.0
        %2448 = vmatprep.subr.mxu0 0.0
        %2449 = vmatpush2.msra.mxu0 0.0
        %2450 = vmatprep.subr.mxu0 0.0
        %2451 = vmatpush2.msra.mxu0 0.0
        %2452 = vmatprep.mubr.f32.mxu0 0.0
        %2453 = vmatmul.mubr.f32.gmra.mxu0 %v2294
        %v2454 = vpop.f32.mrf.mxu0
        %v2455 = vadd.f32 0.0, %v2454
        %v2456 = vpop.f32.mrf.mxu0
        %v2457 = vadd.f32 0.0, %v2456
        %2458 = vmatprep.mubr.f32.mxu0 0.0
        %2459 = vmatmul.mubr.f32.gmra.mxu0 %v2297
        %v2460 = vpop.f32.mrf.mxu0
        %v2461 = vadd.f32 0.0, %v2460
        %v2462 = vpop.f32.mrf.mxu0
        %v2463 = vadd.f32 0.0, %v2462
        %2464 = vdwg.mxu0
        %2465 = vmatprep.subr.mxu0 0.0
        %2466 = vmatpush1.msra.mxu0 0.0
        %2467 = vmatprep.subr.mxu0 0.0
        %2468 = vmatpush1.msra.mxu0 0.0
        %2469 = vmatprep.subr.mxu0 0.0
        %2470 = vmatpush1.msra.mxu0 0.0
        %2471 = vmatprep.subr.mxu0 0.0
        %2472 = vmatpush1.msra.mxu0 0.0
        %2473 = vmatprep.subr.mxu0 0.0
        %2474 = vmatpush1.msra.mxu0 0.0
        %2475 = vmatprep.subr.mxu0 0.0
        %2476 = vmatpush1.msra.mxu0 0.0
        %2477 = vmatprep.subr.mxu0 0.0
        %2478 = vmatpush1.msra.mxu0 0.0
        %2479 = vmatprep.subr.mxu0 0.0
        %2480 = vmatpush1.msra.mxu0 0.0
        %2481 = vmatprep.subr.mxu0 0.0
        %2482 = vmatpush1.msra.mxu0 0.0
        %2483 = vmatprep.subr.mxu0 0.0
        %2484 = vmatpush1.msra.mxu0 0.0
        %2485 = vmatprep.subr.mxu0 0.0
        %2486 = vmatpush1.msra.mxu0 0.0
        %2487 = vmatprep.subr.mxu0 0.0
        %2488 = vmatpush1.msra.mxu0 0.0
        %2489 = vmatprep.subr.mxu0 0.0
        %2490 = vmatpush1.msra.mxu0 0.0
        %2491 = vmatprep.subr.mxu0 %v2309
        %2492 = vmatpush1.msra.mxu0 %v2307
        %2493 = vmatprep.subr.mxu0 %v2253
        %2494 = vmatpush1.msra.mxu0 %v2275
        %2495 = vmatprep.subr.mxu0 %v2241
        %2496 = vmatpush1.msra.mxu0 %v2270
        %2497 = vmatprep.subr.mxu0 0.0
        %2498 = vmatpush2.msra.mxu0 0.0
        %2499 = vmatprep.subr.mxu0 0.0
        %2500 = vmatpush2.msra.mxu0 0.0
        %2501 = vmatprep.subr.mxu0 0.0
        %2502 = vmatpush2.msra.mxu0 0.0
        %2503 = vmatprep.subr.mxu0 0.0
        %2504 = vmatpush2.msra.mxu0 0.0
        %2505 = vmatprep.subr.mxu0 0.0
        %2506 = vmatpush2.msra.mxu0 0.0
        %2507 = vmatprep.subr.mxu0 0.0
        %2508 = vmatpush2.msra.mxu0 0.0
        %2509 = vmatprep.subr.mxu0 0.0
        %2510 = vmatpush2.msra.mxu0 0.0
        %2511 = vmatprep.subr.mxu0 0.0
        %2512 = vmatpush2.msra.mxu0 0.0
        %2513 = vmatprep.subr.mxu0 0.0
        %2514 = vmatpush2.msra.mxu0 0.0
        %2515 = vmatprep.subr.mxu0 0.0
        %2516 = vmatpush2.msra.mxu0 0.0
        %2517 = vmatprep.subr.mxu0 0.0
        %2518 = vmatpush2.msra.mxu0 0.0
        %2519 = vmatprep.subr.mxu0 0.0
        %2520 = vmatpush2.msra.mxu0 0.0
        %2521 = vmatprep.subr.mxu0 0.0
        %2522 = vmatpush2.msra.mxu0 0.0
        %2523 = vmatprep.subr.mxu0 0.0
        %2524 = vmatpush2.msra.mxu0 0.0
        %2525 = vmatprep.subr.mxu0 0.0
        %2526 = vmatpush2.msra.mxu0 0.0
        %2527 = vmatprep.subr.mxu0 0.0
        %2528 = vmatpush2.msra.mxu0 0.0
        %2529 = vmatprep.mubr.f32.mxu0 0.0
        %2530 = vmatmul.mubr.f32.gmra.mxu0 %v2294
        %v2531 = vpop.f32.mrf.mxu0
        %v2532 = vadd.f32 0.0, %v2531
        %v2533 = vpop.f32.mrf.mxu0
        %v2534 = vadd.f32 0.0, %v2533
        %2535 = vmatprep.mubr.f32.mxu0 0.0
        %2536 = vmatmul.mubr.f32.gmra.mxu0 %v2297
        %v2537 = vpop.f32.mrf.mxu0
        %v2538 = vadd.f32 0.0, %v2537
        %v2539 = vpop.f32.mrf.mxu0
        %v2540 = vadd.f32 0.0, %v2539
        %2541 = vdwg.mxu0
        %v2542 = vadd.f32 %v2063, %v2378
        %v2543 = vadd.f32 %v2065, %v2380
        %v2544 = vadd.f32 %v2140, %v2455
        %v2545 = vadd.f32 %v2142, %v2457
        %v2546 = vadd.f32 %v2217, %v2532
        %v2547 = vadd.f32 %v2219, %v2534
        %v2548 = vadd.f32 %v2069, %v2384
        %v2549 = vadd.f32 %v2071, %v2386
        %v2550 = vadd.f32 %v2146, %v2461
        %v2551 = vadd.f32 %v2148, %v2463
        %v2552 = vadd.f32 %v2223, %v2538
        %v2553 = vadd.f32 %v2225, %v2540
        %s2554 = scalar_lea.vmem [#allocation3], 48
        %v2555 = vld [vmem:[%s2554] sm:$0xff]
        %v2556 = vld [vmem:[%s2554 + $0x8] sm:$0x3]
        %2557 = vrot.lane.b32.xlu0 %v1623, 100
        %v2558 = vpop.permute.xlu0 %2557
        %2559 = vrot.lane.b32.xlu0 %v1624, 100
        %v2560 = vpop.permute.xlu0 %2559
        %2561 = vrot.lane.b32.xlu0 %v1625, 100
        %v2562 = vpop.permute.xlu0 %2561
        %2563 = vrot.lane.b32.xlu0 %v1626, 100
        %v2564 = vpop.permute.xlu0 %2563
        %2565 = vrot.lane.b32.xlu0 %v1627, 100
        %v2566 = vpop.permute.xlu0 %2565
        %2567 = vrot.lane.b32.xlu0 %v1628, 100
        %v2568 = vpop.permute.xlu0 %2567
        %2569 = vrot.lane.b32.xlu0 %v1629, 100
        %v2570 = vpop.permute.xlu0 %2569
        %2571 = vrot.lane.b32.xlu0 %v1630, 100
        %v2572 = vpop.permute.xlu0 %2571
        %2573 = vrot.lane.b32.xlu0 %v1631, 100
        %v2574 = vpop.permute.xlu0 %2573
        %2575 = vrot.lane.b32.xlu0 %v1632, 100
        %v2576 = vpop.permute.xlu0 %2575
        %2577 = vrot.lane.b32.xlu0 %v1633, 100
        %v2578 = vpop.permute.xlu0 %2577
        %2579 = vrot.lane.b32.xlu0 %v1634, 100
        %v2580 = vpop.permute.xlu0 %2579
        %2581 = vrot.lane.b32.xlu0 %v1635, 100
        %v2582 = vpop.permute.xlu0 %2581
        %2583 = vrot.lane.b32.xlu0 %v1636, 100
        %v2584 = vpop.permute.xlu0 %2583
        %2585 = vrot.lane.b32.xlu0 %v1637, 100
        %v2586 = vpop.permute.xlu0 %2585
        %2587 = vrot.lane.b32.xlu0 %v1638, 100
        %v2588 = vpop.permute.xlu0 %2587
        %2589 = vrot.lane.b32.xlu0 %v1639, 100
        %v2590 = vpop.permute.xlu0 %2589
        %2591 = vrot.lane.b32.xlu0 %v1640, 100
        %v2592 = vpop.permute.xlu0 %2591
        %v2593 = vsel %vm700, %v2558, %v2560
        %v2594 = vsel %vm700, %v2560, %v2562
        %v2595 = vsel %vm700, %v2562, %v2564
        %v2596 = vsel %vm700, %v2564, %v2566
        %v2597 = vsel %vm700, %v2566, %v2568
        %v2598 = vsel %vm700, %v2570, %v2572
        %v2599 = vsel %vm700, %v2572, %v2574
        %v2600 = vsel %vm700, %v2574, %v2576
        %v2601 = vsel %vm700, %v2576, %v2578
        %v2602 = vsel %vm700, %v2578, %v2580
        %v2603 = vsel %vm700, %v2582, %v2584
        %v2604 = vsel %vm700, %v2584, %v2586
        %v2605 = vsel %vm700, %v2586, %v2588
        %v2606 = vsel %vm700, %v2588, %v2590
        %v2607 = vsel %vm700, %v2590, %v2592
        %v2621 = vsel %vm1727, %v2555, 0
        %v2624 = vsel %vm1727, %v2556, 0
        %v2626 = vsel %vm1734, %v2603, 0
        %v2628 = vsel %vm1734, %v2604, 0
        %v2630 = vsel %vm1734, %v2605, 0
        %v2632 = vsel %vm1734, %v2606, 0
        %v2634 = vsel %vm1734, %v2607, 0
        %v2636 = vsel %vm1734, %v2592, 0
        %2638 = vmatprep.subr.mxu0 0.0
        %2639 = vmatpush1.msra.mxu0 0.0
        %2640 = vmatprep.subr.mxu0 0.0
        %2641 = vmatpush1.msra.mxu0 0.0
        %2642 = vmatprep.subr.mxu0 0.0
        %2643 = vmatpush1.msra.mxu0 0.0
        %2644 = vmatprep.subr.mxu0 0.0
        %2645 = vmatpush1.msra.mxu0 0.0
        %2646 = vmatprep.subr.mxu0 0.0
        %2647 = vmatpush1.msra.mxu0 0.0
        %2648 = vmatprep.subr.mxu0 0.0
        %2649 = vmatpush1.msra.mxu0 0.0
        %2650 = vmatprep.subr.mxu0 0.0
        %2651 = vmatpush1.msra.mxu0 0.0
        %2652 = vmatprep.subr.mxu0 0.0
        %2653 = vmatpush1.msra.mxu0 0.0
        %2654 = vmatprep.subr.mxu0 0.0
        %2655 = vmatpush1.msra.mxu0 0.0
        %2656 = vmatprep.subr.mxu0 0.0
        %2657 = vmatpush1.msra.mxu0 0.0
        %2658 = vmatprep.subr.mxu0 0.0
        %2659 = vmatpush1.msra.mxu0 0.0
        %2660 = vmatprep.subr.mxu0 0.0
        %2661 = vmatpush1.msra.mxu0 0.0
        %2662 = vmatprep.subr.mxu0 0.0
        %2663 = vmatpush1.msra.mxu0 0.0
        %2664 = vmatprep.subr.mxu0 %v2628
        %2665 = vmatpush1.msra.mxu0 %v2626
        %2666 = vmatprep.subr.mxu0 %v2599
        %2667 = vmatpush1.msra.mxu0 %v2598
        %2668 = vmatprep.subr.mxu0 %v2594
        %2669 = vmatpush1.msra.mxu0 %v2593
        %2670 = vmatprep.subr.mxu0 0.0
        %2671 = vmatpush2.msra.mxu0 0.0
        %2672 = vmatprep.subr.mxu0 0.0
        %2673 = vmatpush2.msra.mxu0 0.0
        %2674 = vmatprep.subr.mxu0 0.0
        %2675 = vmatpush2.msra.mxu0 0.0
        %2676 = vmatprep.subr.mxu0 0.0
        %2677 = vmatpush2.msra.mxu0 0.0
        %2678 = vmatprep.subr.mxu0 0.0
        %2679 = vmatpush2.msra.mxu0 0.0
        %2680 = vmatprep.subr.mxu0 0.0
        %2681 = vmatpush2.msra.mxu0 0.0
        %2682 = vmatprep.subr.mxu0 0.0
        %2683 = vmatpush2.msra.mxu0 0.0
        %2684 = vmatprep.subr.mxu0 0.0
        %2685 = vmatpush2.msra.mxu0 0.0
        %2686 = vmatprep.subr.mxu0 0.0
        %2687 = vmatpush2.msra.mxu0 0.0
        %2688 = vmatprep.subr.mxu0 0.0
        %2689 = vmatpush2.msra.mxu0 0.0
        %2690 = vmatprep.subr.mxu0 0.0
        %2691 = vmatpush2.msra.mxu0 0.0
        %2692 = vmatprep.subr.mxu0 0.0
        %2693 = vmatpush2.msra.mxu0 0.0
        %2694 = vmatprep.subr.mxu0 0.0
        %2695 = vmatpush2.msra.mxu0 0.0
        %2696 = vmatprep.subr.mxu0 0.0
        %2697 = vmatpush2.msra.mxu0 0.0
        %2698 = vmatprep.subr.mxu0 0.0
        %2699 = vmatpush2.msra.mxu0 0.0
        %2700 = vmatprep.subr.mxu0 0.0
        %2701 = vmatpush2.msra.mxu0 0.0
        %2702 = vmatprep.mubr.f32.mxu0 0.0
        %2703 = vmatmul.mubr.f32.gmra.mxu0 %v2621
        %v2704 = vpop.f32.mrf.mxu0
        %v2705 = vadd.f32 0.0, %v2704
        %v2706 = vpop.f32.mrf.mxu0
        %v2707 = vadd.f32 0.0, %v2706
        %2708 = vmatprep.mubr.f32.mxu0 0.0
        %2709 = vmatmul.mubr.f32.gmra.mxu0 %v2624
        %v2710 = vpop.f32.mrf.mxu0
        %v2711 = vadd.f32 0.0, %v2710
        %v2712 = vpop.f32.mrf.mxu0
        %v2713 = vadd.f32 0.0, %v2712
        %2714 = vdwg.mxu0
        %2715 = vmatprep.subr.mxu0 0.0
        %2716 = vmatpush1.msra.mxu0 0.0
        %2717 = vmatprep.subr.mxu0 0.0
        %2718 = vmatpush1.msra.mxu0 0.0
        %2719 = vmatprep.subr.mxu0 0.0
        %2720 = vmatpush1.msra.mxu0 0.0
        %2721 = vmatprep.subr.mxu0 0.0
        %2722 = vmatpush1.msra.mxu0 0.0
        %2723 = vmatprep.subr.mxu0 0.0
        %2724 = vmatpush1.msra.mxu0 0.0
        %2725 = vmatprep.subr.mxu0 0.0
        %2726 = vmatpush1.msra.mxu0 0.0
        %2727 = vmatprep.subr.mxu0 0.0
        %2728 = vmatpush1.msra.mxu0 0.0
        %2729 = vmatprep.subr.mxu0 0.0
        %2730 = vmatpush1.msra.mxu0 0.0
        %2731 = vmatprep.subr.mxu0 0.0
        %2732 = vmatpush1.msra.mxu0 0.0
        %2733 = vmatprep.subr.mxu0 0.0
        %2734 = vmatpush1.msra.mxu0 0.0
        %2735 = vmatprep.subr.mxu0 0.0
        %2736 = vmatpush1.msra.mxu0 0.0
        %2737 = vmatprep.subr.mxu0 0.0
        %2738 = vmatpush1.msra.mxu0 0.0
        %2739 = vmatprep.subr.mxu0 0.0
        %2740 = vmatpush1.msra.mxu0 0.0
        %2741 = vmatprep.subr.mxu0 %v2632
        %2742 = vmatpush1.msra.mxu0 %v2630
        %2743 = vmatprep.subr.mxu0 %v2601
        %2744 = vmatpush1.msra.mxu0 %v2600
        %2745 = vmatprep.subr.mxu0 %v2596
        %2746 = vmatpush1.msra.mxu0 %v2595
        %2747 = vmatprep.subr.mxu0 0.0
        %2748 = vmatpush2.msra.mxu0 0.0
        %2749 = vmatprep.subr.mxu0 0.0
        %2750 = vmatpush2.msra.mxu0 0.0
        %2751 = vmatprep.subr.mxu0 0.0
        %2752 = vmatpush2.msra.mxu0 0.0
        %2753 = vmatprep.subr.mxu0 0.0
        %2754 = vmatpush2.msra.mxu0 0.0
        %2755 = vmatprep.subr.mxu0 0.0
        %2756 = vmatpush2.msra.mxu0 0.0
        %2757 = vmatprep.subr.mxu0 0.0
        %2758 = vmatpush2.msra.mxu0 0.0
        %2759 = vmatprep.subr.mxu0 0.0
        %2760 = vmatpush2.msra.mxu0 0.0
        %2761 = vmatprep.subr.mxu0 0.0
        %2762 = vmatpush2.msra.mxu0 0.0
        %2763 = vmatprep.subr.mxu0 0.0
        %2764 = vmatpush2.msra.mxu0 0.0
        %2765 = vmatprep.subr.mxu0 0.0
        %2766 = vmatpush2.msra.mxu0 0.0
        %2767 = vmatprep.subr.mxu0 0.0
        %2768 = vmatpush2.msra.mxu0 0.0
        %2769 = vmatprep.subr.mxu0 0.0
        %2770 = vmatpush2.msra.mxu0 0.0
        %2771 = vmatprep.subr.mxu0 0.0
        %2772 = vmatpush2.msra.mxu0 0.0
        %2773 = vmatprep.subr.mxu0 0.0
        %2774 = vmatpush2.msra.mxu0 0.0
        %2775 = vmatprep.subr.mxu0 0.0
        %2776 = vmatpush2.msra.mxu0 0.0
        %2777 = vmatprep.subr.mxu0 0.0
        %2778 = vmatpush2.msra.mxu0 0.0
        %2779 = vmatprep.mubr.f32.mxu0 0.0
        %2780 = vmatmul.mubr.f32.gmra.mxu0 %v2621
        %v2781 = vpop.f32.mrf.mxu0
        %v2782 = vadd.f32 0.0, %v2781
        %v2783 = vpop.f32.mrf.mxu0
        %v2784 = vadd.f32 0.0, %v2783
        %2785 = vmatprep.mubr.f32.mxu0 0.0
        %2786 = vmatmul.mubr.f32.gmra.mxu0 %v2624
        %v2787 = vpop.f32.mrf.mxu0
        %v2788 = vadd.f32 0.0, %v2787
        %v2789 = vpop.f32.mrf.mxu0
        %v2790 = vadd.f32 0.0, %v2789
        %2791 = vdwg.mxu0
        %2792 = vmatprep.subr.mxu0 0.0
        %2793 = vmatpush1.msra.mxu0 0.0
        %2794 = vmatprep.subr.mxu0 0.0
        %2795 = vmatpush1.msra.mxu0 0.0
        %2796 = vmatprep.subr.mxu0 0.0
        %2797 = vmatpush1.msra.mxu0 0.0
        %2798 = vmatprep.subr.mxu0 0.0
        %2799 = vmatpush1.msra.mxu0 0.0
        %2800 = vmatprep.subr.mxu0 0.0
        %2801 = vmatpush1.msra.mxu0 0.0
        %2802 = vmatprep.subr.mxu0 0.0
        %2803 = vmatpush1.msra.mxu0 0.0
        %2804 = vmatprep.subr.mxu0 0.0
        %2805 = vmatpush1.msra.mxu0 0.0
        %2806 = vmatprep.subr.mxu0 0.0
        %2807 = vmatpush1.msra.mxu0 0.0
        %2808 = vmatprep.subr.mxu0 0.0
        %2809 = vmatpush1.msra.mxu0 0.0
        %2810 = vmatprep.subr.mxu0 0.0
        %2811 = vmatpush1.msra.mxu0 0.0
        %2812 = vmatprep.subr.mxu0 0.0
        %2813 = vmatpush1.msra.mxu0 0.0
        %2814 = vmatprep.subr.mxu0 0.0
        %2815 = vmatpush1.msra.mxu0 0.0
        %2816 = vmatprep.subr.mxu0 0.0
        %2817 = vmatpush1.msra.mxu0 0.0
        %2818 = vmatprep.subr.mxu0 %v2636
        %2819 = vmatpush1.msra.mxu0 %v2634
        %2820 = vmatprep.subr.mxu0 %v2580
        %2821 = vmatpush1.msra.mxu0 %v2602
        %2822 = vmatprep.subr.mxu0 %v2568
        %2823 = vmatpush1.msra.mxu0 %v2597
        %2824 = vmatprep.subr.mxu0 0.0
        %2825 = vmatpush2.msra.mxu0 0.0
        %2826 = vmatprep.subr.mxu0 0.0
        %2827 = vmatpush2.msra.mxu0 0.0
        %2828 = vmatprep.subr.mxu0 0.0
        %2829 = vmatpush2.msra.mxu0 0.0
        %2830 = vmatprep.subr.mxu0 0.0
        %2831 = vmatpush2.msra.mxu0 0.0
        %2832 = vmatprep.subr.mxu0 0.0
        %2833 = vmatpush2.msra.mxu0 0.0
        %2834 = vmatprep.subr.mxu0 0.0
        %2835 = vmatpush2.msra.mxu0 0.0
        %2836 = vmatprep.subr.mxu0 0.0
        %2837 = vmatpush2.msra.mxu0 0.0
        %2838 = vmatprep.subr.mxu0 0.0
        %2839 = vmatpush2.msra.mxu0 0.0
        %2840 = vmatprep.subr.mxu0 0.0
        %2841 = vmatpush2.msra.mxu0 0.0
        %2842 = vmatprep.subr.mxu0 0.0
        %2843 = vmatpush2.msra.mxu0 0.0
        %2844 = vmatprep.subr.mxu0 0.0
        %2845 = vmatpush2.msra.mxu0 0.0
        %2846 = vmatprep.subr.mxu0 0.0
        %2847 = vmatpush2.msra.mxu0 0.0
        %2848 = vmatprep.subr.mxu0 0.0
        %2849 = vmatpush2.msra.mxu0 0.0
        %2850 = vmatprep.subr.mxu0 0.0
        %2851 = vmatpush2.msra.mxu0 0.0
        %2852 = vmatprep.subr.mxu0 0.0
        %2853 = vmatpush2.msra.mxu0 0.0
        %2854 = vmatprep.subr.mxu0 0.0
        %2855 = vmatpush2.msra.mxu0 0.0
        %2856 = vmatprep.mubr.f32.mxu0 0.0
        %2857 = vmatmul.mubr.f32.gmra.mxu0 %v2621
        %v2858 = vpop.f32.mrf.mxu0
        %v2859 = vadd.f32 0.0, %v2858
        %v2860 = vpop.f32.mrf.mxu0
        %v2861 = vadd.f32 0.0, %v2860
        %2862 = vmatprep.mubr.f32.mxu0 0.0
        %2863 = vmatmul.mubr.f32.gmra.mxu0 %v2624
        %v2864 = vpop.f32.mrf.mxu0
        %v2865 = vadd.f32 0.0, %v2864
        %v2866 = vpop.f32.mrf.mxu0
        %v2867 = vadd.f32 0.0, %v2866
        %2868 = vdwg.mxu0
        %v2869 = vadd.f32 %v2542, %v2705
        %v2870 = vadd.f32 %v2543, %v2707
        %v2871 = vadd.f32 %v2544, %v2782
        %v2872 = vadd.f32 %v2545, %v2784
        %v2873 = vadd.f32 %v2546, %v2859
        %v2874 = vadd.f32 %v2547, %v2861
        %v2875 = vadd.f32 %v2548, %v2711
        %v2876 = vadd.f32 %v2549, %v2713
        %v2877 = vadd.f32 %v2550, %v2788
        %v2878 = vadd.f32 %v2551, %v2790
        %v2879 = vadd.f32 %v2552, %v2865
        %v2880 = vadd.f32 %v2553, %v2867
        %s2881 = scalar_lea.vmem [#allocation3], 64
        %v2882 = vld [vmem:[%s2881] sm:$0xff]
        %v2883 = vld [vmem:[%s2881 + $0x8] sm:$0x3]
        %2884 = vrot.lane.b32.xlu0 %v1623, 99
        %v2885 = vpop.permute.xlu0 %2884
        %2886 = vrot.lane.b32.xlu0 %v1624, 99
        %v2887 = vpop.permute.xlu0 %2886
        %2888 = vrot.lane.b32.xlu0 %v1625, 99
        %v2889 = vpop.permute.xlu0 %2888
        %2890 = vrot.lane.b32.xlu0 %v1626, 99
        %v2891 = vpop.permute.xlu0 %2890
        %2892 = vrot.lane.b32.xlu0 %v1627, 99
        %v2893 = vpop.permute.xlu0 %2892
        %2894 = vrot.lane.b32.xlu0 %v1628, 99
        %v2895 = vpop.permute.xlu0 %2894
        %2896 = vrot.lane.b32.xlu0 %v1629, 99
        %v2897 = vpop.permute.xlu0 %2896
        %2898 = vrot.lane.b32.xlu0 %v1630, 99
        %v2899 = vpop.permute.xlu0 %2898
        %2900 = vrot.lane.b32.xlu0 %v1631, 99
        %v2901 = vpop.permute.xlu0 %2900
        %2902 = vrot.lane.b32.xlu0 %v1632, 99
        %v2903 = vpop.permute.xlu0 %2902
        %2904 = vrot.lane.b32.xlu0 %v1633, 99
        %v2905 = vpop.permute.xlu0 %2904
        %2906 = vrot.lane.b32.xlu0 %v1634, 99
        %v2907 = vpop.permute.xlu0 %2906
        %2908 = vrot.lane.b32.xlu0 %v1635, 99
        %v2909 = vpop.permute.xlu0 %2908
        %2910 = vrot.lane.b32.xlu0 %v1636, 99
        %v2911 = vpop.permute.xlu0 %2910
        %2912 = vrot.lane.b32.xlu0 %v1637, 99
        %v2913 = vpop.permute.xlu0 %2912
        %2914 = vrot.lane.b32.xlu0 %v1638, 99
        %v2915 = vpop.permute.xlu0 %2914
        %2916 = vrot.lane.b32.xlu0 %v1639, 99
        %v2917 = vpop.permute.xlu0 %2916
        %2918 = vrot.lane.b32.xlu0 %v1640, 99
        %v2919 = vpop.permute.xlu0 %2918
        %v2920 = vsel %vm843, %v2885, %v2887
        %v2921 = vsel %vm843, %v2887, %v2889
        %v2922 = vsel %vm843, %v2889, %v2891
        %v2923 = vsel %vm843, %v2891, %v2893
        %v2924 = vsel %vm843, %v2893, %v2895
        %v2925 = vsel %vm843, %v2897, %v2899
        %v2926 = vsel %vm843, %v2899, %v2901
        %v2927 = vsel %vm843, %v2901, %v2903
        %v2928 = vsel %vm843, %v2903, %v2905
        %v2929 = vsel %vm843, %v2905, %v2907
        %v2930 = vsel %vm843, %v2909, %v2911
        %v2931 = vsel %vm843, %v2911, %v2913
        %v2932 = vsel %vm843, %v2913, %v2915
        %v2933 = vsel %vm843, %v2915, %v2917
        %v2934 = vsel %vm843, %v2917, %v2919
        %v2948 = vsel %vm1727, %v2882, 0
        %v2951 = vsel %vm1727, %v2883, 0
        %v2953 = vsel %vm1734, %v2930, 0
        %v2955 = vsel %vm1734, %v2931, 0
        %v2957 = vsel %vm1734, %v2932, 0
        %v2959 = vsel %vm1734, %v2933, 0
        %v2961 = vsel %vm1734, %v2934, 0
        %v2963 = vsel %vm1734, %v2919, 0
        %2965 = vmatprep.subr.mxu0 0.0
        %2966 = vmatpush1.msra.mxu0 0.0
        %2967 = vmatprep.subr.mxu0 0.0
        %2968 = vmatpush1.msra.mxu0 0.0
        %2969 = vmatprep.subr.mxu0 0.0
        %2970 = vmatpush1.msra.mxu0 0.0
        %2971 = vmatprep.subr.mxu0 0.0
        %2972 = vmatpush1.msra.mxu0 0.0
        %2973 = vmatprep.subr.mxu0 0.0
        %2974 = vmatpush1.msra.mxu0 0.0
        %2975 = vmatprep.subr.mxu0 0.0
        %2976 = vmatpush1.msra.mxu0 0.0
        %2977 = vmatprep.subr.mxu0 0.0
        %2978 = vmatpush1.msra.mxu0 0.0
        %2979 = vmatprep.subr.mxu0 0.0
        %2980 = vmatpush1.msra.mxu0 0.0
        %2981 = vmatprep.subr.mxu0 0.0
        %2982 = vmatpush1.msra.mxu0 0.0
        %2983 = vmatprep.subr.mxu0 0.0
        %2984 = vmatpush1.msra.mxu0 0.0
        %2985 = vmatprep.subr.mxu0 0.0
        %2986 = vmatpush1.msra.mxu0 0.0
        %2987 = vmatprep.subr.mxu0 0.0
        %2988 = vmatpush1.msra.mxu0 0.0
        %2989 = vmatprep.subr.mxu0 0.0
        %2990 = vmatpush1.msra.mxu0 0.0
        %2991 = vmatprep.subr.mxu0 %v2955
        %2992 = vmatpush1.msra.mxu0 %v2953
        %2993 = vmatprep.subr.mxu0 %v2926
        %2994 = vmatpush1.msra.mxu0 %v2925
        %2995 = vmatprep.subr.mxu0 %v2921
        %2996 = vmatpush1.msra.mxu0 %v2920
        %2997 = vmatprep.subr.mxu0 0.0
        %2998 = vmatpush2.msra.mxu0 0.0
        %2999 = vmatprep.subr.mxu0 0.0
        %3000 = vmatpush2.msra.mxu0 0.0
        %3001 = vmatprep.subr.mxu0 0.0
        %3002 = vmatpush2.msra.mxu0 0.0
        %3003 = vmatprep.subr.mxu0 0.0
        %3004 = vmatpush2.msra.mxu0 0.0
        %3005 = vmatprep.subr.mxu0 0.0
        %3006 = vmatpush2.msra.mxu0 0.0
        %3007 = vmatprep.subr.mxu0 0.0
        %3008 = vmatpush2.msra.mxu0 0.0
        %3009 = vmatprep.subr.mxu0 0.0
        %3010 = vmatpush2.msra.mxu0 0.0
        %3011 = vmatprep.subr.mxu0 0.0
        %3012 = vmatpush2.msra.mxu0 0.0
        %3013 = vmatprep.subr.mxu0 0.0
        %3014 = vmatpush2.msra.mxu0 0.0
        %3015 = vmatprep.subr.mxu0 0.0
        %3016 = vmatpush2.msra.mxu0 0.0
        %3017 = vmatprep.subr.mxu0 0.0
        %3018 = vmatpush2.msra.mxu0 0.0
        %3019 = vmatprep.subr.mxu0 0.0
        %3020 = vmatpush2.msra.mxu0 0.0
        %3021 = vmatprep.subr.mxu0 0.0
        %3022 = vmatpush2.msra.mxu0 0.0
        %3023 = vmatprep.subr.mxu0 0.0
        %3024 = vmatpush2.msra.mxu0 0.0
        %3025 = vmatprep.subr.mxu0 0.0
        %3026 = vmatpush2.msra.mxu0 0.0
        %3027 = vmatprep.subr.mxu0 0.0
        %3028 = vmatpush2.msra.mxu0 0.0
        %3029 = vmatprep.mubr.f32.mxu0 0.0
        %3030 = vmatmul.mubr.f32.gmra.mxu0 %v2948
        %v3031 = vpop.f32.mrf.mxu0
        %v3032 = vadd.f32 0.0, %v3031
        %v3033 = vpop.f32.mrf.mxu0
        %v3034 = vadd.f32 0.0, %v3033
        %3035 = vmatprep.mubr.f32.mxu0 0.0
        %3036 = vmatmul.mubr.f32.gmra.mxu0 %v2951
        %v3037 = vpop.f32.mrf.mxu0
        %v3038 = vadd.f32 0.0, %v3037
        %v3039 = vpop.f32.mrf.mxu0
        %v3040 = vadd.f32 0.0, %v3039
        %3041 = vdwg.mxu0
        %3042 = vmatprep.subr.mxu0 0.0
        %3043 = vmatpush1.msra.mxu0 0.0
        %3044 = vmatprep.subr.mxu0 0.0
        %3045 = vmatpush1.msra.mxu0 0.0
        %3046 = vmatprep.subr.mxu0 0.0
        %3047 = vmatpush1.msra.mxu0 0.0
        %3048 = vmatprep.subr.mxu0 0.0
        %3049 = vmatpush1.msra.mxu0 0.0
        %3050 = vmatprep.subr.mxu0 0.0
        %3051 = vmatpush1.msra.mxu0 0.0
        %3052 = vmatprep.subr.mxu0 0.0
        %3053 = vmatpush1.msra.mxu0 0.0
        %3054 = vmatprep.subr.mxu0 0.0
        %3055 = vmatpush1.msra.mxu0 0.0
        %3056 = vmatprep.subr.mxu0 0.0
        %3057 = vmatpush1.msra.mxu0 0.0
        %3058 = vmatprep.subr.mxu0 0.0
        %3059 = vmatpush1.msra.mxu0 0.0
        %3060 = vmatprep.subr.mxu0 0.0
        %3061 = vmatpush1.msra.mxu0 0.0
        %3062 = vmatprep.subr.mxu0 0.0
        %3063 = vmatpush1.msra.mxu0 0.0
        %3064 = vmatprep.subr.mxu0 0.0
        %3065 = vmatpush1.msra.mxu0 0.0
        %3066 = vmatprep.subr.mxu0 0.0
        %3067 = vmatpush1.msra.mxu0 0.0
        %3068 = vmatprep.subr.mxu0 %v2959
        %3069 = vmatpush1.msra.mxu0 %v2957
        %3070 = vmatprep.subr.mxu0 %v2928
        %3071 = vmatpush1.msra.mxu0 %v2927
        %3072 = vmatprep.subr.mxu0 %v2923
        %3073 = vmatpush1.msra.mxu0 %v2922
        %3074 = vmatprep.subr.mxu0 0.0
        %3075 = vmatpush2.msra.mxu0 0.0
        %3076 = vmatprep.subr.mxu0 0.0
        %3077 = vmatpush2.msra.mxu0 0.0
        %3078 = vmatprep.subr.mxu0 0.0
        %3079 = vmatpush2.msra.mxu0 0.0
        %3080 = vmatprep.subr.mxu0 0.0
        %3081 = vmatpush2.msra.mxu0 0.0
        %3082 = vmatprep.subr.mxu0 0.0
        %3083 = vmatpush2.msra.mxu0 0.0
        %3084 = vmatprep.subr.mxu0 0.0
        %3085 = vmatpush2.msra.mxu0 0.0
        %3086 = vmatprep.subr.mxu0 0.0
        %3087 = vmatpush2.msra.mxu0 0.0
        %3088 = vmatprep.subr.mxu0 0.0
        %3089 = vmatpush2.msra.mxu0 0.0
        %3090 = vmatprep.subr.mxu0 0.0
        %3091 = vmatpush2.msra.mxu0 0.0
        %3092 = vmatprep.subr.mxu0 0.0
        %3093 = vmatpush2.msra.mxu0 0.0
        %3094 = vmatprep.subr.mxu0 0.0
        %3095 = vmatpush2.msra.mxu0 0.0
        %3096 = vmatprep.subr.mxu0 0.0
        %3097 = vmatpush2.msra.mxu0 0.0
        %3098 = vmatprep.subr.mxu0 0.0
        %3099 = vmatpush2.msra.mxu0 0.0
        %3100 = vmatprep.subr.mxu0 0.0
        %3101 = vmatpush2.msra.mxu0 0.0
        %3102 = vmatprep.subr.mxu0 0.0
        %3103 = vmatpush2.msra.mxu0 0.0
        %3104 = vmatprep.subr.mxu0 0.0
        %3105 = vmatpush2.msra.mxu0 0.0
        %3106 = vmatprep.mubr.f32.mxu0 0.0
        %3107 = vmatmul.mubr.f32.gmra.mxu0 %v2948
        %v3108 = vpop.f32.mrf.mxu0
        %v3109 = vadd.f32 0.0, %v3108
        %v3110 = vpop.f32.mrf.mxu0
        %v3111 = vadd.f32 0.0, %v3110
        %3112 = vmatprep.mubr.f32.mxu0 0.0
        %3113 = vmatmul.mubr.f32.gmra.mxu0 %v2951
        %v3114 = vpop.f32.mrf.mxu0
        %v3115 = vadd.f32 0.0, %v3114
        %v3116 = vpop.f32.mrf.mxu0
        %v3117 = vadd.f32 0.0, %v3116
        %3118 = vdwg.mxu0
        %3119 = vmatprep.subr.mxu0 0.0
        %3120 = vmatpush1.msra.mxu0 0.0
        %3121 = vmatprep.subr.mxu0 0.0
        %3122 = vmatpush1.msra.mxu0 0.0
        %3123 = vmatprep.subr.mxu0 0.0
        %3124 = vmatpush1.msra.mxu0 0.0
        %3125 = vmatprep.subr.mxu0 0.0
        %3126 = vmatpush1.msra.mxu0 0.0
        %3127 = vmatprep.subr.mxu0 0.0
        %3128 = vmatpush1.msra.mxu0 0.0
        %3129 = vmatprep.subr.mxu0 0.0
        %3130 = vmatpush1.msra.mxu0 0.0
        %3131 = vmatprep.subr.mxu0 0.0
        %3132 = vmatpush1.msra.mxu0 0.0
        %3133 = vmatprep.subr.mxu0 0.0
        %3134 = vmatpush1.msra.mxu0 0.0
        %3135 = vmatprep.subr.mxu0 0.0
        %3136 = vmatpush1.msra.mxu0 0.0
        %3137 = vmatprep.subr.mxu0 0.0
        %3138 = vmatpush1.msra.mxu0 0.0
        %3139 = vmatprep.subr.mxu0 0.0
        %3140 = vmatpush1.msra.mxu0 0.0
        %3141 = vmatprep.subr.mxu0 0.0
        %3142 = vmatpush1.msra.mxu0 0.0
        %3143 = vmatprep.subr.mxu0 0.0
        %3144 = vmatpush1.msra.mxu0 0.0
        %3145 = vmatprep.subr.mxu0 %v2963
        %3146 = vmatpush1.msra.mxu0 %v2961
        %3147 = vmatprep.subr.mxu0 %v2907
        %3148 = vmatpush1.msra.mxu0 %v2929
        %3149 = vmatprep.subr.mxu0 %v2895
        %3150 = vmatpush1.msra.mxu0 %v2924
        %3151 = vmatprep.subr.mxu0 0.0
        %3152 = vmatpush2.msra.mxu0 0.0
        %3153 = vmatprep.subr.mxu0 0.0
        %3154 = vmatpush2.msra.mxu0 0.0
        %3155 = vmatprep.subr.mxu0 0.0
        %3156 = vmatpush2.msra.mxu0 0.0
        %3157 = vmatprep.subr.mxu0 0.0
        %3158 = vmatpush2.msra.mxu0 0.0
        %3159 = vmatprep.subr.mxu0 0.0
        %3160 = vmatpush2.msra.mxu0 0.0
        %3161 = vmatprep.subr.mxu0 0.0
        %3162 = vmatpush2.msra.mxu0 0.0
        %3163 = vmatprep.subr.mxu0 0.0
        %3164 = vmatpush2.msra.mxu0 0.0
        %3165 = vmatprep.subr.mxu0 0.0
        %3166 = vmatpush2.msra.mxu0 0.0
        %3167 = vmatprep.subr.mxu0 0.0
        %3168 = vmatpush2.msra.mxu0 0.0
        %3169 = vmatprep.subr.mxu0 0.0
        %3170 = vmatpush2.msra.mxu0 0.0
        %3171 = vmatprep.subr.mxu0 0.0
        %3172 = vmatpush2.msra.mxu0 0.0
        %3173 = vmatprep.subr.mxu0 0.0
        %3174 = vmatpush2.msra.mxu0 0.0
        %3175 = vmatprep.subr.mxu0 0.0
        %3176 = vmatpush2.msra.mxu0 0.0
        %3177 = vmatprep.subr.mxu0 0.0
        %3178 = vmatpush2.msra.mxu0 0.0
        %3179 = vmatprep.subr.mxu0 0.0
        %3180 = vmatpush2.msra.mxu0 0.0
        %3181 = vmatprep.subr.mxu0 0.0
        %3182 = vmatpush2.msra.mxu0 0.0
        %3183 = vmatprep.mubr.f32.mxu0 0.0
        %3184 = vmatmul.mubr.f32.gmra.mxu0 %v2948
        %v3185 = vpop.f32.mrf.mxu0
        %v3186 = vadd.f32 0.0, %v3185
        %v3187 = vpop.f32.mrf.mxu0
        %v3188 = vadd.f32 0.0, %v3187
        %3189 = vmatprep.mubr.f32.mxu0 0.0
        %3190 = vmatmul.mubr.f32.gmra.mxu0 %v2951
        %v3191 = vpop.f32.mrf.mxu0
        %v3192 = vadd.f32 0.0, %v3191
        %v3193 = vpop.f32.mrf.mxu0
        %v3194 = vadd.f32 0.0, %v3193
        %3195 = vdwg.mxu0
        %v3196 = vadd.f32 %v2869, %v3032
        %v3197 = vadd.f32 %v2870, %v3034
        %v3198 = vadd.f32 %v2871, %v3109
        %v3199 = vadd.f32 %v2872, %v3111
        %v3200 = vadd.f32 %v2873, %v3186
        %v3201 = vadd.f32 %v2874, %v3188
        %v3202 = vadd.f32 %v2875, %v3038
        %v3203 = vadd.f32 %v2876, %v3040
        %v3204 = vadd.f32 %v2877, %v3115
        %v3205 = vadd.f32 %v2878, %v3117
        %v3206 = vadd.f32 %v2879, %v3192
        %v3207 = vadd.f32 %v2880, %v3194
        %s3208 = scalar_lea.vmem [#allocation3], 80
        %v3209 = vld [vmem:[%s3208] sm:$0xff]
        %v3210 = vld [vmem:[%s3208 + $0x8] sm:$0x3]
        %3211 = vrot.lane.b32.xlu0 %v1623, 98
        %v3212 = vpop.permute.xlu0 %3211
        %3213 = vrot.lane.b32.xlu0 %v1624, 98
        %v3214 = vpop.permute.xlu0 %3213
        %3215 = vrot.lane.b32.xlu0 %v1625, 98
        %v3216 = vpop.permute.xlu0 %3215
        %3217 = vrot.lane.b32.xlu0 %v1626, 98
        %v3218 = vpop.permute.xlu0 %3217
        %3219 = vrot.lane.b32.xlu0 %v1627, 98
        %v3220 = vpop.permute.xlu0 %3219
        %3221 = vrot.lane.b32.xlu0 %v1628, 98
        %v3222 = vpop.permute.xlu0 %3221
        %3223 = vrot.lane.b32.xlu0 %v1629, 98
        %v3224 = vpop.permute.xlu0 %3223
        %3225 = vrot.lane.b32.xlu0 %v1630, 98
        %v3226 = vpop.permute.xlu0 %3225
        %3227 = vrot.lane.b32.xlu0 %v1631, 98
        %v3228 = vpop.permute.xlu0 %3227
        %3229 = vrot.lane.b32.xlu0 %v1632, 98
        %v3230 = vpop.permute.xlu0 %3229
        %3231 = vrot.lane.b32.xlu0 %v1633, 98
        %v3232 = vpop.permute.xlu0 %3231
        %3233 = vrot.lane.b32.xlu0 %v1634, 98
        %v3234 = vpop.permute.xlu0 %3233
        %3235 = vrot.lane.b32.xlu0 %v1635, 98
        %v3236 = vpop.permute.xlu0 %3235
        %3237 = vrot.lane.b32.xlu0 %v1636, 98
        %v3238 = vpop.permute.xlu0 %3237
        %3239 = vrot.lane.b32.xlu0 %v1637, 98
        %v3240 = vpop.permute.xlu0 %3239
        %3241 = vrot.lane.b32.xlu0 %v1638, 98
        %v3242 = vpop.permute.xlu0 %3241
        %3243 = vrot.lane.b32.xlu0 %v1639, 98
        %v3244 = vpop.permute.xlu0 %3243
        %3245 = vrot.lane.b32.xlu0 %v1640, 98
        %v3246 = vpop.permute.xlu0 %3245
        %v3247 = vsel %vm986, %v3212, %v3214
        %v3248 = vsel %vm986, %v3214, %v3216
        %v3249 = vsel %vm986, %v3216, %v3218
        %v3250 = vsel %vm986, %v3218, %v3220
        %v3251 = vsel %vm986, %v3220, %v3222
        %v3252 = vsel %vm986, %v3224, %v3226
        %v3253 = vsel %vm986, %v3226, %v3228
        %v3254 = vsel %vm986, %v3228, %v3230
        %v3255 = vsel %vm986, %v3230, %v3232
        %v3256 = vsel %vm986, %v3232, %v3234
        %v3257 = vsel %vm986, %v3236, %v3238
        %v3258 = vsel %vm986, %v3238, %v3240
        %v3259 = vsel %vm986, %v3240, %v3242
        %v3260 = vsel %vm986, %v3242, %v3244
        %v3261 = vsel %vm986, %v3244, %v3246
        %v3275 = vsel %vm1727, %v3209, 0
        %v3278 = vsel %vm1727, %v3210, 0
        %v3280 = vsel %vm1734, %v3257, 0
        %v3282 = vsel %vm1734, %v3258, 0
        %v3284 = vsel %vm1734, %v3259, 0
        %v3286 = vsel %vm1734, %v3260, 0
        %v3288 = vsel %vm1734, %v3261, 0
        %v3290 = vsel %vm1734, %v3246, 0
        %3292 = vmatprep.subr.mxu0 0.0
        %3293 = vmatpush1.msra.mxu0 0.0
        %3294 = vmatprep.subr.mxu0 0.0
        %3295 = vmatpush1.msra.mxu0 0.0
        %3296 = vmatprep.subr.mxu0 0.0
        %3297 = vmatpush1.msra.mxu0 0.0
        %3298 = vmatprep.subr.mxu0 0.0
        %3299 = vmatpush1.msra.mxu0 0.0
        %3300 = vmatprep.subr.mxu0 0.0
        %3301 = vmatpush1.msra.mxu0 0.0
        %3302 = vmatprep.subr.mxu0 0.0
        %3303 = vmatpush1.msra.mxu0 0.0
        %3304 = vmatprep.subr.mxu0 0.0
        %3305 = vmatpush1.msra.mxu0 0.0
        %3306 = vmatprep.subr.mxu0 0.0
        %3307 = vmatpush1.msra.mxu0 0.0
        %3308 = vmatprep.subr.mxu0 0.0
        %3309 = vmatpush1.msra.mxu0 0.0
        %3310 = vmatprep.subr.mxu0 0.0
        %3311 = vmatpush1.msra.mxu0 0.0
        %3312 = vmatprep.subr.mxu0 0.0
        %3313 = vmatpush1.msra.mxu0 0.0
        %3314 = vmatprep.subr.mxu0 0.0
        %3315 = vmatpush1.msra.mxu0 0.0
        %3316 = vmatprep.subr.mxu0 0.0
        %3317 = vmatpush1.msra.mxu0 0.0
        %3318 = vmatprep.subr.mxu0 %v3282
        %3319 = vmatpush1.msra.mxu0 %v3280
        %3320 = vmatprep.subr.mxu0 %v3253
        %3321 = vmatpush1.msra.mxu0 %v3252
        %3322 = vmatprep.subr.mxu0 %v3248
        %3323 = vmatpush1.msra.mxu0 %v3247
        %3324 = vmatprep.subr.mxu0 0.0
        %3325 = vmatpush2.msra.mxu0 0.0
        %3326 = vmatprep.subr.mxu0 0.0
        %3327 = vmatpush2.msra.mxu0 0.0
        %3328 = vmatprep.subr.mxu0 0.0
        %3329 = vmatpush2.msra.mxu0 0.0
        %3330 = vmatprep.subr.mxu0 0.0
        %3331 = vmatpush2.msra.mxu0 0.0
        %3332 = vmatprep.subr.mxu0 0.0
        %3333 = vmatpush2.msra.mxu0 0.0
        %3334 = vmatprep.subr.mxu0 0.0
        %3335 = vmatpush2.msra.mxu0 0.0
        %3336 = vmatprep.subr.mxu0 0.0
        %3337 = vmatpush2.msra.mxu0 0.0
        %3338 = vmatprep.subr.mxu0 0.0
        %3339 = vmatpush2.msra.mxu0 0.0
        %3340 = vmatprep.subr.mxu0 0.0
        %3341 = vmatpush2.msra.mxu0 0.0
        %3342 = vmatprep.subr.mxu0 0.0
        %3343 = vmatpush2.msra.mxu0 0.0
        %3344 = vmatprep.subr.mxu0 0.0
        %3345 = vmatpush2.msra.mxu0 0.0
        %3346 = vmatprep.subr.mxu0 0.0
        %3347 = vmatpush2.msra.mxu0 0.0
        %3348 = vmatprep.subr.mxu0 0.0
        %3349 = vmatpush2.msra.mxu0 0.0
        %3350 = vmatprep.subr.mxu0 0.0
        %3351 = vmatpush2.msra.mxu0 0.0
        %3352 = vmatprep.subr.mxu0 0.0
        %3353 = vmatpush2.msra.mxu0 0.0
        %3354 = vmatprep.subr.mxu0 0.0
        %3355 = vmatpush2.msra.mxu0 0.0
        %3356 = vmatprep.mubr.f32.mxu0 0.0
        %3357 = vmatmul.mubr.f32.gmra.mxu0 %v3275
        %v3358 = vpop.f32.mrf.mxu0
        %v3359 = vadd.f32 0.0, %v3358
        %v3360 = vpop.f32.mrf.mxu0
        %v3361 = vadd.f32 0.0, %v3360
        %3362 = vmatprep.mubr.f32.mxu0 0.0
        %3363 = vmatmul.mubr.f32.gmra.mxu0 %v3278
        %v3364 = vpop.f32.mrf.mxu0
        %v3365 = vadd.f32 0.0, %v3364
        %v3366 = vpop.f32.mrf.mxu0
        %v3367 = vadd.f32 0.0, %v3366
        %3368 = vdwg.mxu0
        %3369 = vmatprep.subr.mxu0 0.0
        %3370 = vmatpush1.msra.mxu0 0.0
        %3371 = vmatprep.subr.mxu0 0.0
        %3372 = vmatpush1.msra.mxu0 0.0
        %3373 = vmatprep.subr.mxu0 0.0
        %3374 = vmatpush1.msra.mxu0 0.0
        %3375 = vmatprep.subr.mxu0 0.0
        %3376 = vmatpush1.msra.mxu0 0.0
        %3377 = vmatprep.subr.mxu0 0.0
        %3378 = vmatpush1.msra.mxu0 0.0
        %3379 = vmatprep.subr.mxu0 0.0
        %3380 = vmatpush1.msra.mxu0 0.0
        %3381 = vmatprep.subr.mxu0 0.0
        %3382 = vmatpush1.msra.mxu0 0.0
        %3383 = vmatprep.subr.mxu0 0.0
        %3384 = vmatpush1.msra.mxu0 0.0
        %3385 = vmatprep.subr.mxu0 0.0
        %3386 = vmatpush1.msra.mxu0 0.0
        %3387 = vmatprep.subr.mxu0 0.0
        %3388 = vmatpush1.msra.mxu0 0.0
        %3389 = vmatprep.subr.mxu0 0.0
        %3390 = vmatpush1.msra.mxu0 0.0
        %3391 = vmatprep.subr.mxu0 0.0
        %3392 = vmatpush1.msra.mxu0 0.0
        %3393 = vmatprep.subr.mxu0 0.0
        %3394 = vmatpush1.msra.mxu0 0.0
        %3395 = vmatprep.subr.mxu0 %v3286
        %3396 = vmatpush1.msra.mxu0 %v3284
        %3397 = vmatprep.subr.mxu0 %v3255
        %3398 = vmatpush1.msra.mxu0 %v3254
        %3399 = vmatprep.subr.mxu0 %v3250
        %3400 = vmatpush1.msra.mxu0 %v3249
        %3401 = vmatprep.subr.mxu0 0.0
        %3402 = vmatpush2.msra.mxu0 0.0
        %3403 = vmatprep.subr.mxu0 0.0
        %3404 = vmatpush2.msra.mxu0 0.0
        %3405 = vmatprep.subr.mxu0 0.0
        %3406 = vmatpush2.msra.mxu0 0.0
        %3407 = vmatprep.subr.mxu0 0.0
        %3408 = vmatpush2.msra.mxu0 0.0
        %3409 = vmatprep.subr.mxu0 0.0
        %3410 = vmatpush2.msra.mxu0 0.0
        %3411 = vmatprep.subr.mxu0 0.0
        %3412 = vmatpush2.msra.mxu0 0.0
        %3413 = vmatprep.subr.mxu0 0.0
        %3414 = vmatpush2.msra.mxu0 0.0
        %3415 = vmatprep.subr.mxu0 0.0
        %3416 = vmatpush2.msra.mxu0 0.0
        %3417 = vmatprep.subr.mxu0 0.0
        %3418 = vmatpush2.msra.mxu0 0.0
        %3419 = vmatprep.subr.mxu0 0.0
        %3420 = vmatpush2.msra.mxu0 0.0
        %3421 = vmatprep.subr.mxu0 0.0
        %3422 = vmatpush2.msra.mxu0 0.0
        %3423 = vmatprep.subr.mxu0 0.0
        %3424 = vmatpush2.msra.mxu0 0.0
        %3425 = vmatprep.subr.mxu0 0.0
        %3426 = vmatpush2.msra.mxu0 0.0
        %3427 = vmatprep.subr.mxu0 0.0
        %3428 = vmatpush2.msra.mxu0 0.0
        %3429 = vmatprep.subr.mxu0 0.0
        %3430 = vmatpush2.msra.mxu0 0.0
        %3431 = vmatprep.subr.mxu0 0.0
        %3432 = vmatpush2.msra.mxu0 0.0
        %3433 = vmatprep.mubr.f32.mxu0 0.0
        %3434 = vmatmul.mubr.f32.gmra.mxu0 %v3275
        %v3435 = vpop.f32.mrf.mxu0
        %v3436 = vadd.f32 0.0, %v3435
        %v3437 = vpop.f32.mrf.mxu0
        %v3438 = vadd.f32 0.0, %v3437
        %3439 = vmatprep.mubr.f32.mxu0 0.0
        %3440 = vmatmul.mubr.f32.gmra.mxu0 %v3278
        %v3441 = vpop.f32.mrf.mxu0
        %v3442 = vadd.f32 0.0, %v3441
        %v3443 = vpop.f32.mrf.mxu0
        %v3444 = vadd.f32 0.0, %v3443
        %3445 = vdwg.mxu0
        %3446 = vmatprep.subr.mxu0 0.0
        %3447 = vmatpush1.msra.mxu0 0.0
        %3448 = vmatprep.subr.mxu0 0.0
        %3449 = vmatpush1.msra.mxu0 0.0
        %3450 = vmatprep.subr.mxu0 0.0
        %3451 = vmatpush1.msra.mxu0 0.0
        %3452 = vmatprep.subr.mxu0 0.0
        %3453 = vmatpush1.msra.mxu0 0.0
        %3454 = vmatprep.subr.mxu0 0.0
        %3455 = vmatpush1.msra.mxu0 0.0
        %3456 = vmatprep.subr.mxu0 0.0
        %3457 = vmatpush1.msra.mxu0 0.0
        %3458 = vmatprep.subr.mxu0 0.0
        %3459 = vmatpush1.msra.mxu0 0.0
        %3460 = vmatprep.subr.mxu0 0.0
        %3461 = vmatpush1.msra.mxu0 0.0
        %3462 = vmatprep.subr.mxu0 0.0
        %3463 = vmatpush1.msra.mxu0 0.0
        %3464 = vmatprep.subr.mxu0 0.0
        %3465 = vmatpush1.msra.mxu0 0.0
        %3466 = vmatprep.subr.mxu0 0.0
        %3467 = vmatpush1.msra.mxu0 0.0
        %3468 = vmatprep.subr.mxu0 0.0
        %3469 = vmatpush1.msra.mxu0 0.0
        %3470 = vmatprep.subr.mxu0 0.0
        %3471 = vmatpush1.msra.mxu0 0.0
        %3472 = vmatprep.subr.mxu0 %v3290
        %3473 = vmatpush1.msra.mxu0 %v3288
        %3474 = vmatprep.subr.mxu0 %v3234
        %3475 = vmatpush1.msra.mxu0 %v3256
        %3476 = vmatprep.subr.mxu0 %v3222
        %3477 = vmatpush1.msra.mxu0 %v3251
        %3478 = vmatprep.subr.mxu0 0.0
        %3479 = vmatpush2.msra.mxu0 0.0
        %3480 = vmatprep.subr.mxu0 0.0
        %3481 = vmatpush2.msra.mxu0 0.0
        %3482 = vmatprep.subr.mxu0 0.0
        %3483 = vmatpush2.msra.mxu0 0.0
        %3484 = vmatprep.subr.mxu0 0.0
        %3485 = vmatpush2.msra.mxu0 0.0
        %3486 = vmatprep.subr.mxu0 0.0
        %3487 = vmatpush2.msra.mxu0 0.0
        %3488 = vmatprep.subr.mxu0 0.0
        %3489 = vmatpush2.msra.mxu0 0.0
        %3490 = vmatprep.subr.mxu0 0.0
        %3491 = vmatpush2.msra.mxu0 0.0
        %3492 = vmatprep.subr.mxu0 0.0
        %3493 = vmatpush2.msra.mxu0 0.0
        %3494 = vmatprep.subr.mxu0 0.0
        %3495 = vmatpush2.msra.mxu0 0.0
        %3496 = vmatprep.subr.mxu0 0.0
        %3497 = vmatpush2.msra.mxu0 0.0
        %3498 = vmatprep.subr.mxu0 0.0
        %3499 = vmatpush2.msra.mxu0 0.0
        %3500 = vmatprep.subr.mxu0 0.0
        %3501 = vmatpush2.msra.mxu0 0.0
        %3502 = vmatprep.subr.mxu0 0.0
        %3503 = vmatpush2.msra.mxu0 0.0
        %3504 = vmatprep.subr.mxu0 0.0
        %3505 = vmatpush2.msra.mxu0 0.0
        %3506 = vmatprep.subr.mxu0 0.0
        %3507 = vmatpush2.msra.mxu0 0.0
        %3508 = vmatprep.subr.mxu0 0.0
        %3509 = vmatpush2.msra.mxu0 0.0
        %3510 = vmatprep.mubr.f32.mxu0 0.0
        %3511 = vmatmul.mubr.f32.gmra.mxu0 %v3275
        %v3512 = vpop.f32.mrf.mxu0
        %v3513 = vadd.f32 0.0, %v3512
        %v3514 = vpop.f32.mrf.mxu0
        %v3515 = vadd.f32 0.0, %v3514
        %3516 = vmatprep.mubr.f32.mxu0 0.0
        %3517 = vmatmul.mubr.f32.gmra.mxu0 %v3278
        %v3518 = vpop.f32.mrf.mxu0
        %v3519 = vadd.f32 0.0, %v3518
        %v3520 = vpop.f32.mrf.mxu0
        %v3521 = vadd.f32 0.0, %v3520
        %3522 = vdwg.mxu0
        %v3523 = vadd.f32 %v3196, %v3359
        %v3524 = vadd.f32 %v3197, %v3361
        %v3525 = vadd.f32 %v3198, %v3436
        %v3526 = vadd.f32 %v3199, %v3438
        %v3527 = vadd.f32 %v3200, %v3513
        %v3528 = vadd.f32 %v3201, %v3515
        %v3529 = vadd.f32 %v3202, %v3365
        %v3530 = vadd.f32 %v3203, %v3367
        %v3531 = vadd.f32 %v3204, %v3442
        %v3532 = vadd.f32 %v3205, %v3444
        %v3533 = vadd.f32 %v3206, %v3519
        %v3534 = vadd.f32 %v3207, %v3521
        %s3535 = scalar_lea.vmem [#allocation3], 96
        %v3536 = vld [vmem:[%s3535] sm:$0xff]
        %v3537 = vld [vmem:[%s3535 + $0x8] sm:$0x3]
        %3538 = vrot.lane.b32.xlu0 %v1623, 72
        %v3539 = vpop.permute.xlu0 %3538
        %3540 = vrot.lane.b32.xlu0 %v1624, 72
        %v3541 = vpop.permute.xlu0 %3540
        %3542 = vrot.lane.b32.xlu0 %v1625, 72
        %v3543 = vpop.permute.xlu0 %3542
        %3544 = vrot.lane.b32.xlu0 %v1626, 72
        %v3545 = vpop.permute.xlu0 %3544
        %3546 = vrot.lane.b32.xlu0 %v1627, 72
        %v3547 = vpop.permute.xlu0 %3546
        %3548 = vrot.lane.b32.xlu0 %v1628, 72
        %v3549 = vpop.permute.xlu0 %3548
        %3550 = vrot.lane.b32.xlu0 %v1629, 72
        %v3551 = vpop.permute.xlu0 %3550
        %3552 = vrot.lane.b32.xlu0 %v1630, 72
        %v3553 = vpop.permute.xlu0 %3552
        %3554 = vrot.lane.b32.xlu0 %v1631, 72
        %v3555 = vpop.permute.xlu0 %3554
        %3556 = vrot.lane.b32.xlu0 %v1632, 72
        %v3557 = vpop.permute.xlu0 %3556
        %3558 = vrot.lane.b32.xlu0 %v1633, 72
        %v3559 = vpop.permute.xlu0 %3558
        %3560 = vrot.lane.b32.xlu0 %v1634, 72
        %v3561 = vpop.permute.xlu0 %3560
        %3562 = vrot.lane.b32.xlu0 %v1635, 72
        %v3563 = vpop.permute.xlu0 %3562
        %3564 = vrot.lane.b32.xlu0 %v1636, 72
        %v3565 = vpop.permute.xlu0 %3564
        %3566 = vrot.lane.b32.xlu0 %v1637, 72
        %v3567 = vpop.permute.xlu0 %3566
        %3568 = vrot.lane.b32.xlu0 %v1638, 72
        %v3569 = vpop.permute.xlu0 %3568
        %3570 = vrot.lane.b32.xlu0 %v1639, 72
        %v3571 = vpop.permute.xlu0 %3570
        %3572 = vrot.lane.b32.xlu0 %v1640, 72
        %v3573 = vpop.permute.xlu0 %3572
        %v3574 = vsel %vm1178, %v3539, %v3541
        %v3575 = vsel %vm1178, %v3541, %v3543
        %v3576 = vsel %vm1178, %v3543, %v3545
        %v3577 = vsel %vm1178, %v3545, %v3547
        %v3578 = vsel %vm1178, %v3547, %v3549
        %v3579 = vsel %vm1178, %v3551, %v3553
        %v3580 = vsel %vm1178, %v3553, %v3555
        %v3581 = vsel %vm1178, %v3555, %v3557
        %v3582 = vsel %vm1178, %v3557, %v3559
        %v3583 = vsel %vm1178, %v3559, %v3561
        %v3584 = vsel %vm1178, %v3563, %v3565
        %v3585 = vsel %vm1178, %v3565, %v3567
        %v3586 = vsel %vm1178, %v3567, %v3569
        %v3587 = vsel %vm1178, %v3569, %v3571
        %v3588 = vsel %vm1178, %v3571, %v3573
        %v3602 = vsel %vm1727, %v3536, 0
        %v3605 = vsel %vm1727, %v3537, 0
        %v3607 = vsel %vm1734, %v3584, 0
        %v3609 = vsel %vm1734, %v3585, 0
        %v3611 = vsel %vm1734, %v3586, 0
        %v3613 = vsel %vm1734, %v3587, 0
        %v3615 = vsel %vm1734, %v3588, 0
        %v3617 = vsel %vm1734, %v3573, 0
        %3619 = vmatprep.subr.mxu0 0.0
        %3620 = vmatpush1.msra.mxu0 0.0
        %3621 = vmatprep.subr.mxu0 0.0
        %3622 = vmatpush1.msra.mxu0 0.0
        %3623 = vmatprep.subr.mxu0 0.0
        %3624 = vmatpush1.msra.mxu0 0.0
        %3625 = vmatprep.subr.mxu0 0.0
        %3626 = vmatpush1.msra.mxu0 0.0
        %3627 = vmatprep.subr.mxu0 0.0
        %3628 = vmatpush1.msra.mxu0 0.0
        %3629 = vmatprep.subr.mxu0 0.0
        %3630 = vmatpush1.msra.mxu0 0.0
        %3631 = vmatprep.subr.mxu0 0.0
        %3632 = vmatpush1.msra.mxu0 0.0
        %3633 = vmatprep.subr.mxu0 0.0
        %3634 = vmatpush1.msra.mxu0 0.0
        %3635 = vmatprep.subr.mxu0 0.0
        %3636 = vmatpush1.msra.mxu0 0.0
        %3637 = vmatprep.subr.mxu0 0.0
        %3638 = vmatpush1.msra.mxu0 0.0
        %3639 = vmatprep.subr.mxu0 0.0
        %3640 = vmatpush1.msra.mxu0 0.0
        %3641 = vmatprep.subr.mxu0 0.0
        %3642 = vmatpush1.msra.mxu0 0.0
        %3643 = vmatprep.subr.mxu0 0.0
        %3644 = vmatpush1.msra.mxu0 0.0
        %3645 = vmatprep.subr.mxu0 %v3609
        %3646 = vmatpush1.msra.mxu0 %v3607
        %3647 = vmatprep.subr.mxu0 %v3580
        %3648 = vmatpush1.msra.mxu0 %v3579
        %3649 = vmatprep.subr.mxu0 %v3575
        %3650 = vmatpush1.msra.mxu0 %v3574
        %3651 = vmatprep.subr.mxu0 0.0
        %3652 = vmatpush2.msra.mxu0 0.0
        %3653 = vmatprep.subr.mxu0 0.0
        %3654 = vmatpush2.msra.mxu0 0.0
        %3655 = vmatprep.subr.mxu0 0.0
        %3656 = vmatpush2.msra.mxu0 0.0
        %3657 = vmatprep.subr.mxu0 0.0
        %3658 = vmatpush2.msra.mxu0 0.0
        %3659 = vmatprep.subr.mxu0 0.0
        %3660 = vmatpush2.msra.mxu0 0.0
        %3661 = vmatprep.subr.mxu0 0.0
        %3662 = vmatpush2.msra.mxu0 0.0
        %3663 = vmatprep.subr.mxu0 0.0
        %3664 = vmatpush2.msra.mxu0 0.0
        %3665 = vmatprep.subr.mxu0 0.0
        %3666 = vmatpush2.msra.mxu0 0.0
        %3667 = vmatprep.subr.mxu0 0.0
        %3668 = vmatpush2.msra.mxu0 0.0
        %3669 = vmatprep.subr.mxu0 0.0
        %3670 = vmatpush2.msra.mxu0 0.0
        %3671 = vmatprep.subr.mxu0 0.0
        %3672 = vmatpush2.msra.mxu0 0.0
        %3673 = vmatprep.subr.mxu0 0.0
        %3674 = vmatpush2.msra.mxu0 0.0
        %3675 = vmatprep.subr.mxu0 0.0
        %3676 = vmatpush2.msra.mxu0 0.0
        %3677 = vmatprep.subr.mxu0 0.0
        %3678 = vmatpush2.msra.mxu0 0.0
        %3679 = vmatprep.subr.mxu0 0.0
        %3680 = vmatpush2.msra.mxu0 0.0
        %3681 = vmatprep.subr.mxu0 0.0
        %3682 = vmatpush2.msra.mxu0 0.0
        %3683 = vmatprep.mubr.f32.mxu0 0.0
        %3684 = vmatmul.mubr.f32.gmra.mxu0 %v3602
        %v3685 = vpop.f32.mrf.mxu0
        %v3686 = vadd.f32 0.0, %v3685
        %v3687 = vpop.f32.mrf.mxu0
        %v3688 = vadd.f32 0.0, %v3687
        %3689 = vmatprep.mubr.f32.mxu0 0.0
        %3690 = vmatmul.mubr.f32.gmra.mxu0 %v3605
        %v3691 = vpop.f32.mrf.mxu0
        %v3692 = vadd.f32 0.0, %v3691
        %v3693 = vpop.f32.mrf.mxu0
        %v3694 = vadd.f32 0.0, %v3693
        %3695 = vdwg.mxu0
        %3696 = vmatprep.subr.mxu0 0.0
        %3697 = vmatpush1.msra.mxu0 0.0
        %3698 = vmatprep.subr.mxu0 0.0
        %3699 = vmatpush1.msra.mxu0 0.0
        %3700 = vmatprep.subr.mxu0 0.0
        %3701 = vmatpush1.msra.mxu0 0.0
        %3702 = vmatprep.subr.mxu0 0.0
        %3703 = vmatpush1.msra.mxu0 0.0
        %3704 = vmatprep.subr.mxu0 0.0
        %3705 = vmatpush1.msra.mxu0 0.0
        %3706 = vmatprep.subr.mxu0 0.0
        %3707 = vmatpush1.msra.mxu0 0.0
        %3708 = vmatprep.subr.mxu0 0.0
        %3709 = vmatpush1.msra.mxu0 0.0
        %3710 = vmatprep.subr.mxu0 0.0
        %3711 = vmatpush1.msra.mxu0 0.0
        %3712 = vmatprep.subr.mxu0 0.0
        %3713 = vmatpush1.msra.mxu0 0.0
        %3714 = vmatprep.subr.mxu0 0.0
        %3715 = vmatpush1.msra.mxu0 0.0
        %3716 = vmatprep.subr.mxu0 0.0
        %3717 = vmatpush1.msra.mxu0 0.0
        %3718 = vmatprep.subr.mxu0 0.0
        %3719 = vmatpush1.msra.mxu0 0.0
        %3720 = vmatprep.subr.mxu0 0.0
        %3721 = vmatpush1.msra.mxu0 0.0
        %3722 = vmatprep.subr.mxu0 %v3613
        %3723 = vmatpush1.msra.mxu0 %v3611
        %3724 = vmatprep.subr.mxu0 %v3582
        %3725 = vmatpush1.msra.mxu0 %v3581
        %3726 = vmatprep.subr.mxu0 %v3577
        %3727 = vmatpush1.msra.mxu0 %v3576
        %3728 = vmatprep.subr.mxu0 0.0
        %3729 = vmatpush2.msra.mxu0 0.0
        %3730 = vmatprep.subr.mxu0 0.0
        %3731 = vmatpush2.msra.mxu0 0.0
        %3732 = vmatprep.subr.mxu0 0.0
        %3733 = vmatpush2.msra.mxu0 0.0
        %3734 = vmatprep.subr.mxu0 0.0
        %3735 = vmatpush2.msra.mxu0 0.0
        %3736 = vmatprep.subr.mxu0 0.0
        %3737 = vmatpush2.msra.mxu0 0.0
        %3738 = vmatprep.subr.mxu0 0.0
        %3739 = vmatpush2.msra.mxu0 0.0
        %3740 = vmatprep.subr.mxu0 0.0
        %3741 = vmatpush2.msra.mxu0 0.0
        %3742 = vmatprep.subr.mxu0 0.0
        %3743 = vmatpush2.msra.mxu0 0.0
        %3744 = vmatprep.subr.mxu0 0.0
        %3745 = vmatpush2.msra.mxu0 0.0
        %3746 = vmatprep.subr.mxu0 0.0
        %3747 = vmatpush2.msra.mxu0 0.0
        %3748 = vmatprep.subr.mxu0 0.0
        %3749 = vmatpush2.msra.mxu0 0.0
        %3750 = vmatprep.subr.mxu0 0.0
        %3751 = vmatpush2.msra.mxu0 0.0
        %3752 = vmatprep.subr.mxu0 0.0
        %3753 = vmatpush2.msra.mxu0 0.0
        %3754 = vmatprep.subr.mxu0 0.0
        %3755 = vmatpush2.msra.mxu0 0.0
        %3756 = vmatprep.subr.mxu0 0.0
        %3757 = vmatpush2.msra.mxu0 0.0
        %3758 = vmatprep.subr.mxu0 0.0
        %3759 = vmatpush2.msra.mxu0 0.0
        %3760 = vmatprep.mubr.f32.mxu0 0.0
        %3761 = vmatmul.mubr.f32.gmra.mxu0 %v3602
        %v3762 = vpop.f32.mrf.mxu0
        %v3763 = vadd.f32 0.0, %v3762
        %v3764 = vpop.f32.mrf.mxu0
        %v3765 = vadd.f32 0.0, %v3764
        %3766 = vmatprep.mubr.f32.mxu0 0.0
        %3767 = vmatmul.mubr.f32.gmra.mxu0 %v3605
        %v3768 = vpop.f32.mrf.mxu0
        %v3769 = vadd.f32 0.0, %v3768
        %v3770 = vpop.f32.mrf.mxu0
        %v3771 = vadd.f32 0.0, %v3770
        %3772 = vdwg.mxu0
        %3773 = vmatprep.subr.mxu0 0.0
        %3774 = vmatpush1.msra.mxu0 0.0
        %3775 = vmatprep.subr.mxu0 0.0
        %3776 = vmatpush1.msra.mxu0 0.0
        %3777 = vmatprep.subr.mxu0 0.0
        %3778 = vmatpush1.msra.mxu0 0.0
        %3779 = vmatprep.subr.mxu0 0.0
        %3780 = vmatpush1.msra.mxu0 0.0
        %3781 = vmatprep.subr.mxu0 0.0
        %3782 = vmatpush1.msra.mxu0 0.0
        %3783 = vmatprep.subr.mxu0 0.0
        %3784 = vmatpush1.msra.mxu0 0.0
        %3785 = vmatprep.subr.mxu0 0.0
        %3786 = vmatpush1.msra.mxu0 0.0
        %3787 = vmatprep.subr.mxu0 0.0
        %3788 = vmatpush1.msra.mxu0 0.0
        %3789 = vmatprep.subr.mxu0 0.0
        %3790 = vmatpush1.msra.mxu0 0.0
        %3791 = vmatprep.subr.mxu0 0.0
        %3792 = vmatpush1.msra.mxu0 0.0
        %3793 = vmatprep.subr.mxu0 0.0
        %3794 = vmatpush1.msra.mxu0 0.0
        %3795 = vmatprep.subr.mxu0 0.0
        %3796 = vmatpush1.msra.mxu0 0.0
        %3797 = vmatprep.subr.mxu0 0.0
        %3798 = vmatpush1.msra.mxu0 0.0
        %3799 = vmatprep.subr.mxu0 %v3617
        %3800 = vmatpush1.msra.mxu0 %v3615
        %3801 = vmatprep.subr.mxu0 %v3561
        %3802 = vmatpush1.msra.mxu0 %v3583
        %3803 = vmatprep.subr.mxu0 %v3549
        %3804 = vmatpush1.msra.mxu0 %v3578
        %3805 = vmatprep.subr.mxu0 0.0
        %3806 = vmatpush2.msra.mxu0 0.0
        %3807 = vmatprep.subr.mxu0 0.0
        %3808 = vmatpush2.msra.mxu0 0.0
        %3809 = vmatprep.subr.mxu0 0.0
        %3810 = vmatpush2.msra.mxu0 0.0
        %3811 = vmatprep.subr.mxu0 0.0
        %3812 = vmatpush2.msra.mxu0 0.0
        %3813 = vmatprep.subr.mxu0 0.0
        %3814 = vmatpush2.msra.mxu0 0.0
        %3815 = vmatprep.subr.mxu0 0.0
        %3816 = vmatpush2.msra.mxu0 0.0
        %3817 = vmatprep.subr.mxu0 0.0
        %3818 = vmatpush2.msra.mxu0 0.0
        %3819 = vmatprep.subr.mxu0 0.0
        %3820 = vmatpush2.msra.mxu0 0.0
        %3821 = vmatprep.subr.mxu0 0.0
        %3822 = vmatpush2.msra.mxu0 0.0
        %3823 = vmatprep.subr.mxu0 0.0
        %3824 = vmatpush2.msra.mxu0 0.0
        %3825 = vmatprep.subr.mxu0 0.0
        %3826 = vmatpush2.msra.mxu0 0.0
        %3827 = vmatprep.subr.mxu0 0.0
        %3828 = vmatpush2.msra.mxu0 0.0
        %3829 = vmatprep.subr.mxu0 0.0
        %3830 = vmatpush2.msra.mxu0 0.0
        %3831 = vmatprep.subr.mxu0 0.0
        %3832 = vmatpush2.msra.mxu0 0.0
        %3833 = vmatprep.subr.mxu0 0.0
        %3834 = vmatpush2.msra.mxu0 0.0
        %3835 = vmatprep.subr.mxu0 0.0
        %3836 = vmatpush2.msra.mxu0 0.0
        %3837 = vmatprep.mubr.f32.mxu0 0.0
        %3838 = vmatmul.mubr.f32.gmra.mxu0 %v3602
        %v3839 = vpop.f32.mrf.mxu0
        %v3840 = vadd.f32 0.0, %v3839
        %v3841 = vpop.f32.mrf.mxu0
        %v3842 = vadd.f32 0.0, %v3841
        %3843 = vmatprep.mubr.f32.mxu0 0.0
        %3844 = vmatmul.mubr.f32.gmra.mxu0 %v3605
        %v3845 = vpop.f32.mrf.mxu0
        %v3846 = vadd.f32 0.0, %v3845
        %v3847 = vpop.f32.mrf.mxu0
        %v3848 = vadd.f32 0.0, %v3847
        %3849 = vdwg.mxu0
        %v3850 = vadd.f32 %v3523, %v3686
        %v3851 = vadd.f32 %v3524, %v3688
        %v3852 = vadd.f32 %v3525, %v3763
        %v3853 = vadd.f32 %v3526, %v3765
        %v3854 = vadd.f32 %v3527, %v3840
        %v3855 = vadd.f32 %v3528, %v3842
        %v3856 = vadd.f32 %v3529, %v3692
        %v3857 = vadd.f32 %v3530, %v3694
        %v3858 = vadd.f32 %v3531, %v3769
        %v3859 = vadd.f32 %v3532, %v3771
        %v3860 = vadd.f32 %v3533, %v3846
        %v3861 = vadd.f32 %v3534, %v3848
        %s3862 = scalar_lea.vmem [#allocation3], 112
        %v3863 = vld [vmem:[%s3862] sm:$0xff]
        %v3864 = vld [vmem:[%s3862 + $0x8] sm:$0x3]
        %3865 = vrot.lane.b32.xlu0 %v1623, 71
        %v3866 = vpop.permute.xlu0 %3865
        %3867 = vrot.lane.b32.xlu0 %v1624, 71
        %v3868 = vpop.permute.xlu0 %3867
        %3869 = vrot.lane.b32.xlu0 %v1625, 71
        %v3870 = vpop.permute.xlu0 %3869
        %3871 = vrot.lane.b32.xlu0 %v1626, 71
        %v3872 = vpop.permute.xlu0 %3871
        %3873 = vrot.lane.b32.xlu0 %v1627, 71
        %v3874 = vpop.permute.xlu0 %3873
        %3875 = vrot.lane.b32.xlu0 %v1628, 71
        %v3876 = vpop.permute.xlu0 %3875
        %3877 = vrot.lane.b32.xlu0 %v1629, 71
        %v3878 = vpop.permute.xlu0 %3877
        %3879 = vrot.lane.b32.xlu0 %v1630, 71
        %v3880 = vpop.permute.xlu0 %3879
        %3881 = vrot.lane.b32.xlu0 %v1631, 71
        %v3882 = vpop.permute.xlu0 %3881
        %3883 = vrot.lane.b32.xlu0 %v1632, 71
        %v3884 = vpop.permute.xlu0 %3883
        %3885 = vrot.lane.b32.xlu0 %v1633, 71
        %v3886 = vpop.permute.xlu0 %3885
        %3887 = vrot.lane.b32.xlu0 %v1634, 71
        %v3888 = vpop.permute.xlu0 %3887
        %3889 = vrot.lane.b32.xlu0 %v1635, 71
        %v3890 = vpop.permute.xlu0 %3889
        %3891 = vrot.lane.b32.xlu0 %v1636, 71
        %v3892 = vpop.permute.xlu0 %3891
        %3893 = vrot.lane.b32.xlu0 %v1637, 71
        %v3894 = vpop.permute.xlu0 %3893
        %3895 = vrot.lane.b32.xlu0 %v1638, 71
        %v3896 = vpop.permute.xlu0 %3895
        %3897 = vrot.lane.b32.xlu0 %v1639, 71
        %v3898 = vpop.permute.xlu0 %3897
        %3899 = vrot.lane.b32.xlu0 %v1640, 71
        %v3900 = vpop.permute.xlu0 %3899
        %v3901 = vsel %vm1336, %v3866, %v3868
        %v3902 = vsel %vm1336, %v3868, %v3870
        %v3903 = vsel %vm1336, %v3870, %v3872
        %v3904 = vsel %vm1336, %v3872, %v3874
        %v3905 = vsel %vm1336, %v3874, %v3876
        %v3906 = vsel %vm1336, %v3878, %v3880
        %v3907 = vsel %vm1336, %v3880, %v3882
        %v3908 = vsel %vm1336, %v3882, %v3884
        %v3909 = vsel %vm1336, %v3884, %v3886
        %v3910 = vsel %vm1336, %v3886, %v3888
        %v3911 = vsel %vm1336, %v3890, %v3892
        %v3912 = vsel %vm1336, %v3892, %v3894
        %v3913 = vsel %vm1336, %v3894, %v3896
        %v3914 = vsel %vm1336, %v3896, %v3898
        %v3915 = vsel %vm1336, %v3898, %v3900
        %v3929 = vsel %vm1727, %v3863, 0
        %v3932 = vsel %vm1727, %v3864, 0
        %v3934 = vsel %vm1734, %v3911, 0
        %v3936 = vsel %vm1734, %v3912, 0
        %v3938 = vsel %vm1734, %v3913, 0
        %v3940 = vsel %vm1734, %v3914, 0
        %v3942 = vsel %vm1734, %v3915, 0
        %v3944 = vsel %vm1734, %v3900, 0
        %3946 = vmatprep.subr.mxu0 0.0
        %3947 = vmatpush1.msra.mxu0 0.0
        %3948 = vmatprep.subr.mxu0 0.0
        %3949 = vmatpush1.msra.mxu0 0.0
        %3950 = vmatprep.subr.mxu0 0.0
        %3951 = vmatpush1.msra.mxu0 0.0
        %3952 = vmatprep.subr.mxu0 0.0
        %3953 = vmatpush1.msra.mxu0 0.0
        %3954 = vmatprep.subr.mxu0 0.0
        %3955 = vmatpush1.msra.mxu0 0.0
        %3956 = vmatprep.subr.mxu0 0.0
        %3957 = vmatpush1.msra.mxu0 0.0
        %3958 = vmatprep.subr.mxu0 0.0
        %3959 = vmatpush1.msra.mxu0 0.0
        %3960 = vmatprep.subr.mxu0 0.0
        %3961 = vmatpush1.msra.mxu0 0.0
        %3962 = vmatprep.subr.mxu0 0.0
        %3963 = vmatpush1.msra.mxu0 0.0
        %3964 = vmatprep.subr.mxu0 0.0
        %3965 = vmatpush1.msra.mxu0 0.0
        %3966 = vmatprep.subr.mxu0 0.0
        %3967 = vmatpush1.msra.mxu0 0.0
        %3968 = vmatprep.subr.mxu0 0.0
        %3969 = vmatpush1.msra.mxu0 0.0
        %3970 = vmatprep.subr.mxu0 0.0
        %3971 = vmatpush1.msra.mxu0 0.0
        %3972 = vmatprep.subr.mxu0 %v3936
        %3973 = vmatpush1.msra.mxu0 %v3934
        %3974 = vmatprep.subr.mxu0 %v3907
        %3975 = vmatpush1.msra.mxu0 %v3906
        %3976 = vmatprep.subr.mxu0 %v3902
        %3977 = vmatpush1.msra.mxu0 %v3901
        %3978 = vmatprep.subr.mxu0 0.0
        %3979 = vmatpush2.msra.mxu0 0.0
        %3980 = vmatprep.subr.mxu0 0.0
        %3981 = vmatpush2.msra.mxu0 0.0
        %3982 = vmatprep.subr.mxu0 0.0
        %3983 = vmatpush2.msra.mxu0 0.0
        %3984 = vmatprep.subr.mxu0 0.0
        %3985 = vmatpush2.msra.mxu0 0.0
        %3986 = vmatprep.subr.mxu0 0.0
        %3987 = vmatpush2.msra.mxu0 0.0
        %3988 = vmatprep.subr.mxu0 0.0
        %3989 = vmatpush2.msra.mxu0 0.0
        %3990 = vmatprep.subr.mxu0 0.0
        %3991 = vmatpush2.msra.mxu0 0.0
        %3992 = vmatprep.subr.mxu0 0.0
        %3993 = vmatpush2.msra.mxu0 0.0
        %3994 = vmatprep.subr.mxu0 0.0
        %3995 = vmatpush2.msra.mxu0 0.0
        %3996 = vmatprep.subr.mxu0 0.0
        %3997 = vmatpush2.msra.mxu0 0.0
        %3998 = vmatprep.subr.mxu0 0.0
        %3999 = vmatpush2.msra.mxu0 0.0
        %4000 = vmatprep.subr.mxu0 0.0
        %4001 = vmatpush2.msra.mxu0 0.0
        %4002 = vmatprep.subr.mxu0 0.0
        %4003 = vmatpush2.msra.mxu0 0.0
        %4004 = vmatprep.subr.mxu0 0.0
        %4005 = vmatpush2.msra.mxu0 0.0
        %4006 = vmatprep.subr.mxu0 0.0
        %4007 = vmatpush2.msra.mxu0 0.0
        %4008 = vmatprep.subr.mxu0 0.0
        %4009 = vmatpush2.msra.mxu0 0.0
        %4010 = vmatprep.mubr.f32.mxu0 0.0
        %4011 = vmatmul.mubr.f32.gmra.mxu0 %v3929
        %v4012 = vpop.f32.mrf.mxu0
        %v4013 = vadd.f32 0.0, %v4012
        %v4014 = vpop.f32.mrf.mxu0
        %v4015 = vadd.f32 0.0, %v4014
        %4016 = vmatprep.mubr.f32.mxu0 0.0
        %4017 = vmatmul.mubr.f32.gmra.mxu0 %v3932
        %v4018 = vpop.f32.mrf.mxu0
        %v4019 = vadd.f32 0.0, %v4018
        %v4020 = vpop.f32.mrf.mxu0
        %v4021 = vadd.f32 0.0, %v4020
        %4022 = vdwg.mxu0
        %4023 = vmatprep.subr.mxu0 0.0
        %4024 = vmatpush1.msra.mxu0 0.0
        %4025 = vmatprep.subr.mxu0 0.0
        %4026 = vmatpush1.msra.mxu0 0.0
        %4027 = vmatprep.subr.mxu0 0.0
        %4028 = vmatpush1.msra.mxu0 0.0
        %4029 = vmatprep.subr.mxu0 0.0
        %4030 = vmatpush1.msra.mxu0 0.0
        %4031 = vmatprep.subr.mxu0 0.0
        %4032 = vmatpush1.msra.mxu0 0.0
        %4033 = vmatprep.subr.mxu0 0.0
        %4034 = vmatpush1.msra.mxu0 0.0
        %4035 = vmatprep.subr.mxu0 0.0
        %4036 = vmatpush1.msra.mxu0 0.0
        %4037 = vmatprep.subr.mxu0 0.0
        %4038 = vmatpush1.msra.mxu0 0.0
        %4039 = vmatprep.subr.mxu0 0.0
        %4040 = vmatpush1.msra.mxu0 0.0
        %4041 = vmatprep.subr.mxu0 0.0
        %4042 = vmatpush1.msra.mxu0 0.0
        %4043 = vmatprep.subr.mxu0 0.0
        %4044 = vmatpush1.msra.mxu0 0.0
        %4045 = vmatprep.subr.mxu0 0.0
        %4046 = vmatpush1.msra.mxu0 0.0
        %4047 = vmatprep.subr.mxu0 0.0
        %4048 = vmatpush1.msra.mxu0 0.0
        %4049 = vmatprep.subr.mxu0 %v3940
        %4050 = vmatpush1.msra.mxu0 %v3938
        %4051 = vmatprep.subr.mxu0 %v3909
        %4052 = vmatpush1.msra.mxu0 %v3908
        %4053 = vmatprep.subr.mxu0 %v3904
        %4054 = vmatpush1.msra.mxu0 %v3903
        %4055 = vmatprep.subr.mxu0 0.0
        %4056 = vmatpush2.msra.mxu0 0.0
        %4057 = vmatprep.subr.mxu0 0.0
        %4058 = vmatpush2.msra.mxu0 0.0
        %4059 = vmatprep.subr.mxu0 0.0
        %4060 = vmatpush2.msra.mxu0 0.0
        %4061 = vmatprep.subr.mxu0 0.0
        %4062 = vmatpush2.msra.mxu0 0.0
        %4063 = vmatprep.subr.mxu0 0.0
        %4064 = vmatpush2.msra.mxu0 0.0
        %4065 = vmatprep.subr.mxu0 0.0
        %4066 = vmatpush2.msra.mxu0 0.0
        %4067 = vmatprep.subr.mxu0 0.0
        %4068 = vmatpush2.msra.mxu0 0.0
        %4069 = vmatprep.subr.mxu0 0.0
        %4070 = vmatpush2.msra.mxu0 0.0
        %4071 = vmatprep.subr.mxu0 0.0
        %4072 = vmatpush2.msra.mxu0 0.0
        %4073 = vmatprep.subr.mxu0 0.0
        %4074 = vmatpush2.msra.mxu0 0.0
        %4075 = vmatprep.subr.mxu0 0.0
        %4076 = vmatpush2.msra.mxu0 0.0
        %4077 = vmatprep.subr.mxu0 0.0
        %4078 = vmatpush2.msra.mxu0 0.0
        %4079 = vmatprep.subr.mxu0 0.0
        %4080 = vmatpush2.msra.mxu0 0.0
        %4081 = vmatprep.subr.mxu0 0.0
        %4082 = vmatpush2.msra.mxu0 0.0
        %4083 = vmatprep.subr.mxu0 0.0
        %4084 = vmatpush2.msra.mxu0 0.0
        %4085 = vmatprep.subr.mxu0 0.0
        %4086 = vmatpush2.msra.mxu0 0.0
        %4087 = vmatprep.mubr.f32.mxu0 0.0
        %4088 = vmatmul.mubr.f32.gmra.mxu0 %v3929
        %v4089 = vpop.f32.mrf.mxu0
        %v4090 = vadd.f32 0.0, %v4089
        %v4091 = vpop.f32.mrf.mxu0
        %v4092 = vadd.f32 0.0, %v4091
        %4093 = vmatprep.mubr.f32.mxu0 0.0
        %4094 = vmatmul.mubr.f32.gmra.mxu0 %v3932
        %v4095 = vpop.f32.mrf.mxu0
        %v4096 = vadd.f32 0.0, %v4095
        %v4097 = vpop.f32.mrf.mxu0
        %v4098 = vadd.f32 0.0, %v4097
        %4099 = vdwg.mxu0
        %4100 = vmatprep.subr.mxu0 0.0
        %4101 = vmatpush1.msra.mxu0 0.0
        %4102 = vmatprep.subr.mxu0 0.0
        %4103 = vmatpush1.msra.mxu0 0.0
        %4104 = vmatprep.subr.mxu0 0.0
        %4105 = vmatpush1.msra.mxu0 0.0
        %4106 = vmatprep.subr.mxu0 0.0
        %4107 = vmatpush1.msra.mxu0 0.0
        %4108 = vmatprep.subr.mxu0 0.0
        %4109 = vmatpush1.msra.mxu0 0.0
        %4110 = vmatprep.subr.mxu0 0.0
        %4111 = vmatpush1.msra.mxu0 0.0
        %4112 = vmatprep.subr.mxu0 0.0
        %4113 = vmatpush1.msra.mxu0 0.0
        %4114 = vmatprep.subr.mxu0 0.0
        %4115 = vmatpush1.msra.mxu0 0.0
        %4116 = vmatprep.subr.mxu0 0.0
        %4117 = vmatpush1.msra.mxu0 0.0
        %4118 = vmatprep.subr.mxu0 0.0
        %4119 = vmatpush1.msra.mxu0 0.0
        %4120 = vmatprep.subr.mxu0 0.0
        %4121 = vmatpush1.msra.mxu0 0.0
        %4122 = vmatprep.subr.mxu0 0.0
        %4123 = vmatpush1.msra.mxu0 0.0
        %4124 = vmatprep.subr.mxu0 0.0
        %4125 = vmatpush1.msra.mxu0 0.0
        %4126 = vmatprep.subr.mxu0 %v3944
        %4127 = vmatpush1.msra.mxu0 %v3942
        %4128 = vmatprep.subr.mxu0 %v3888
        %4129 = vmatpush1.msra.mxu0 %v3910
        %4130 = vmatprep.subr.mxu0 %v3876
        %4131 = vmatpush1.msra.mxu0 %v3905
        %4132 = vmatprep.subr.mxu0 0.0
        %4133 = vmatpush2.msra.mxu0 0.0
        %4134 = vmatprep.subr.mxu0 0.0
        %4135 = vmatpush2.msra.mxu0 0.0
        %4136 = vmatprep.subr.mxu0 0.0
        %4137 = vmatpush2.msra.mxu0 0.0
        %4138 = vmatprep.subr.mxu0 0.0
        %4139 = vmatpush2.msra.mxu0 0.0
        %4140 = vmatprep.subr.mxu0 0.0
        %4141 = vmatpush2.msra.mxu0 0.0
        %4142 = vmatprep.subr.mxu0 0.0
        %4143 = vmatpush2.msra.mxu0 0.0
        %4144 = vmatprep.subr.mxu0 0.0
        %4145 = vmatpush2.msra.mxu0 0.0
        %4146 = vmatprep.subr.mxu0 0.0
        %4147 = vmatpush2.msra.mxu0 0.0
        %4148 = vmatprep.subr.mxu0 0.0
        %4149 = vmatpush2.msra.mxu0 0.0
        %4150 = vmatprep.subr.mxu0 0.0
        %4151 = vmatpush2.msra.mxu0 0.0
        %4152 = vmatprep.subr.mxu0 0.0
        %4153 = vmatpush2.msra.mxu0 0.0
        %4154 = vmatprep.subr.mxu0 0.0
        %4155 = vmatpush2.msra.mxu0 0.0
        %4156 = vmatprep.subr.mxu0 0.0
        %4157 = vmatpush2.msra.mxu0 0.0
        %4158 = vmatprep.subr.mxu0 0.0
        %4159 = vmatpush2.msra.mxu0 0.0
        %4160 = vmatprep.subr.mxu0 0.0
        %4161 = vmatpush2.msra.mxu0 0.0
        %4162 = vmatprep.subr.mxu0 0.0
        %4163 = vmatpush2.msra.mxu0 0.0
        %4164 = vmatprep.mubr.f32.mxu0 0.0
        %4165 = vmatmul.mubr.f32.gmra.mxu0 %v3929
        %v4166 = vpop.f32.mrf.mxu0
        %v4167 = vadd.f32 0.0, %v4166
        %v4168 = vpop.f32.mrf.mxu0
        %v4169 = vadd.f32 0.0, %v4168
        %4170 = vmatprep.mubr.f32.mxu0 0.0
        %4171 = vmatmul.mubr.f32.gmra.mxu0 %v3932
        %v4172 = vpop.f32.mrf.mxu0
        %v4173 = vadd.f32 0.0, %v4172
        %v4174 = vpop.f32.mrf.mxu0
        %v4175 = vadd.f32 0.0, %v4174
        %4176 = vdwg.mxu0
        %v4177 = vadd.f32 %v3850, %v4013
        %v4178 = vadd.f32 %v3851, %v4015
        %v4179 = vadd.f32 %v3852, %v4090
        %v4180 = vadd.f32 %v3853, %v4092
        %v4181 = vadd.f32 %v3854, %v4167
        %v4182 = vadd.f32 %v3855, %v4169
        %v4183 = vadd.f32 %v3856, %v4019
        %v4184 = vadd.f32 %v3857, %v4021
        %v4185 = vadd.f32 %v3858, %v4096
        %v4186 = vadd.f32 %v3859, %v4098
        %v4187 = vadd.f32 %v3860, %v4173
        %v4188 = vadd.f32 %v3861, %v4175
        %s4189 = scalar_lea.vmem [#allocation3], 128
        %v4190 = vld [vmem:[%s4189] sm:$0xff]
        %v4191 = vld [vmem:[%s4189 + $0x8] sm:$0x3]
        %4192 = vrot.lane.b32.xlu0 %v1623, 70
        %v4193 = vpop.permute.xlu0 %4192
        %4194 = vrot.lane.b32.xlu0 %v1624, 70
        %v4195 = vpop.permute.xlu0 %4194
        %4196 = vrot.lane.b32.xlu0 %v1625, 70
        %v4197 = vpop.permute.xlu0 %4196
        %4198 = vrot.lane.b32.xlu0 %v1626, 70
        %v4199 = vpop.permute.xlu0 %4198
        %4200 = vrot.lane.b32.xlu0 %v1627, 70
        %v4201 = vpop.permute.xlu0 %4200
        %4202 = vrot.lane.b32.xlu0 %v1628, 70
        %v4203 = vpop.permute.xlu0 %4202
        %4204 = vrot.lane.b32.xlu0 %v1629, 70
        %v4205 = vpop.permute.xlu0 %4204
        %4206 = vrot.lane.b32.xlu0 %v1630, 70
        %v4207 = vpop.permute.xlu0 %4206
        %4208 = vrot.lane.b32.xlu0 %v1631, 70
        %v4209 = vpop.permute.xlu0 %4208
        %4210 = vrot.lane.b32.xlu0 %v1632, 70
        %v4211 = vpop.permute.xlu0 %4210
        %4212 = vrot.lane.b32.xlu0 %v1633, 70
        %v4213 = vpop.permute.xlu0 %4212
        %4214 = vrot.lane.b32.xlu0 %v1634, 70
        %v4215 = vpop.permute.xlu0 %4214
        %4216 = vrot.lane.b32.xlu0 %v1635, 70
        %v4217 = vpop.permute.xlu0 %4216
        %4218 = vrot.lane.b32.xlu0 %v1636, 70
        %v4219 = vpop.permute.xlu0 %4218
        %4220 = vrot.lane.b32.xlu0 %v1637, 70
        %v4221 = vpop.permute.xlu0 %4220
        %4222 = vrot.lane.b32.xlu0 %v1638, 70
        %v4223 = vpop.permute.xlu0 %4222
        %4224 = vrot.lane.b32.xlu0 %v1639, 70
        %v4225 = vpop.permute.xlu0 %4224
        %4226 = vrot.lane.b32.xlu0 %v1640, 70
        %v4227 = vpop.permute.xlu0 %4226
        %v4228 = vsel %vm1494, %v4193, %v4195
        %v4229 = vsel %vm1494, %v4195, %v4197
        %v4230 = vsel %vm1494, %v4197, %v4199
        %v4231 = vsel %vm1494, %v4199, %v4201
        %v4232 = vsel %vm1494, %v4201, %v4203
        %v4233 = vsel %vm1494, %v4205, %v4207
        %v4234 = vsel %vm1494, %v4207, %v4209
        %v4235 = vsel %vm1494, %v4209, %v4211
        %v4236 = vsel %vm1494, %v4211, %v4213
        %v4237 = vsel %vm1494, %v4213, %v4215
        %v4238 = vsel %vm1494, %v4217, %v4219
        %v4239 = vsel %vm1494, %v4219, %v4221
        %v4240 = vsel %vm1494, %v4221, %v4223
        %v4241 = vsel %vm1494, %v4223, %v4225
        %v4242 = vsel %vm1494, %v4225, %v4227
        %v4256 = vsel %vm1727, %v4190, 0
        %v4259 = vsel %vm1727, %v4191, 0
        %v4261 = vsel %vm1734, %v4238, 0
        %v4263 = vsel %vm1734, %v4239, 0
        %v4265 = vsel %vm1734, %v4240, 0
        %v4267 = vsel %vm1734, %v4241, 0
        %v4269 = vsel %vm1734, %v4242, 0
        %v4271 = vsel %vm1734, %v4227, 0
        %4273 = vmatprep.subr.mxu0 0.0
        %4274 = vmatpush1.msra.mxu0 0.0
        %4275 = vmatprep.subr.mxu0 0.0
        %4276 = vmatpush1.msra.mxu0 0.0
        %4277 = vmatprep.subr.mxu0 0.0
        %4278 = vmatpush1.msra.mxu0 0.0
        %4279 = vmatprep.subr.mxu0 0.0
        %4280 = vmatpush1.msra.mxu0 0.0
        %4281 = vmatprep.subr.mxu0 0.0
        %4282 = vmatpush1.msra.mxu0 0.0
        %4283 = vmatprep.subr.mxu0 0.0
        %4284 = vmatpush1.msra.mxu0 0.0
        %4285 = vmatprep.subr.mxu0 0.0
        %4286 = vmatpush1.msra.mxu0 0.0
        %4287 = vmatprep.subr.mxu0 0.0
        %4288 = vmatpush1.msra.mxu0 0.0
        %4289 = vmatprep.subr.mxu0 0.0
        %4290 = vmatpush1.msra.mxu0 0.0
        %4291 = vmatprep.subr.mxu0 0.0
        %4292 = vmatpush1.msra.mxu0 0.0
        %4293 = vmatprep.subr.mxu0 0.0
        %4294 = vmatpush1.msra.mxu0 0.0
        %4295 = vmatprep.subr.mxu0 0.0
        %4296 = vmatpush1.msra.mxu0 0.0
        %4297 = vmatprep.subr.mxu0 0.0
        %4298 = vmatpush1.msra.mxu0 0.0
        %4299 = vmatprep.subr.mxu0 %v4263
        %4300 = vmatpush1.msra.mxu0 %v4261
        %4301 = vmatprep.subr.mxu0 %v4234
        %4302 = vmatpush1.msra.mxu0 %v4233
        %4303 = vmatprep.subr.mxu0 %v4229
        %4304 = vmatpush1.msra.mxu0 %v4228
        %4305 = vmatprep.subr.mxu0 0.0
        %4306 = vmatpush2.msra.mxu0 0.0
        %4307 = vmatprep.subr.mxu0 0.0
        %4308 = vmatpush2.msra.mxu0 0.0
        %4309 = vmatprep.subr.mxu0 0.0
        %4310 = vmatpush2.msra.mxu0 0.0
        %4311 = vmatprep.subr.mxu0 0.0
        %4312 = vmatpush2.msra.mxu0 0.0
        %4313 = vmatprep.subr.mxu0 0.0
        %4314 = vmatpush2.msra.mxu0 0.0
        %4315 = vmatprep.subr.mxu0 0.0
        %4316 = vmatpush2.msra.mxu0 0.0
        %4317 = vmatprep.subr.mxu0 0.0
        %4318 = vmatpush2.msra.mxu0 0.0
        %4319 = vmatprep.subr.mxu0 0.0
        %4320 = vmatpush2.msra.mxu0 0.0
        %4321 = vmatprep.subr.mxu0 0.0
        %4322 = vmatpush2.msra.mxu0 0.0
        %4323 = vmatprep.subr.mxu0 0.0
        %4324 = vmatpush2.msra.mxu0 0.0
        %4325 = vmatprep.subr.mxu0 0.0
        %4326 = vmatpush2.msra.mxu0 0.0
        %4327 = vmatprep.subr.mxu0 0.0
        %4328 = vmatpush2.msra.mxu0 0.0
        %4329 = vmatprep.subr.mxu0 0.0
        %4330 = vmatpush2.msra.mxu0 0.0
        %4331 = vmatprep.subr.mxu0 0.0
        %4332 = vmatpush2.msra.mxu0 0.0
        %4333 = vmatprep.subr.mxu0 0.0
        %4334 = vmatpush2.msra.mxu0 0.0
        %4335 = vmatprep.subr.mxu0 0.0
        %4336 = vmatpush2.msra.mxu0 0.0
        %4337 = vmatprep.mubr.f32.mxu0 0.0
        %4338 = vmatmul.mubr.f32.gmra.mxu0 %v4256
        %v4339 = vpop.f32.mrf.mxu0
        %v4340 = vadd.f32 0.0, %v4339
        %v4341 = vpop.f32.mrf.mxu0
        %v4342 = vadd.f32 0.0, %v4341
        %4343 = vmatprep.mubr.f32.mxu0 0.0
        %4344 = vmatmul.mubr.f32.gmra.mxu0 %v4259
        %v4345 = vpop.f32.mrf.mxu0
        %v4346 = vadd.f32 0.0, %v4345
        %v4347 = vpop.f32.mrf.mxu0
        %v4348 = vadd.f32 0.0, %v4347
        %4349 = vdwg.mxu0
        %4350 = vmatprep.subr.mxu0 0.0
        %4351 = vmatpush1.msra.mxu0 0.0
        %4352 = vmatprep.subr.mxu0 0.0
        %4353 = vmatpush1.msra.mxu0 0.0
        %4354 = vmatprep.subr.mxu0 0.0
        %4355 = vmatpush1.msra.mxu0 0.0
        %4356 = vmatprep.subr.mxu0 0.0
        %4357 = vmatpush1.msra.mxu0 0.0
        %4358 = vmatprep.subr.mxu0 0.0
        %4359 = vmatpush1.msra.mxu0 0.0
        %4360 = vmatprep.subr.mxu0 0.0
        %4361 = vmatpush1.msra.mxu0 0.0
        %4362 = vmatprep.subr.mxu0 0.0
        %4363 = vmatpush1.msra.mxu0 0.0
        %4364 = vmatprep.subr.mxu0 0.0
        %4365 = vmatpush1.msra.mxu0 0.0
        %4366 = vmatprep.subr.mxu0 0.0
        %4367 = vmatpush1.msra.mxu0 0.0
        %4368 = vmatprep.subr.mxu0 0.0
        %4369 = vmatpush1.msra.mxu0 0.0
        %4370 = vmatprep.subr.mxu0 0.0
        %4371 = vmatpush1.msra.mxu0 0.0
        %4372 = vmatprep.subr.mxu0 0.0
        %4373 = vmatpush1.msra.mxu0 0.0
        %4374 = vmatprep.subr.mxu0 0.0
        %4375 = vmatpush1.msra.mxu0 0.0
        %4376 = vmatprep.subr.mxu0 %v4267
        %4377 = vmatpush1.msra.mxu0 %v4265
        %4378 = vmatprep.subr.mxu0 %v4236
        %4379 = vmatpush1.msra.mxu0 %v4235
        %4380 = vmatprep.subr.mxu0 %v4231
        %4381 = vmatpush1.msra.mxu0 %v4230
        %4382 = vmatprep.subr.mxu0 0.0
        %4383 = vmatpush2.msra.mxu0 0.0
        %4384 = vmatprep.subr.mxu0 0.0
        %4385 = vmatpush2.msra.mxu0 0.0
        %4386 = vmatprep.subr.mxu0 0.0
        %4387 = vmatpush2.msra.mxu0 0.0
        %4388 = vmatprep.subr.mxu0 0.0
        %4389 = vmatpush2.msra.mxu0 0.0
        %4390 = vmatprep.subr.mxu0 0.0
        %4391 = vmatpush2.msra.mxu0 0.0
        %4392 = vmatprep.subr.mxu0 0.0
        %4393 = vmatpush2.msra.mxu0 0.0
        %4394 = vmatprep.subr.mxu0 0.0
        %4395 = vmatpush2.msra.mxu0 0.0
        %4396 = vmatprep.subr.mxu0 0.0
        %4397 = vmatpush2.msra.mxu0 0.0
        %4398 = vmatprep.subr.mxu0 0.0
        %4399 = vmatpush2.msra.mxu0 0.0
        %4400 = vmatprep.subr.mxu0 0.0
        %4401 = vmatpush2.msra.mxu0 0.0
        %4402 = vmatprep.subr.mxu0 0.0
        %4403 = vmatpush2.msra.mxu0 0.0
        %4404 = vmatprep.subr.mxu0 0.0
        %4405 = vmatpush2.msra.mxu0 0.0
        %4406 = vmatprep.subr.mxu0 0.0
        %4407 = vmatpush2.msra.mxu0 0.0
        %4408 = vmatprep.subr.mxu0 0.0
        %4409 = vmatpush2.msra.mxu0 0.0
        %4410 = vmatprep.subr.mxu0 0.0
        %4411 = vmatpush2.msra.mxu0 0.0
        %4412 = vmatprep.subr.mxu0 0.0
        %4413 = vmatpush2.msra.mxu0 0.0
        %4414 = vmatprep.mubr.f32.mxu0 0.0
        %4415 = vmatmul.mubr.f32.gmra.mxu0 %v4256
        %v4416 = vpop.f32.mrf.mxu0
        %v4417 = vadd.f32 0.0, %v4416
        %v4418 = vpop.f32.mrf.mxu0
        %v4419 = vadd.f32 0.0, %v4418
        %4420 = vmatprep.mubr.f32.mxu0 0.0
        %4421 = vmatmul.mubr.f32.gmra.mxu0 %v4259
        %v4422 = vpop.f32.mrf.mxu0
        %v4423 = vadd.f32 0.0, %v4422
        %v4424 = vpop.f32.mrf.mxu0
        %v4425 = vadd.f32 0.0, %v4424
        %4426 = vdwg.mxu0
        %4427 = vmatprep.subr.mxu0 0.0
        %4428 = vmatpush1.msra.mxu0 0.0
        %4429 = vmatprep.subr.mxu0 0.0
        %4430 = vmatpush1.msra.mxu0 0.0
        %4431 = vmatprep.subr.mxu0 0.0
        %4432 = vmatpush1.msra.mxu0 0.0
        %4433 = vmatprep.subr.mxu0 0.0
        %4434 = vmatpush1.msra.mxu0 0.0
        %4435 = vmatprep.subr.mxu0 0.0
        %4436 = vmatpush1.msra.mxu0 0.0
        %4437 = vmatprep.subr.mxu0 0.0
        %4438 = vmatpush1.msra.mxu0 0.0
        %4439 = vmatprep.subr.mxu0 0.0
        %4440 = vmatpush1.msra.mxu0 0.0
        %4441 = vmatprep.subr.mxu0 0.0
        %4442 = vmatpush1.msra.mxu0 0.0
        %4443 = vmatprep.subr.mxu0 0.0
        %4444 = vmatpush1.msra.mxu0 0.0
        %4445 = vmatprep.subr.mxu0 0.0
        %4446 = vmatpush1.msra.mxu0 0.0
        %4447 = vmatprep.subr.mxu0 0.0
        %4448 = vmatpush1.msra.mxu0 0.0
        %4449 = vmatprep.subr.mxu0 0.0
        %4450 = vmatpush1.msra.mxu0 0.0
        %4451 = vmatprep.subr.mxu0 0.0
        %4452 = vmatpush1.msra.mxu0 0.0
        %4453 = vmatprep.subr.mxu0 %v4271
        %4454 = vmatpush1.msra.mxu0 %v4269
        %4455 = vmatprep.subr.mxu0 %v4215
        %4456 = vmatpush1.msra.mxu0 %v4237
        %4457 = vmatprep.subr.mxu0 %v4203
        %4458 = vmatpush1.msra.mxu0 %v4232
        %4459 = vmatprep.subr.mxu0 0.0
        %4460 = vmatpush2.msra.mxu0 0.0
        %4461 = vmatprep.subr.mxu0 0.0
        %4462 = vmatpush2.msra.mxu0 0.0
        %4463 = vmatprep.subr.mxu0 0.0
        %4464 = vmatpush2.msra.mxu0 0.0
        %4465 = vmatprep.subr.mxu0 0.0
        %4466 = vmatpush2.msra.mxu0 0.0
        %4467 = vmatprep.subr.mxu0 0.0
        %4468 = vmatpush2.msra.mxu0 0.0
        %4469 = vmatprep.subr.mxu0 0.0
        %4470 = vmatpush2.msra.mxu0 0.0
        %4471 = vmatprep.subr.mxu0 0.0
        %4472 = vmatpush2.msra.mxu0 0.0
        %4473 = vmatprep.subr.mxu0 0.0
        %4474 = vmatpush2.msra.mxu0 0.0
        %4475 = vmatprep.subr.mxu0 0.0
        %4476 = vmatpush2.msra.mxu0 0.0
        %4477 = vmatprep.subr.mxu0 0.0
        %4478 = vmatpush2.msra.mxu0 0.0
        %4479 = vmatprep.subr.mxu0 0.0
        %4480 = vmatpush2.msra.mxu0 0.0
        %4481 = vmatprep.subr.mxu0 0.0
        %4482 = vmatpush2.msra.mxu0 0.0
        %4483 = vmatprep.subr.mxu0 0.0
        %4484 = vmatpush2.msra.mxu0 0.0
        %4485 = vmatprep.subr.mxu0 0.0
        %4486 = vmatpush2.msra.mxu0 0.0
        %4487 = vmatprep.subr.mxu0 0.0
        %4488 = vmatpush2.msra.mxu0 0.0
        %4489 = vmatprep.subr.mxu0 0.0
        %4490 = vmatpush2.msra.mxu0 0.0
        %4491 = vmatprep.mubr.f32.mxu0 0.0
        %4492 = vmatmul.mubr.f32.gmra.mxu0 %v4256
        %v4493 = vpop.f32.mrf.mxu0
        %v4494 = vadd.f32 0.0, %v4493
        %v4495 = vpop.f32.mrf.mxu0
        %v4496 = vadd.f32 0.0, %v4495
        %4497 = vmatprep.mubr.f32.mxu0 0.0
        %4498 = vmatmul.mubr.f32.gmra.mxu0 %v4259
        %v4499 = vpop.f32.mrf.mxu0
        %v4500 = vadd.f32 0.0, %v4499
        %v4501 = vpop.f32.mrf.mxu0
        %v4502 = vadd.f32 0.0, %v4501
        %4503 = vdwg.mxu0
        %v4504 = vadd.f32 %v4177, %v4340
        %v4505 = vadd.f32 %v4178, %v4342
        %v4506 = vadd.f32 %v4179, %v4417
        %v4507 = vadd.f32 %v4180, %v4419
        %v4508 = vadd.f32 %v4181, %v4494
        %v4509 = vadd.f32 %v4182, %v4496
        %v4510 = vadd.f32 %v4183, %v4346
        %v4511 = vadd.f32 %v4184, %v4348
        %v4512 = vadd.f32 %v4185, %v4423
        %v4513 = vadd.f32 %v4186, %v4425
        %v4514 = vadd.f32 %v4187, %v4500
        %v4515 = vadd.f32 %v4188, %v4502
        %v4516 = vld [vmem:[%s4] sm:$0xff]
        %v4517 = vld [vmem:[%s4 + $0x8] sm:$0x3]
        %4519 = vset.pattern.permute.xlu0 0
        %4520 = vperm.xlu0 %4519, %v4516
        %v4521 = vpop.permute.xlu0 %4520
        %4524 = vset.pattern.permute.xlu0 0
        %4525 = vperm.xlu0 %4524, %v4517
        %v4526 = vpop.permute.xlu0 %4525
        %v4528 = vadd.f32 %v4504, %v4521
        %v4529 = vadd.f32 %v4505, %v4521
        %v4530 = vadd.f32 %v4506, %v4521
        %v4531 = vadd.f32 %v4507, %v4521
        %v4532 = vadd.f32 %v4508, %v4521
        %v4533 = vadd.f32 %v4509, %v4521
        %v4534 = vadd.f32 %v4510, %v4526
        %v4535 = vadd.f32 %v4511, %v4526
        %v4536 = vadd.f32 %v4512, %v4526
        %v4537 = vadd.f32 %v4513, %v4526
        %v4538 = vadd.f32 %v4514, %v4526
        %v4539 = vadd.f32 %v4515, %v4526
        %v4540 = vtanh.pop %v4528
        %v4541 = vtanh.pop %v4529
        %v4542 = vtanh.pop %v4530
        %v4543 = vtanh.pop %v4531
        %v4544 = vtanh.pop %v4532
        %v4545 = vtanh.pop %v4533
        %v4546 = vtanh.pop %v4534
        %v4547 = vtanh.pop %v4535
        %v4548 = vtanh.pop %v4536
        %v4549 = vtanh.pop %v4537
        %v4550 = vtanh.pop %v4538
        %v4551 = vtanh.pop %v4539
        %4552 = vst [vmem:[%s236] sm:$0xff] %v4540
        %4553 = vst [vmem:[%s236 + $0x8] sm:$0xff] %v4541
        %4554 = vst [vmem:[%s236 + $0x10] sm:$0xff] %v4542
        %4555 = vst [vmem:[%s236 + $0x18] sm:$0xff] %v4543
        %4556 = vst [vmem:[%s236 + $0x20] sm:$0xff] %v4544
        %vm4557 = vcmask 261120
        %4558 = vst.msk [vmem:[%s236 + $0x28] sm:$0xff] %vm4557, %v4545
        %4559 = vst [vmem:[%s236 + $0x30] sm:$0x3] %v4546
        %4560 = vst [vmem:[%s236 + $0x38] sm:$0x3] %v4547
        %4561 = vst [vmem:[%s236 + $0x40] sm:$0x3] %v4548
        %4562 = vst [vmem:[%s236 + $0x48] sm:$0x3] %v4549
        %4563 = vst [vmem:[%s236 + $0x50] sm:$0x3] %v4550
        %vm4564 = vcmask 254976
        %4565 = vst.msk [vmem:[%s236 + $0x58] sm:$0x3] %vm4564, %v4551
        %p4566 = scmp.lt.s32.totalorder %s17, 1
        %s4567 = scalar_select %p4566, %s17, 1
        %s4568 = smul.addr %s4567, 12
        %s4569 = smul.addr %s4568, 8
        %s4570 = scalar_lea.vmem %s5, %s4569
        // Predicated region
        $region45: #{model_forward.2} parent=39 // pred_check
          %p4571 = pneg %p145
        $region46: #{model_forward.2} parent=39 // pred_check_branch
          %4573 = sbr.rel (%p4571) target = $region48
        $region47: #{model_forward.2} parent=39 // pred_region
          _
        $region48: #{model_forward.2} parent=39 // pred_fallthru
          _
      $region40: #{model_forward.2} parent=5 // pred_fallthru
        _
      %p4574 = scmp.le.s32.totalorder 2, %s12
      // Predicated region
      $region49: #{model_forward.2} parent=5 // pred_check
        %p4575 = pneg %p4574
      $region50: #{model_forward.2} parent=5 // pred_check_branch
        %4577 = sbr.rel (%p4575) target = $region52
      $region51: #{model_forward.2} parent=5 // pred_region
        %s4578 = ssub.s32 %s12, 2
        // Predicated region
        $region53: #{model_forward.2} parent=51 // pred_check
          %p4579 = pneg %p151
        $region54: #{model_forward.2} parent=51 // pred_check_branch
          %4581 = sbr.rel (%p4579) target = $region56
        $region55: #{model_forward.2} parent=51 // pred_region
          %p4582 = scmp.lt.s32.totalorder %s18, 1
          %s4583 = scalar_select %p4582, %s18, 1
          %s4584 = smul.addr %s4583, 12
          %s4585 = smul.addr %s4584, 8
          %s4586 = scalar_lea.vmem %s5, %s4585
        $region56: #{model_forward.2} parent=51 // pred_fallthru
          _
      $region52: #{model_forward.2} parent=5 // pred_fallthru
        _
    $region6: #{model_forward.2} parent=1 // loop_footer
      %s16 = sadd.s32 1, %s12
    $region7: #{model_forward.2} parent=1 // loop_footer_branch
      %11 = sbr.rel target = $region3
    $region8: #{model_forward.2} parent=1 // loop_exit
      _
    %4587 = vsyncpa [#allocation4], 1
    %s4588 = scalar_lea.sflag [#allocation4], 1
    %4589 = vsyncpa %s4588, 1

// kernel: model_forward.3
$region0: #{model_forward.3}
  #allocation0 [shape = 'u32[]', space=smem, size = 0x4, offset = 0x4, fixed_abs, tag = 'smem constant byte address 0x4 - core index']
  #allocation1 [shape = 'u32[144,128]{1,0:T(1,128)}', space=vmem, size = 0x12000, scoped, tag = 'internal scratch']
  %s0 = inlined_call_operand.vmem [shape: f32[2,6720], index: 0, kind: input, shape index: {}]
  %s1 = inlined_call_operand.vmem [shape: f32[6720,100], index: 1, kind: input, shape index: {}]
  %s2 = inlined_call_operand.vmem [shape: f32[1,100], index: 2, kind: input, shape index: {}]
  %s3 = inlined_call_operand.vmem [shape: f32[100,10], index: 3, kind: input, shape index: {}]
  %s4 = inlined_call_operand.vmem [shape: f32[1,10], index: 4, kind: input, shape index: {}]
  %s5 = inlined_call_operand.hbm [shape: f32[2,10], index: 5, kind: output, shape index: {}]
  %s6 = sld [smem:[#allocation0]]
  $region30: #{model_forward.3} parent=0
    _
  %s8 = ssub.s32 1, %s6
  %s9 = scalar_select 0, %s8, %s6
  $region1: #{model_forward.3} parent=0
    #allocation2 [shape = 'u8[1024]{0}', space=vmem, size = 0x400, scoped, tag = 'output window, operand 0, single buffered']
    #allocation3 [shape = 's32[1]{0}', space=sflag, size = 0x4, scoped, tag = 'scoped memory for model_forward.3']
    %10 = vsyncpa [#allocation3], 0
    // Predicated region
    $region2: #{model_forward.3} parent=1 // pred_check
      _
    $region3: #{model_forward.3} parent=1 // pred_check_branch
      %12 = sbr.rel (0) target = $region5
    $region4: #{model_forward.3} parent=1 // pred_region
      _
    $region5: #{model_forward.3} parent=1 // pred_fallthru
      _
    // Predicated region
    $region6: #{model_forward.3} parent=1 // pred_check
      _
    $region7: #{model_forward.3} parent=1 // pred_check_branch
      %14 = sbr.rel (0) target = $region9
    $region8: #{model_forward.3} parent=1 // pred_region
      _
    $region9: #{model_forward.3} parent=1 // pred_fallthru
      _
    // Predicated region
    $region10: #{model_forward.3} parent=1 // pred_check
      _
    $region11: #{model_forward.3} parent=1 // pred_check_branch
      %16 = sbr.rel (0) target = $region13
    $region12: #{model_forward.3} parent=1 // pred_region
      _
    $region13: #{model_forward.3} parent=1 // pred_fallthru
      _
    // Predicated region
    $region14: #{model_forward.3} parent=1 // pred_check
      _
    $region15: #{model_forward.3} parent=1 // pred_check_branch
      %18 = sbr.rel (0) target = $region17
    $region16: #{model_forward.3} parent=1 // pred_region
      _
    $region17: #{model_forward.3} parent=1 // pred_fallthru
      _
    // Predicated region
    $region18: #{model_forward.3} parent=1 // pred_check
      _
    $region19: #{model_forward.3} parent=1 // pred_check_branch
      %20 = sbr.rel (0) target = $region21
    $region20: #{model_forward.3} parent=1 // pred_region
      _
    $region21: #{model_forward.3} parent=1 // pred_fallthru
      _
    %v21 = vld [vmem:[%s0] sm:$0xff]
    %v22 = vld [vmem:[%s0 + $0x8] sm:$0xff]
    %v23 = vld [vmem:[%s0 + $0x10] sm:$0xff]
    %v24 = vld [vmem:[%s0 + $0x18] sm:$0xff]
    %v25 = vld [vmem:[%s0 + $0x20] sm:$0xff]
    %v26 = vld [vmem:[%s0 + $0x28] sm:$0xff]
    %v27 = vld [vmem:[%s0 + $0x30] sm:$0xff]
    %v28 = vld [vmem:[%s0 + $0x38] sm:$0xff]
    %v29 = vld [vmem:[%s0 + $0x40] sm:$0xff]
    %v30 = vld [vmem:[%s0 + $0x48] sm:$0xff]
    %v31 = vld [vmem:[%s0 + $0x50] sm:$0xff]
    %v32 = vld [vmem:[%s0 + $0x58] sm:$0xff]
    %v33 = vld [vmem:[%s0 + $0x60] sm:$0xff]
    %v34 = vld [vmem:[%s0 + $0x68] sm:$0x3]
    %v35 = vld [vmem:[%s1] sm:$0xff]
    %v36 = vld [vmem:[%s1 + $0x8] sm:$0xff]
    %v37 = vld [vmem:[%s1 + $0x10] sm:$0xff]
    %v38 = vld [vmem:[%s1 + $0x18] sm:$0xff]
    %v39 = vld [vmem:[%s1 + $0x20] sm:$0xff]
    %v40 = vld [vmem:[%s1 + $0x28] sm:$0xff]
    %v41 = vld [vmem:[%s1 + $0x30] sm:$0xff]
    %v42 = vld [vmem:[%s1 + $0x38] sm:$0xff]
    %v43 = vld [vmem:[%s1 + $0x40] sm:$0xff]
    %v44 = vld [vmem:[%s1 + $0x48] sm:$0xff]
    %v45 = vld [vmem:[%s1 + $0x50] sm:$0xff]
    %v46 = vld [vmem:[%s1 + $0x58] sm:$0xff]
    %v47 = vld [vmem:[%s1 + $0x60] sm:$0xff]
    %v48 = vld [vmem:[%s1 + $0x68] sm:$0xff]
    %v49 = vld [vmem:[%s1 + $0x70] sm:$0xff]
    %v50 = vld [vmem:[%s1 + $0x78] sm:$0xff]
    %v51 = vld [vmem:[%s1 + $0x80] sm:$0xff]
    %v52 = vld [vmem:[%s1 + $0x88] sm:$0xff]
    %v53 = vld [vmem:[%s1 + $0x90] sm:$0xff]
    %v54 = vld [vmem:[%s1 + $0x98] sm:$0xff]
    %v55 = vld [vmem:[%s1 + $0xa0] sm:$0xff]
    %v56 = vld [vmem:[%s1 + $0xa8] sm:$0xff]
    %v57 = vld [vmem:[%s1 + $0xb0] sm:$0xff]
    %v58 = vld [vmem:[%s1 + $0xb8] sm:$0xff]
    %v59 = vld [vmem:[%s1 + $0xc0] sm:$0xff]
    %v60 = vld [vmem:[%s1 + $0xc8] sm:$0xff]
    %v61 = vld [vmem:[%s1 + $0xd0] sm:$0xff]
    %v62 = vld [vmem:[%s1 + $0xd8] sm:$0xff]
    %v63 = vld [vmem:[%s1 + $0xe0] sm:$0xff]
    %v64 = vld [vmem:[%s1 + $0xe8] sm:$0xff]
    %v65 = vld [vmem:[%s1 + $0xf0] sm:$0xff]
    %v66 = vld [vmem:[%s1 + $0xf8] sm:$0xff]
    %v67 = vld [vmem:[%s1 + $0x100] sm:$0xff]
    %v68 = vld [vmem:[%s1 + $0x108] sm:$0xff]
    %v69 = vld [vmem:[%s1 + $0x110] sm:$0xff]
    %v70 = vld [vmem:[%s1 + $0x118] sm:$0xff]
    %v71 = vld [vmem:[%s1 + $0x120] sm:$0xff]
    %v72 = vld [vmem:[%s1 + $0x128] sm:$0xff]
    %v73 = vld [vmem:[%s1 + $0x130] sm:$0xff]
    %v74 = vld [vmem:[%s1 + $0x138] sm:$0xff]
    %v75 = vld [vmem:[%s1 + $0x140] sm:$0xff]
    %v76 = vld [vmem:[%s1 + $0x148] sm:$0xff]
    %v77 = vld [vmem:[%s1 + $0x150] sm:$0xff]
    %v78 = vld [vmem:[%s1 + $0x158] sm:$0xff]
    %v79 = vld [vmem:[%s1 + $0x160] sm:$0xff]
    %v80 = vld [vmem:[%s1 + $0x168] sm:$0xff]
    %v81 = vld [vmem:[%s1 + $0x170] sm:$0xff]
    %v82 = vld [vmem:[%s1 + $0x178] sm:$0xff]
    %v83 = vld [vmem:[%s1 + $0x180] sm:$0xff]
    %v84 = vld [vmem:[%s1 + $0x188] sm:$0xff]
    %v85 = vld [vmem:[%s1 + $0x190] sm:$0xff]
    %v86 = vld [vmem:[%s1 + $0x198] sm:$0xff]
    %v87 = vld [vmem:[%s1 + $0x1a0] sm:$0xff]
    %v88 = vld [vmem:[%s1 + $0x1a8] sm:$0xff]
    %v89 = vld [vmem:[%s1 + $0x1b0] sm:$0xff]
    %v90 = vld [vmem:[%s1 + $0x1b8] sm:$0xff]
    %v91 = vld [vmem:[%s1 + $0x1c0] sm:$0xff]
    %v92 = vld [vmem:[%s1 + $0x1c8] sm:$0xff]
    %v93 = vld [vmem:[%s1 + $0x1d0] sm:$0xff]
    %v94 = vld [vmem:[%s1 + $0x1d8] sm:$0xff]
    %v95 = vld [vmem:[%s1 + $0x1e0] sm:$0xff]
    %v96 = vld [vmem:[%s1 + $0x1e8] sm:$0xff]
    %v97 = vld [vmem:[%s1 + $0x1f0] sm:$0xff]
    %v98 = vld [vmem:[%s1 + $0x1f8] sm:$0xff]
    %v99 = vld [vmem:[%s1 + $0x200] sm:$0xff]
    %v100 = vld [vmem:[%s1 + $0x208] sm:$0xff]
    %v101 = vld [vmem:[%s1 + $0x210] sm:$0xff]
    %v102 = vld [vmem:[%s1 + $0x218] sm:$0xff]
    %v103 = vld [vmem:[%s1 + $0x220] sm:$0xff]
    %v104 = vld [vmem:[%s1 + $0x228] sm:$0xff]
    %v105 = vld [vmem:[%s1 + $0x230] sm:$0xff]
    %v106 = vld [vmem:[%s1 + $0x238] sm:$0xff]
    %v107 = vld [vmem:[%s1 + $0x240] sm:$0xff]
    %v108 = vld [vmem:[%s1 + $0x248] sm:$0xff]
    %v109 = vld [vmem:[%s1 + $0x250] sm:$0xff]
    %v110 = vld [vmem:[%s1 + $0x258] sm:$0xff]
    %v111 = vld [vmem:[%s1 + $0x260] sm:$0xff]
    %v112 = vld [vmem:[%s1 + $0x268] sm:$0xff]
    %v113 = vld [vmem:[%s1 + $0x270] sm:$0xff]
    %v114 = vld [vmem:[%s1 + $0x278] sm:$0xff]
    %v115 = vld [vmem:[%s1 + $0x280] sm:$0xff]
    %v116 = vld [vmem:[%s1 + $0x288] sm:$0xff]
    %v117 = vld [vmem:[%s1 + $0x290] sm:$0xff]
    %v118 = vld [vmem:[%s1 + $0x298] sm:$0xff]
    %v119 = vld [vmem:[%s1 + $0x2a0] sm:$0xff]
    %v120 = vld [vmem:[%s1 + $0x2a8] sm:$0xff]
    %v121 = vld [vmem:[%s1 + $0x2b0] sm:$0xff]
    %v122 = vld [vmem:[%s1 + $0x2b8] sm:$0xff]
    %v123 = vld [vmem:[%s1 + $0x2c0] sm:$0xff]
    %v124 = vld [vmem:[%s1 + $0x2c8] sm:$0xff]
    %v125 = vld [vmem:[%s1 + $0x2d0] sm:$0xff]
    %v126 = vld [vmem:[%s1 + $0x2d8] sm:$0xff]
    %v127 = vld [vmem:[%s1 + $0x2e0] sm:$0xff]
    %v128 = vld [vmem:[%s1 + $0x2e8] sm:$0xff]
    %v129 = vld [vmem:[%s1 + $0x2f0] sm:$0xff]
    %v130 = vld [vmem:[%s1 + $0x2f8] sm:$0xff]
    %v131 = vld [vmem:[%s1 + $0x300] sm:$0xff]
    %v132 = vld [vmem:[%s1 + $0x308] sm:$0xff]
    %v133 = vld [vmem:[%s1 + $0x310] sm:$0xff]
    %v134 = vld [vmem:[%s1 + $0x318] sm:$0xff]
    %v135 = vld [vmem:[%s1 + $0x320] sm:$0xff]
    %v136 = vld [vmem:[%s1 + $0x328] sm:$0xff]
    %v137 = vld [vmem:[%s1 + $0x330] sm:$0xff]
    %v138 = vld [vmem:[%s1 + $0x338] sm:$0xff]
    %v139 = vld [vmem:[%s1 + $0x340] sm:$0xff]
    %v140 = vld [vmem:[%s1 + $0x348] sm:$0xff]
    %v141 = vld [vmem:[%s1 + $0x350] sm:$0xff]
    %v142 = vld [vmem:[%s1 + $0x358] sm:$0xff]
    %v143 = vld [vmem:[%s1 + $0x360] sm:$0xff]
    %v144 = vld [vmem:[%s1 + $0x368] sm:$0xff]
    %v145 = vld [vmem:[%s1 + $0x370] sm:$0xff]
    %v146 = vld [vmem:[%s1 + $0x378] sm:$0xff]
    %v147 = vld [vmem:[%s1 + $0x380] sm:$0xff]
    %v148 = vld [vmem:[%s1 + $0x388] sm:$0xff]
    %v149 = vld [vmem:[%s1 + $0x390] sm:$0xff]
    %v150 = vld [vmem:[%s1 + $0x398] sm:$0xff]
    %v151 = vld [vmem:[%s1 + $0x3a0] sm:$0xff]
    %v152 = vld [vmem:[%s1 + $0x3a8] sm:$0xff]
    %v153 = vld [vmem:[%s1 + $0x3b0] sm:$0xff]
    %v154 = vld [vmem:[%s1 + $0x3b8] sm:$0xff]
    %v155 = vld [vmem:[%s1 + $0x3c0] sm:$0xff]
    %v156 = vld [vmem:[%s1 + $0x3c8] sm:$0xff]
    %v157 = vld [vmem:[%s1 + $0x3d0] sm:$0xff]
    %v158 = vld [vmem:[%s1 + $0x3d8] sm:$0xff]
    %v159 = vld [vmem:[%s1 + $0x3e0] sm:$0xff]
    %v160 = vld [vmem:[%s1 + $0x3e8] sm:$0xff]
    %v161 = vld [vmem:[%s1 + $0x3f0] sm:$0xff]
    %v162 = vld [vmem:[%s1 + $0x3f8] sm:$0xff]
    %v163 = vld [vmem:[%s1 + $0x400] sm:$0xff]
    %v164 = vld [vmem:[%s1 + $0x408] sm:$0xff]
    %v165 = vld [vmem:[%s1 + $0x410] sm:$0xff]
    %v166 = vld [vmem:[%s1 + $0x418] sm:$0xff]
    %v167 = vld [vmem:[%s1 + $0x420] sm:$0xff]
    %v168 = vld [vmem:[%s1 + $0x428] sm:$0xff]
    %v169 = vld [vmem:[%s1 + $0x430] sm:$0xff]
    %v170 = vld [vmem:[%s1 + $0x438] sm:$0xff]
    %v171 = vld [vmem:[%s1 + $0x440] sm:$0xff]
    %v172 = vld [vmem:[%s1 + $0x448] sm:$0xff]
    %v173 = vld [vmem:[%s1 + $0x450] sm:$0xff]
    %v174 = vld [vmem:[%s1 + $0x458] sm:$0xff]
    %v175 = vld [vmem:[%s1 + $0x460] sm:$0xff]
    %v176 = vld [vmem:[%s1 + $0x468] sm:$0xff]
    %v177 = vld [vmem:[%s1 + $0x470] sm:$0xff]
    %v178 = vld [vmem:[%s1 + $0x478] sm:$0xff]
    %v179 = vld [vmem:[%s1 + $0x480] sm:$0xff]
    %v180 = vld [vmem:[%s1 + $0x488] sm:$0xff]
    %v181 = vld [vmem:[%s1 + $0x490] sm:$0xff]
    %v182 = vld [vmem:[%s1 + $0x498] sm:$0xff]
    %v183 = vld [vmem:[%s1 + $0x4a0] sm:$0xff]
    %v184 = vld [vmem:[%s1 + $0x4a8] sm:$0xff]
    %v185 = vld [vmem:[%s1 + $0x4b0] sm:$0xff]
    %v186 = vld [vmem:[%s1 + $0x4b8] sm:$0xff]
    %v187 = vld [vmem:[%s1 + $0x4c0] sm:$0xff]
    %v188 = vld [vmem:[%s1 + $0x4c8] sm:$0xff]
    %v189 = vld [vmem:[%s1 + $0x4d0] sm:$0xff]
    %v190 = vld [vmem:[%s1 + $0x4d8] sm:$0xff]
    %v191 = vld [vmem:[%s1 + $0x4e0] sm:$0xff]
    %v192 = vld [vmem:[%s1 + $0x4e8] sm:$0xff]
    %v193 = vld [vmem:[%s1 + $0x4f0] sm:$0xff]
    %v194 = vld [vmem:[%s1 + $0x4f8] sm:$0xff]
    %v195 = vld [vmem:[%s1 + $0x500] sm:$0xff]
    %v196 = vld [vmem:[%s1 + $0x508] sm:$0xff]
    %v197 = vld [vmem:[%s1 + $0x510] sm:$0xff]
    %v198 = vld [vmem:[%s1 + $0x518] sm:$0xff]
    %v199 = vld [vmem:[%s1 + $0x520] sm:$0xff]
    %v200 = vld [vmem:[%s1 + $0x528] sm:$0xff]
    %v201 = vld [vmem:[%s1 + $0x530] sm:$0xff]
    %v202 = vld [vmem:[%s1 + $0x538] sm:$0xff]
    %v203 = vld [vmem:[%s1 + $0x540] sm:$0xff]
    %v204 = vld [vmem:[%s1 + $0x548] sm:$0xff]
    %v205 = vld [vmem:[%s1 + $0x550] sm:$0xff]
    %v206 = vld [vmem:[%s1 + $0x558] sm:$0xff]
    %v207 = vld [vmem:[%s1 + $0x560] sm:$0xff]
    %v208 = vld [vmem:[%s1 + $0x568] sm:$0xff]
    %v209 = vld [vmem:[%s1 + $0x570] sm:$0xff]
    %v210 = vld [vmem:[%s1 + $0x578] sm:$0xff]
    %v211 = vld [vmem:[%s1 + $0x580] sm:$0xff]
    %v212 = vld [vmem:[%s1 + $0x588] sm:$0xff]
    %v213 = vld [vmem:[%s1 + $0x590] sm:$0xff]
    %v214 = vld [vmem:[%s1 + $0x598] sm:$0xff]
    %v215 = vld [vmem:[%s1 + $0x5a0] sm:$0xff]
    %v216 = vld [vmem:[%s1 + $0x5a8] sm:$0xff]
    %v217 = vld [vmem:[%s1 + $0x5b0] sm:$0xff]
    %v218 = vld [vmem:[%s1 + $0x5b8] sm:$0xff]
    %v219 = vld [vmem:[%s1 + $0x5c0] sm:$0xff]
    %v220 = vld [vmem:[%s1 + $0x5c8] sm:$0xff]
    %v221 = vld [vmem:[%s1 + $0x5d0] sm:$0xff]
    %v222 = vld [vmem:[%s1 + $0x5d8] sm:$0xff]
    %v223 = vld [vmem:[%s1 + $0x5e0] sm:$0xff]
    %v224 = vld [vmem:[%s1 + $0x5e8] sm:$0xff]
    %v225 = vld [vmem:[%s1 + $0x5f0] sm:$0xff]
    %v226 = vld [vmem:[%s1 + $0x5f8] sm:$0xff]
    %v227 = vld [vmem:[%s1 + $0x600] sm:$0xff]
    %v228 = vld [vmem:[%s1 + $0x608] sm:$0xff]
    %v229 = vld [vmem:[%s1 + $0x610] sm:$0xff]
    %v230 = vld [vmem:[%s1 + $0x618] sm:$0xff]
    %v231 = vld [vmem:[%s1 + $0x620] sm:$0xff]
    %v232 = vld [vmem:[%s1 + $0x628] sm:$0xff]
    %v233 = vld [vmem:[%s1 + $0x630] sm:$0xff]
    %v234 = vld [vmem:[%s1 + $0x638] sm:$0xff]
    %v235 = vld [vmem:[%s1 + $0x640] sm:$0xff]
    %v236 = vld [vmem:[%s1 + $0x648] sm:$0xff]
    %v237 = vld [vmem:[%s1 + $0x650] sm:$0xff]
    %v238 = vld [vmem:[%s1 + $0x658] sm:$0xff]
    %v239 = vld [vmem:[%s1 + $0x660] sm:$0xff]
    %v240 = vld [vmem:[%s1 + $0x668] sm:$0xff]
    %v241 = vld [vmem:[%s1 + $0x670] sm:$0xff]
    %v242 = vld [vmem:[%s1 + $0x678] sm:$0xff]
    %v243 = vld [vmem:[%s1 + $0x680] sm:$0xff]
    %v244 = vld [vmem:[%s1 + $0x688] sm:$0xff]
    %v245 = vld [vmem:[%s1 + $0x690] sm:$0xff]
    %v246 = vld [vmem:[%s1 + $0x698] sm:$0xff]
    %v247 = vld [vmem:[%s1 + $0x6a0] sm:$0xff]
    %v248 = vld [vmem:[%s1 + $0x6a8] sm:$0xff]
    %v249 = vld [vmem:[%s1 + $0x6b0] sm:$0xff]
    %v250 = vld [vmem:[%s1 + $0x6b8] sm:$0xff]
    %v251 = vld [vmem:[%s1 + $0x6c0] sm:$0xff]
    %v252 = vld [vmem:[%s1 + $0x6c8] sm:$0xff]
    %v253 = vld [vmem:[%s1 + $0x6d0] sm:$0xff]
    %v254 = vld [vmem:[%s1 + $0x6d8] sm:$0xff]
    %v255 = vld [vmem:[%s1 + $0x6e0] sm:$0xff]
    %v256 = vld [vmem:[%s1 + $0x6e8] sm:$0xff]
    %v257 = vld [vmem:[%s1 + $0x6f0] sm:$0xff]
    %v258 = vld [vmem:[%s1 + $0x6f8] sm:$0xff]
    %v259 = vld [vmem:[%s1 + $0x700] sm:$0xff]
    %v260 = vld [vmem:[%s1 + $0x708] sm:$0xff]
    %v261 = vld [vmem:[%s1 + $0x710] sm:$0xff]
    %v262 = vld [vmem:[%s1 + $0x718] sm:$0xff]
    %v263 = vld [vmem:[%s1 + $0x720] sm:$0xff]
    %v264 = vld [vmem:[%s1 + $0x728] sm:$0xff]
    %v265 = vld [vmem:[%s1 + $0x730] sm:$0xff]
    %v266 = vld [vmem:[%s1 + $0x738] sm:$0xff]
    %v267 = vld [vmem:[%s1 + $0x740] sm:$0xff]
    %v268 = vld [vmem:[%s1 + $0x748] sm:$0xff]
    %v269 = vld [vmem:[%s1 + $0x750] sm:$0xff]
    %v270 = vld [vmem:[%s1 + $0x758] sm:$0xff]
    %v271 = vld [vmem:[%s1 + $0x760] sm:$0xff]
    %v272 = vld [vmem:[%s1 + $0x768] sm:$0xff]
    %v273 = vld [vmem:[%s1 + $0x770] sm:$0xff]
    %v274 = vld [vmem:[%s1 + $0x778] sm:$0xff]
    %v275 = vld [vmem:[%s1 + $0x780] sm:$0xff]
    %v276 = vld [vmem:[%s1 + $0x788] sm:$0xff]
    %v277 = vld [vmem:[%s1 + $0x790] sm:$0xff]
    %v278 = vld [vmem:[%s1 + $0x798] sm:$0xff]
    %v279 = vld [vmem:[%s1 + $0x7a0] sm:$0xff]
    %v280 = vld [vmem:[%s1 + $0x7a8] sm:$0xff]
    %v281 = vld [vmem:[%s1 + $0x7b0] sm:$0xff]
    %v282 = vld [vmem:[%s1 + $0x7b8] sm:$0xff]
    %v283 = vld [vmem:[%s1 + $0x7c0] sm:$0xff]
    %v284 = vld [vmem:[%s1 + $0x7c8] sm:$0xff]
    %v285 = vld [vmem:[%s1 + $0x7d0] sm:$0xff]
    %v286 = vld [vmem:[%s1 + $0x7d8] sm:$0xff]
    %v287 = vld [vmem:[%s1 + $0x7e0] sm:$0xff]
    %v288 = vld [vmem:[%s1 + $0x7e8] sm:$0xff]
    %v289 = vld [vmem:[%s1 + $0x7f0] sm:$0xff]
    %v290 = vld [vmem:[%s1 + $0x7f8] sm:$0xff]
    %v291 = vld [vmem:[%s1 + $0x800] sm:$0xff]
    %v292 = vld [vmem:[%s1 + $0x808] sm:$0xff]
    %v293 = vld [vmem:[%s1 + $0x810] sm:$0xff]
    %v294 = vld [vmem:[%s1 + $0x818] sm:$0xff]
    %v295 = vld [vmem:[%s1 + $0x820] sm:$0xff]
    %v296 = vld [vmem:[%s1 + $0x828] sm:$0xff]
    %v297 = vld [vmem:[%s1 + $0x830] sm:$0xff]
    %v298 = vld [vmem:[%s1 + $0x838] sm:$0xff]
    %v299 = vld [vmem:[%s1 + $0x840] sm:$0xff]
    %v300 = vld [vmem:[%s1 + $0x848] sm:$0xff]
    %v301 = vld [vmem:[%s1 + $0x850] sm:$0xff]
    %v302 = vld [vmem:[%s1 + $0x858] sm:$0xff]
    %v303 = vld [vmem:[%s1 + $0x860] sm:$0xff]
    %v304 = vld [vmem:[%s1 + $0x868] sm:$0xff]
    %v305 = vld [vmem:[%s1 + $0x870] sm:$0xff]
    %v306 = vld [vmem:[%s1 + $0x878] sm:$0xff]
    %v307 = vld [vmem:[%s1 + $0x880] sm:$0xff]
    %v308 = vld [vmem:[%s1 + $0x888] sm:$0xff]
    %v309 = vld [vmem:[%s1 + $0x890] sm:$0xff]
    %v310 = vld [vmem:[%s1 + $0x898] sm:$0xff]
    %v311 = vld [vmem:[%s1 + $0x8a0] sm:$0xff]
    %v312 = vld [vmem:[%s1 + $0x8a8] sm:$0xff]
    %v313 = vld [vmem:[%s1 + $0x8b0] sm:$0xff]
    %v314 = vld [vmem:[%s1 + $0x8b8] sm:$0xff]
    %v315 = vld [vmem:[%s1 + $0x8c0] sm:$0xff]
    %v316 = vld [vmem:[%s1 + $0x8c8] sm:$0xff]
    %v317 = vld [vmem:[%s1 + $0x8d0] sm:$0xff]
    %v318 = vld [vmem:[%s1 + $0x8d8] sm:$0xff]
    %v319 = vld [vmem:[%s1 + $0x8e0] sm:$0xff]
    %v320 = vld [vmem:[%s1 + $0x8e8] sm:$0xff]
    %v321 = vld [vmem:[%s1 + $0x8f0] sm:$0xff]
    %v322 = vld [vmem:[%s1 + $0x8f8] sm:$0xff]
    %v323 = vld [vmem:[%s1 + $0x900] sm:$0xff]
    %v324 = vld [vmem:[%s1 + $0x908] sm:$0xff]
    %v325 = vld [vmem:[%s1 + $0x910] sm:$0xff]
    %v326 = vld [vmem:[%s1 + $0x918] sm:$0xff]
    %v327 = vld [vmem:[%s1 + $0x920] sm:$0xff]
    %v328 = vld [vmem:[%s1 + $0x928] sm:$0xff]
    %v329 = vld [vmem:[%s1 + $0x930] sm:$0xff]
    %v330 = vld [vmem:[%s1 + $0x938] sm:$0xff]
    %v331 = vld [vmem:[%s1 + $0x940] sm:$0xff]
    %v332 = vld [vmem:[%s1 + $0x948] sm:$0xff]
    %v333 = vld [vmem:[%s1 + $0x950] sm:$0xff]
    %v334 = vld [vmem:[%s1 + $0x958] sm:$0xff]
    %v335 = vld [vmem:[%s1 + $0x960] sm:$0xff]
    %v336 = vld [vmem:[%s1 + $0x968] sm:$0xff]
    %v337 = vld [vmem:[%s1 + $0x970] sm:$0xff]
    %v338 = vld [vmem:[%s1 + $0x978] sm:$0xff]
    %v339 = vld [vmem:[%s1 + $0x980] sm:$0xff]
    %v340 = vld [vmem:[%s1 + $0x988] sm:$0xff]
    %v341 = vld [vmem:[%s1 + $0x990] sm:$0xff]
    %v342 = vld [vmem:[%s1 + $0x998] sm:$0xff]
    %v343 = vld [vmem:[%s1 + $0x9a0] sm:$0xff]
    %v344 = vld [vmem:[%s1 + $0x9a8] sm:$0xff]
    %v345 = vld [vmem:[%s1 + $0x9b0] sm:$0xff]
    %v346 = vld [vmem:[%s1 + $0x9b8] sm:$0xff]
    %v347 = vld [vmem:[%s1 + $0x9c0] sm:$0xff]
    %v348 = vld [vmem:[%s1 + $0x9c8] sm:$0xff]
    %v349 = vld [vmem:[%s1 + $0x9d0] sm:$0xff]
    %v350 = vld [vmem:[%s1 + $0x9d8] sm:$0xff]
    %v351 = vld [vmem:[%s1 + $0x9e0] sm:$0xff]
    %v352 = vld [vmem:[%s1 + $0x9e8] sm:$0xff]
    %v353 = vld [vmem:[%s1 + $0x9f0] sm:$0xff]
    %v354 = vld [vmem:[%s1 + $0x9f8] sm:$0xff]
    %v355 = vld [vmem:[%s1 + $0xa00] sm:$0xff]
    %v356 = vld [vmem:[%s1 + $0xa08] sm:$0xff]
    %v357 = vld [vmem:[%s1 + $0xa10] sm:$0xff]
    %v358 = vld [vmem:[%s1 + $0xa18] sm:$0xff]
    %v359 = vld [vmem:[%s1 + $0xa20] sm:$0xff]
    %v360 = vld [vmem:[%s1 + $0xa28] sm:$0xff]
    %v361 = vld [vmem:[%s1 + $0xa30] sm:$0xff]
    %v362 = vld [vmem:[%s1 + $0xa38] sm:$0xff]
    %v363 = vld [vmem:[%s1 + $0xa40] sm:$0xff]
    %v364 = vld [vmem:[%s1 + $0xa48] sm:$0xff]
    %v365 = vld [vmem:[%s1 + $0xa50] sm:$0xff]
    %v366 = vld [vmem:[%s1 + $0xa58] sm:$0xff]
    %v367 = vld [vmem:[%s1 + $0xa60] sm:$0xff]
    %v368 = vld [vmem:[%s1 + $0xa68] sm:$0xff]
    %v369 = vld [vmem:[%s1 + $0xa70] sm:$0xff]
    %v370 = vld [vmem:[%s1 + $0xa78] sm:$0xff]
    %v371 = vld [vmem:[%s1 + $0xa80] sm:$0xff]
    %v372 = vld [vmem:[%s1 + $0xa88] sm:$0xff]
    %v373 = vld [vmem:[%s1 + $0xa90] sm:$0xff]
    %v374 = vld [vmem:[%s1 + $0xa98] sm:$0xff]
    %v375 = vld [vmem:[%s1 + $0xaa0] sm:$0xff]
    %v376 = vld [vmem:[%s1 + $0xaa8] sm:$0xff]
    %v377 = vld [vmem:[%s1 + $0xab0] sm:$0xff]
    %v378 = vld [vmem:[%s1 + $0xab8] sm:$0xff]
    %v379 = vld [vmem:[%s1 + $0xac0] sm:$0xff]
    %v380 = vld [vmem:[%s1 + $0xac8] sm:$0xff]
    %v381 = vld [vmem:[%s1 + $0xad0] sm:$0xff]
    %v382 = vld [vmem:[%s1 + $0xad8] sm:$0xff]
    %v383 = vld [vmem:[%s1 + $0xae0] sm:$0xff]
    %v384 = vld [vmem:[%s1 + $0xae8] sm:$0xff]
    %v385 = vld [vmem:[%s1 + $0xaf0] sm:$0xff]
    %v386 = vld [vmem:[%s1 + $0xaf8] sm:$0xff]
    %v387 = vld [vmem:[%s1 + $0xb00] sm:$0xff]
    %v388 = vld [vmem:[%s1 + $0xb08] sm:$0xff]
    %v389 = vld [vmem:[%s1 + $0xb10] sm:$0xff]
    %v390 = vld [vmem:[%s1 + $0xb18] sm:$0xff]
    %v391 = vld [vmem:[%s1 + $0xb20] sm:$0xff]
    %v392 = vld [vmem:[%s1 + $0xb28] sm:$0xff]
    %v393 = vld [vmem:[%s1 + $0xb30] sm:$0xff]
    %v394 = vld [vmem:[%s1 + $0xb38] sm:$0xff]
    %v395 = vld [vmem:[%s1 + $0xb40] sm:$0xff]
    %v396 = vld [vmem:[%s1 + $0xb48] sm:$0xff]
    %v397 = vld [vmem:[%s1 + $0xb50] sm:$0xff]
    %v398 = vld [vmem:[%s1 + $0xb58] sm:$0xff]
    %v399 = vld [vmem:[%s1 + $0xb60] sm:$0xff]
    %v400 = vld [vmem:[%s1 + $0xb68] sm:$0xff]
    %v401 = vld [vmem:[%s1 + $0xb70] sm:$0xff]
    %v402 = vld [vmem:[%s1 + $0xb78] sm:$0xff]
    %v403 = vld [vmem:[%s1 + $0xb80] sm:$0xff]
    %v404 = vld [vmem:[%s1 + $0xb88] sm:$0xff]
    %v405 = vld [vmem:[%s1 + $0xb90] sm:$0xff]
    %v406 = vld [vmem:[%s1 + $0xb98] sm:$0xff]
    %v407 = vld [vmem:[%s1 + $0xba0] sm:$0xff]
    %v408 = vld [vmem:[%s1 + $0xba8] sm:$0xff]
    %v409 = vld [vmem:[%s1 + $0xbb0] sm:$0xff]
    %v410 = vld [vmem:[%s1 + $0xbb8] sm:$0xff]
    %v411 = vld [vmem:[%s1 + $0xbc0] sm:$0xff]
    %v412 = vld [vmem:[%s1 + $0xbc8] sm:$0xff]
    %v413 = vld [vmem:[%s1 + $0xbd0] sm:$0xff]
    %v414 = vld [vmem:[%s1 + $0xbd8] sm:$0xff]
    %v415 = vld [vmem:[%s1 + $0xbe0] sm:$0xff]
    %v416 = vld [vmem:[%s1 + $0xbe8] sm:$0xff]
    %v417 = vld [vmem:[%s1 + $0xbf0] sm:$0xff]
    %v418 = vld [vmem:[%s1 + $0xbf8] sm:$0xff]
    %v419 = vld [vmem:[%s1 + $0xc00] sm:$0xff]
    %v420 = vld [vmem:[%s1 + $0xc08] sm:$0xff]
    %v421 = vld [vmem:[%s1 + $0xc10] sm:$0xff]
    %v422 = vld [vmem:[%s1 + $0xc18] sm:$0xff]
    %v423 = vld [vmem:[%s1 + $0xc20] sm:$0xff]
    %v424 = vld [vmem:[%s1 + $0xc28] sm:$0xff]
    %v425 = vld [vmem:[%s1 + $0xc30] sm:$0xff]
    %v426 = vld [vmem:[%s1 + $0xc38] sm:$0xff]
    %v427 = vld [vmem:[%s1 + $0xc40] sm:$0xff]
    %v428 = vld [vmem:[%s1 + $0xc48] sm:$0xff]
    %v429 = vld [vmem:[%s1 + $0xc50] sm:$0xff]
    %v430 = vld [vmem:[%s1 + $0xc58] sm:$0xff]
    %v431 = vld [vmem:[%s1 + $0xc60] sm:$0xff]
    %v432 = vld [vmem:[%s1 + $0xc68] sm:$0xff]
    %v433 = vld [vmem:[%s1 + $0xc70] sm:$0xff]
    %v434 = vld [vmem:[%s1 + $0xc78] sm:$0xff]
    %v435 = vld [vmem:[%s1 + $0xc80] sm:$0xff]
    %v436 = vld [vmem:[%s1 + $0xc88] sm:$0xff]
    %v437 = vld [vmem:[%s1 + $0xc90] sm:$0xff]
    %v438 = vld [vmem:[%s1 + $0xc98] sm:$0xff]
    %v439 = vld [vmem:[%s1 + $0xca0] sm:$0xff]
    %v440 = vld [vmem:[%s1 + $0xca8] sm:$0xff]
    %v441 = vld [vmem:[%s1 + $0xcb0] sm:$0xff]
    %v442 = vld [vmem:[%s1 + $0xcb8] sm:$0xff]
    %v443 = vld [vmem:[%s1 + $0xcc0] sm:$0xff]
    %v444 = vld [vmem:[%s1 + $0xcc8] sm:$0xff]
    %v445 = vld [vmem:[%s1 + $0xcd0] sm:$0xff]
    %v446 = vld [vmem:[%s1 + $0xcd8] sm:$0xff]
    %v447 = vld [vmem:[%s1 + $0xce0] sm:$0xff]
    %v448 = vld [vmem:[%s1 + $0xce8] sm:$0xff]
    %v449 = vld [vmem:[%s1 + $0xcf0] sm:$0xff]
    %v450 = vld [vmem:[%s1 + $0xcf8] sm:$0xff]
    %v451 = vld [vmem:[%s1 + $0xd00] sm:$0xff]
    %v452 = vld [vmem:[%s1 + $0xd08] sm:$0xff]
    %v453 = vld [vmem:[%s1 + $0xd10] sm:$0xff]
    %v454 = vld [vmem:[%s1 + $0xd18] sm:$0xff]
    %v455 = vld [vmem:[%s1 + $0xd20] sm:$0xff]
    %v456 = vld [vmem:[%s1 + $0xd28] sm:$0xff]
    %v457 = vld [vmem:[%s1 + $0xd30] sm:$0xff]
    %v458 = vld [vmem:[%s1 + $0xd38] sm:$0xff]
    %v459 = vld [vmem:[%s1 + $0xd40] sm:$0xff]
    %v460 = vld [vmem:[%s1 + $0xd48] sm:$0xff]
    %v461 = vld [vmem:[%s1 + $0xd50] sm:$0xff]
    %v462 = vld [vmem:[%s1 + $0xd58] sm:$0xff]
    %v463 = vld [vmem:[%s1 + $0xd60] sm:$0xff]
    %v464 = vld [vmem:[%s1 + $0xd68] sm:$0xff]
    %v465 = vld [vmem:[%s1 + $0xd70] sm:$0xff]
    %v466 = vld [vmem:[%s1 + $0xd78] sm:$0xff]
    %v467 = vld [vmem:[%s1 + $0xd80] sm:$0xff]
    %v468 = vld [vmem:[%s1 + $0xd88] sm:$0xff]
    %v469 = vld [vmem:[%s1 + $0xd90] sm:$0xff]
    %v470 = vld [vmem:[%s1 + $0xd98] sm:$0xff]
    %v471 = vld [vmem:[%s1 + $0xda0] sm:$0xff]
    %v472 = vld [vmem:[%s1 + $0xda8] sm:$0xff]
    %v473 = vld [vmem:[%s1 + $0xdb0] sm:$0xff]
    %v474 = vld [vmem:[%s1 + $0xdb8] sm:$0xff]
    %v475 = vld [vmem:[%s1 + $0xdc0] sm:$0xff]
    %v476 = vld [vmem:[%s1 + $0xdc8] sm:$0xff]
    %v477 = vld [vmem:[%s1 + $0xdd0] sm:$0xff]
    %v478 = vld [vmem:[%s1 + $0xdd8] sm:$0xff]
    %v479 = vld [vmem:[%s1 + $0xde0] sm:$0xff]
    %v480 = vld [vmem:[%s1 + $0xde8] sm:$0xff]
    %v481 = vld [vmem:[%s1 + $0xdf0] sm:$0xff]
    %v482 = vld [vmem:[%s1 + $0xdf8] sm:$0xff]
    %v483 = vld [vmem:[%s1 + $0xe00] sm:$0xff]
    %v484 = vld [vmem:[%s1 + $0xe08] sm:$0xff]
    %v485 = vld [vmem:[%s1 + $0xe10] sm:$0xff]
    %v486 = vld [vmem:[%s1 + $0xe18] sm:$0xff]
    %v487 = vld [vmem:[%s1 + $0xe20] sm:$0xff]
    %v488 = vld [vmem:[%s1 + $0xe28] sm:$0xff]
    %v489 = vld [vmem:[%s1 + $0xe30] sm:$0xff]
    %v490 = vld [vmem:[%s1 + $0xe38] sm:$0xff]
    %v491 = vld [vmem:[%s1 + $0xe40] sm:$0xff]
    %v492 = vld [vmem:[%s1 + $0xe48] sm:$0xff]
    %v493 = vld [vmem:[%s1 + $0xe50] sm:$0xff]
    %v494 = vld [vmem:[%s1 + $0xe58] sm:$0xff]
    %v495 = vld [vmem:[%s1 + $0xe60] sm:$0xff]
    %v496 = vld [vmem:[%s1 + $0xe68] sm:$0xff]
    %v497 = vld [vmem:[%s1 + $0xe70] sm:$0xff]
    %v498 = vld [vmem:[%s1 + $0xe78] sm:$0xff]
    %v499 = vld [vmem:[%s1 + $0xe80] sm:$0xff]
    %v500 = vld [vmem:[%s1 + $0xe88] sm:$0xff]
    %v501 = vld [vmem:[%s1 + $0xe90] sm:$0xff]
    %v502 = vld [vmem:[%s1 + $0xe98] sm:$0xff]
    %v503 = vld [vmem:[%s1 + $0xea0] sm:$0xff]
    %v504 = vld [vmem:[%s1 + $0xea8] sm:$0xff]
    %v505 = vld [vmem:[%s1 + $0xeb0] sm:$0xff]
    %v506 = vld [vmem:[%s1 + $0xeb8] sm:$0xff]
    %v507 = vld [vmem:[%s1 + $0xec0] sm:$0xff]
    %v508 = vld [vmem:[%s1 + $0xec8] sm:$0xff]
    %v509 = vld [vmem:[%s1 + $0xed0] sm:$0xff]
    %v510 = vld [vmem:[%s1 + $0xed8] sm:$0xff]
    %v511 = vld [vmem:[%s1 + $0xee0] sm:$0xff]
    %v512 = vld [vmem:[%s1 + $0xee8] sm:$0xff]
    %v513 = vld [vmem:[%s1 + $0xef0] sm:$0xff]
    %v514 = vld [vmem:[%s1 + $0xef8] sm:$0xff]
    %v515 = vld [vmem:[%s1 + $0xf00] sm:$0xff]
    %v516 = vld [vmem:[%s1 + $0xf08] sm:$0xff]
    %v517 = vld [vmem:[%s1 + $0xf10] sm:$0xff]
    %v518 = vld [vmem:[%s1 + $0xf18] sm:$0xff]
    %v519 = vld [vmem:[%s1 + $0xf20] sm:$0xff]
    %v520 = vld [vmem:[%s1 + $0xf28] sm:$0xff]
    %v521 = vld [vmem:[%s1 + $0xf30] sm:$0xff]
    %v522 = vld [vmem:[%s1 + $0xf38] sm:$0xff]
    %v523 = vld [vmem:[%s1 + $0xf40] sm:$0xff]
    %v524 = vld [vmem:[%s1 + $0xf48] sm:$0xff]
    %v525 = vld [vmem:[%s1 + $0xf50] sm:$0xff]
    %v526 = vld [vmem:[%s1 + $0xf58] sm:$0xff]
    %v527 = vld [vmem:[%s1 + $0xf60] sm:$0xff]
    %v528 = vld [vmem:[%s1 + $0xf68] sm:$0xff]
    %v529 = vld [vmem:[%s1 + $0xf70] sm:$0xff]
    %v530 = vld [vmem:[%s1 + $0xf78] sm:$0xff]
    %v531 = vld [vmem:[%s1 + $0xf80] sm:$0xff]
    %v532 = vld [vmem:[%s1 + $0xf88] sm:$0xff]
    %v533 = vld [vmem:[%s1 + $0xf90] sm:$0xff]
    %v534 = vld [vmem:[%s1 + $0xf98] sm:$0xff]
    %v535 = vld [vmem:[%s1 + $0xfa0] sm:$0xff]
    %v536 = vld [vmem:[%s1 + $0xfa8] sm:$0xff]
    %v537 = vld [vmem:[%s1 + $0xfb0] sm:$0xff]
    %v538 = vld [vmem:[%s1 + $0xfb8] sm:$0xff]
    %v539 = vld [vmem:[%s1 + $0xfc0] sm:$0xff]
    %v540 = vld [vmem:[%s1 + $0xfc8] sm:$0xff]
    %v541 = vld [vmem:[%s1 + $0xfd0] sm:$0xff]
    %v542 = vld [vmem:[%s1 + $0xfd8] sm:$0xff]
    %v543 = vld [vmem:[%s1 + $0xfe0] sm:$0xff]
    %v544 = vld [vmem:[%s1 + $0xfe8] sm:$0xff]
    %v545 = vld [vmem:[%s1 + $0xff0] sm:$0xff]
    %v546 = vld [vmem:[%s1 + $0xff8] sm:$0xff]
    %v547 = vld [vmem:[%s1 + $0x1000] sm:$0xff]
    %v548 = vld [vmem:[%s1 + $0x1008] sm:$0xff]
    %v549 = vld [vmem:[%s1 + $0x1010] sm:$0xff]
    %v550 = vld [vmem:[%s1 + $0x1018] sm:$0xff]
    %v551 = vld [vmem:[%s1 + $0x1020] sm:$0xff]
    %v552 = vld [vmem:[%s1 + $0x1028] sm:$0xff]
    %v553 = vld [vmem:[%s1 + $0x1030] sm:$0xff]
    %v554 = vld [vmem:[%s1 + $0x1038] sm:$0xff]
    %v555 = vld [vmem:[%s1 + $0x1040] sm:$0xff]
    %v556 = vld [vmem:[%s1 + $0x1048] sm:$0xff]
    %v557 = vld [vmem:[%s1 + $0x1050] sm:$0xff]
    %v558 = vld [vmem:[%s1 + $0x1058] sm:$0xff]
    %v559 = vld [vmem:[%s1 + $0x1060] sm:$0xff]
    %v560 = vld [vmem:[%s1 + $0x1068] sm:$0xff]
    %v561 = vld [vmem:[%s1 + $0x1070] sm:$0xff]
    %v562 = vld [vmem:[%s1 + $0x1078] sm:$0xff]
    %v563 = vld [vmem:[%s1 + $0x1080] sm:$0xff]
    %v564 = vld [vmem:[%s1 + $0x1088] sm:$0xff]
    %v565 = vld [vmem:[%s1 + $0x1090] sm:$0xff]
    %v566 = vld [vmem:[%s1 + $0x1098] sm:$0xff]
    %v567 = vld [vmem:[%s1 + $0x10a0] sm:$0xff]
    %v568 = vld [vmem:[%s1 + $0x10a8] sm:$0xff]
    %v569 = vld [vmem:[%s1 + $0x10b0] sm:$0xff]
    %v570 = vld [vmem:[%s1 + $0x10b8] sm:$0xff]
    %v571 = vld [vmem:[%s1 + $0x10c0] sm:$0xff]
    %v572 = vld [vmem:[%s1 + $0x10c8] sm:$0xff]
    %v573 = vld [vmem:[%s1 + $0x10d0] sm:$0xff]
    %v574 = vld [vmem:[%s1 + $0x10d8] sm:$0xff]
    %v575 = vld [vmem:[%s1 + $0x10e0] sm:$0xff]
    %v576 = vld [vmem:[%s1 + $0x10e8] sm:$0xff]
    %v577 = vld [vmem:[%s1 + $0x10f0] sm:$0xff]
    %v578 = vld [vmem:[%s1 + $0x10f8] sm:$0xff]
    %v579 = vld [vmem:[%s1 + $0x1100] sm:$0xff]
    %v580 = vld [vmem:[%s1 + $0x1108] sm:$0xff]
    %v581 = vld [vmem:[%s1 + $0x1110] sm:$0xff]
    %v582 = vld [vmem:[%s1 + $0x1118] sm:$0xff]
    %v583 = vld [vmem:[%s1 + $0x1120] sm:$0xff]
    %v584 = vld [vmem:[%s1 + $0x1128] sm:$0xff]
    %v585 = vld [vmem:[%s1 + $0x1130] sm:$0xff]
    %v586 = vld [vmem:[%s1 + $0x1138] sm:$0xff]
    %v587 = vld [vmem:[%s1 + $0x1140] sm:$0xff]
    %v588 = vld [vmem:[%s1 + $0x1148] sm:$0xff]
    %v589 = vld [vmem:[%s1 + $0x1150] sm:$0xff]
    %v590 = vld [vmem:[%s1 + $0x1158] sm:$0xff]
    %v591 = vld [vmem:[%s1 + $0x1160] sm:$0xff]
    %v592 = vld [vmem:[%s1 + $0x1168] sm:$0xff]
    %v593 = vld [vmem:[%s1 + $0x1170] sm:$0xff]
    %v594 = vld [vmem:[%s1 + $0x1178] sm:$0xff]
    %v595 = vld [vmem:[%s1 + $0x1180] sm:$0xff]
    %v596 = vld [vmem:[%s1 + $0x1188] sm:$0xff]
    %v597 = vld [vmem:[%s1 + $0x1190] sm:$0xff]
    %v598 = vld [vmem:[%s1 + $0x1198] sm:$0xff]
    %v599 = vld [vmem:[%s1 + $0x11a0] sm:$0xff]
    %v600 = vld [vmem:[%s1 + $0x11a8] sm:$0xff]
    %v601 = vld [vmem:[%s1 + $0x11b0] sm:$0xff]
    %v602 = vld [vmem:[%s1 + $0x11b8] sm:$0xff]
    %v603 = vld [vmem:[%s1 + $0x11c0] sm:$0xff]
    %v604 = vld [vmem:[%s1 + $0x11c8] sm:$0xff]
    %v605 = vld [vmem:[%s1 + $0x11d0] sm:$0xff]
    %v606 = vld [vmem:[%s1 + $0x11d8] sm:$0xff]
    %v607 = vld [vmem:[%s1 + $0x11e0] sm:$0xff]
    %v608 = vld [vmem:[%s1 + $0x11e8] sm:$0xff]
    %v609 = vld [vmem:[%s1 + $0x11f0] sm:$0xff]
    %v610 = vld [vmem:[%s1 + $0x11f8] sm:$0xff]
    %v611 = vld [vmem:[%s1 + $0x1200] sm:$0xff]
    %v612 = vld [vmem:[%s1 + $0x1208] sm:$0xff]
    %v613 = vld [vmem:[%s1 + $0x1210] sm:$0xff]
    %v614 = vld [vmem:[%s1 + $0x1218] sm:$0xff]
    %v615 = vld [vmem:[%s1 + $0x1220] sm:$0xff]
    %v616 = vld [vmem:[%s1 + $0x1228] sm:$0xff]
    %v617 = vld [vmem:[%s1 + $0x1230] sm:$0xff]
    %v618 = vld [vmem:[%s1 + $0x1238] sm:$0xff]
    %v619 = vld [vmem:[%s1 + $0x1240] sm:$0xff]
    %v620 = vld [vmem:[%s1 + $0x1248] sm:$0xff]
    %v621 = vld [vmem:[%s1 + $0x1250] sm:$0xff]
    %v622 = vld [vmem:[%s1 + $0x1258] sm:$0xff]
    %v623 = vld [vmem:[%s1 + $0x1260] sm:$0xff]
    %v624 = vld [vmem:[%s1 + $0x1268] sm:$0xff]
    %v625 = vld [vmem:[%s1 + $0x1270] sm:$0xff]
    %v626 = vld [vmem:[%s1 + $0x1278] sm:$0xff]
    %v627 = vld [vmem:[%s1 + $0x1280] sm:$0xff]
    %v628 = vld [vmem:[%s1 + $0x1288] sm:$0xff]
    %v629 = vld [vmem:[%s1 + $0x1290] sm:$0xff]
    %v630 = vld [vmem:[%s1 + $0x1298] sm:$0xff]
    %v631 = vld [vmem:[%s1 + $0x12a0] sm:$0xff]
    %v632 = vld [vmem:[%s1 + $0x12a8] sm:$0xff]
    %v633 = vld [vmem:[%s1 + $0x12b0] sm:$0xff]
    %v634 = vld [vmem:[%s1 + $0x12b8] sm:$0xff]
    %v635 = vld [vmem:[%s1 + $0x12c0] sm:$0xff]
    %v636 = vld [vmem:[%s1 + $0x12c8] sm:$0xff]
    %v637 = vld [vmem:[%s1 + $0x12d0] sm:$0xff]
    %v638 = vld [vmem:[%s1 + $0x12d8] sm:$0xff]
    %v639 = vld [vmem:[%s1 + $0x12e0] sm:$0xff]
    %v640 = vld [vmem:[%s1 + $0x12e8] sm:$0xff]
    %v641 = vld [vmem:[%s1 + $0x12f0] sm:$0xff]
    %v642 = vld [vmem:[%s1 + $0x12f8] sm:$0xff]
    %v643 = vld [vmem:[%s1 + $0x1300] sm:$0xff]
    %v644 = vld [vmem:[%s1 + $0x1308] sm:$0xff]
    %v645 = vld [vmem:[%s1 + $0x1310] sm:$0xff]
    %v646 = vld [vmem:[%s1 + $0x1318] sm:$0xff]
    %v647 = vld [vmem:[%s1 + $0x1320] sm:$0xff]
    %v648 = vld [vmem:[%s1 + $0x1328] sm:$0xff]
    %v649 = vld [vmem:[%s1 + $0x1330] sm:$0xff]
    %v650 = vld [vmem:[%s1 + $0x1338] sm:$0xff]
    %v651 = vld [vmem:[%s1 + $0x1340] sm:$0xff]
    %v652 = vld [vmem:[%s1 + $0x1348] sm:$0xff]
    %v653 = vld [vmem:[%s1 + $0x1350] sm:$0xff]
    %v654 = vld [vmem:[%s1 + $0x1358] sm:$0xff]
    %v655 = vld [vmem:[%s1 + $0x1360] sm:$0xff]
    %v656 = vld [vmem:[%s1 + $0x1368] sm:$0xff]
    %v657 = vld [vmem:[%s1 + $0x1370] sm:$0xff]
    %v658 = vld [vmem:[%s1 + $0x1378] sm:$0xff]
    %v659 = vld [vmem:[%s1 + $0x1380] sm:$0xff]
    %v660 = vld [vmem:[%s1 + $0x1388] sm:$0xff]
    %v661 = vld [vmem:[%s1 + $0x1390] sm:$0xff]
    %v662 = vld [vmem:[%s1 + $0x1398] sm:$0xff]
    %v663 = vld [vmem:[%s1 + $0x13a0] sm:$0xff]
    %v664 = vld [vmem:[%s1 + $0x13a8] sm:$0xff]
    %v665 = vld [vmem:[%s1 + $0x13b0] sm:$0xff]
    %v666 = vld [vmem:[%s1 + $0x13b8] sm:$0xff]
    %v667 = vld [vmem:[%s1 + $0x13c0] sm:$0xff]
    %v668 = vld [vmem:[%s1 + $0x13c8] sm:$0xff]
    %v669 = vld [vmem:[%s1 + $0x13d0] sm:$0xff]
    %v670 = vld [vmem:[%s1 + $0x13d8] sm:$0xff]
    %v671 = vld [vmem:[%s1 + $0x13e0] sm:$0xff]
    %v672 = vld [vmem:[%s1 + $0x13e8] sm:$0xff]
    %v673 = vld [vmem:[%s1 + $0x13f0] sm:$0xff]
    %v674 = vld [vmem:[%s1 + $0x13f8] sm:$0xff]
    %v675 = vld [vmem:[%s1 + $0x1400] sm:$0xff]
    %v676 = vld [vmem:[%s1 + $0x1408] sm:$0xff]
    %v677 = vld [vmem:[%s1 + $0x1410] sm:$0xff]
    %v678 = vld [vmem:[%s1 + $0x1418] sm:$0xff]
    %v679 = vld [vmem:[%s1 + $0x1420] sm:$0xff]
    %v680 = vld [vmem:[%s1 + $0x1428] sm:$0xff]
    %v681 = vld [vmem:[%s1 + $0x1430] sm:$0xff]
    %v682 = vld [vmem:[%s1 + $0x1438] sm:$0xff]
    %v683 = vld [vmem:[%s1 + $0x1440] sm:$0xff]
    %v684 = vld [vmem:[%s1 + $0x1448] sm:$0xff]
    %v685 = vld [vmem:[%s1 + $0x1450] sm:$0xff]
    %v686 = vld [vmem:[%s1 + $0x1458] sm:$0xff]
    %v687 = vld [vmem:[%s1 + $0x1460] sm:$0xff]
    %v688 = vld [vmem:[%s1 + $0x1468] sm:$0xff]
    %v689 = vld [vmem:[%s1 + $0x1470] sm:$0xff]
    %v690 = vld [vmem:[%s1 + $0x1478] sm:$0xff]
    %v691 = vld [vmem:[%s1 + $0x1480] sm:$0xff]
    %v692 = vld [vmem:[%s1 + $0x1488] sm:$0xff]
    %v693 = vld [vmem:[%s1 + $0x1490] sm:$0xff]
    %v694 = vld [vmem:[%s1 + $0x1498] sm:$0xff]
    %v695 = vld [vmem:[%s1 + $0x14a0] sm:$0xff]
    %v696 = vld [vmem:[%s1 + $0x14a8] sm:$0xff]
    %v697 = vld [vmem:[%s1 + $0x14b0] sm:$0xff]
    %v698 = vld [vmem:[%s1 + $0x14b8] sm:$0xff]
    %v699 = vld [vmem:[%s1 + $0x14c0] sm:$0xff]
    %v700 = vld [vmem:[%s1 + $0x14c8] sm:$0xff]
    %v701 = vld [vmem:[%s1 + $0x14d0] sm:$0xff]
    %v702 = vld [vmem:[%s1 + $0x14d8] sm:$0xff]
    %v703 = vld [vmem:[%s1 + $0x14e0] sm:$0xff]
    %v704 = vld [vmem:[%s1 + $0x14e8] sm:$0xff]
    %v705 = vld [vmem:[%s1 + $0x14f0] sm:$0xff]
    %v706 = vld [vmem:[%s1 + $0x14f8] sm:$0xff]
    %v707 = vld [vmem:[%s1 + $0x1500] sm:$0xff]
    %v708 = vld [vmem:[%s1 + $0x1508] sm:$0xff]
    %v709 = vld [vmem:[%s1 + $0x1510] sm:$0xff]
    %v710 = vld [vmem:[%s1 + $0x1518] sm:$0xff]
    %v711 = vld [vmem:[%s1 + $0x1520] sm:$0xff]
    %v712 = vld [vmem:[%s1 + $0x1528] sm:$0xff]
    %v713 = vld [vmem:[%s1 + $0x1530] sm:$0xff]
    %v714 = vld [vmem:[%s1 + $0x1538] sm:$0xff]
    %v715 = vld [vmem:[%s1 + $0x1540] sm:$0xff]
    %v716 = vld [vmem:[%s1 + $0x1548] sm:$0xff]
    %v717 = vld [vmem:[%s1 + $0x1550] sm:$0xff]
    %v718 = vld [vmem:[%s1 + $0x1558] sm:$0xff]
    %v719 = vld [vmem:[%s1 + $0x1560] sm:$0xff]
    %v720 = vld [vmem:[%s1 + $0x1568] sm:$0xff]
    %v721 = vld [vmem:[%s1 + $0x1570] sm:$0xff]
    %v722 = vld [vmem:[%s1 + $0x1578] sm:$0xff]
    %v723 = vld [vmem:[%s1 + $0x1580] sm:$0xff]
    %v724 = vld [vmem:[%s1 + $0x1588] sm:$0xff]
    %v725 = vld [vmem:[%s1 + $0x1590] sm:$0xff]
    %v726 = vld [vmem:[%s1 + $0x1598] sm:$0xff]
    %v727 = vld [vmem:[%s1 + $0x15a0] sm:$0xff]
    %v728 = vld [vmem:[%s1 + $0x15a8] sm:$0xff]
    %v729 = vld [vmem:[%s1 + $0x15b0] sm:$0xff]
    %v730 = vld [vmem:[%s1 + $0x15b8] sm:$0xff]
    %v731 = vld [vmem:[%s1 + $0x15c0] sm:$0xff]
    %v732 = vld [vmem:[%s1 + $0x15c8] sm:$0xff]
    %v733 = vld [vmem:[%s1 + $0x15d0] sm:$0xff]
    %v734 = vld [vmem:[%s1 + $0x15d8] sm:$0xff]
    %v735 = vld [vmem:[%s1 + $0x15e0] sm:$0xff]
    %v736 = vld [vmem:[%s1 + $0x15e8] sm:$0xff]
    %v737 = vld [vmem:[%s1 + $0x15f0] sm:$0xff]
    %v738 = vld [vmem:[%s1 + $0x15f8] sm:$0xff]
    %v739 = vld [vmem:[%s1 + $0x1600] sm:$0xff]
    %v740 = vld [vmem:[%s1 + $0x1608] sm:$0xff]
    %v741 = vld [vmem:[%s1 + $0x1610] sm:$0xff]
    %v742 = vld [vmem:[%s1 + $0x1618] sm:$0xff]
    %v743 = vld [vmem:[%s1 + $0x1620] sm:$0xff]
    %v744 = vld [vmem:[%s1 + $0x1628] sm:$0xff]
    %v745 = vld [vmem:[%s1 + $0x1630] sm:$0xff]
    %v746 = vld [vmem:[%s1 + $0x1638] sm:$0xff]
    %v747 = vld [vmem:[%s1 + $0x1640] sm:$0xff]
    %v748 = vld [vmem:[%s1 + $0x1648] sm:$0xff]
    %v749 = vld [vmem:[%s1 + $0x1650] sm:$0xff]
    %v750 = vld [vmem:[%s1 + $0x1658] sm:$0xff]
    %v751 = vld [vmem:[%s1 + $0x1660] sm:$0xff]
    %v752 = vld [vmem:[%s1 + $0x1668] sm:$0xff]
    %v753 = vld [vmem:[%s1 + $0x1670] sm:$0xff]
    %v754 = vld [vmem:[%s1 + $0x1678] sm:$0xff]
    %v755 = vld [vmem:[%s1 + $0x1680] sm:$0xff]
    %v756 = vld [vmem:[%s1 + $0x1688] sm:$0xff]
    %v757 = vld [vmem:[%s1 + $0x1690] sm:$0xff]
    %v758 = vld [vmem:[%s1 + $0x1698] sm:$0xff]
    %v759 = vld [vmem:[%s1 + $0x16a0] sm:$0xff]
    %v760 = vld [vmem:[%s1 + $0x16a8] sm:$0xff]
    %v761 = vld [vmem:[%s1 + $0x16b0] sm:$0xff]
    %v762 = vld [vmem:[%s1 + $0x16b8] sm:$0xff]
    %v763 = vld [vmem:[%s1 + $0x16c0] sm:$0xff]
    %v764 = vld [vmem:[%s1 + $0x16c8] sm:$0xff]
    %v765 = vld [vmem:[%s1 + $0x16d0] sm:$0xff]
    %v766 = vld [vmem:[%s1 + $0x16d8] sm:$0xff]
    %v767 = vld [vmem:[%s1 + $0x16e0] sm:$0xff]
    %v768 = vld [vmem:[%s1 + $0x16e8] sm:$0xff]
    %v769 = vld [vmem:[%s1 + $0x16f0] sm:$0xff]
    %v770 = vld [vmem:[%s1 + $0x16f8] sm:$0xff]
    %v771 = vld [vmem:[%s1 + $0x1700] sm:$0xff]
    %v772 = vld [vmem:[%s1 + $0x1708] sm:$0xff]
    %v773 = vld [vmem:[%s1 + $0x1710] sm:$0xff]
    %v774 = vld [vmem:[%s1 + $0x1718] sm:$0xff]
    %v775 = vld [vmem:[%s1 + $0x1720] sm:$0xff]
    %v776 = vld [vmem:[%s1 + $0x1728] sm:$0xff]
    %v777 = vld [vmem:[%s1 + $0x1730] sm:$0xff]
    %v778 = vld [vmem:[%s1 + $0x1738] sm:$0xff]
    %v779 = vld [vmem:[%s1 + $0x1740] sm:$0xff]
    %v780 = vld [vmem:[%s1 + $0x1748] sm:$0xff]
    %v781 = vld [vmem:[%s1 + $0x1750] sm:$0xff]
    %v782 = vld [vmem:[%s1 + $0x1758] sm:$0xff]
    %v783 = vld [vmem:[%s1 + $0x1760] sm:$0xff]
    %v784 = vld [vmem:[%s1 + $0x1768] sm:$0xff]
    %v785 = vld [vmem:[%s1 + $0x1770] sm:$0xff]
    %v786 = vld [vmem:[%s1 + $0x1778] sm:$0xff]
    %v787 = vld [vmem:[%s1 + $0x1780] sm:$0xff]
    %v788 = vld [vmem:[%s1 + $0x1788] sm:$0xff]
    %v789 = vld [vmem:[%s1 + $0x1790] sm:$0xff]
    %v790 = vld [vmem:[%s1 + $0x1798] sm:$0xff]
    %v791 = vld [vmem:[%s1 + $0x17a0] sm:$0xff]
    %v792 = vld [vmem:[%s1 + $0x17a8] sm:$0xff]
    %v793 = vld [vmem:[%s1 + $0x17b0] sm:$0xff]
    %v794 = vld [vmem:[%s1 + $0x17b8] sm:$0xff]
    %v795 = vld [vmem:[%s1 + $0x17c0] sm:$0xff]
    %v796 = vld [vmem:[%s1 + $0x17c8] sm:$0xff]
    %v797 = vld [vmem:[%s1 + $0x17d0] sm:$0xff]
    %v798 = vld [vmem:[%s1 + $0x17d8] sm:$0xff]
    %v799 = vld [vmem:[%s1 + $0x17e0] sm:$0xff]
    %v800 = vld [vmem:[%s1 + $0x17e8] sm:$0xff]
    %v801 = vld [vmem:[%s1 + $0x17f0] sm:$0xff]
    %v802 = vld [vmem:[%s1 + $0x17f8] sm:$0xff]
    %v803 = vld [vmem:[%s1 + $0x1800] sm:$0xff]
    %v804 = vld [vmem:[%s1 + $0x1808] sm:$0xff]
    %v805 = vld [vmem:[%s1 + $0x1810] sm:$0xff]
    %v806 = vld [vmem:[%s1 + $0x1818] sm:$0xff]
    %v807 = vld [vmem:[%s1 + $0x1820] sm:$0xff]
    %v808 = vld [vmem:[%s1 + $0x1828] sm:$0xff]
    %v809 = vld [vmem:[%s1 + $0x1830] sm:$0xff]
    %v810 = vld [vmem:[%s1 + $0x1838] sm:$0xff]
    %v811 = vld [vmem:[%s1 + $0x1840] sm:$0xff]
    %v812 = vld [vmem:[%s1 + $0x1848] sm:$0xff]
    %v813 = vld [vmem:[%s1 + $0x1850] sm:$0xff]
    %v814 = vld [vmem:[%s1 + $0x1858] sm:$0xff]
    %v815 = vld [vmem:[%s1 + $0x1860] sm:$0xff]
    %v816 = vld [vmem:[%s1 + $0x1868] sm:$0xff]
    %v817 = vld [vmem:[%s1 + $0x1870] sm:$0xff]
    %v818 = vld [vmem:[%s1 + $0x1878] sm:$0xff]
    %v819 = vld [vmem:[%s1 + $0x1880] sm:$0xff]
    %v820 = vld [vmem:[%s1 + $0x1888] sm:$0xff]
    %v821 = vld [vmem:[%s1 + $0x1890] sm:$0xff]
    %v822 = vld [vmem:[%s1 + $0x1898] sm:$0xff]
    %v823 = vld [vmem:[%s1 + $0x18a0] sm:$0xff]
    %v824 = vld [vmem:[%s1 + $0x18a8] sm:$0xff]
    %v825 = vld [vmem:[%s1 + $0x18b0] sm:$0xff]
    %v826 = vld [vmem:[%s1 + $0x18b8] sm:$0xff]
    %v827 = vld [vmem:[%s1 + $0x18c0] sm:$0xff]
    %v828 = vld [vmem:[%s1 + $0x18c8] sm:$0xff]
    %v829 = vld [vmem:[%s1 + $0x18d0] sm:$0xff]
    %v830 = vld [vmem:[%s1 + $0x18d8] sm:$0xff]
    %v831 = vld [vmem:[%s1 + $0x18e0] sm:$0xff]
    %v832 = vld [vmem:[%s1 + $0x18e8] sm:$0xff]
    %v833 = vld [vmem:[%s1 + $0x18f0] sm:$0xff]
    %v834 = vld [vmem:[%s1 + $0x18f8] sm:$0xff]
    %v835 = vld [vmem:[%s1 + $0x1900] sm:$0xff]
    %v836 = vld [vmem:[%s1 + $0x1908] sm:$0xff]
    %v837 = vld [vmem:[%s1 + $0x1910] sm:$0xff]
    %v838 = vld [vmem:[%s1 + $0x1918] sm:$0xff]
    %v839 = vld [vmem:[%s1 + $0x1920] sm:$0xff]
    %v840 = vld [vmem:[%s1 + $0x1928] sm:$0xff]
    %v841 = vld [vmem:[%s1 + $0x1930] sm:$0xff]
    %v842 = vld [vmem:[%s1 + $0x1938] sm:$0xff]
    %v843 = vld [vmem:[%s1 + $0x1940] sm:$0xff]
    %v844 = vld [vmem:[%s1 + $0x1948] sm:$0xff]
    %v845 = vld [vmem:[%s1 + $0x1950] sm:$0xff]
    %v846 = vld [vmem:[%s1 + $0x1958] sm:$0xff]
    %v847 = vld [vmem:[%s1 + $0x1960] sm:$0xff]
    %v848 = vld [vmem:[%s1 + $0x1968] sm:$0xff]
    %v849 = vld [vmem:[%s1 + $0x1970] sm:$0xff]
    %v850 = vld [vmem:[%s1 + $0x1978] sm:$0xff]
    %v851 = vld [vmem:[%s1 + $0x1980] sm:$0xff]
    %v852 = vld [vmem:[%s1 + $0x1988] sm:$0xff]
    %v853 = vld [vmem:[%s1 + $0x1990] sm:$0xff]
    %v854 = vld [vmem:[%s1 + $0x1998] sm:$0xff]
    %v855 = vld [vmem:[%s1 + $0x19a0] sm:$0xff]
    %v856 = vld [vmem:[%s1 + $0x19a8] sm:$0xff]
    %v857 = vld [vmem:[%s1 + $0x19b0] sm:$0xff]
    %v858 = vld [vmem:[%s1 + $0x19b8] sm:$0xff]
    %v859 = vld [vmem:[%s1 + $0x19c0] sm:$0xff]
    %v860 = vld [vmem:[%s1 + $0x19c8] sm:$0xff]
    %v861 = vld [vmem:[%s1 + $0x19d0] sm:$0xff]
    %v862 = vld [vmem:[%s1 + $0x19d8] sm:$0xff]
    %v863 = vld [vmem:[%s1 + $0x19e0] sm:$0xff]
    %v864 = vld [vmem:[%s1 + $0x19e8] sm:$0xff]
    %v865 = vld [vmem:[%s1 + $0x19f0] sm:$0xff]
    %v866 = vld [vmem:[%s1 + $0x19f8] sm:$0xff]
    %v867 = vld [vmem:[%s1 + $0x1a00] sm:$0xff]
    %v868 = vld [vmem:[%s1 + $0x1a08] sm:$0xff]
    %v869 = vld [vmem:[%s1 + $0x1a10] sm:$0xff]
    %v870 = vld [vmem:[%s1 + $0x1a18] sm:$0xff]
    %v871 = vld [vmem:[%s1 + $0x1a20] sm:$0xff]
    %v872 = vld [vmem:[%s1 + $0x1a28] sm:$0xff]
    %v873 = vld [vmem:[%s1 + $0x1a30] sm:$0xff]
    %v874 = vld [vmem:[%s1 + $0x1a38] sm:$0xff]
    %v875 = vld [vmem:[%s2] sm:$0x1]
    %v877 = vlaneseq
    %v878 = vshrl.u32 %v877, 7
    %v879 = vsub.s32 0, %v878
    %v880 = vrot.slane %v875, %v879
    %v896 = vcombine.high %v21, %v21
    %v898 = vunpack.c.l.s4 1983009808
    %v899 = vunpack.c.0.s8 %v898
    %v900 = vlaneseq
    %v901 = vshrl.u32 %v900, 7
    %v902 = vsub.s32 %v899, %v901
    %v903 = vrot.slane %v21, %v902
    %v905 = vunpack.c.l.s4 1983009808
    %v906 = vunpack.c.0.s8 %v905
    %v907 = vlaneseq
    %v908 = vshrl.u32 %v907, 7
    %v909 = vsub.s32 %v906, %v908
    %v910 = vrot.slane %v896, %v909
    %v911 = vcombine.high %v903, %v903
    %v912 = vcombine.high %v910, %v910
    %v913 = vcombine.high %v22, %v22
    %v915 = vunpack.c.l.s4 1983009808
    %v916 = vunpack.c.0.s8 %v915
    %v917 = vlaneseq
    %v918 = vshrl.u32 %v917, 7
    %v919 = vsub.s32 %v916, %v918
    %v920 = vrot.slane %v22, %v919
    %v922 = vunpack.c.l.s4 1983009808
    %v923 = vunpack.c.0.s8 %v922
    %v924 = vlaneseq
    %v925 = vshrl.u32 %v924, 7
    %v926 = vsub.s32 %v923, %v925
    %v927 = vrot.slane %v913, %v926
    %v928 = vcombine.high %v920, %v920
    %v929 = vcombine.high %v927, %v927
    %v930 = vcombine.high %v23, %v23
    %v932 = vunpack.c.l.s4 1983009808
    %v933 = vunpack.c.0.s8 %v932
    %v934 = vlaneseq
    %v935 = vshrl.u32 %v934, 7
    %v936 = vsub.s32 %v933, %v935
    %v937 = vrot.slane %v23, %v936
    %v939 = vunpack.c.l.s4 1983009808
    %v940 = vunpack.c.0.s8 %v939
    %v941 = vlaneseq
    %v942 = vshrl.u32 %v941, 7
    %v943 = vsub.s32 %v940, %v942
    %v944 = vrot.slane %v930, %v943
    %v945 = vcombine.high %v937, %v937
    %v946 = vcombine.high %v944, %v944
    %v947 = vcombine.high %v24, %v24
    %v949 = vunpack.c.l.s4 1983009808
    %v950 = vunpack.c.0.s8 %v949
    %v951 = vlaneseq
    %v952 = vshrl.u32 %v951, 7
    %v953 = vsub.s32 %v950, %v952
    %v954 = vrot.slane %v24, %v953
    %v956 = vunpack.c.l.s4 1983009808
    %v957 = vunpack.c.0.s8 %v956
    %v958 = vlaneseq
    %v959 = vshrl.u32 %v958, 7
    %v960 = vsub.s32 %v957, %v959
    %v961 = vrot.slane %v947, %v960
    %v962 = vcombine.high %v954, %v954
    %v963 = vcombine.high %v961, %v961
    %v964 = vcombine.high %v25, %v25
    %v966 = vunpack.c.l.s4 1983009808
    %v967 = vunpack.c.0.s8 %v966
    %v968 = vlaneseq
    %v969 = vshrl.u32 %v968, 7
    %v970 = vsub.s32 %v967, %v969
    %v971 = vrot.slane %v25, %v970
    %v973 = vunpack.c.l.s4 1983009808
    %v974 = vunpack.c.0.s8 %v973
    %v975 = vlaneseq
    %v976 = vshrl.u32 %v975, 7
    %v977 = vsub.s32 %v974, %v976
    %v978 = vrot.slane %v964, %v977
    %v979 = vcombine.high %v971, %v971
    %v980 = vcombine.high %v978, %v978
    %v981 = vcombine.high %v26, %v26
    %v983 = vunpack.c.l.s4 1983009808
    %v984 = vunpack.c.0.s8 %v983
    %v985 = vlaneseq
    %v986 = vshrl.u32 %v985, 7
    %v987 = vsub.s32 %v984, %v986
    %v988 = vrot.slane %v26, %v987
    %v990 = vunpack.c.l.s4 1983009808
    %v991 = vunpack.c.0.s8 %v990
    %v992 = vlaneseq
    %v993 = vshrl.u32 %v992, 7
    %v994 = vsub.s32 %v991, %v993
    %v995 = vrot.slane %v981, %v994
    %v996 = vcombine.high %v988, %v988
    %v997 = vcombine.high %v995, %v995
    %v998 = vcombine.high %v27, %v27
    %v1000 = vunpack.c.l.s4 1983009808
    %v1001 = vunpack.c.0.s8 %v1000
    %v1002 = vlaneseq
    %v1003 = vshrl.u32 %v1002, 7
    %v1004 = vsub.s32 %v1001, %v1003
    %v1005 = vrot.slane %v27, %v1004
    %v1007 = vunpack.c.l.s4 1983009808
    %v1008 = vunpack.c.0.s8 %v1007
    %v1009 = vlaneseq
    %v1010 = vshrl.u32 %v1009, 7
    %v1011 = vsub.s32 %v1008, %v1010
    %v1012 = vrot.slane %v998, %v1011
    %v1013 = vcombine.high %v1005, %v1005
    %v1014 = vcombine.high %v1012, %v1012
    %v1015 = vcombine.high %v28, %v28
    %v1017 = vunpack.c.l.s4 1983009808
    %v1018 = vunpack.c.0.s8 %v1017
    %v1019 = vlaneseq
    %v1020 = vshrl.u32 %v1019, 7
    %v1021 = vsub.s32 %v1018, %v1020
    %v1022 = vrot.slane %v28, %v1021
    %v1024 = vunpack.c.l.s4 1983009808
    %v1025 = vunpack.c.0.s8 %v1024
    %v1026 = vlaneseq
    %v1027 = vshrl.u32 %v1026, 7
    %v1028 = vsub.s32 %v1025, %v1027
    %v1029 = vrot.slane %v1015, %v1028
    %v1030 = vcombine.high %v1022, %v1022
    %v1031 = vcombine.high %v1029, %v1029
    %v1032 = vcombine.high %v29, %v29
    %v1034 = vunpack.c.l.s4 1983009808
    %v1035 = vunpack.c.0.s8 %v1034
    %v1036 = vlaneseq
    %v1037 = vshrl.u32 %v1036, 7
    %v1038 = vsub.s32 %v1035, %v1037
    %v1039 = vrot.slane %v29, %v1038
    %v1041 = vunpack.c.l.s4 1983009808
    %v1042 = vunpack.c.0.s8 %v1041
    %v1043 = vlaneseq
    %v1044 = vshrl.u32 %v1043, 7
    %v1045 = vsub.s32 %v1042, %v1044
    %v1046 = vrot.slane %v1032, %v1045
    %v1047 = vcombine.high %v1039, %v1039
    %v1048 = vcombine.high %v1046, %v1046
    %v1049 = vcombine.high %v30, %v30
    %v1051 = vunpack.c.l.s4 1983009808
    %v1052 = vunpack.c.0.s8 %v1051
    %v1053 = vlaneseq
    %v1054 = vshrl.u32 %v1053, 7
    %v1055 = vsub.s32 %v1052, %v1054
    %v1056 = vrot.slane %v30, %v1055
    %v1058 = vunpack.c.l.s4 1983009808
    %v1059 = vunpack.c.0.s8 %v1058
    %v1060 = vlaneseq
    %v1061 = vshrl.u32 %v1060, 7
    %v1062 = vsub.s32 %v1059, %v1061
    %v1063 = vrot.slane %v1049, %v1062
    %v1064 = vcombine.high %v1056, %v1056
    %v1065 = vcombine.high %v1063, %v1063
    %v1066 = vcombine.high %v31, %v31
    %v1068 = vunpack.c.l.s4 1983009808
    %v1069 = vunpack.c.0.s8 %v1068
    %v1070 = vlaneseq
    %v1071 = vshrl.u32 %v1070, 7
    %v1072 = vsub.s32 %v1069, %v1071
    %v1073 = vrot.slane %v31, %v1072
    %v1075 = vunpack.c.l.s4 1983009808
    %v1076 = vunpack.c.0.s8 %v1075
    %v1077 = vlaneseq
    %v1078 = vshrl.u32 %v1077, 7
    %v1079 = vsub.s32 %v1076, %v1078
    %v1080 = vrot.slane %v1066, %v1079
    %v1081 = vcombine.high %v1073, %v1073
    %v1082 = vcombine.high %v1080, %v1080
    %v1083 = vcombine.high %v32, %v32
    %v1085 = vunpack.c.l.s4 1983009808
    %v1086 = vunpack.c.0.s8 %v1085
    %v1087 = vlaneseq
    %v1088 = vshrl.u32 %v1087, 7
    %v1089 = vsub.s32 %v1086, %v1088
    %v1090 = vrot.slane %v32, %v1089
    %v1092 = vunpack.c.l.s4 1983009808
    %v1093 = vunpack.c.0.s8 %v1092
    %v1094 = vlaneseq
    %v1095 = vshrl.u32 %v1094, 7
    %v1096 = vsub.s32 %v1093, %v1095
    %v1097 = vrot.slane %v1083, %v1096
    %v1098 = vcombine.high %v1090, %v1090
    %v1099 = vcombine.high %v1097, %v1097
    %v1100 = vcombine.high %v33, %v33
    %v1102 = vunpack.c.l.s4 1983009808
    %v1103 = vunpack.c.0.s8 %v1102
    %v1104 = vlaneseq
    %v1105 = vshrl.u32 %v1104, 7
    %v1106 = vsub.s32 %v1103, %v1105
    %v1107 = vrot.slane %v33, %v1106
    %v1109 = vunpack.c.l.s4 1983009808
    %v1110 = vunpack.c.0.s8 %v1109
    %v1111 = vlaneseq
    %v1112 = vshrl.u32 %v1111, 7
    %v1113 = vsub.s32 %v1110, %v1112
    %v1114 = vrot.slane %v1100, %v1113
    %v1115 = vcombine.high %v1107, %v1107
    %v1116 = vcombine.high %v1114, %v1114
    %v1118 = vunpack.c.l.s4 1983009808
    %v1119 = vunpack.c.0.s8 %v1118
    %v1120 = vlaneseq
    %v1121 = vshrl.u32 %v1120, 7
    %v1122 = vsub.s32 %v1119, %v1121
    %v1123 = vrot.slane %v34, %v1122
    %vm1176 = vcmask 523264
    %v1177 = vsel %vm1176, %v1123, 0
    %1179 = vmatprep.subr.mxu0 0.0
    %1180 = vmatpush1.msra.mxu0 %v50
    %1181 = vmatprep.subr.mxu0 0.0
    %1182 = vmatpush1.msra.mxu0 %v49
    %1183 = vmatprep.subr.mxu0 0.0
    %1184 = vmatpush1.msra.mxu0 %v48
    %1185 = vmatprep.subr.mxu0 0.0
    %1186 = vmatpush1.msra.mxu0 %v47
    %1187 = vmatprep.subr.mxu0 0.0
    %1188 = vmatpush1.msra.mxu0 %v46
    %1189 = vmatprep.subr.mxu0 0.0
    %1190 = vmatpush1.msra.mxu0 %v45
    %1191 = vmatprep.subr.mxu0 0.0
    %1192 = vmatpush1.msra.mxu0 %v44
    %1193 = vmatprep.subr.mxu0 0.0
    %1194 = vmatpush1.msra.mxu0 %v43
    %1195 = vmatprep.subr.mxu0 0.0
    %1196 = vmatpush1.msra.mxu0 %v42
    %1197 = vmatprep.subr.mxu0 0.0
    %1198 = vmatpush1.msra.mxu0 %v41
    %1199 = vmatprep.subr.mxu0 0.0
    %1200 = vmatpush1.msra.mxu0 %v40
    %1201 = vmatprep.subr.mxu0 0.0
    %1202 = vmatpush1.msra.mxu0 %v39
    %1203 = vmatprep.subr.mxu0 0.0
    %1204 = vmatpush1.msra.mxu0 %v38
    %1205 = vmatprep.subr.mxu0 0.0
    %1206 = vmatpush1.msra.mxu0 %v37
    %1207 = vmatprep.subr.mxu0 0.0
    %1208 = vmatpush1.msra.mxu0 %v36
    %1209 = vmatprep.subr.mxu0 0.0
    %1210 = vmatpush1.msra.mxu0 %v35
    %1211 = vmatprep.subr.mxu0 0.0
    %1212 = vmatpush2.msra.mxu0 %v66
    %1213 = vmatprep.subr.mxu0 0.0
    %1214 = vmatpush2.msra.mxu0 %v65
    %1215 = vmatprep.subr.mxu0 0.0
    %1216 = vmatpush2.msra.mxu0 %v64
    %1217 = vmatprep.subr.mxu0 0.0
    %1218 = vmatpush2.msra.mxu0 %v63
    %1219 = vmatprep.subr.mxu0 0.0
    %1220 = vmatpush2.msra.mxu0 %v62
    %1221 = vmatprep.subr.mxu0 0.0
    %1222 = vmatpush2.msra.mxu0 %v61
    %1223 = vmatprep.subr.mxu0 0.0
    %1224 = vmatpush2.msra.mxu0 %v60
    %1225 = vmatprep.subr.mxu0 0.0
    %1226 = vmatpush2.msra.mxu0 %v59
    %1227 = vmatprep.subr.mxu0 0.0
    %1228 = vmatpush2.msra.mxu0 %v58
    %1229 = vmatprep.subr.mxu0 0.0
    %1230 = vmatpush2.msra.mxu0 %v57
    %1231 = vmatprep.subr.mxu0 0.0
    %1232 = vmatpush2.msra.mxu0 %v56
    %1233 = vmatprep.subr.mxu0 0.0
    %1234 = vmatpush2.msra.mxu0 %v55
    %1235 = vmatprep.subr.mxu0 0.0
    %1236 = vmatpush2.msra.mxu0 %v54
    %1237 = vmatprep.subr.mxu0 0.0
    %1238 = vmatpush2.msra.mxu0 %v53
    %1239 = vmatprep.subr.mxu0 0.0
    %1240 = vmatpush2.msra.mxu0 %v52
    %1241 = vmatprep.subr.mxu0 0.0
    %1242 = vmatpush2.msra.mxu0 %v51
    %1243 = vmatprep.mubr.f32.mxu0 %v911
    %1244 = vmatmul.mubr.f32.gmra.mxu0 %v903
    %v1245 = vpop.f32.mrf.mxu0
    %v1246 = vadd.f32 %v880, %v1245
    %v1247 = vpop.f32.mrf.mxu0
    %1248 = vdwg.mxu0
    %1249 = vmatprep.subr.mxu0 0.0
    %1250 = vmatpush1.msra.mxu0 %v82
    %1251 = vmatprep.subr.mxu0 0.0
    %1252 = vmatpush1.msra.mxu0 %v81
    %1253 = vmatprep.subr.mxu0 0.0
    %1254 = vmatpush1.msra.mxu0 %v80
    %1255 = vmatprep.subr.mxu0 0.0
    %1256 = vmatpush1.msra.mxu0 %v79
    %1257 = vmatprep.subr.mxu0 0.0
    %1258 = vmatpush1.msra.mxu0 %v78
    %1259 = vmatprep.subr.mxu0 0.0
    %1260 = vmatpush1.msra.mxu0 %v77
    %1261 = vmatprep.subr.mxu0 0.0
    %1262 = vmatpush1.msra.mxu0 %v76
    %1263 = vmatprep.subr.mxu0 0.0
    %1264 = vmatpush1.msra.mxu0 %v75
    %1265 = vmatprep.subr.mxu0 0.0
    %1266 = vmatpush1.msra.mxu0 %v74
    %1267 = vmatprep.subr.mxu0 0.0
    %1268 = vmatpush1.msra.mxu0 %v73
    %1269 = vmatprep.subr.mxu0 0.0
    %1270 = vmatpush1.msra.mxu0 %v72
    %1271 = vmatprep.subr.mxu0 0.0
    %1272 = vmatpush1.msra.mxu0 %v71
    %1273 = vmatprep.subr.mxu0 0.0
    %1274 = vmatpush1.msra.mxu0 %v70
    %1275 = vmatprep.subr.mxu0 0.0
    %1276 = vmatpush1.msra.mxu0 %v69
    %1277 = vmatprep.subr.mxu0 0.0
    %1278 = vmatpush1.msra.mxu0 %v68
    %1279 = vmatprep.subr.mxu0 0.0
    %1280 = vmatpush1.msra.mxu0 %v67
    %1281 = vmatprep.subr.mxu0 0.0
    %1282 = vmatpush2.msra.mxu0 %v98
    %1283 = vmatprep.subr.mxu0 0.0
    %1284 = vmatpush2.msra.mxu0 %v97
    %1285 = vmatprep.subr.mxu0 0.0
    %1286 = vmatpush2.msra.mxu0 %v96
    %1287 = vmatprep.subr.mxu0 0.0
    %1288 = vmatpush2.msra.mxu0 %v95
    %1289 = vmatprep.subr.mxu0 0.0
    %1290 = vmatpush2.msra.mxu0 %v94
    %1291 = vmatprep.subr.mxu0 0.0
    %1292 = vmatpush2.msra.mxu0 %v93
    %1293 = vmatprep.subr.mxu0 0.0
    %1294 = vmatpush2.msra.mxu0 %v92
    %1295 = vmatprep.subr.mxu0 0.0
    %1296 = vmatpush2.msra.mxu0 %v91
    %1297 = vmatprep.subr.mxu0 0.0
    %1298 = vmatpush2.msra.mxu0 %v90
    %1299 = vmatprep.subr.mxu0 0.0
    %1300 = vmatpush2.msra.mxu0 %v89
    %1301 = vmatprep.subr.mxu0 0.0
    %1302 = vmatpush2.msra.mxu0 %v88
    %1303 = vmatprep.subr.mxu0 0.0
    %1304 = vmatpush2.msra.mxu0 %v87
    %1305 = vmatprep.subr.mxu0 0.0
    %1306 = vmatpush2.msra.mxu0 %v86
    %1307 = vmatprep.subr.mxu0 0.0
    %1308 = vmatpush2.msra.mxu0 %v85
    %1309 = vmatprep.subr.mxu0 0.0
    %1310 = vmatpush2.msra.mxu0 %v84
    %1311 = vmatprep.subr.mxu0 0.0
    %1312 = vmatpush2.msra.mxu0 %v83
    %1313 = vmatprep.mubr.f32.mxu0 %v912
    %1314 = vmatmul.mubr.f32.gmra.mxu0 %v910
    %v1315 = vpop.f32.mrf.mxu0
    %v1316 = vadd.f32 %v1246, %v1315
    %v1317 = vpop.f32.mrf.mxu0
    %1318 = vdwg.mxu0
    %1319 = vmatprep.subr.mxu0 0.0
    %1320 = vmatpush1.msra.mxu0 %v114
    %1321 = vmatprep.subr.mxu0 0.0
    %1322 = vmatpush1.msra.mxu0 %v113
    %1323 = vmatprep.subr.mxu0 0.0
    %1324 = vmatpush1.msra.mxu0 %v112
    %1325 = vmatprep.subr.mxu0 0.0
    %1326 = vmatpush1.msra.mxu0 %v111
    %1327 = vmatprep.subr.mxu0 0.0
    %1328 = vmatpush1.msra.mxu0 %v110
    %1329 = vmatprep.subr.mxu0 0.0
    %1330 = vmatpush1.msra.mxu0 %v109
    %1331 = vmatprep.subr.mxu0 0.0
    %1332 = vmatpush1.msra.mxu0 %v108
    %1333 = vmatprep.subr.mxu0 0.0
    %1334 = vmatpush1.msra.mxu0 %v107
    %1335 = vmatprep.subr.mxu0 0.0
    %1336 = vmatpush1.msra.mxu0 %v106
    %1337 = vmatprep.subr.mxu0 0.0
    %1338 = vmatpush1.msra.mxu0 %v105
    %1339 = vmatprep.subr.mxu0 0.0
    %1340 = vmatpush1.msra.mxu0 %v104
    %1341 = vmatprep.subr.mxu0 0.0
    %1342 = vmatpush1.msra.mxu0 %v103
    %1343 = vmatprep.subr.mxu0 0.0
    %1344 = vmatpush1.msra.mxu0 %v102
    %1345 = vmatprep.subr.mxu0 0.0
    %1346 = vmatpush1.msra.mxu0 %v101
    %1347 = vmatprep.subr.mxu0 0.0
    %1348 = vmatpush1.msra.mxu0 %v100
    %1349 = vmatprep.subr.mxu0 0.0
    %1350 = vmatpush1.msra.mxu0 %v99
    %1351 = vmatprep.subr.mxu0 0.0
    %1352 = vmatpush2.msra.mxu0 %v130
    %1353 = vmatprep.subr.mxu0 0.0
    %1354 = vmatpush2.msra.mxu0 %v129
    %1355 = vmatprep.subr.mxu0 0.0
    %1356 = vmatpush2.msra.mxu0 %v128
    %1357 = vmatprep.subr.mxu0 0.0
    %1358 = vmatpush2.msra.mxu0 %v127
    %1359 = vmatprep.subr.mxu0 0.0
    %1360 = vmatpush2.msra.mxu0 %v126
    %1361 = vmatprep.subr.mxu0 0.0
    %1362 = vmatpush2.msra.mxu0 %v125
    %1363 = vmatprep.subr.mxu0 0.0
    %1364 = vmatpush2.msra.mxu0 %v124
    %1365 = vmatprep.subr.mxu0 0.0
    %1366 = vmatpush2.msra.mxu0 %v123
    %1367 = vmatprep.subr.mxu0 0.0
    %1368 = vmatpush2.msra.mxu0 %v122
    %1369 = vmatprep.subr.mxu0 0.0
    %1370 = vmatpush2.msra.mxu0 %v121
    %1371 = vmatprep.subr.mxu0 0.0
    %1372 = vmatpush2.msra.mxu0 %v120
    %1373 = vmatprep.subr.mxu0 0.0
    %1374 = vmatpush2.msra.mxu0 %v119
    %1375 = vmatprep.subr.mxu0 0.0
    %1376 = vmatpush2.msra.mxu0 %v118
    %1377 = vmatprep.subr.mxu0 0.0
    %1378 = vmatpush2.msra.mxu0 %v117
    %1379 = vmatprep.subr.mxu0 0.0
    %1380 = vmatpush2.msra.mxu0 %v116
    %1381 = vmatprep.subr.mxu0 0.0
    %1382 = vmatpush2.msra.mxu0 %v115
    %1383 = vmatprep.mubr.f32.mxu0 %v928
    %1384 = vmatmul.mubr.f32.gmra.mxu0 %v920
    %v1385 = vpop.f32.mrf.mxu0
    %v1386 = vadd.f32 %v1316, %v1385
    %v1387 = vpop.f32.mrf.mxu0
    %1388 = vdwg.mxu0
    %1389 = vmatprep.subr.mxu0 0.0
    %1390 = vmatpush1.msra.mxu0 %v146
    %1391 = vmatprep.subr.mxu0 0.0
    %1392 = vmatpush1.msra.mxu0 %v145
    %1393 = vmatprep.subr.mxu0 0.0
    %1394 = vmatpush1.msra.mxu0 %v144
    %1395 = vmatprep.subr.mxu0 0.0
    %1396 = vmatpush1.msra.mxu0 %v143
    %1397 = vmatprep.subr.mxu0 0.0
    %1398 = vmatpush1.msra.mxu0 %v142
    %1399 = vmatprep.subr.mxu0 0.0
    %1400 = vmatpush1.msra.mxu0 %v141
    %1401 = vmatprep.subr.mxu0 0.0
    %1402 = vmatpush1.msra.mxu0 %v140
    %1403 = vmatprep.subr.mxu0 0.0
    %1404 = vmatpush1.msra.mxu0 %v139
    %1405 = vmatprep.subr.mxu0 0.0
    %1406 = vmatpush1.msra.mxu0 %v138
    %1407 = vmatprep.subr.mxu0 0.0
    %1408 = vmatpush1.msra.mxu0 %v137
    %1409 = vmatprep.subr.mxu0 0.0
    %1410 = vmatpush1.msra.mxu0 %v136
    %1411 = vmatprep.subr.mxu0 0.0
    %1412 = vmatpush1.msra.mxu0 %v135
    %1413 = vmatprep.subr.mxu0 0.0
    %1414 = vmatpush1.msra.mxu0 %v134
    %1415 = vmatprep.subr.mxu0 0.0
    %1416 = vmatpush1.msra.mxu0 %v133
    %1417 = vmatprep.subr.mxu0 0.0
    %1418 = vmatpush1.msra.mxu0 %v132
    %1419 = vmatprep.subr.mxu0 0.0
    %1420 = vmatpush1.msra.mxu0 %v131
    %1421 = vmatprep.subr.mxu0 0.0
    %1422 = vmatpush2.msra.mxu0 %v162
    %1423 = vmatprep.subr.mxu0 0.0
    %1424 = vmatpush2.msra.mxu0 %v161
    %1425 = vmatprep.subr.mxu0 0.0
    %1426 = vmatpush2.msra.mxu0 %v160
    %1427 = vmatprep.subr.mxu0 0.0
    %1428 = vmatpush2.msra.mxu0 %v159
    %1429 = vmatprep.subr.mxu0 0.0
    %1430 = vmatpush2.msra.mxu0 %v158
    %1431 = vmatprep.subr.mxu0 0.0
    %1432 = vmatpush2.msra.mxu0 %v157
    %1433 = vmatprep.subr.mxu0 0.0
    %1434 = vmatpush2.msra.mxu0 %v156
    %1435 = vmatprep.subr.mxu0 0.0
    %1436 = vmatpush2.msra.mxu0 %v155
    %1437 = vmatprep.subr.mxu0 0.0
    %1438 = vmatpush2.msra.mxu0 %v154
    %1439 = vmatprep.subr.mxu0 0.0
    %1440 = vmatpush2.msra.mxu0 %v153
    %1441 = vmatprep.subr.mxu0 0.0
    %1442 = vmatpush2.msra.mxu0 %v152
    %1443 = vmatprep.subr.mxu0 0.0
    %1444 = vmatpush2.msra.mxu0 %v151
    %1445 = vmatprep.subr.mxu0 0.0
    %1446 = vmatpush2.msra.mxu0 %v150
    %1447 = vmatprep.subr.mxu0 0.0
    %1448 = vmatpush2.msra.mxu0 %v149
    %1449 = vmatprep.subr.mxu0 0.0
    %1450 = vmatpush2.msra.mxu0 %v148
    %1451 = vmatprep.subr.mxu0 0.0
    %1452 = vmatpush2.msra.mxu0 %v147
    %1453 = vmatprep.mubr.f32.mxu0 %v929
    %1454 = vmatmul.mubr.f32.gmra.mxu0 %v927
    %v1455 = vpop.f32.mrf.mxu0
    %v1456 = vadd.f32 %v1386, %v1455
    %v1457 = vpop.f32.mrf.mxu0
    %1458 = vdwg.mxu0
    %1459 = vmatprep.subr.mxu0 0.0
    %1460 = vmatpush1.msra.mxu0 %v178
    %1461 = vmatprep.subr.mxu0 0.0
    %1462 = vmatpush1.msra.mxu0 %v177
    %1463 = vmatprep.subr.mxu0 0.0
    %1464 = vmatpush1.msra.mxu0 %v176
    %1465 = vmatprep.subr.mxu0 0.0
    %1466 = vmatpush1.msra.mxu0 %v175
    %1467 = vmatprep.subr.mxu0 0.0
    %1468 = vmatpush1.msra.mxu0 %v174
    %1469 = vmatprep.subr.mxu0 0.0
    %1470 = vmatpush1.msra.mxu0 %v173
    %1471 = vmatprep.subr.mxu0 0.0
    %1472 = vmatpush1.msra.mxu0 %v172
    %1473 = vmatprep.subr.mxu0 0.0
    %1474 = vmatpush1.msra.mxu0 %v171
    %1475 = vmatprep.subr.mxu0 0.0
    %1476 = vmatpush1.msra.mxu0 %v170
    %1477 = vmatprep.subr.mxu0 0.0
    %1478 = vmatpush1.msra.mxu0 %v169
    %1479 = vmatprep.subr.mxu0 0.0
    %1480 = vmatpush1.msra.mxu0 %v168
    %1481 = vmatprep.subr.mxu0 0.0
    %1482 = vmatpush1.msra.mxu0 %v167
    %1483 = vmatprep.subr.mxu0 0.0
    %1484 = vmatpush1.msra.mxu0 %v166
    %1485 = vmatprep.subr.mxu0 0.0
    %1486 = vmatpush1.msra.mxu0 %v165
    %1487 = vmatprep.subr.mxu0 0.0
    %1488 = vmatpush1.msra.mxu0 %v164
    %1489 = vmatprep.subr.mxu0 0.0
    %1490 = vmatpush1.msra.mxu0 %v163
    %1491 = vmatprep.subr.mxu0 0.0
    %1492 = vmatpush2.msra.mxu0 %v194
    %1493 = vmatprep.subr.mxu0 0.0
    %1494 = vmatpush2.msra.mxu0 %v193
    %1495 = vmatprep.subr.mxu0 0.0
    %1496 = vmatpush2.msra.mxu0 %v192
    %1497 = vmatprep.subr.mxu0 0.0
    %1498 = vmatpush2.msra.mxu0 %v191
    %1499 = vmatprep.subr.mxu0 0.0
    %1500 = vmatpush2.msra.mxu0 %v190
    %1501 = vmatprep.subr.mxu0 0.0
    %1502 = vmatpush2.msra.mxu0 %v189
    %1503 = vmatprep.subr.mxu0 0.0
    %1504 = vmatpush2.msra.mxu0 %v188
    %1505 = vmatprep.subr.mxu0 0.0
    %1506 = vmatpush2.msra.mxu0 %v187
    %1507 = vmatprep.subr.mxu0 0.0
    %1508 = vmatpush2.msra.mxu0 %v186
    %1509 = vmatprep.subr.mxu0 0.0
    %1510 = vmatpush2.msra.mxu0 %v185
    %1511 = vmatprep.subr.mxu0 0.0
    %1512 = vmatpush2.msra.mxu0 %v184
    %1513 = vmatprep.subr.mxu0 0.0
    %1514 = vmatpush2.msra.mxu0 %v183
    %1515 = vmatprep.subr.mxu0 0.0
    %1516 = vmatpush2.msra.mxu0 %v182
    %1517 = vmatprep.subr.mxu0 0.0
    %1518 = vmatpush2.msra.mxu0 %v181
    %1519 = vmatprep.subr.mxu0 0.0
    %1520 = vmatpush2.msra.mxu0 %v180
    %1521 = vmatprep.subr.mxu0 0.0
    %1522 = vmatpush2.msra.mxu0 %v179
    %1523 = vmatprep.mubr.f32.mxu0 %v945
    %1524 = vmatmul.mubr.f32.gmra.mxu0 %v937
    %v1525 = vpop.f32.mrf.mxu0
    %v1526 = vadd.f32 %v1456, %v1525
    %v1527 = vpop.f32.mrf.mxu0
    %1528 = vdwg.mxu0
    %1529 = vmatprep.subr.mxu0 0.0
    %1530 = vmatpush1.msra.mxu0 %v210
    %1531 = vmatprep.subr.mxu0 0.0
    %1532 = vmatpush1.msra.mxu0 %v209
    %1533 = vmatprep.subr.mxu0 0.0
    %1534 = vmatpush1.msra.mxu0 %v208
    %1535 = vmatprep.subr.mxu0 0.0
    %1536 = vmatpush1.msra.mxu0 %v207
    %1537 = vmatprep.subr.mxu0 0.0
    %1538 = vmatpush1.msra.mxu0 %v206
    %1539 = vmatprep.subr.mxu0 0.0
    %1540 = vmatpush1.msra.mxu0 %v205
    %1541 = vmatprep.subr.mxu0 0.0
    %1542 = vmatpush1.msra.mxu0 %v204
    %1543 = vmatprep.subr.mxu0 0.0
    %1544 = vmatpush1.msra.mxu0 %v203
    %1545 = vmatprep.subr.mxu0 0.0
    %1546 = vmatpush1.msra.mxu0 %v202
    %1547 = vmatprep.subr.mxu0 0.0
    %1548 = vmatpush1.msra.mxu0 %v201
    %1549 = vmatprep.subr.mxu0 0.0
    %1550 = vmatpush1.msra.mxu0 %v200
    %1551 = vmatprep.subr.mxu0 0.0
    %1552 = vmatpush1.msra.mxu0 %v199
    %1553 = vmatprep.subr.mxu0 0.0
    %1554 = vmatpush1.msra.mxu0 %v198
    %1555 = vmatprep.subr.mxu0 0.0
    %1556 = vmatpush1.msra.mxu0 %v197
    %1557 = vmatprep.subr.mxu0 0.0
    %1558 = vmatpush1.msra.mxu0 %v196
    %1559 = vmatprep.subr.mxu0 0.0
    %1560 = vmatpush1.msra.mxu0 %v195
    %1561 = vmatprep.subr.mxu0 0.0
    %1562 = vmatpush2.msra.mxu0 %v226
    %1563 = vmatprep.subr.mxu0 0.0
    %1564 = vmatpush2.msra.mxu0 %v225
    %1565 = vmatprep.subr.mxu0 0.0
    %1566 = vmatpush2.msra.mxu0 %v224
    %1567 = vmatprep.subr.mxu0 0.0
    %1568 = vmatpush2.msra.mxu0 %v223
    %1569 = vmatprep.subr.mxu0 0.0
    %1570 = vmatpush2.msra.mxu0 %v222
    %1571 = vmatprep.subr.mxu0 0.0
    %1572 = vmatpush2.msra.mxu0 %v221
    %1573 = vmatprep.subr.mxu0 0.0
    %1574 = vmatpush2.msra.mxu0 %v220
    %1575 = vmatprep.subr.mxu0 0.0
    %1576 = vmatpush2.msra.mxu0 %v219
    %1577 = vmatprep.subr.mxu0 0.0
    %1578 = vmatpush2.msra.mxu0 %v218
    %1579 = vmatprep.subr.mxu0 0.0
    %1580 = vmatpush2.msra.mxu0 %v217
    %1581 = vmatprep.subr.mxu0 0.0
    %1582 = vmatpush2.msra.mxu0 %v216
    %1583 = vmatprep.subr.mxu0 0.0
    %1584 = vmatpush2.msra.mxu0 %v215
    %1585 = vmatprep.subr.mxu0 0.0
    %1586 = vmatpush2.msra.mxu0 %v214
    %1587 = vmatprep.subr.mxu0 0.0
    %1588 = vmatpush2.msra.mxu0 %v213
    %1589 = vmatprep.subr.mxu0 0.0
    %1590 = vmatpush2.msra.mxu0 %v212
    %1591 = vmatprep.subr.mxu0 0.0
    %1592 = vmatpush2.msra.mxu0 %v211
    %1593 = vmatprep.mubr.f32.mxu0 %v946
    %1594 = vmatmul.mubr.f32.gmra.mxu0 %v944
    %v1595 = vpop.f32.mrf.mxu0
    %v1596 = vadd.f32 %v1526, %v1595
    %v1597 = vpop.f32.mrf.mxu0
    %1598 = vdwg.mxu0
    %1599 = vmatprep.subr.mxu0 0.0
    %1600 = vmatpush1.msra.mxu0 %v242
    %1601 = vmatprep.subr.mxu0 0.0
    %1602 = vmatpush1.msra.mxu0 %v241
    %1603 = vmatprep.subr.mxu0 0.0
    %1604 = vmatpush1.msra.mxu0 %v240
    %1605 = vmatprep.subr.mxu0 0.0
    %1606 = vmatpush1.msra.mxu0 %v239
    %1607 = vmatprep.subr.mxu0 0.0
    %1608 = vmatpush1.msra.mxu0 %v238
    %1609 = vmatprep.subr.mxu0 0.0
    %1610 = vmatpush1.msra.mxu0 %v237
    %1611 = vmatprep.subr.mxu0 0.0
    %1612 = vmatpush1.msra.mxu0 %v236
    %1613 = vmatprep.subr.mxu0 0.0
    %1614 = vmatpush1.msra.mxu0 %v235
    %1615 = vmatprep.subr.mxu0 0.0
    %1616 = vmatpush1.msra.mxu0 %v234
    %1617 = vmatprep.subr.mxu0 0.0
    %1618 = vmatpush1.msra.mxu0 %v233
    %1619 = vmatprep.subr.mxu0 0.0
    %1620 = vmatpush1.msra.mxu0 %v232
    %1621 = vmatprep.subr.mxu0 0.0
    %1622 = vmatpush1.msra.mxu0 %v231
    %1623 = vmatprep.subr.mxu0 0.0
    %1624 = vmatpush1.msra.mxu0 %v230
    %1625 = vmatprep.subr.mxu0 0.0
    %1626 = vmatpush1.msra.mxu0 %v229
    %1627 = vmatprep.subr.mxu0 0.0
    %1628 = vmatpush1.msra.mxu0 %v228
    %1629 = vmatprep.subr.mxu0 0.0
    %1630 = vmatpush1.msra.mxu0 %v227
    %1631 = vmatprep.subr.mxu0 0.0
    %1632 = vmatpush2.msra.mxu0 %v258
    %1633 = vmatprep.subr.mxu0 0.0
    %1634 = vmatpush2.msra.mxu0 %v257
    %1635 = vmatprep.subr.mxu0 0.0
    %1636 = vmatpush2.msra.mxu0 %v256
    %1637 = vmatprep.subr.mxu0 0.0
    %1638 = vmatpush2.msra.mxu0 %v255
    %1639 = vmatprep.subr.mxu0 0.0
    %1640 = vmatpush2.msra.mxu0 %v254
    %1641 = vmatprep.subr.mxu0 0.0
    %1642 = vmatpush2.msra.mxu0 %v253
    %1643 = vmatprep.subr.mxu0 0.0
    %1644 = vmatpush2.msra.mxu0 %v252
    %1645 = vmatprep.subr.mxu0 0.0
    %1646 = vmatpush2.msra.mxu0 %v251
    %1647 = vmatprep.subr.mxu0 0.0
    %1648 = vmatpush2.msra.mxu0 %v250
    %1649 = vmatprep.subr.mxu0 0.0
    %1650 = vmatpush2.msra.mxu0 %v249
    %1651 = vmatprep.subr.mxu0 0.0
    %1652 = vmatpush2.msra.mxu0 %v248
    %1653 = vmatprep.subr.mxu0 0.0
    %1654 = vmatpush2.msra.mxu0 %v247
    %1655 = vmatprep.subr.mxu0 0.0
    %1656 = vmatpush2.msra.mxu0 %v246
    %1657 = vmatprep.subr.mxu0 0.0
    %1658 = vmatpush2.msra.mxu0 %v245
    %1659 = vmatprep.subr.mxu0 0.0
    %1660 = vmatpush2.msra.mxu0 %v244
    %1661 = vmatprep.subr.mxu0 0.0
    %1662 = vmatpush2.msra.mxu0 %v243
    %1663 = vmatprep.mubr.f32.mxu0 %v962
    %1664 = vmatmul.mubr.f32.gmra.mxu0 %v954
    %v1665 = vpop.f32.mrf.mxu0
    %v1666 = vadd.f32 %v1596, %v1665
    %v1667 = vpop.f32.mrf.mxu0
    %1668 = vdwg.mxu0
    %1669 = vmatprep.subr.mxu0 0.0
    %1670 = vmatpush1.msra.mxu0 %v274
    %1671 = vmatprep.subr.mxu0 0.0
    %1672 = vmatpush1.msra.mxu0 %v273
    %1673 = vmatprep.subr.mxu0 0.0
    %1674 = vmatpush1.msra.mxu0 %v272
    %1675 = vmatprep.subr.mxu0 0.0
    %1676 = vmatpush1.msra.mxu0 %v271
    %1677 = vmatprep.subr.mxu0 0.0
    %1678 = vmatpush1.msra.mxu0 %v270
    %1679 = vmatprep.subr.mxu0 0.0
    %1680 = vmatpush1.msra.mxu0 %v269
    %1681 = vmatprep.subr.mxu0 0.0
    %1682 = vmatpush1.msra.mxu0 %v268
    %1683 = vmatprep.subr.mxu0 0.0
    %1684 = vmatpush1.msra.mxu0 %v267
    %1685 = vmatprep.subr.mxu0 0.0
    %1686 = vmatpush1.msra.mxu0 %v266
    %1687 = vmatprep.subr.mxu0 0.0
    %1688 = vmatpush1.msra.mxu0 %v265
    %1689 = vmatprep.subr.mxu0 0.0
    %1690 = vmatpush1.msra.mxu0 %v264
    %1691 = vmatprep.subr.mxu0 0.0
    %1692 = vmatpush1.msra.mxu0 %v263
    %1693 = vmatprep.subr.mxu0 0.0
    %1694 = vmatpush1.msra.mxu0 %v262
    %1695 = vmatprep.subr.mxu0 0.0
    %1696 = vmatpush1.msra.mxu0 %v261
    %1697 = vmatprep.subr.mxu0 0.0
    %1698 = vmatpush1.msra.mxu0 %v260
    %1699 = vmatprep.subr.mxu0 0.0
    %1700 = vmatpush1.msra.mxu0 %v259
    %1701 = vmatprep.subr.mxu0 0.0
    %1702 = vmatpush2.msra.mxu0 %v290
    %1703 = vmatprep.subr.mxu0 0.0
    %1704 = vmatpush2.msra.mxu0 %v289
    %1705 = vmatprep.subr.mxu0 0.0
    %1706 = vmatpush2.msra.mxu0 %v288
    %1707 = vmatprep.subr.mxu0 0.0
    %1708 = vmatpush2.msra.mxu0 %v287
    %1709 = vmatprep.subr.mxu0 0.0
    %1710 = vmatpush2.msra.mxu0 %v286
    %1711 = vmatprep.subr.mxu0 0.0
    %1712 = vmatpush2.msra.mxu0 %v285
    %1713 = vmatprep.subr.mxu0 0.0
    %1714 = vmatpush2.msra.mxu0 %v284
    %1715 = vmatprep.subr.mxu0 0.0
    %1716 = vmatpush2.msra.mxu0 %v283
    %1717 = vmatprep.subr.mxu0 0.0
    %1718 = vmatpush2.msra.mxu0 %v282
    %1719 = vmatprep.subr.mxu0 0.0
    %1720 = vmatpush2.msra.mxu0 %v281
    %1721 = vmatprep.subr.mxu0 0.0
    %1722 = vmatpush2.msra.mxu0 %v280
    %1723 = vmatprep.subr.mxu0 0.0
    %1724 = vmatpush2.msra.mxu0 %v279
    %1725 = vmatprep.subr.mxu0 0.0
    %1726 = vmatpush2.msra.mxu0 %v278
    %1727 = vmatprep.subr.mxu0 0.0
    %1728 = vmatpush2.msra.mxu0 %v277
    %1729 = vmatprep.subr.mxu0 0.0
    %1730 = vmatpush2.msra.mxu0 %v276
    %1731 = vmatprep.subr.mxu0 0.0
    %1732 = vmatpush2.msra.mxu0 %v275
    %1733 = vmatprep.mubr.f32.mxu0 %v963
    %1734 = vmatmul.mubr.f32.gmra.mxu0 %v961
    %v1735 = vpop.f32.mrf.mxu0
    %v1736 = vadd.f32 %v1666, %v1735
    %v1737 = vpop.f32.mrf.mxu0
    %1738 = vdwg.mxu0
    %1739 = vmatprep.subr.mxu0 0.0
    %1740 = vmatpush1.msra.mxu0 %v306
    %1741 = vmatprep.subr.mxu0 0.0
    %1742 = vmatpush1.msra.mxu0 %v305
    %1743 = vmatprep.subr.mxu0 0.0
    %1744 = vmatpush1.msra.mxu0 %v304
    %1745 = vmatprep.subr.mxu0 0.0
    %1746 = vmatpush1.msra.mxu0 %v303
    %1747 = vmatprep.subr.mxu0 0.0
    %1748 = vmatpush1.msra.mxu0 %v302
    %1749 = vmatprep.subr.mxu0 0.0
    %1750 = vmatpush1.msra.mxu0 %v301
    %1751 = vmatprep.subr.mxu0 0.0
    %1752 = vmatpush1.msra.mxu0 %v300
    %1753 = vmatprep.subr.mxu0 0.0
    %1754 = vmatpush1.msra.mxu0 %v299
    %1755 = vmatprep.subr.mxu0 0.0
    %1756 = vmatpush1.msra.mxu0 %v298
    %1757 = vmatprep.subr.mxu0 0.0
    %1758 = vmatpush1.msra.mxu0 %v297
    %1759 = vmatprep.subr.mxu0 0.0
    %1760 = vmatpush1.msra.mxu0 %v296
    %1761 = vmatprep.subr.mxu0 0.0
    %1762 = vmatpush1.msra.mxu0 %v295
    %1763 = vmatprep.subr.mxu0 0.0
    %1764 = vmatpush1.msra.mxu0 %v294
    %1765 = vmatprep.subr.mxu0 0.0
    %1766 = vmatpush1.msra.mxu0 %v293
    %1767 = vmatprep.subr.mxu0 0.0
    %1768 = vmatpush1.msra.mxu0 %v292
    %1769 = vmatprep.subr.mxu0 0.0
    %1770 = vmatpush1.msra.mxu0 %v291
    %1771 = vmatprep.subr.mxu0 0.0
    %1772 = vmatpush2.msra.mxu0 %v322
    %1773 = vmatprep.subr.mxu0 0.0
    %1774 = vmatpush2.msra.mxu0 %v321
    %1775 = vmatprep.subr.mxu0 0.0
    %1776 = vmatpush2.msra.mxu0 %v320
    %1777 = vmatprep.subr.mxu0 0.0
    %1778 = vmatpush2.msra.mxu0 %v319
    %1779 = vmatprep.subr.mxu0 0.0
    %1780 = vmatpush2.msra.mxu0 %v318
    %1781 = vmatprep.subr.mxu0 0.0
    %1782 = vmatpush2.msra.mxu0 %v317
    %1783 = vmatprep.subr.mxu0 0.0
    %1784 = vmatpush2.msra.mxu0 %v316
    %1785 = vmatprep.subr.mxu0 0.0
    %1786 = vmatpush2.msra.mxu0 %v315
    %1787 = vmatprep.subr.mxu0 0.0
    %1788 = vmatpush2.msra.mxu0 %v314
    %1789 = vmatprep.subr.mxu0 0.0
    %1790 = vmatpush2.msra.mxu0 %v313
    %1791 = vmatprep.subr.mxu0 0.0
    %1792 = vmatpush2.msra.mxu0 %v312
    %1793 = vmatprep.subr.mxu0 0.0
    %1794 = vmatpush2.msra.mxu0 %v311
    %1795 = vmatprep.subr.mxu0 0.0
    %1796 = vmatpush2.msra.mxu0 %v310
    %1797 = vmatprep.subr.mxu0 0.0
    %1798 = vmatpush2.msra.mxu0 %v309
    %1799 = vmatprep.subr.mxu0 0.0
    %1800 = vmatpush2.msra.mxu0 %v308
    %1801 = vmatprep.subr.mxu0 0.0
    %1802 = vmatpush2.msra.mxu0 %v307
    %1803 = vmatprep.mubr.f32.mxu0 %v979
    %1804 = vmatmul.mubr.f32.gmra.mxu0 %v971
    %v1805 = vpop.f32.mrf.mxu0
    %v1806 = vadd.f32 %v1736, %v1805
    %v1807 = vpop.f32.mrf.mxu0
    %1808 = vdwg.mxu0
    %1809 = vmatprep.subr.mxu0 0.0
    %1810 = vmatpush1.msra.mxu0 %v338
    %1811 = vmatprep.subr.mxu0 0.0
    %1812 = vmatpush1.msra.mxu0 %v337
    %1813 = vmatprep.subr.mxu0 0.0
    %1814 = vmatpush1.msra.mxu0 %v336
    %1815 = vmatprep.subr.mxu0 0.0
    %1816 = vmatpush1.msra.mxu0 %v335
    %1817 = vmatprep.subr.mxu0 0.0
    %1818 = vmatpush1.msra.mxu0 %v334
    %1819 = vmatprep.subr.mxu0 0.0
    %1820 = vmatpush1.msra.mxu0 %v333
    %1821 = vmatprep.subr.mxu0 0.0
    %1822 = vmatpush1.msra.mxu0 %v332
    %1823 = vmatprep.subr.mxu0 0.0
    %1824 = vmatpush1.msra.mxu0 %v331
    %1825 = vmatprep.subr.mxu0 0.0
    %1826 = vmatpush1.msra.mxu0 %v330
    %1827 = vmatprep.subr.mxu0 0.0
    %1828 = vmatpush1.msra.mxu0 %v329
    %1829 = vmatprep.subr.mxu0 0.0
    %1830 = vmatpush1.msra.mxu0 %v328
    %1831 = vmatprep.subr.mxu0 0.0
    %1832 = vmatpush1.msra.mxu0 %v327
    %1833 = vmatprep.subr.mxu0 0.0
    %1834 = vmatpush1.msra.mxu0 %v326
    %1835 = vmatprep.subr.mxu0 0.0
    %1836 = vmatpush1.msra.mxu0 %v325
    %1837 = vmatprep.subr.mxu0 0.0
    %1838 = vmatpush1.msra.mxu0 %v324
    %1839 = vmatprep.subr.mxu0 0.0
    %1840 = vmatpush1.msra.mxu0 %v323
    %1841 = vmatprep.subr.mxu0 0.0
    %1842 = vmatpush2.msra.mxu0 %v354
    %1843 = vmatprep.subr.mxu0 0.0
    %1844 = vmatpush2.msra.mxu0 %v353
    %1845 = vmatprep.subr.mxu0 0.0
    %1846 = vmatpush2.msra.mxu0 %v352
    %1847 = vmatprep.subr.mxu0 0.0
    %1848 = vmatpush2.msra.mxu0 %v351
    %1849 = vmatprep.subr.mxu0 0.0
    %1850 = vmatpush2.msra.mxu0 %v350
    %1851 = vmatprep.subr.mxu0 0.0
    %1852 = vmatpush2.msra.mxu0 %v349
    %1853 = vmatprep.subr.mxu0 0.0
    %1854 = vmatpush2.msra.mxu0 %v348
    %1855 = vmatprep.subr.mxu0 0.0
    %1856 = vmatpush2.msra.mxu0 %v347
    %1857 = vmatprep.subr.mxu0 0.0
    %1858 = vmatpush2.msra.mxu0 %v346
    %1859 = vmatprep.subr.mxu0 0.0
    %1860 = vmatpush2.msra.mxu0 %v345
    %1861 = vmatprep.subr.mxu0 0.0
    %1862 = vmatpush2.msra.mxu0 %v344
    %1863 = vmatprep.subr.mxu0 0.0
    %1864 = vmatpush2.msra.mxu0 %v343
    %1865 = vmatprep.subr.mxu0 0.0
    %1866 = vmatpush2.msra.mxu0 %v342
    %1867 = vmatprep.subr.mxu0 0.0
    %1868 = vmatpush2.msra.mxu0 %v341
    %1869 = vmatprep.subr.mxu0 0.0
    %1870 = vmatpush2.msra.mxu0 %v340
    %1871 = vmatprep.subr.mxu0 0.0
    %1872 = vmatpush2.msra.mxu0 %v339
    %1873 = vmatprep.mubr.f32.mxu0 %v980
    %1874 = vmatmul.mubr.f32.gmra.mxu0 %v978
    %v1875 = vpop.f32.mrf.mxu0
    %v1876 = vadd.f32 %v1806, %v1875
    %v1877 = vpop.f32.mrf.mxu0
    %1878 = vdwg.mxu0
    %1879 = vmatprep.subr.mxu0 0.0
    %1880 = vmatpush1.msra.mxu0 %v370
    %1881 = vmatprep.subr.mxu0 0.0
    %1882 = vmatpush1.msra.mxu0 %v369
    %1883 = vmatprep.subr.mxu0 0.0
    %1884 = vmatpush1.msra.mxu0 %v368
    %1885 = vmatprep.subr.mxu0 0.0
    %1886 = vmatpush1.msra.mxu0 %v367
    %1887 = vmatprep.subr.mxu0 0.0
    %1888 = vmatpush1.msra.mxu0 %v366
    %1889 = vmatprep.subr.mxu0 0.0
    %1890 = vmatpush1.msra.mxu0 %v365
    %1891 = vmatprep.subr.mxu0 0.0
    %1892 = vmatpush1.msra.mxu0 %v364
    %1893 = vmatprep.subr.mxu0 0.0
    %1894 = vmatpush1.msra.mxu0 %v363
    %1895 = vmatprep.subr.mxu0 0.0
    %1896 = vmatpush1.msra.mxu0 %v362
    %1897 = vmatprep.subr.mxu0 0.0
    %1898 = vmatpush1.msra.mxu0 %v361
    %1899 = vmatprep.subr.mxu0 0.0
    %1900 = vmatpush1.msra.mxu0 %v360
    %1901 = vmatprep.subr.mxu0 0.0
    %1902 = vmatpush1.msra.mxu0 %v359
    %1903 = vmatprep.subr.mxu0 0.0
    %1904 = vmatpush1.msra.mxu0 %v358
    %1905 = vmatprep.subr.mxu0 0.0
    %1906 = vmatpush1.msra.mxu0 %v357
    %1907 = vmatprep.subr.mxu0 0.0
    %1908 = vmatpush1.msra.mxu0 %v356
    %1909 = vmatprep.subr.mxu0 0.0
    %1910 = vmatpush1.msra.mxu0 %v355
    %1911 = vmatprep.subr.mxu0 0.0
    %1912 = vmatpush2.msra.mxu0 %v386
    %1913 = vmatprep.subr.mxu0 0.0
    %1914 = vmatpush2.msra.mxu0 %v385
    %1915 = vmatprep.subr.mxu0 0.0
    %1916 = vmatpush2.msra.mxu0 %v384
    %1917 = vmatprep.subr.mxu0 0.0
    %1918 = vmatpush2.msra.mxu0 %v383
    %1919 = vmatprep.subr.mxu0 0.0
    %1920 = vmatpush2.msra.mxu0 %v382
    %1921 = vmatprep.subr.mxu0 0.0
    %1922 = vmatpush2.msra.mxu0 %v381
    %1923 = vmatprep.subr.mxu0 0.0
    %1924 = vmatpush2.msra.mxu0 %v380
    %1925 = vmatprep.subr.mxu0 0.0
    %1926 = vmatpush2.msra.mxu0 %v379
    %1927 = vmatprep.subr.mxu0 0.0
    %1928 = vmatpush2.msra.mxu0 %v378
    %1929 = vmatprep.subr.mxu0 0.0
    %1930 = vmatpush2.msra.mxu0 %v377
    %1931 = vmatprep.subr.mxu0 0.0
    %1932 = vmatpush2.msra.mxu0 %v376
    %1933 = vmatprep.subr.mxu0 0.0
    %1934 = vmatpush2.msra.mxu0 %v375
    %1935 = vmatprep.subr.mxu0 0.0
    %1936 = vmatpush2.msra.mxu0 %v374
    %1937 = vmatprep.subr.mxu0 0.0
    %1938 = vmatpush2.msra.mxu0 %v373
    %1939 = vmatprep.subr.mxu0 0.0
    %1940 = vmatpush2.msra.mxu0 %v372
    %1941 = vmatprep.subr.mxu0 0.0
    %1942 = vmatpush2.msra.mxu0 %v371
    %1943 = vmatprep.mubr.f32.mxu0 %v996
    %1944 = vmatmul.mubr.f32.gmra.mxu0 %v988
    %v1945 = vpop.f32.mrf.mxu0
    %v1946 = vadd.f32 %v1876, %v1945
    %v1947 = vpop.f32.mrf.mxu0
    %1948 = vdwg.mxu0
    %1949 = vmatprep.subr.mxu0 0.0
    %1950 = vmatpush1.msra.mxu0 %v402
    %1951 = vmatprep.subr.mxu0 0.0
    %1952 = vmatpush1.msra.mxu0 %v401
    %1953 = vmatprep.subr.mxu0 0.0
    %1954 = vmatpush1.msra.mxu0 %v400
    %1955 = vmatprep.subr.mxu0 0.0
    %1956 = vmatpush1.msra.mxu0 %v399
    %1957 = vmatprep.subr.mxu0 0.0
    %1958 = vmatpush1.msra.mxu0 %v398
    %1959 = vmatprep.subr.mxu0 0.0
    %1960 = vmatpush1.msra.mxu0 %v397
    %1961 = vmatprep.subr.mxu0 0.0
    %1962 = vmatpush1.msra.mxu0 %v396
    %1963 = vmatprep.subr.mxu0 0.0
    %1964 = vmatpush1.msra.mxu0 %v395
    %1965 = vmatprep.subr.mxu0 0.0
    %1966 = vmatpush1.msra.mxu0 %v394
    %1967 = vmatprep.subr.mxu0 0.0
    %1968 = vmatpush1.msra.mxu0 %v393
    %1969 = vmatprep.subr.mxu0 0.0
    %1970 = vmatpush1.msra.mxu0 %v392
    %1971 = vmatprep.subr.mxu0 0.0
    %1972 = vmatpush1.msra.mxu0 %v391
    %1973 = vmatprep.subr.mxu0 0.0
    %1974 = vmatpush1.msra.mxu0 %v390
    %1975 = vmatprep.subr.mxu0 0.0
    %1976 = vmatpush1.msra.mxu0 %v389
    %1977 = vmatprep.subr.mxu0 0.0
    %1978 = vmatpush1.msra.mxu0 %v388
    %1979 = vmatprep.subr.mxu0 0.0
    %1980 = vmatpush1.msra.mxu0 %v387
    %1981 = vmatprep.subr.mxu0 0.0
    %1982 = vmatpush2.msra.mxu0 %v418
    %1983 = vmatprep.subr.mxu0 0.0
    %1984 = vmatpush2.msra.mxu0 %v417
    %1985 = vmatprep.subr.mxu0 0.0
    %1986 = vmatpush2.msra.mxu0 %v416
    %1987 = vmatprep.subr.mxu0 0.0
    %1988 = vmatpush2.msra.mxu0 %v415
    %1989 = vmatprep.subr.mxu0 0.0
    %1990 = vmatpush2.msra.mxu0 %v414
    %1991 = vmatprep.subr.mxu0 0.0
    %1992 = vmatpush2.msra.mxu0 %v413
    %1993 = vmatprep.subr.mxu0 0.0
    %1994 = vmatpush2.msra.mxu0 %v412
    %1995 = vmatprep.subr.mxu0 0.0
    %1996 = vmatpush2.msra.mxu0 %v411
    %1997 = vmatprep.subr.mxu0 0.0
    %1998 = vmatpush2.msra.mxu0 %v410
    %1999 = vmatprep.subr.mxu0 0.0
    %2000 = vmatpush2.msra.mxu0 %v409
    %2001 = vmatprep.subr.mxu0 0.0
    %2002 = vmatpush2.msra.mxu0 %v408
    %2003 = vmatprep.subr.mxu0 0.0
    %2004 = vmatpush2.msra.mxu0 %v407
    %2005 = vmatprep.subr.mxu0 0.0
    %2006 = vmatpush2.msra.mxu0 %v406
    %2007 = vmatprep.subr.mxu0 0.0
    %2008 = vmatpush2.msra.mxu0 %v405
    %2009 = vmatprep.subr.mxu0 0.0
    %2010 = vmatpush2.msra.mxu0 %v404
    %2011 = vmatprep.subr.mxu0 0.0
    %2012 = vmatpush2.msra.mxu0 %v403
    %2013 = vmatprep.mubr.f32.mxu0 %v997
    %2014 = vmatmul.mubr.f32.gmra.mxu0 %v995
    %v2015 = vpop.f32.mrf.mxu0
    %v2016 = vadd.f32 %v1946, %v2015
    %v2017 = vpop.f32.mrf.mxu0
    %2018 = vdwg.mxu0
    %2019 = vmatprep.subr.mxu0 0.0
    %2020 = vmatpush1.msra.mxu0 %v434
    %2021 = vmatprep.subr.mxu0 0.0
    %2022 = vmatpush1.msra.mxu0 %v433
    %2023 = vmatprep.subr.mxu0 0.0
    %2024 = vmatpush1.msra.mxu0 %v432
    %2025 = vmatprep.subr.mxu0 0.0
    %2026 = vmatpush1.msra.mxu0 %v431
    %2027 = vmatprep.subr.mxu0 0.0
    %2028 = vmatpush1.msra.mxu0 %v430
    %2029 = vmatprep.subr.mxu0 0.0
    %2030 = vmatpush1.msra.mxu0 %v429
    %2031 = vmatprep.subr.mxu0 0.0
    %2032 = vmatpush1.msra.mxu0 %v428
    %2033 = vmatprep.subr.mxu0 0.0
    %2034 = vmatpush1.msra.mxu0 %v427
    %2035 = vmatprep.subr.mxu0 0.0
    %2036 = vmatpush1.msra.mxu0 %v426
    %2037 = vmatprep.subr.mxu0 0.0
    %2038 = vmatpush1.msra.mxu0 %v425
    %2039 = vmatprep.subr.mxu0 0.0
    %2040 = vmatpush1.msra.mxu0 %v424
    %2041 = vmatprep.subr.mxu0 0.0
    %2042 = vmatpush1.msra.mxu0 %v423
    %2043 = vmatprep.subr.mxu0 0.0
    %2044 = vmatpush1.msra.mxu0 %v422
    %2045 = vmatprep.subr.mxu0 0.0
    %2046 = vmatpush1.msra.mxu0 %v421
    %2047 = vmatprep.subr.mxu0 0.0
    %2048 = vmatpush1.msra.mxu0 %v420
    %2049 = vmatprep.subr.mxu0 0.0
    %2050 = vmatpush1.msra.mxu0 %v419
    %2051 = vmatprep.subr.mxu0 0.0
    %2052 = vmatpush2.msra.mxu0 %v450
    %2053 = vmatprep.subr.mxu0 0.0
    %2054 = vmatpush2.msra.mxu0 %v449
    %2055 = vmatprep.subr.mxu0 0.0
    %2056 = vmatpush2.msra.mxu0 %v448
    %2057 = vmatprep.subr.mxu0 0.0
    %2058 = vmatpush2.msra.mxu0 %v447
    %2059 = vmatprep.subr.mxu0 0.0
    %2060 = vmatpush2.msra.mxu0 %v446
    %2061 = vmatprep.subr.mxu0 0.0
    %2062 = vmatpush2.msra.mxu0 %v445
    %2063 = vmatprep.subr.mxu0 0.0
    %2064 = vmatpush2.msra.mxu0 %v444
    %2065 = vmatprep.subr.mxu0 0.0
    %2066 = vmatpush2.msra.mxu0 %v443
    %2067 = vmatprep.subr.mxu0 0.0
    %2068 = vmatpush2.msra.mxu0 %v442
    %2069 = vmatprep.subr.mxu0 0.0
    %2070 = vmatpush2.msra.mxu0 %v441
    %2071 = vmatprep.subr.mxu0 0.0
    %2072 = vmatpush2.msra.mxu0 %v440
    %2073 = vmatprep.subr.mxu0 0.0
    %2074 = vmatpush2.msra.mxu0 %v439
    %2075 = vmatprep.subr.mxu0 0.0
    %2076 = vmatpush2.msra.mxu0 %v438
    %2077 = vmatprep.subr.mxu0 0.0
    %2078 = vmatpush2.msra.mxu0 %v437
    %2079 = vmatprep.subr.mxu0 0.0
    %2080 = vmatpush2.msra.mxu0 %v436
    %2081 = vmatprep.subr.mxu0 0.0
    %2082 = vmatpush2.msra.mxu0 %v435
    %2083 = vmatprep.mubr.f32.mxu0 %v1013
    %2084 = vmatmul.mubr.f32.gmra.mxu0 %v1005
    %v2085 = vpop.f32.mrf.mxu0
    %v2086 = vadd.f32 %v2016, %v2085
    %v2087 = vpop.f32.mrf.mxu0
    %2088 = vdwg.mxu0
    %2089 = vmatprep.subr.mxu0 0.0
    %2090 = vmatpush1.msra.mxu0 %v466
    %2091 = vmatprep.subr.mxu0 0.0
    %2092 = vmatpush1.msra.mxu0 %v465
    %2093 = vmatprep.subr.mxu0 0.0
    %2094 = vmatpush1.msra.mxu0 %v464
    %2095 = vmatprep.subr.mxu0 0.0
    %2096 = vmatpush1.msra.mxu0 %v463
    %2097 = vmatprep.subr.mxu0 0.0
    %2098 = vmatpush1.msra.mxu0 %v462
    %2099 = vmatprep.subr.mxu0 0.0
    %2100 = vmatpush1.msra.mxu0 %v461
    %2101 = vmatprep.subr.mxu0 0.0
    %2102 = vmatpush1.msra.mxu0 %v460
    %2103 = vmatprep.subr.mxu0 0.0
    %2104 = vmatpush1.msra.mxu0 %v459
    %2105 = vmatprep.subr.mxu0 0.0
    %2106 = vmatpush1.msra.mxu0 %v458
    %2107 = vmatprep.subr.mxu0 0.0
    %2108 = vmatpush1.msra.mxu0 %v457
    %2109 = vmatprep.subr.mxu0 0.0
    %2110 = vmatpush1.msra.mxu0 %v456
    %2111 = vmatprep.subr.mxu0 0.0
    %2112 = vmatpush1.msra.mxu0 %v455
    %2113 = vmatprep.subr.mxu0 0.0
    %2114 = vmatpush1.msra.mxu0 %v454
    %2115 = vmatprep.subr.mxu0 0.0
    %2116 = vmatpush1.msra.mxu0 %v453
    %2117 = vmatprep.subr.mxu0 0.0
    %2118 = vmatpush1.msra.mxu0 %v452
    %2119 = vmatprep.subr.mxu0 0.0
    %2120 = vmatpush1.msra.mxu0 %v451
    %2121 = vmatprep.subr.mxu0 0.0
    %2122 = vmatpush2.msra.mxu0 %v482
    %2123 = vmatprep.subr.mxu0 0.0
    %2124 = vmatpush2.msra.mxu0 %v481
    %2125 = vmatprep.subr.mxu0 0.0
    %2126 = vmatpush2.msra.mxu0 %v480
    %2127 = vmatprep.subr.mxu0 0.0
    %2128 = vmatpush2.msra.mxu0 %v479
    %2129 = vmatprep.subr.mxu0 0.0
    %2130 = vmatpush2.msra.mxu0 %v478
    %2131 = vmatprep.subr.mxu0 0.0
    %2132 = vmatpush2.msra.mxu0 %v477
    %2133 = vmatprep.subr.mxu0 0.0
    %2134 = vmatpush2.msra.mxu0 %v476
    %2135 = vmatprep.subr.mxu0 0.0
    %2136 = vmatpush2.msra.mxu0 %v475
    %2137 = vmatprep.subr.mxu0 0.0
    %2138 = vmatpush2.msra.mxu0 %v474
    %2139 = vmatprep.subr.mxu0 0.0
    %2140 = vmatpush2.msra.mxu0 %v473
    %2141 = vmatprep.subr.mxu0 0.0
    %2142 = vmatpush2.msra.mxu0 %v472
    %2143 = vmatprep.subr.mxu0 0.0
    %2144 = vmatpush2.msra.mxu0 %v471
    %2145 = vmatprep.subr.mxu0 0.0
    %2146 = vmatpush2.msra.mxu0 %v470
    %2147 = vmatprep.subr.mxu0 0.0
    %2148 = vmatpush2.msra.mxu0 %v469
    %2149 = vmatprep.subr.mxu0 0.0
    %2150 = vmatpush2.msra.mxu0 %v468
    %2151 = vmatprep.subr.mxu0 0.0
    %2152 = vmatpush2.msra.mxu0 %v467
    %2153 = vmatprep.mubr.f32.mxu0 %v1014
    %2154 = vmatmul.mubr.f32.gmra.mxu0 %v1012
    %v2155 = vpop.f32.mrf.mxu0
    %v2156 = vadd.f32 %v2086, %v2155
    %v2157 = vpop.f32.mrf.mxu0
    %2158 = vdwg.mxu0
    %2159 = vmatprep.subr.mxu0 0.0
    %2160 = vmatpush1.msra.mxu0 %v498
    %2161 = vmatprep.subr.mxu0 0.0
    %2162 = vmatpush1.msra.mxu0 %v497
    %2163 = vmatprep.subr.mxu0 0.0
    %2164 = vmatpush1.msra.mxu0 %v496
    %2165 = vmatprep.subr.mxu0 0.0
    %2166 = vmatpush1.msra.mxu0 %v495
    %2167 = vmatprep.subr.mxu0 0.0
    %2168 = vmatpush1.msra.mxu0 %v494
    %2169 = vmatprep.subr.mxu0 0.0
    %2170 = vmatpush1.msra.mxu0 %v493
    %2171 = vmatprep.subr.mxu0 0.0
    %2172 = vmatpush1.msra.mxu0 %v492
    %2173 = vmatprep.subr.mxu0 0.0
    %2174 = vmatpush1.msra.mxu0 %v491
    %2175 = vmatprep.subr.mxu0 0.0
    %2176 = vmatpush1.msra.mxu0 %v490
    %2177 = vmatprep.subr.mxu0 0.0
    %2178 = vmatpush1.msra.mxu0 %v489
    %2179 = vmatprep.subr.mxu0 0.0
    %2180 = vmatpush1.msra.mxu0 %v488
    %2181 = vmatprep.subr.mxu0 0.0
    %2182 = vmatpush1.msra.mxu0 %v487
    %2183 = vmatprep.subr.mxu0 0.0
    %2184 = vmatpush1.msra.mxu0 %v486
    %2185 = vmatprep.subr.mxu0 0.0
    %2186 = vmatpush1.msra.mxu0 %v485
    %2187 = vmatprep.subr.mxu0 0.0
    %2188 = vmatpush1.msra.mxu0 %v484
    %2189 = vmatprep.subr.mxu0 0.0
    %2190 = vmatpush1.msra.mxu0 %v483
    %2191 = vmatprep.subr.mxu0 0.0
    %2192 = vmatpush2.msra.mxu0 %v514
    %2193 = vmatprep.subr.mxu0 0.0
    %2194 = vmatpush2.msra.mxu0 %v513
    %2195 = vmatprep.subr.mxu0 0.0
    %2196 = vmatpush2.msra.mxu0 %v512
    %2197 = vmatprep.subr.mxu0 0.0
    %2198 = vmatpush2.msra.mxu0 %v511
    %2199 = vmatprep.subr.mxu0 0.0
    %2200 = vmatpush2.msra.mxu0 %v510
    %2201 = vmatprep.subr.mxu0 0.0
    %2202 = vmatpush2.msra.mxu0 %v509
    %2203 = vmatprep.subr.mxu0 0.0
    %2204 = vmatpush2.msra.mxu0 %v508
    %2205 = vmatprep.subr.mxu0 0.0
    %2206 = vmatpush2.msra.mxu0 %v507
    %2207 = vmatprep.subr.mxu0 0.0
    %2208 = vmatpush2.msra.mxu0 %v506
    %2209 = vmatprep.subr.mxu0 0.0
    %2210 = vmatpush2.msra.mxu0 %v505
    %2211 = vmatprep.subr.mxu0 0.0
    %2212 = vmatpush2.msra.mxu0 %v504
    %2213 = vmatprep.subr.mxu0 0.0
    %2214 = vmatpush2.msra.mxu0 %v503
    %2215 = vmatprep.subr.mxu0 0.0
    %2216 = vmatpush2.msra.mxu0 %v502
    %2217 = vmatprep.subr.mxu0 0.0
    %2218 = vmatpush2.msra.mxu0 %v501
    %2219 = vmatprep.subr.mxu0 0.0
    %2220 = vmatpush2.msra.mxu0 %v500
    %2221 = vmatprep.subr.mxu0 0.0
    %2222 = vmatpush2.msra.mxu0 %v499
    %2223 = vmatprep.mubr.f32.mxu0 %v1030
    %2224 = vmatmul.mubr.f32.gmra.mxu0 %v1022
    %v2225 = vpop.f32.mrf.mxu0
    %v2226 = vadd.f32 %v2156, %v2225
    %v2227 = vpop.f32.mrf.mxu0
    %2228 = vdwg.mxu0
    %2229 = vmatprep.subr.mxu0 0.0
    %2230 = vmatpush1.msra.mxu0 %v530
    %2231 = vmatprep.subr.mxu0 0.0
    %2232 = vmatpush1.msra.mxu0 %v529
    %2233 = vmatprep.subr.mxu0 0.0
    %2234 = vmatpush1.msra.mxu0 %v528
    %2235 = vmatprep.subr.mxu0 0.0
    %2236 = vmatpush1.msra.mxu0 %v527
    %2237 = vmatprep.subr.mxu0 0.0
    %2238 = vmatpush1.msra.mxu0 %v526
    %2239 = vmatprep.subr.mxu0 0.0
    %2240 = vmatpush1.msra.mxu0 %v525
    %2241 = vmatprep.subr.mxu0 0.0
    %2242 = vmatpush1.msra.mxu0 %v524
    %2243 = vmatprep.subr.mxu0 0.0
    %2244 = vmatpush1.msra.mxu0 %v523
    %2245 = vmatprep.subr.mxu0 0.0
    %2246 = vmatpush1.msra.mxu0 %v522
    %2247 = vmatprep.subr.mxu0 0.0
    %2248 = vmatpush1.msra.mxu0 %v521
    %2249 = vmatprep.subr.mxu0 0.0
    %2250 = vmatpush1.msra.mxu0 %v520
    %2251 = vmatprep.subr.mxu0 0.0
    %2252 = vmatpush1.msra.mxu0 %v519
    %2253 = vmatprep.subr.mxu0 0.0
    %2254 = vmatpush1.msra.mxu0 %v518
    %2255 = vmatprep.subr.mxu0 0.0
    %2256 = vmatpush1.msra.mxu0 %v517
    %2257 = vmatprep.subr.mxu0 0.0
    %2258 = vmatpush1.msra.mxu0 %v516
    %2259 = vmatprep.subr.mxu0 0.0
    %2260 = vmatpush1.msra.mxu0 %v515
    %2261 = vmatprep.subr.mxu0 0.0
    %2262 = vmatpush2.msra.mxu0 %v546
    %2263 = vmatprep.subr.mxu0 0.0
    %2264 = vmatpush2.msra.mxu0 %v545
    %2265 = vmatprep.subr.mxu0 0.0
    %2266 = vmatpush2.msra.mxu0 %v544
    %2267 = vmatprep.subr.mxu0 0.0
    %2268 = vmatpush2.msra.mxu0 %v543
    %2269 = vmatprep.subr.mxu0 0.0
    %2270 = vmatpush2.msra.mxu0 %v542
    %2271 = vmatprep.subr.mxu0 0.0
    %2272 = vmatpush2.msra.mxu0 %v541
    %2273 = vmatprep.subr.mxu0 0.0
    %2274 = vmatpush2.msra.mxu0 %v540
    %2275 = vmatprep.subr.mxu0 0.0
    %2276 = vmatpush2.msra.mxu0 %v539
    %2277 = vmatprep.subr.mxu0 0.0
    %2278 = vmatpush2.msra.mxu0 %v538
    %2279 = vmatprep.subr.mxu0 0.0
    %2280 = vmatpush2.msra.mxu0 %v537
    %2281 = vmatprep.subr.mxu0 0.0
    %2282 = vmatpush2.msra.mxu0 %v536
    %2283 = vmatprep.subr.mxu0 0.0
    %2284 = vmatpush2.msra.mxu0 %v535
    %2285 = vmatprep.subr.mxu0 0.0
    %2286 = vmatpush2.msra.mxu0 %v534
    %2287 = vmatprep.subr.mxu0 0.0
    %2288 = vmatpush2.msra.mxu0 %v533
    %2289 = vmatprep.subr.mxu0 0.0
    %2290 = vmatpush2.msra.mxu0 %v532
    %2291 = vmatprep.subr.mxu0 0.0
    %2292 = vmatpush2.msra.mxu0 %v531
    %2293 = vmatprep.mubr.f32.mxu0 %v1031
    %2294 = vmatmul.mubr.f32.gmra.mxu0 %v1029
    %v2295 = vpop.f32.mrf.mxu0
    %v2296 = vadd.f32 %v2226, %v2295
    %v2297 = vpop.f32.mrf.mxu0
    %2298 = vdwg.mxu0
    %2299 = vmatprep.subr.mxu0 0.0
    %2300 = vmatpush1.msra.mxu0 %v562
    %2301 = vmatprep.subr.mxu0 0.0
    %2302 = vmatpush1.msra.mxu0 %v561
    %2303 = vmatprep.subr.mxu0 0.0
    %2304 = vmatpush1.msra.mxu0 %v560
    %2305 = vmatprep.subr.mxu0 0.0
    %2306 = vmatpush1.msra.mxu0 %v559
    %2307 = vmatprep.subr.mxu0 0.0
    %2308 = vmatpush1.msra.mxu0 %v558
    %2309 = vmatprep.subr.mxu0 0.0
    %2310 = vmatpush1.msra.mxu0 %v557
    %2311 = vmatprep.subr.mxu0 0.0
    %2312 = vmatpush1.msra.mxu0 %v556
    %2313 = vmatprep.subr.mxu0 0.0
    %2314 = vmatpush1.msra.mxu0 %v555
    %2315 = vmatprep.subr.mxu0 0.0
    %2316 = vmatpush1.msra.mxu0 %v554
    %2317 = vmatprep.subr.mxu0 0.0
    %2318 = vmatpush1.msra.mxu0 %v553
    %2319 = vmatprep.subr.mxu0 0.0
    %2320 = vmatpush1.msra.mxu0 %v552
    %2321 = vmatprep.subr.mxu0 0.0
    %2322 = vmatpush1.msra.mxu0 %v551
    %2323 = vmatprep.subr.mxu0 0.0
    %2324 = vmatpush1.msra.mxu0 %v550
    %2325 = vmatprep.subr.mxu0 0.0
    %2326 = vmatpush1.msra.mxu0 %v549
    %2327 = vmatprep.subr.mxu0 0.0
    %2328 = vmatpush1.msra.mxu0 %v548
    %2329 = vmatprep.subr.mxu0 0.0
    %2330 = vmatpush1.msra.mxu0 %v547
    %2331 = vmatprep.subr.mxu0 0.0
    %2332 = vmatpush2.msra.mxu0 %v578
    %2333 = vmatprep.subr.mxu0 0.0
    %2334 = vmatpush2.msra.mxu0 %v577
    %2335 = vmatprep.subr.mxu0 0.0
    %2336 = vmatpush2.msra.mxu0 %v576
    %2337 = vmatprep.subr.mxu0 0.0
    %2338 = vmatpush2.msra.mxu0 %v575
    %2339 = vmatprep.subr.mxu0 0.0
    %2340 = vmatpush2.msra.mxu0 %v574
    %2341 = vmatprep.subr.mxu0 0.0
    %2342 = vmatpush2.msra.mxu0 %v573
    %2343 = vmatprep.subr.mxu0 0.0
    %2344 = vmatpush2.msra.mxu0 %v572
    %2345 = vmatprep.subr.mxu0 0.0
    %2346 = vmatpush2.msra.mxu0 %v571
    %2347 = vmatprep.subr.mxu0 0.0
    %2348 = vmatpush2.msra.mxu0 %v570
    %2349 = vmatprep.subr.mxu0 0.0
    %2350 = vmatpush2.msra.mxu0 %v569
    %2351 = vmatprep.subr.mxu0 0.0
    %2352 = vmatpush2.msra.mxu0 %v568
    %2353 = vmatprep.subr.mxu0 0.0
    %2354 = vmatpush2.msra.mxu0 %v567
    %2355 = vmatprep.subr.mxu0 0.0
    %2356 = vmatpush2.msra.mxu0 %v566
    %2357 = vmatprep.subr.mxu0 0.0
    %2358 = vmatpush2.msra.mxu0 %v565
    %2359 = vmatprep.subr.mxu0 0.0
    %2360 = vmatpush2.msra.mxu0 %v564
    %2361 = vmatprep.subr.mxu0 0.0
    %2362 = vmatpush2.msra.mxu0 %v563
    %2363 = vmatprep.mubr.f32.mxu0 %v1047
    %2364 = vmatmul.mubr.f32.gmra.mxu0 %v1039
    %v2365 = vpop.f32.mrf.mxu0
    %v2366 = vadd.f32 %v2296, %v2365
    %v2367 = vpop.f32.mrf.mxu0
    %2368 = vdwg.mxu0
    %2369 = vmatprep.subr.mxu0 0.0
    %2370 = vmatpush1.msra.mxu0 %v594
    %2371 = vmatprep.subr.mxu0 0.0
    %2372 = vmatpush1.msra.mxu0 %v593
    %2373 = vmatprep.subr.mxu0 0.0
    %2374 = vmatpush1.msra.mxu0 %v592
    %2375 = vmatprep.subr.mxu0 0.0
    %2376 = vmatpush1.msra.mxu0 %v591
    %2377 = vmatprep.subr.mxu0 0.0
    %2378 = vmatpush1.msra.mxu0 %v590
    %2379 = vmatprep.subr.mxu0 0.0
    %2380 = vmatpush1.msra.mxu0 %v589
    %2381 = vmatprep.subr.mxu0 0.0
    %2382 = vmatpush1.msra.mxu0 %v588
    %2383 = vmatprep.subr.mxu0 0.0
    %2384 = vmatpush1.msra.mxu0 %v587
    %2385 = vmatprep.subr.mxu0 0.0
    %2386 = vmatpush1.msra.mxu0 %v586
    %2387 = vmatprep.subr.mxu0 0.0
    %2388 = vmatpush1.msra.mxu0 %v585
    %2389 = vmatprep.subr.mxu0 0.0
    %2390 = vmatpush1.msra.mxu0 %v584
    %2391 = vmatprep.subr.mxu0 0.0
    %2392 = vmatpush1.msra.mxu0 %v583
    %2393 = vmatprep.subr.mxu0 0.0
    %2394 = vmatpush1.msra.mxu0 %v582
    %2395 = vmatprep.subr.mxu0 0.0
    %2396 = vmatpush1.msra.mxu0 %v581
    %2397 = vmatprep.subr.mxu0 0.0
    %2398 = vmatpush1.msra.mxu0 %v580
    %2399 = vmatprep.subr.mxu0 0.0
    %2400 = vmatpush1.msra.mxu0 %v579
    %2401 = vmatprep.subr.mxu0 0.0
    %2402 = vmatpush2.msra.mxu0 %v610
    %2403 = vmatprep.subr.mxu0 0.0
    %2404 = vmatpush2.msra.mxu0 %v609
    %2405 = vmatprep.subr.mxu0 0.0
    %2406 = vmatpush2.msra.mxu0 %v608
    %2407 = vmatprep.subr.mxu0 0.0
    %2408 = vmatpush2.msra.mxu0 %v607
    %2409 = vmatprep.subr.mxu0 0.0
    %2410 = vmatpush2.msra.mxu0 %v606
    %2411 = vmatprep.subr.mxu0 0.0
    %2412 = vmatpush2.msra.mxu0 %v605
    %2413 = vmatprep.subr.mxu0 0.0
    %2414 = vmatpush2.msra.mxu0 %v604
    %2415 = vmatprep.subr.mxu0 0.0
    %2416 = vmatpush2.msra.mxu0 %v603
    %2417 = vmatprep.subr.mxu0 0.0
    %2418 = vmatpush2.msra.mxu0 %v602
    %2419 = vmatprep.subr.mxu0 0.0
    %2420 = vmatpush2.msra.mxu0 %v601
    %2421 = vmatprep.subr.mxu0 0.0
    %2422 = vmatpush2.msra.mxu0 %v600
    %2423 = vmatprep.subr.mxu0 0.0
    %2424 = vmatpush2.msra.mxu0 %v599
    %2425 = vmatprep.subr.mxu0 0.0
    %2426 = vmatpush2.msra.mxu0 %v598
    %2427 = vmatprep.subr.mxu0 0.0
    %2428 = vmatpush2.msra.mxu0 %v597
    %2429 = vmatprep.subr.mxu0 0.0
    %2430 = vmatpush2.msra.mxu0 %v596
    %2431 = vmatprep.subr.mxu0 0.0
    %2432 = vmatpush2.msra.mxu0 %v595
    %2433 = vmatprep.mubr.f32.mxu0 %v1048
    %2434 = vmatmul.mubr.f32.gmra.mxu0 %v1046
    %v2435 = vpop.f32.mrf.mxu0
    %v2436 = vadd.f32 %v2366, %v2435
    %v2437 = vpop.f32.mrf.mxu0
    %2438 = vdwg.mxu0
    %2439 = vmatprep.subr.mxu0 0.0
    %2440 = vmatpush1.msra.mxu0 %v626
    %2441 = vmatprep.subr.mxu0 0.0
    %2442 = vmatpush1.msra.mxu0 %v625
    %2443 = vmatprep.subr.mxu0 0.0
    %2444 = vmatpush1.msra.mxu0 %v624
    %2445 = vmatprep.subr.mxu0 0.0
    %2446 = vmatpush1.msra.mxu0 %v623
    %2447 = vmatprep.subr.mxu0 0.0
    %2448 = vmatpush1.msra.mxu0 %v622
    %2449 = vmatprep.subr.mxu0 0.0
    %2450 = vmatpush1.msra.mxu0 %v621
    %2451 = vmatprep.subr.mxu0 0.0
    %2452 = vmatpush1.msra.mxu0 %v620
    %2453 = vmatprep.subr.mxu0 0.0
    %2454 = vmatpush1.msra.mxu0 %v619
    %2455 = vmatprep.subr.mxu0 0.0
    %2456 = vmatpush1.msra.mxu0 %v618
    %2457 = vmatprep.subr.mxu0 0.0
    %2458 = vmatpush1.msra.mxu0 %v617
    %2459 = vmatprep.subr.mxu0 0.0
    %2460 = vmatpush1.msra.mxu0 %v616
    %2461 = vmatprep.subr.mxu0 0.0
    %2462 = vmatpush1.msra.mxu0 %v615
    %2463 = vmatprep.subr.mxu0 0.0
    %2464 = vmatpush1.msra.mxu0 %v614
    %2465 = vmatprep.subr.mxu0 0.0
    %2466 = vmatpush1.msra.mxu0 %v613
    %2467 = vmatprep.subr.mxu0 0.0
    %2468 = vmatpush1.msra.mxu0 %v612
    %2469 = vmatprep.subr.mxu0 0.0
    %2470 = vmatpush1.msra.mxu0 %v611
    %2471 = vmatprep.subr.mxu0 0.0
    %2472 = vmatpush2.msra.mxu0 %v642
    %2473 = vmatprep.subr.mxu0 0.0
    %2474 = vmatpush2.msra.mxu0 %v641
    %2475 = vmatprep.subr.mxu0 0.0
    %2476 = vmatpush2.msra.mxu0 %v640
    %2477 = vmatprep.subr.mxu0 0.0
    %2478 = vmatpush2.msra.mxu0 %v639
    %2479 = vmatprep.subr.mxu0 0.0
    %2480 = vmatpush2.msra.mxu0 %v638
    %2481 = vmatprep.subr.mxu0 0.0
    %2482 = vmatpush2.msra.mxu0 %v637
    %2483 = vmatprep.subr.mxu0 0.0
    %2484 = vmatpush2.msra.mxu0 %v636
    %2485 = vmatprep.subr.mxu0 0.0
    %2486 = vmatpush2.msra.mxu0 %v635
    %2487 = vmatprep.subr.mxu0 0.0
    %2488 = vmatpush2.msra.mxu0 %v634
    %2489 = vmatprep.subr.mxu0 0.0
    %2490 = vmatpush2.msra.mxu0 %v633
    %2491 = vmatprep.subr.mxu0 0.0
    %2492 = vmatpush2.msra.mxu0 %v632
    %2493 = vmatprep.subr.mxu0 0.0
    %2494 = vmatpush2.msra.mxu0 %v631
    %2495 = vmatprep.subr.mxu0 0.0
    %2496 = vmatpush2.msra.mxu0 %v630
    %2497 = vmatprep.subr.mxu0 0.0
    %2498 = vmatpush2.msra.mxu0 %v629
    %2499 = vmatprep.subr.mxu0 0.0
    %2500 = vmatpush2.msra.mxu0 %v628
    %2501 = vmatprep.subr.mxu0 0.0
    %2502 = vmatpush2.msra.mxu0 %v627
    %2503 = vmatprep.mubr.f32.mxu0 %v1064
    %2504 = vmatmul.mubr.f32.gmra.mxu0 %v1056
    %v2505 = vpop.f32.mrf.mxu0
    %v2506 = vadd.f32 %v2436, %v2505
    %v2507 = vpop.f32.mrf.mxu0
    %2508 = vdwg.mxu0
    %2509 = vmatprep.subr.mxu0 0.0
    %2510 = vmatpush1.msra.mxu0 %v658
    %2511 = vmatprep.subr.mxu0 0.0
    %2512 = vmatpush1.msra.mxu0 %v657
    %2513 = vmatprep.subr.mxu0 0.0
    %2514 = vmatpush1.msra.mxu0 %v656
    %2515 = vmatprep.subr.mxu0 0.0
    %2516 = vmatpush1.msra.mxu0 %v655
    %2517 = vmatprep.subr.mxu0 0.0
    %2518 = vmatpush1.msra.mxu0 %v654
    %2519 = vmatprep.subr.mxu0 0.0
    %2520 = vmatpush1.msra.mxu0 %v653
    %2521 = vmatprep.subr.mxu0 0.0
    %2522 = vmatpush1.msra.mxu0 %v652
    %2523 = vmatprep.subr.mxu0 0.0
    %2524 = vmatpush1.msra.mxu0 %v651
    %2525 = vmatprep.subr.mxu0 0.0
    %2526 = vmatpush1.msra.mxu0 %v650
    %2527 = vmatprep.subr.mxu0 0.0
    %2528 = vmatpush1.msra.mxu0 %v649
    %2529 = vmatprep.subr.mxu0 0.0
    %2530 = vmatpush1.msra.mxu0 %v648
    %2531 = vmatprep.subr.mxu0 0.0
    %2532 = vmatpush1.msra.mxu0 %v647
    %2533 = vmatprep.subr.mxu0 0.0
    %2534 = vmatpush1.msra.mxu0 %v646
    %2535 = vmatprep.subr.mxu0 0.0
    %2536 = vmatpush1.msra.mxu0 %v645
    %2537 = vmatprep.subr.mxu0 0.0
    %2538 = vmatpush1.msra.mxu0 %v644
    %2539 = vmatprep.subr.mxu0 0.0
    %2540 = vmatpush1.msra.mxu0 %v643
    %2541 = vmatprep.subr.mxu0 0.0
    %2542 = vmatpush2.msra.mxu0 %v674
    %2543 = vmatprep.subr.mxu0 0.0
    %2544 = vmatpush2.msra.mxu0 %v673
    %2545 = vmatprep.subr.mxu0 0.0
    %2546 = vmatpush2.msra.mxu0 %v672
    %2547 = vmatprep.subr.mxu0 0.0
    %2548 = vmatpush2.msra.mxu0 %v671
    %2549 = vmatprep.subr.mxu0 0.0
    %2550 = vmatpush2.msra.mxu0 %v670
    %2551 = vmatprep.subr.mxu0 0.0
    %2552 = vmatpush2.msra.mxu0 %v669
    %2553 = vmatprep.subr.mxu0 0.0
    %2554 = vmatpush2.msra.mxu0 %v668
    %2555 = vmatprep.subr.mxu0 0.0
    %2556 = vmatpush2.msra.mxu0 %v667
    %2557 = vmatprep.subr.mxu0 0.0
    %2558 = vmatpush2.msra.mxu0 %v666
    %2559 = vmatprep.subr.mxu0 0.0
    %2560 = vmatpush2.msra.mxu0 %v665
    %2561 = vmatprep.subr.mxu0 0.0
    %2562 = vmatpush2.msra.mxu0 %v664
    %2563 = vmatprep.subr.mxu0 0.0
    %2564 = vmatpush2.msra.mxu0 %v663
    %2565 = vmatprep.subr.mxu0 0.0
    %2566 = vmatpush2.msra.mxu0 %v662
    %2567 = vmatprep.subr.mxu0 0.0
    %2568 = vmatpush2.msra.mxu0 %v661
    %2569 = vmatprep.subr.mxu0 0.0
    %2570 = vmatpush2.msra.mxu0 %v660
    %2571 = vmatprep.subr.mxu0 0.0
    %2572 = vmatpush2.msra.mxu0 %v659
    %2573 = vmatprep.mubr.f32.mxu0 %v1065
    %2574 = vmatmul.mubr.f32.gmra.mxu0 %v1063
    %v2575 = vpop.f32.mrf.mxu0
    %v2576 = vadd.f32 %v2506, %v2575
    %v2577 = vpop.f32.mrf.mxu0
    %2578 = vdwg.mxu0
    %2579 = vmatprep.subr.mxu0 0.0
    %2580 = vmatpush1.msra.mxu0 %v690
    %2581 = vmatprep.subr.mxu0 0.0
    %2582 = vmatpush1.msra.mxu0 %v689
    %2583 = vmatprep.subr.mxu0 0.0
    %2584 = vmatpush1.msra.mxu0 %v688
    %2585 = vmatprep.subr.mxu0 0.0
    %2586 = vmatpush1.msra.mxu0 %v687
    %2587 = vmatprep.subr.mxu0 0.0
    %2588 = vmatpush1.msra.mxu0 %v686
    %2589 = vmatprep.subr.mxu0 0.0
    %2590 = vmatpush1.msra.mxu0 %v685
    %2591 = vmatprep.subr.mxu0 0.0
    %2592 = vmatpush1.msra.mxu0 %v684
    %2593 = vmatprep.subr.mxu0 0.0
    %2594 = vmatpush1.msra.mxu0 %v683
    %2595 = vmatprep.subr.mxu0 0.0
    %2596 = vmatpush1.msra.mxu0 %v682
    %2597 = vmatprep.subr.mxu0 0.0
    %2598 = vmatpush1.msra.mxu0 %v681
    %2599 = vmatprep.subr.mxu0 0.0
    %2600 = vmatpush1.msra.mxu0 %v680
    %2601 = vmatprep.subr.mxu0 0.0
    %2602 = vmatpush1.msra.mxu0 %v679
    %2603 = vmatprep.subr.mxu0 0.0
    %2604 = vmatpush1.msra.mxu0 %v678
    %2605 = vmatprep.subr.mxu0 0.0
    %2606 = vmatpush1.msra.mxu0 %v677
    %2607 = vmatprep.subr.mxu0 0.0
    %2608 = vmatpush1.msra.mxu0 %v676
    %2609 = vmatprep.subr.mxu0 0.0
    %2610 = vmatpush1.msra.mxu0 %v675
    %2611 = vmatprep.subr.mxu0 0.0
    %2612 = vmatpush2.msra.mxu0 %v706
    %2613 = vmatprep.subr.mxu0 0.0
    %2614 = vmatpush2.msra.mxu0 %v705
    %2615 = vmatprep.subr.mxu0 0.0
    %2616 = vmatpush2.msra.mxu0 %v704
    %2617 = vmatprep.subr.mxu0 0.0
    %2618 = vmatpush2.msra.mxu0 %v703
    %2619 = vmatprep.subr.mxu0 0.0
    %2620 = vmatpush2.msra.mxu0 %v702
    %2621 = vmatprep.subr.mxu0 0.0
    %2622 = vmatpush2.msra.mxu0 %v701
    %2623 = vmatprep.subr.mxu0 0.0
    %2624 = vmatpush2.msra.mxu0 %v700
    %2625 = vmatprep.subr.mxu0 0.0
    %2626 = vmatpush2.msra.mxu0 %v699
    %2627 = vmatprep.subr.mxu0 0.0
    %2628 = vmatpush2.msra.mxu0 %v698
    %2629 = vmatprep.subr.mxu0 0.0
    %2630 = vmatpush2.msra.mxu0 %v697
    %2631 = vmatprep.subr.mxu0 0.0
    %2632 = vmatpush2.msra.mxu0 %v696
    %2633 = vmatprep.subr.mxu0 0.0
    %2634 = vmatpush2.msra.mxu0 %v695
    %2635 = vmatprep.subr.mxu0 0.0
    %2636 = vmatpush2.msra.mxu0 %v694
    %2637 = vmatprep.subr.mxu0 0.0
    %2638 = vmatpush2.msra.mxu0 %v693
    %2639 = vmatprep.subr.mxu0 0.0
    %2640 = vmatpush2.msra.mxu0 %v692
    %2641 = vmatprep.subr.mxu0 0.0
    %2642 = vmatpush2.msra.mxu0 %v691
    %2643 = vmatprep.mubr.f32.mxu0 %v1081
    %2644 = vmatmul.mubr.f32.gmra.mxu0 %v1073
    %v2645 = vpop.f32.mrf.mxu0
    %v2646 = vadd.f32 %v2576, %v2645
    %v2647 = vpop.f32.mrf.mxu0
    %2648 = vdwg.mxu0
    %2649 = vmatprep.subr.mxu0 0.0
    %2650 = vmatpush1.msra.mxu0 %v722
    %2651 = vmatprep.subr.mxu0 0.0
    %2652 = vmatpush1.msra.mxu0 %v721
    %2653 = vmatprep.subr.mxu0 0.0
    %2654 = vmatpush1.msra.mxu0 %v720
    %2655 = vmatprep.subr.mxu0 0.0
    %2656 = vmatpush1.msra.mxu0 %v719
    %2657 = vmatprep.subr.mxu0 0.0
    %2658 = vmatpush1.msra.mxu0 %v718
    %2659 = vmatprep.subr.mxu0 0.0
    %2660 = vmatpush1.msra.mxu0 %v717
    %2661 = vmatprep.subr.mxu0 0.0
    %2662 = vmatpush1.msra.mxu0 %v716
    %2663 = vmatprep.subr.mxu0 0.0
    %2664 = vmatpush1.msra.mxu0 %v715
    %2665 = vmatprep.subr.mxu0 0.0
    %2666 = vmatpush1.msra.mxu0 %v714
    %2667 = vmatprep.subr.mxu0 0.0
    %2668 = vmatpush1.msra.mxu0 %v713
    %2669 = vmatprep.subr.mxu0 0.0
    %2670 = vmatpush1.msra.mxu0 %v712
    %2671 = vmatprep.subr.mxu0 0.0
    %2672 = vmatpush1.msra.mxu0 %v711
    %2673 = vmatprep.subr.mxu0 0.0
    %2674 = vmatpush1.msra.mxu0 %v710
    %2675 = vmatprep.subr.mxu0 0.0
    %2676 = vmatpush1.msra.mxu0 %v709
    %2677 = vmatprep.subr.mxu0 0.0
    %2678 = vmatpush1.msra.mxu0 %v708
    %2679 = vmatprep.subr.mxu0 0.0
    %2680 = vmatpush1.msra.mxu0 %v707
    %2681 = vmatprep.subr.mxu0 0.0
    %2682 = vmatpush2.msra.mxu0 %v738
    %2683 = vmatprep.subr.mxu0 0.0
    %2684 = vmatpush2.msra.mxu0 %v737
    %2685 = vmatprep.subr.mxu0 0.0
    %2686 = vmatpush2.msra.mxu0 %v736
    %2687 = vmatprep.subr.mxu0 0.0
    %2688 = vmatpush2.msra.mxu0 %v735
    %2689 = vmatprep.subr.mxu0 0.0
    %2690 = vmatpush2.msra.mxu0 %v734
    %2691 = vmatprep.subr.mxu0 0.0
    %2692 = vmatpush2.msra.mxu0 %v733
    %2693 = vmatprep.subr.mxu0 0.0
    %2694 = vmatpush2.msra.mxu0 %v732
    %2695 = vmatprep.subr.mxu0 0.0
    %2696 = vmatpush2.msra.mxu0 %v731
    %2697 = vmatprep.subr.mxu0 0.0
    %2698 = vmatpush2.msra.mxu0 %v730
    %2699 = vmatprep.subr.mxu0 0.0
    %2700 = vmatpush2.msra.mxu0 %v729
    %2701 = vmatprep.subr.mxu0 0.0
    %2702 = vmatpush2.msra.mxu0 %v728
    %2703 = vmatprep.subr.mxu0 0.0
    %2704 = vmatpush2.msra.mxu0 %v727
    %2705 = vmatprep.subr.mxu0 0.0
    %2706 = vmatpush2.msra.mxu0 %v726
    %2707 = vmatprep.subr.mxu0 0.0
    %2708 = vmatpush2.msra.mxu0 %v725
    %2709 = vmatprep.subr.mxu0 0.0
    %2710 = vmatpush2.msra.mxu0 %v724
    %2711 = vmatprep.subr.mxu0 0.0
    %2712 = vmatpush2.msra.mxu0 %v723
    %2713 = vmatprep.mubr.f32.mxu0 %v1082
    %2714 = vmatmul.mubr.f32.gmra.mxu0 %v1080
    %v2715 = vpop.f32.mrf.mxu0
    %v2716 = vadd.f32 %v2646, %v2715
    %v2717 = vpop.f32.mrf.mxu0
    %2718 = vdwg.mxu0
    %2719 = vmatprep.subr.mxu0 0.0
    %2720 = vmatpush1.msra.mxu0 %v754
    %2721 = vmatprep.subr.mxu0 0.0
    %2722 = vmatpush1.msra.mxu0 %v753
    %2723 = vmatprep.subr.mxu0 0.0
    %2724 = vmatpush1.msra.mxu0 %v752
    %2725 = vmatprep.subr.mxu0 0.0
    %2726 = vmatpush1.msra.mxu0 %v751
    %2727 = vmatprep.subr.mxu0 0.0
    %2728 = vmatpush1.msra.mxu0 %v750
    %2729 = vmatprep.subr.mxu0 0.0
    %2730 = vmatpush1.msra.mxu0 %v749
    %2731 = vmatprep.subr.mxu0 0.0
    %2732 = vmatpush1.msra.mxu0 %v748
    %2733 = vmatprep.subr.mxu0 0.0
    %2734 = vmatpush1.msra.mxu0 %v747
    %2735 = vmatprep.subr.mxu0 0.0
    %2736 = vmatpush1.msra.mxu0 %v746
    %2737 = vmatprep.subr.mxu0 0.0
    %2738 = vmatpush1.msra.mxu0 %v745
    %2739 = vmatprep.subr.mxu0 0.0
    %2740 = vmatpush1.msra.mxu0 %v744
    %2741 = vmatprep.subr.mxu0 0.0
    %2742 = vmatpush1.msra.mxu0 %v743
    %2743 = vmatprep.subr.mxu0 0.0
    %2744 = vmatpush1.msra.mxu0 %v742
    %2745 = vmatprep.subr.mxu0 0.0
    %2746 = vmatpush1.msra.mxu0 %v741
    %2747 = vmatprep.subr.mxu0 0.0
    %2748 = vmatpush1.msra.mxu0 %v740
    %2749 = vmatprep.subr.mxu0 0.0
    %2750 = vmatpush1.msra.mxu0 %v739
    %2751 = vmatprep.subr.mxu0 0.0
    %2752 = vmatpush2.msra.mxu0 %v770
    %2753 = vmatprep.subr.mxu0 0.0
    %2754 = vmatpush2.msra.mxu0 %v769
    %2755 = vmatprep.subr.mxu0 0.0
    %2756 = vmatpush2.msra.mxu0 %v768
    %2757 = vmatprep.subr.mxu0 0.0
    %2758 = vmatpush2.msra.mxu0 %v767
    %2759 = vmatprep.subr.mxu0 0.0
    %2760 = vmatpush2.msra.mxu0 %v766
    %2761 = vmatprep.subr.mxu0 0.0
    %2762 = vmatpush2.msra.mxu0 %v765
    %2763 = vmatprep.subr.mxu0 0.0
    %2764 = vmatpush2.msra.mxu0 %v764
    %2765 = vmatprep.subr.mxu0 0.0
    %2766 = vmatpush2.msra.mxu0 %v763
    %2767 = vmatprep.subr.mxu0 0.0
    %2768 = vmatpush2.msra.mxu0 %v762
    %2769 = vmatprep.subr.mxu0 0.0
    %2770 = vmatpush2.msra.mxu0 %v761
    %2771 = vmatprep.subr.mxu0 0.0
    %2772 = vmatpush2.msra.mxu0 %v760
    %2773 = vmatprep.subr.mxu0 0.0
    %2774 = vmatpush2.msra.mxu0 %v759
    %2775 = vmatprep.subr.mxu0 0.0
    %2776 = vmatpush2.msra.mxu0 %v758
    %2777 = vmatprep.subr.mxu0 0.0
    %2778 = vmatpush2.msra.mxu0 %v757
    %2779 = vmatprep.subr.mxu0 0.0
    %2780 = vmatpush2.msra.mxu0 %v756
    %2781 = vmatprep.subr.mxu0 0.0
    %2782 = vmatpush2.msra.mxu0 %v755
    %2783 = vmatprep.mubr.f32.mxu0 %v1098
    %2784 = vmatmul.mubr.f32.gmra.mxu0 %v1090
    %v2785 = vpop.f32.mrf.mxu0
    %v2786 = vadd.f32 %v2716, %v2785
    %v2787 = vpop.f32.mrf.mxu0
    %2788 = vdwg.mxu0
    %2789 = vmatprep.subr.mxu0 0.0
    %2790 = vmatpush1.msra.mxu0 %v786
    %2791 = vmatprep.subr.mxu0 0.0
    %2792 = vmatpush1.msra.mxu0 %v785
    %2793 = vmatprep.subr.mxu0 0.0
    %2794 = vmatpush1.msra.mxu0 %v784
    %2795 = vmatprep.subr.mxu0 0.0
    %2796 = vmatpush1.msra.mxu0 %v783
    %2797 = vmatprep.subr.mxu0 0.0
    %2798 = vmatpush1.msra.mxu0 %v782
    %2799 = vmatprep.subr.mxu0 0.0
    %2800 = vmatpush1.msra.mxu0 %v781
    %2801 = vmatprep.subr.mxu0 0.0
    %2802 = vmatpush1.msra.mxu0 %v780
    %2803 = vmatprep.subr.mxu0 0.0
    %2804 = vmatpush1.msra.mxu0 %v779
    %2805 = vmatprep.subr.mxu0 0.0
    %2806 = vmatpush1.msra.mxu0 %v778
    %2807 = vmatprep.subr.mxu0 0.0
    %2808 = vmatpush1.msra.mxu0 %v777
    %2809 = vmatprep.subr.mxu0 0.0
    %2810 = vmatpush1.msra.mxu0 %v776
    %2811 = vmatprep.subr.mxu0 0.0
    %2812 = vmatpush1.msra.mxu0 %v775
    %2813 = vmatprep.subr.mxu0 0.0
    %2814 = vmatpush1.msra.mxu0 %v774
    %2815 = vmatprep.subr.mxu0 0.0
    %2816 = vmatpush1.msra.mxu0 %v773
    %2817 = vmatprep.subr.mxu0 0.0
    %2818 = vmatpush1.msra.mxu0 %v772
    %2819 = vmatprep.subr.mxu0 0.0
    %2820 = vmatpush1.msra.mxu0 %v771
    %2821 = vmatprep.subr.mxu0 0.0
    %2822 = vmatpush2.msra.mxu0 %v802
    %2823 = vmatprep.subr.mxu0 0.0
    %2824 = vmatpush2.msra.mxu0 %v801
    %2825 = vmatprep.subr.mxu0 0.0
    %2826 = vmatpush2.msra.mxu0 %v800
    %2827 = vmatprep.subr.mxu0 0.0
    %2828 = vmatpush2.msra.mxu0 %v799
    %2829 = vmatprep.subr.mxu0 0.0
    %2830 = vmatpush2.msra.mxu0 %v798
    %2831 = vmatprep.subr.mxu0 0.0
    %2832 = vmatpush2.msra.mxu0 %v797
    %2833 = vmatprep.subr.mxu0 0.0
    %2834 = vmatpush2.msra.mxu0 %v796
    %2835 = vmatprep.subr.mxu0 0.0
    %2836 = vmatpush2.msra.mxu0 %v795
    %2837 = vmatprep.subr.mxu0 0.0
    %2838 = vmatpush2.msra.mxu0 %v794
    %2839 = vmatprep.subr.mxu0 0.0
    %2840 = vmatpush2.msra.mxu0 %v793
    %2841 = vmatprep.subr.mxu0 0.0
    %2842 = vmatpush2.msra.mxu0 %v792
    %2843 = vmatprep.subr.mxu0 0.0
    %2844 = vmatpush2.msra.mxu0 %v791
    %2845 = vmatprep.subr.mxu0 0.0
    %2846 = vmatpush2.msra.mxu0 %v790
    %2847 = vmatprep.subr.mxu0 0.0
    %2848 = vmatpush2.msra.mxu0 %v789
    %2849 = vmatprep.subr.mxu0 0.0
    %2850 = vmatpush2.msra.mxu0 %v788
    %2851 = vmatprep.subr.mxu0 0.0
    %2852 = vmatpush2.msra.mxu0 %v787
    %2853 = vmatprep.mubr.f32.mxu0 %v1099
    %2854 = vmatmul.mubr.f32.gmra.mxu0 %v1097
    %v2855 = vpop.f32.mrf.mxu0
    %v2856 = vadd.f32 %v2786, %v2855
    %v2857 = vpop.f32.mrf.mxu0
    %2858 = vdwg.mxu0
    %2859 = vmatprep.subr.mxu0 0.0
    %2860 = vmatpush1.msra.mxu0 %v818
    %2861 = vmatprep.subr.mxu0 0.0
    %2862 = vmatpush1.msra.mxu0 %v817
    %2863 = vmatprep.subr.mxu0 0.0
    %2864 = vmatpush1.msra.mxu0 %v816
    %2865 = vmatprep.subr.mxu0 0.0
    %2866 = vmatpush1.msra.mxu0 %v815
    %2867 = vmatprep.subr.mxu0 0.0
    %2868 = vmatpush1.msra.mxu0 %v814
    %2869 = vmatprep.subr.mxu0 0.0
    %2870 = vmatpush1.msra.mxu0 %v813
    %2871 = vmatprep.subr.mxu0 0.0
    %2872 = vmatpush1.msra.mxu0 %v812
    %2873 = vmatprep.subr.mxu0 0.0
    %2874 = vmatpush1.msra.mxu0 %v811
    %2875 = vmatprep.subr.mxu0 0.0
    %2876 = vmatpush1.msra.mxu0 %v810
    %2877 = vmatprep.subr.mxu0 0.0
    %2878 = vmatpush1.msra.mxu0 %v809
    %2879 = vmatprep.subr.mxu0 0.0
    %2880 = vmatpush1.msra.mxu0 %v808
    %2881 = vmatprep.subr.mxu0 0.0
    %2882 = vmatpush1.msra.mxu0 %v807
    %2883 = vmatprep.subr.mxu0 0.0
    %2884 = vmatpush1.msra.mxu0 %v806
    %2885 = vmatprep.subr.mxu0 0.0
    %2886 = vmatpush1.msra.mxu0 %v805
    %2887 = vmatprep.subr.mxu0 0.0
    %2888 = vmatpush1.msra.mxu0 %v804
    %2889 = vmatprep.subr.mxu0 0.0
    %2890 = vmatpush1.msra.mxu0 %v803
    %2891 = vmatprep.subr.mxu0 0.0
    %2892 = vmatpush2.msra.mxu0 %v834
    %2893 = vmatprep.subr.mxu0 0.0
    %2894 = vmatpush2.msra.mxu0 %v833
    %2895 = vmatprep.subr.mxu0 0.0
    %2896 = vmatpush2.msra.mxu0 %v832
    %2897 = vmatprep.subr.mxu0 0.0
    %2898 = vmatpush2.msra.mxu0 %v831
    %2899 = vmatprep.subr.mxu0 0.0
    %2900 = vmatpush2.msra.mxu0 %v830
    %2901 = vmatprep.subr.mxu0 0.0
    %2902 = vmatpush2.msra.mxu0 %v829
    %2903 = vmatprep.subr.mxu0 0.0
    %2904 = vmatpush2.msra.mxu0 %v828
    %2905 = vmatprep.subr.mxu0 0.0
    %2906 = vmatpush2.msra.mxu0 %v827
    %2907 = vmatprep.subr.mxu0 0.0
    %2908 = vmatpush2.msra.mxu0 %v826
    %2909 = vmatprep.subr.mxu0 0.0
    %2910 = vmatpush2.msra.mxu0 %v825
    %2911 = vmatprep.subr.mxu0 0.0
    %2912 = vmatpush2.msra.mxu0 %v824
    %2913 = vmatprep.subr.mxu0 0.0
    %2914 = vmatpush2.msra.mxu0 %v823
    %2915 = vmatprep.subr.mxu0 0.0
    %2916 = vmatpush2.msra.mxu0 %v822
    %2917 = vmatprep.subr.mxu0 0.0
    %2918 = vmatpush2.msra.mxu0 %v821
    %2919 = vmatprep.subr.mxu0 0.0
    %2920 = vmatpush2.msra.mxu0 %v820
    %2921 = vmatprep.subr.mxu0 0.0
    %2922 = vmatpush2.msra.mxu0 %v819
    %2923 = vmatprep.mubr.f32.mxu0 %v1115
    %2924 = vmatmul.mubr.f32.gmra.mxu0 %v1107
    %v2925 = vpop.f32.mrf.mxu0
    %v2926 = vadd.f32 %v2856, %v2925
    %v2927 = vpop.f32.mrf.mxu0
    %2928 = vdwg.mxu0
    %2929 = vmatprep.subr.mxu0 0.0
    %2930 = vmatpush1.msra.mxu0 %v850
    %2931 = vmatprep.subr.mxu0 0.0
    %2932 = vmatpush1.msra.mxu0 %v849
    %2933 = vmatprep.subr.mxu0 0.0
    %2934 = vmatpush1.msra.mxu0 %v848
    %2935 = vmatprep.subr.mxu0 0.0
    %2936 = vmatpush1.msra.mxu0 %v847
    %2937 = vmatprep.subr.mxu0 0.0
    %2938 = vmatpush1.msra.mxu0 %v846
    %2939 = vmatprep.subr.mxu0 0.0
    %2940 = vmatpush1.msra.mxu0 %v845
    %2941 = vmatprep.subr.mxu0 0.0
    %2942 = vmatpush1.msra.mxu0 %v844
    %2943 = vmatprep.subr.mxu0 0.0
    %2944 = vmatpush1.msra.mxu0 %v843
    %2945 = vmatprep.subr.mxu0 0.0
    %2946 = vmatpush1.msra.mxu0 %v842
    %2947 = vmatprep.subr.mxu0 0.0
    %2948 = vmatpush1.msra.mxu0 %v841
    %2949 = vmatprep.subr.mxu0 0.0
    %2950 = vmatpush1.msra.mxu0 %v840
    %2951 = vmatprep.subr.mxu0 0.0
    %2952 = vmatpush1.msra.mxu0 %v839
    %2953 = vmatprep.subr.mxu0 0.0
    %2954 = vmatpush1.msra.mxu0 %v838
    %2955 = vmatprep.subr.mxu0 0.0
    %2956 = vmatpush1.msra.mxu0 %v837
    %2957 = vmatprep.subr.mxu0 0.0
    %2958 = vmatpush1.msra.mxu0 %v836
    %2959 = vmatprep.subr.mxu0 0.0
    %2960 = vmatpush1.msra.mxu0 %v835
    %2961 = vmatprep.subr.mxu0 0.0
    %2962 = vmatpush2.msra.mxu0 %v866
    %2963 = vmatprep.subr.mxu0 0.0
    %2964 = vmatpush2.msra.mxu0 %v865
    %2965 = vmatprep.subr.mxu0 0.0
    %2966 = vmatpush2.msra.mxu0 %v864
    %2967 = vmatprep.subr.mxu0 0.0
    %2968 = vmatpush2.msra.mxu0 %v863
    %2969 = vmatprep.subr.mxu0 0.0
    %2970 = vmatpush2.msra.mxu0 %v862
    %2971 = vmatprep.subr.mxu0 0.0
    %2972 = vmatpush2.msra.mxu0 %v861
    %2973 = vmatprep.subr.mxu0 0.0
    %2974 = vmatpush2.msra.mxu0 %v860
    %2975 = vmatprep.subr.mxu0 0.0
    %2976 = vmatpush2.msra.mxu0 %v859
    %2977 = vmatprep.subr.mxu0 0.0
    %2978 = vmatpush2.msra.mxu0 %v858
    %2979 = vmatprep.subr.mxu0 0.0
    %2980 = vmatpush2.msra.mxu0 %v857
    %2981 = vmatprep.subr.mxu0 0.0
    %2982 = vmatpush2.msra.mxu0 %v856
    %2983 = vmatprep.subr.mxu0 0.0
    %2984 = vmatpush2.msra.mxu0 %v855
    %2985 = vmatprep.subr.mxu0 0.0
    %2986 = vmatpush2.msra.mxu0 %v854
    %2987 = vmatprep.subr.mxu0 0.0
    %2988 = vmatpush2.msra.mxu0 %v853
    %2989 = vmatprep.subr.mxu0 0.0
    %2990 = vmatpush2.msra.mxu0 %v852
    %2991 = vmatprep.subr.mxu0 0.0
    %2992 = vmatpush2.msra.mxu0 %v851
    %2993 = vmatprep.mubr.f32.mxu0 %v1116
    %2994 = vmatmul.mubr.f32.gmra.mxu0 %v1114
    %v2995 = vpop.f32.mrf.mxu0
    %v2996 = vadd.f32 %v2926, %v2995
    %v2997 = vpop.f32.mrf.mxu0
    %2998 = vdwg.mxu0
    %2999 = vmatprep.subr.mxu0 0.0
    %3000 = vmatpush1.msra.mxu0 0.0
    %3001 = vmatprep.subr.mxu0 0.0
    %3002 = vmatpush1.msra.mxu0 0.0
    %3003 = vmatprep.subr.mxu0 0.0
    %3004 = vmatpush1.msra.mxu0 0.0
    %3005 = vmatprep.subr.mxu0 0.0
    %3006 = vmatpush1.msra.mxu0 0.0
    %3007 = vmatprep.subr.mxu0 0.0
    %3008 = vmatpush1.msra.mxu0 0.0
    %3009 = vmatprep.subr.mxu0 0.0
    %3010 = vmatpush1.msra.mxu0 0.0
    %3011 = vmatprep.subr.mxu0 0.0
    %3012 = vmatpush1.msra.mxu0 0.0
    %3013 = vmatprep.subr.mxu0 0.0
    %3014 = vmatpush1.msra.mxu0 0.0
    %3015 = vmatprep.subr.mxu0 0.0
    %3016 = vmatpush1.msra.mxu0 %v874
    %3017 = vmatprep.subr.mxu0 0.0
    %3018 = vmatpush1.msra.mxu0 %v873
    %3019 = vmatprep.subr.mxu0 0.0
    %3020 = vmatpush1.msra.mxu0 %v872
    %3021 = vmatprep.subr.mxu0 0.0
    %3022 = vmatpush1.msra.mxu0 %v871
    %3023 = vmatprep.subr.mxu0 0.0
    %3024 = vmatpush1.msra.mxu0 %v870
    %3025 = vmatprep.subr.mxu0 0.0
    %3026 = vmatpush1.msra.mxu0 %v869
    %3027 = vmatprep.subr.mxu0 0.0
    %3028 = vmatpush1.msra.mxu0 %v868
    %3029 = vmatprep.subr.mxu0 0.0
    %3030 = vmatpush1.msra.mxu0 %v867
    %3031 = vmatprep.subr.mxu0 0.0
    %3032 = vmatpush2.msra.mxu0 0.0
    %3033 = vmatprep.subr.mxu0 0.0
    %3034 = vmatpush2.msra.mxu0 0.0
    %3035 = vmatprep.subr.mxu0 0.0
    %3036 = vmatpush2.msra.mxu0 0.0
    %3037 = vmatprep.subr.mxu0 0.0
    %3038 = vmatpush2.msra.mxu0 0.0
    %3039 = vmatprep.subr.mxu0 0.0
    %3040 = vmatpush2.msra.mxu0 0.0
    %3041 = vmatprep.subr.mxu0 0.0
    %3042 = vmatpush2.msra.mxu0 0.0
    %3043 = vmatprep.subr.mxu0 0.0
    %3044 = vmatpush2.msra.mxu0 0.0
    %3045 = vmatprep.subr.mxu0 0.0
    %3046 = vmatpush2.msra.mxu0 0.0
    %3047 = vmatprep.subr.mxu0 0.0
    %3048 = vmatpush2.msra.mxu0 0.0
    %3049 = vmatprep.subr.mxu0 0.0
    %3050 = vmatpush2.msra.mxu0 0.0
    %3051 = vmatprep.subr.mxu0 0.0
    %3052 = vmatpush2.msra.mxu0 0.0
    %3053 = vmatprep.subr.mxu0 0.0
    %3054 = vmatpush2.msra.mxu0 0.0
    %3055 = vmatprep.subr.mxu0 0.0
    %3056 = vmatpush2.msra.mxu0 0.0
    %3057 = vmatprep.subr.mxu0 0.0
    %3058 = vmatpush2.msra.mxu0 0.0
    %3059 = vmatprep.subr.mxu0 0.0
    %3060 = vmatpush2.msra.mxu0 0.0
    %3061 = vmatprep.subr.mxu0 0.0
    %3062 = vmatpush2.msra.mxu0 0.0
    %3063 = vmatprep.mubr.f32.mxu0 0.0
    %3064 = vmatmul.mubr.f32.gmra.mxu0 %v1177
    %v3065 = vpop.f32.mrf.mxu0
    %v3066 = vadd.f32 %v2996, %v3065
    %v3067 = vpop.f32.mrf.mxu0
    %3068 = vdwg.mxu0
    %v3069 = vtanh.pop %v3066
    %v3070 = vld [vmem:[%s3] sm:$0xff]
    %v3071 = vld [vmem:[%s3 + $0x8] sm:$0xff]
    %v3072 = vld [vmem:[%s3 + $0x10] sm:$0xff]
    %v3073 = vld [vmem:[%s3 + $0x18] sm:$0xff]
    %v3074 = vld [vmem:[%s3 + $0x20] sm:$0xff]
    %v3075 = vld [vmem:[%s3 + $0x28] sm:$0xff]
    %v3076 = vld [vmem:[%s3 + $0x30] sm:$0xff]
    %v3077 = vld [vmem:[%s3 + $0x38] sm:$0xff]
    %v3078 = vld [vmem:[%s3 + $0x40] sm:$0xff]
    %v3079 = vld [vmem:[%s3 + $0x48] sm:$0xff]
    %v3080 = vld [vmem:[%s3 + $0x50] sm:$0xff]
    %v3081 = vld [vmem:[%s3 + $0x58] sm:$0xff]
    %v3082 = vld [vmem:[%s3 + $0x60] sm:$0xf]
    %v3083 = vld [vmem:[%s4] sm:$0x1]
    %v3085 = vlaneseq
    %v3086 = vshrl.u32 %v3085, 7
    %v3087 = vsub.s32 0, %v3086
    %v3088 = vrot.slane %v3083, %v3087
    %vm3090 = vcmask 818176
    %v3092 = vsel %vm3090, %v3069, 0
    %vm3094 = vcmask 1043456
    %v3096 = vsel %vm3094, %v3082, 0
    %3098 = vmatprep.subr.mxu0 0.0
    %3099 = vmatpush1.msra.mxu0 0.0
    %3100 = vmatprep.subr.mxu0 0.0
    %3101 = vmatpush1.msra.mxu0 0.0
    %3102 = vmatprep.subr.mxu0 0.0
    %3103 = vmatpush1.msra.mxu0 0.0
    %3104 = vmatprep.subr.mxu0 0.0
    %3105 = vmatpush1.msra.mxu0 %v3096
    %3106 = vmatprep.subr.mxu0 0.0
    %3107 = vmatpush1.msra.mxu0 %v3081
    %3108 = vmatprep.subr.mxu0 0.0
    %3109 = vmatpush1.msra.mxu0 %v3080
    %3110 = vmatprep.subr.mxu0 0.0
    %3111 = vmatpush1.msra.mxu0 %v3079
    %3112 = vmatprep.subr.mxu0 0.0
    %3113 = vmatpush1.msra.mxu0 %v3078
    %3114 = vmatprep.subr.mxu0 0.0
    %3115 = vmatpush1.msra.mxu0 %v3077
    %3116 = vmatprep.subr.mxu0 0.0
    %3117 = vmatpush1.msra.mxu0 %v3076
    %3118 = vmatprep.subr.mxu0 0.0
    %3119 = vmatpush1.msra.mxu0 %v3075
    %3120 = vmatprep.subr.mxu0 0.0
    %3121 = vmatpush1.msra.mxu0 %v3074
    %3122 = vmatprep.subr.mxu0 0.0
    %3123 = vmatpush1.msra.mxu0 %v3073
    %3124 = vmatprep.subr.mxu0 0.0
    %3125 = vmatpush1.msra.mxu0 %v3072
    %3126 = vmatprep.subr.mxu0 0.0
    %3127 = vmatpush1.msra.mxu0 %v3071
    %3128 = vmatprep.subr.mxu0 0.0
    %3129 = vmatpush1.msra.mxu0 %v3070
    %3130 = vmatprep.subr.mxu0 0.0
    %3131 = vmatpush2.msra.mxu0 0.0
    %3132 = vmatprep.subr.mxu0 0.0
    %3133 = vmatpush2.msra.mxu0 0.0
    %3134 = vmatprep.subr.mxu0 0.0
    %3135 = vmatpush2.msra.mxu0 0.0
    %3136 = vmatprep.subr.mxu0 0.0
    %3137 = vmatpush2.msra.mxu0 0.0
    %3138 = vmatprep.subr.mxu0 0.0
    %3139 = vmatpush2.msra.mxu0 0.0
    %3140 = vmatprep.subr.mxu0 0.0
    %3141 = vmatpush2.msra.mxu0 0.0
    %3142 = vmatprep.subr.mxu0 0.0
    %3143 = vmatpush2.msra.mxu0 0.0
    %3144 = vmatprep.subr.mxu0 0.0
    %3145 = vmatpush2.msra.mxu0 0.0
    %3146 = vmatprep.subr.mxu0 0.0
    %3147 = vmatpush2.msra.mxu0 0.0
    %3148 = vmatprep.subr.mxu0 0.0
    %3149 = vmatpush2.msra.mxu0 0.0
    %3150 = vmatprep.subr.mxu0 0.0
    %3151 = vmatpush2.msra.mxu0 0.0
    %3152 = vmatprep.subr.mxu0 0.0
    %3153 = vmatpush2.msra.mxu0 0.0
    %3154 = vmatprep.subr.mxu0 0.0
    %3155 = vmatpush2.msra.mxu0 0.0
    %3156 = vmatprep.subr.mxu0 0.0
    %3157 = vmatpush2.msra.mxu0 0.0
    %3158 = vmatprep.subr.mxu0 0.0
    %3159 = vmatpush2.msra.mxu0 0.0
    %3160 = vmatprep.subr.mxu0 0.0
    %3161 = vmatpush2.msra.mxu0 0.0
    %3162 = vmatprep.mubr.f32.mxu0 0.0
    %3163 = vmatmul.mubr.f32.gmra.mxu0 %v3092
    %v3164 = vpop.f32.mrf.mxu0
    %v3165 = vadd.f32 %v3088, %v3164
    %v3166 = vpop.f32.mrf.mxu0
    %3167 = vdwg.mxu0
    %vm3168 = vcmask 74752
    %3169 = vst.msk [vmem:[#allocation2] sm:$0x3] %vm3168, %v3165
    // Predicated region
    $region22: #{model_forward.3} parent=1 // pred_check
      _
    $region23: #{model_forward.3} parent=1 // pred_check_branch
      %3171 = sbr.rel (0) target = $region25
    $region24: #{model_forward.3} parent=1 // pred_region
      %s3173 = ssub.s32 32, 32
      %3174 = vsyncadd [#allocation3], %s3173
      %s3176 = sshll.u32 [#allocation2], 4
      %s3177 = int_to_ptr.vmem [resolvable:$true] %s3176
      %3179 = dma.vmem_to_hbm [thread:$0]  %s3177, 32, %s5, [#allocation3]
    $region25: #{model_forward.3} parent=1 // pred_fallthru
      _
    // Predicated region
    $region26: #{model_forward.3} parent=1 // pred_check
      _
    $region27: #{model_forward.3} parent=1 // pred_check_branch
      %3181 = sbr.rel (0) target = $region29
    $region28: #{model_forward.3} parent=1 // pred_region
      %3182 = dma.done [#allocation3], 32
    $region29: #{model_forward.3} parent=1 // pred_fallthru
      _
    %3183 = vsyncpa [#allocation3], 1

</llo_original>
